<compile_context>
chip_gen: v7x
topology: tpu7x:2x2x1
jax: 0.10.0
libtpu: 0.0.40
codegen_flags: <defaults>
</compile_context>

<pallas_src>
import numpy as np
import jax
import jax.numpy as jnp
from jax import lax
from jax.experimental import pallas as pl
from jax.experimental.pallas import tpu as pltpu

# Small, module-consistent shapes (module defaults are N=4, N_h=128; we use a
# smaller hidden size to keep the example tiny).
N = 4                 # spatial extent of the 3-D grid
N_H = 32              # hidden channels (C)
B = 2                 # batch
D_IN = 1024           # Linear input features (fixed by the module)
S = N * N * N         # 64 spatial positions
P = B * S             # 128 positions == exactly one full vreg lane row
G = S * N_H           # 2048 linear features per gate (torch order: c*S + s)
COL_TILE = 1536       # kernel-1 column tile: 4 even grid steps, 3 MiB bf16 block

assert P == 128, "lane-roll im2col assumes the state fits one 128-lane row"
assert (3 * G) % COL_TILE == 0 and ((3 * G) // COL_TILE) % 2 == 0

# 3x3x3 neighbourhood, row-major (dz, dy, dx), and the lane offset of each tap
# in the flattened position index p = b*S + z*N*N + y*N + x.
_TAPS = [(dz, dy, dx) for dz in range(3) for dy in range(3) for dx in range(3)]
_OFFS = [(dz - 1) * N * N + (dy - 1) * N + (dx - 1) for dz, dy, dx in _TAPS]


def _make_masks():
    """[27, P] f32 validity mask for every tap at every position (zero-pad).

    The mask kills both spatially out-of-bounds taps and lanes that a cyclic
    roll wrapped across the batch boundary, so a pure 128-lane rotation is a
    correct im2col gather for this layout.
    """
    pos = np.arange(P)
    s = pos % S
    z, y, x = s // (N * N), (s // N) % N, s % N
    m = np.zeros((27, P), np.float32)
    for k, (dz, dy, dx) in enumerate(_TAPS):
        ok = ((z + dz - 1 >= 0) & (z + dz - 1 < N) &
              (y + dy - 1 >= 0) & (y + dy - 1 < N) &
              (x + dx - 1 >= 0) & (x + dx - 1 < N))
        m[k] = ok.astype(np.float32)
    return jnp.asarray(m)


# --------------------- pltpu.roll direction calibration -----------------------
def _probe_roll():
    """Check pltpu.roll lowers on this build and learn its rotation direction."""
    try:
        def k(x_ref, o_ref):
            o_ref[...] = pltpu.roll(x_ref[...], shift=1, axis=1)
        x = jnp.tile(jnp.arange(P, dtype=jnp.float32)[None, :], (8, 1))
        y = np.asarray(pl.pallas_call(
            k, out_shape=jax.ShapeDtypeStruct((8, P), jnp.float32))(x))
        xn = np.asarray(x)
        if np.array_equal(y, np.roll(xn, 1, axis=1)):
            return True, True      # numpy-style: out[p] = in[(p - shift) % P]
        if np.array_equal(y, np.roll(xn, -1, axis=1)):
            return True, False     # opposite:    out[p] = in[(p + shift) % P]
    except Exception:              # roll unavailable -> safe fallback
        pass
    return False, True


_USE_ROLL, _ROLL_IS_NUMPY = _probe_roll()


def _lane_roll_left(v, off):
    """out[:, p] = v[:, (p + off) % P]; wrapped lanes are masked by the caller."""
    k = off % P
    if k == 0:
        return v
    if _USE_ROLL:
        return pltpu.roll(v, shift=(P - k) if _ROLL_IS_NUMPY else k, axis=1)
    # Fallback: explicit slice+concat (correct everywhere, a bit more copy traffic).
    return jnp.concatenate([v[:, k:], v[:, :k]], axis=1)


# ------------- kernel 1: the three nn.Linear layers fused (x @ W + b) ---------
def _linear_kernel(x_ref, w_ref, b_ref, o_ref):
    o_ref[...] = (
        jnp.dot(x_ref[...], w_ref[...], preferred_element_type=jnp.float32)
        + b_ref[...]
    )


def _linear_all_gates(x_bf16, w_all, b_all):
    # x_bf16: [B, 1024] bf16, w_all: [1024, 3*G] bf16, b_all: [1, 3*G] f32.
    b = x_bf16.shape[0]
    n_cols = w_all.shape[1]
    n_tiles = n_cols // COL_TILE
    return pl.pallas_call(
        _linear_kernel,
        out_shape=jax.ShapeDtypeStruct((b, n_cols), jnp.float32),
        grid=(n_tiles,),
        in_specs=[
            pl.BlockSpec((b, D_IN), lambda j: (0, 0)),
            pl.BlockSpec((D_IN, COL_TILE), lambda j: (0, j)),
            pl.BlockSpec((1, COL_TILE), lambda j: (0, j)),
        ],
        out_specs=pl.BlockSpec((b, COL_TILE), lambda j: (0, j)),
        compiler_params=pltpu.CompilerParams(
            dimension_semantics=("parallel",)),
        cost_estimate=pl.CostEstimate(
            flops=2 * b * D_IN * n_cols,
            transcendentals=0,
            bytes_accessed=(D_IN * n_cols * 2 + b * D_IN * 2
                            + n_cols * 4 + b * n_cols * 4)),
    )(x_bf16, w_all, b_all)


# ------------- kernel 2: conv1+conv2+conv3 + gates + blend, fully fused -------
def _fused_gru_kernel(xgt_ref, h_ref, m_ref, w12_ref, b12_ref, w3_ref, b3_ref,
                      o_ref, ph_ref, prh_ref):
    h_t = h_ref[...]                          # [C, P] f32, lane-dense state
    masks = m_ref[...]                        # [27, P] f32, 1.0 where valid

    # im2col(h_prev): tap k of channel c lands in scratch row k*C + c.  Each
    # masked, rolled piece goes straight to bf16 VMEM scratch (bounded vreg
    # liveness; XLU rotations; bf16 MXU operand).
    for k, off in enumerate(_OFFS):
        piece = _lane_roll_left(h_t, off) * masks[k:k + 1, :]
        ph_ref[k * N_H:(k + 1) * N_H, :] = piece.astype(jnp.bfloat16)

    # conv1 and conv2 share a single MXU pass over the same patch matrix.
    h12 = jnp.dot(w12_ref[...], ph_ref[...],
                  preferred_element_type=jnp.float32) + b12_ref[...]   # [2C, P]
    rt = jax.nn.sigmoid(xgt_ref[0] + h12[:N_H, :])
    ut = jax.nn.sigmoid(xgt_ref[1] + h12[N_H:, :])

    # im2col(rt * h_prev): reuse the masked+rolled h taps already in scratch,
    # so the 27 mask slices/broadcasts are not repeated.
    for k, off in enumerate(_OFFS):
        rows = slice(k * N_H, (k + 1) * N_H)
        prh_ref[rows, :] = (_lane_roll_left(rt, off)
                            * ph_ref[rows, :]).astype(jnp.bfloat16)

    h3 = jnp.dot(w3_ref[...], prh_ref[...],
                 preferred_element_type=jnp.float32) + b3_ref[...]     # [C, P]
    gt = jnp.tanh(xgt_ref[2] + h3)

    o_ref[...] = (1.0 - ut) * h_t + ut * gt


def _fused_gru(xgt, h_t, kp):
    n_bytes = (4 * (3 * N_H * P          # gate pre-activations
                    + 2 * N_H * P        # h_t in + new h out
                    + 27 * P             # masks
                    + 3 * N_H)           # biases
               + 2 * (3 * N_H * 27 * N_H))   # bf16 conv weights
    return pl.pallas_call(
        _fused_gru_kernel,
        out_shape=jax.ShapeDtypeStruct((N_H, P), jnp.float32),
        in_specs=[pl.BlockSpec(memory_space=pltpu.MemorySpace.VMEM)
                  for _ in range(7)],
        out_specs=pl.BlockSpec(memory_space=pltpu.MemorySpace.VMEM),
        scratch_shapes=[pltpu.VMEM((27 * N_H, P), jnp.bfloat16),   # im2col(h)
                        pltpu.VMEM((27 * N_H, P), jnp.bfloat16)],  # im2col(rt*h)
        cost_estimate=pl.CostEstimate(
            flops=2 * P * (27 * N_H) * (3 * N_H),
            transcendentals=3 * N_H * P,
            bytes_accessed=n_bytes),
    )(xgt, h_t, kp["masks"], kp["w12"], kp["b12"], kp["w3"], kp["b3"])


# ----------------------------- parameters -------------------------------------
def init_params(key):
    """Deterministic PyTorch-layout parameters (torch default-ish uniform init)."""
    ks = jax.random.split(key, 12)
    lin_bound = 1.0 / jnp.sqrt(jnp.float32(D_IN))
    conv_bound = 1.0 / jnp.sqrt(jnp.float32(N_H * 27))

    def u(k, shape, bound):
        return jax.random.uniform(k, shape, jnp.float32, -bound, bound)

    p = {}
    for i, name in enumerate(("1", "2", "3")):
        p[f"lw{name}"] = u(ks[2 * i], (N_H * S, D_IN), lin_bound)   # Linear.weight
        p[f"lb{name}"] = u(ks[2 * i + 1], (N_H * S,), lin_bound)    # Linear.bias
    for i, name in enumerate(("1", "2", "3")):
        p[f"cw{name}"] = u(ks[6 + 2 * i], (N_H, N_H, 3, 3, 3), conv_bound)
        p[f"cb{name}"] = u(ks[7 + 2 * i], (N_H,), conv_bound)
    return p


def to_kernel_params(p):
    """Re-layout PyTorch parameters into kernel-friendly form."""
    def conv_wT(w):  # [C_out, C_in, 3,3,3] -> [C_out, 27*C_in], col = k*C_in + c_in
        return jnp.transpose(w, (0, 2, 3, 4, 1)).reshape(N_H, 27 * N_H)

    # Linear weights keep torch's native feature order (c*S + s); bf16 stream.
    w_all = jnp.concatenate([p["lw1"].T, p["lw2"].T, p["lw3"].T],
                            axis=1).astype(jnp.bfloat16)              # [1024, 3G]
    b_all = jnp.concatenate([p["lb1"], p["lb2"], p["lb3"]])[None, :]  # [1, 3G] f32
    return {
        "w_all": w_all, "b_all": b_all,
        # conv1+conv2 fused weight, bf16 MXU operands (f32 accumulation).
        "w12": jnp.concatenate([conv_wT(p["cw1"]),
                                conv_wT(p["cw2"])], axis=0).astype(jnp.bfloat16),
        "b12": jnp.concatenate([p["cb1"], p["cb2"]])[:, None],        # [2C, 1] f32
        "w3": conv_wT(p["cw3"]).astype(jnp.bfloat16),                 # [C, 27C]
        "b3": p["cb3"][:, None],                                      # [C, 1] f32
        "masks": _make_masks(),                                       # [27, P]
    }


# ----------------------------- forward -----------------------------------------
@jax.jit
def gru_forward(x, h_prev, kp):
    """x: [B, 1024], h_prev: [B, N_h, N, N, N] (NCDHW) -> [B, N_h, N, N, N]."""
    b = x.shape[0]
    # Kernel 1: all three Linear layers with bf16 weight streaming.
    xg = _linear_all_gates(x.astype(jnp.bfloat16), kp["w_all"], kp["b_all"])
    # One small XLA transpose into the lane-dense [3, C, B*S] layout of kernel 2.
    xgt = xg.reshape(b, 3, N_H, S).transpose(1, 2, 0, 3).reshape(3, N_H, b * S)
    h_t = jnp.transpose(h_prev, (1, 0, 2, 3, 4)).reshape(N_H, b * S)
    # Kernel 2: conv1/conv2/conv3 + gates + blend, fully fused in VMEM.
    newh_t = _fused_gru(xgt, h_t, kp)
    return jnp.transpose(newh_t.reshape(N_H, b, N, N, N), (1, 0, 2, 3, 4))


# ----------------------------- reference ----------------------------------------
def torch_reference(x, h_prev, p):
    """Pure-JAX mirror of the PyTorch forward (NCDHW, torch param layout, f32)."""
    b = x.shape[0]

    def conv(h, w, bias):
        out = lax.conv_general_dilated(
            h, w, window_strides=(1, 1, 1), padding="SAME",
            dimension_numbers=("NCDHW", "OIDHW", "NCDHW"))
        return out + bias[None, :, None, None, None]

    x1 = (x @ p["lw1"].T + p["lb1"]).reshape(b, N_H, N, N, N)
    x2 = (x @ p["lw2"].T + p["lb2"]).reshape(b, N_H, N, N, N)
    x3 = (x @ p["lw3"].T + p["lb3"]).reshape(b, N_H, N, N, N)
    h1 = conv(h_prev, p["cw1"], p["cb1"])
    h2 = conv(h_prev, p["cw2"], p["cb2"])
    rt = jax.nn.sigmoid(x1 + h1)
    ut = jax.nn.sigmoid(x2 + h2)
    gt = jnp.tanh(x3 + conv(rt * h_prev, p["cw3"], p["cb3"]))
    return (1.0 - ut) * h_prev + ut * gt


if __name__ == "__main__":
    key = jax.random.PRNGKey(0)
    kparam, kx, kh = jax.random.split(key, 3)

    params = init_params(kparam)
    kparams = to_kernel_params(params)

    x = jax.random.normal(kx, (B, D_IN), jnp.float32)
    h_prev = jax.random.normal(kh, (B, N_H, N, N, N), jnp.float32)

    out = gru_forward(x, h_prev, kparams)
    out = jax.block_until_ready(out)

    ref = torch_reference(x, h_prev, params)
    max_err = float(jnp.max(jnp.abs(out - ref)))
    assert out.shape == (B, N_H, N, N, N), out.shape
    # Tolerance accounts for bf16 streaming of the 1024-deep Linear weights AND
    # the bf16 conv weights / im2col patches (all matmuls accumulate in f32);
    # the gate math and GRU blend stay in f32.
    assert max_err < 4e-2, f"max abs err {max_err}"
    print("KERNEL_OK")
</pallas_src>

<mosaic_0001>
module attributes {stable_mosaic.version = 11 : i64} {
  func.func @k(%arg0: memref<8x128xf32, #tpu.memory_space<vmem>>, %arg1: memref<8x128xf32, #tpu.memory_space<vmem>>) attributes {dimension_semantics = [], scalar_prefetch = 0 : i64, scratch_operands = 0 : i64, tpu.core_type = #tpu.core_type<tc>} {
    %c0 = arith.constant 0 : index
    %c0_0 = arith.constant 0 : index
    %0 = vector.load %arg0[%c0, %c0_0] : memref<8x128xf32, #tpu.memory_space<vmem>>, vector<8x128xf32>
    %c1_i32 = arith.constant 1 : i32
    %1 = tpu.dynamic_rotate %0 by %c1_i32 dim 1 : vector<8x128xf32>, i32 -> vector<8x128xf32>
    %c0_1 = arith.constant 0 : index
    %c0_2 = arith.constant 0 : index
    %2 = vector.load %arg1[%c0_1, %c0_2] : memref<8x128xf32, #tpu.memory_space<vmem>>, vector<8x128xf32>
    tpu.vector_store %arg1[%c0_1, %c0_2], %1 {strides = array<i32>} : memref<8x128xf32, #tpu.memory_space<vmem>>, vector<8x128xf32>,
    return
  }
}

module attributes {stable_mosaic.version = 11 : i64} {
  func.func @_linear_kernel(%arg0: i32, %arg1: memref<2x1024xbf16, #tpu.memory_space<vmem>>, %arg2: memref<1024x1536xbf16, #tpu.memory_space<vmem>>, %arg3: memref<1x1536xf32, #tpu.memory_space<vmem>>, %arg4: memref<2x1536xf32, #tpu.memory_space<vmem>>) attributes {dimension_semantics = [#tpu.dimension_semantics<parallel>], iteration_bounds = array<i64: 4>, scalar_prefetch = 0 : i64, scratch_operands = 0 : i64, tpu.core_type = #tpu.core_type<tc>, window_params = [{pipeline_mode = #tpu.pipeline_mode<synchronous>, transform_indices = @transform_0, window_bounds = array<i64: 2, 1024>}, {transform_indices = @transform_1, window_bounds = array<i64: 1024, 1536>}, {transform_indices = @transform_2, window_bounds = array<i64: 1, 1536>}, {transform_indices = @transform_3, window_bounds = array<i64: 2, 1536>}]} {
    %c0 = arith.constant 0 : index
    %c0_0 = arith.constant 0 : index
    %0 = vector.load %arg1[%c0, %c0_0] : memref<2x1024xbf16, #tpu.memory_space<vmem>>, vector<2x1024xbf16>
    %c0_1 = arith.constant 0 : index
    %c0_2 = arith.constant 0 : index
    %1 = vector.load %arg2[%c0_1, %c0_2] : memref<1024x1536xbf16, #tpu.memory_space<vmem>>, vector<1024x1536xbf16>
    %cst = arith.constant dense<0.000000e+00> : vector<2x1536xf32>
    %2 = tpu.matmul %0, %1, %cst {dimension_numbers = #tpu.dot_dimension_numbers<[1], [0], [0], [1], [0, 0, 1, 1], [], []>} : vector<2x1024xbf16>, vector<1024x1536xbf16>, vector<2x1536xf32> -> vector<2x1536xf32>
    %c0_3 = arith.constant 0 : index
    %c0_4 = arith.constant 0 : index
    %3 = vector.load %arg3[%c0_3, %c0_4] : memref<1x1536xf32, #tpu.memory_space<vmem>>, vector<1x1536xf32>
    %4 = vector.broadcast %3 : vector<1x1536xf32> to vector<2x1536xf32>
    %5 = arith.addf %2, %4 : vector<2x1536xf32>
    %c0_5 = arith.constant 0 : index
    %c0_6 = arith.constant 0 : index
    %6 = vector.load %arg4[%c0_5, %c0_6] : memref<2x1536xf32, #tpu.memory_space<vmem>>, vector<2x1536xf32>
    tpu.vector_store %arg4[%c0_5, %c0_6], %5 {strides = array<i32>} : memref<2x1536xf32, #tpu.memory_space<vmem>>, vector<2x1536xf32>,
    return
  }
  func.func @transform_0(%arg0: i32) -> (i32, i32) {
    %c0_i32 = arith.constant 0 : i32
    %c0_i32_0 = arith.constant 0 : i32
    %c0_i32_1 = arith.constant 0 : i32
    return %c0_i32, %c0_i32_0 : i32, i32
  }
  func.func @transform_1(%arg0: i32) -> (i32, i32) {
    %c0_i32 = arith.constant 0 : i32
    %c0_i32_0 = arith.constant 0 : i32
    return %c0_i32, %arg0 : i32, i32
  }
  func.func @transform_2(%arg0: i32) -> (i32, i32) {
    %c0_i32 = arith.constant 0 : i32
    %c0_i32_0 = arith.constant 0 : i32
    return %c0_i32, %arg0 : i32, i32
  }
  func.func @transform_3(%arg0: i32) -> (i32, i32) {
    %c0_i32 = arith.constant 0 : i32
    %c0_i32_0 = arith.constant 0 : i32
    return %c0_i32, %arg0 : i32, i32
  }
}

module attributes {stable_mosaic.version = 11 : i64} {
  func.func @_fused_gru_kernel(%arg0: memref<3x32x128xf32, #tpu.memory_space<vmem>>, %arg1: memref<32x128xf32, #tpu.memory_space<vmem>>, %arg2: memref<27x128xf32, #tpu.memory_space<vmem>>, %arg3: memref<64x864xbf16, #tpu.memory_space<vmem>>, %arg4: memref<64x1xf32, #tpu.memory_space<vmem>>, %arg5: memref<32x864xbf16, #tpu.memory_space<vmem>>, %arg6: memref<32x1xf32, #tpu.memory_space<vmem>>, %arg7: memref<32x128xf32, #tpu.memory_space<vmem>>, %arg8: memref<864x128xbf16, #tpu.memory_space<vmem>>, %arg9: memref<864x128xbf16, #tpu.memory_space<vmem>>) attributes {dimension_semantics = [], scalar_prefetch = 0 : i64, scratch_operands = 2 : i64, tpu.core_type = #tpu.core_type<tc>} {
    %c0 = arith.constant 0 : index
    %c0_0 = arith.constant 0 : index
    %0 = vector.load %arg1[%c0, %c0_0] : memref<32x128xf32, #tpu.memory_space<vmem>>, vector<32x128xf32>
    %c0_1 = arith.constant 0 : index
    %c0_2 = arith.constant 0 : index
    %1 = vector.load %arg2[%c0_1, %c0_2] : memref<27x128xf32, #tpu.memory_space<vmem>>, vector<27x128xf32>
    %2 = vector.extract_strided_slice %0 {offsets = [0, 107], sizes = [32, 21], strides = [1, 1]} : vector<32x128xf32> to vector<32x21xf32>
    %3 = vector.extract_strided_slice %0 {offsets = [0, 0], sizes = [32, 107], strides = [1, 1]} : vector<32x128xf32> to vector<32x107xf32>
    %4 = tpu.concatenate %2, %3 in 1 : vector<32x21xf32>, vector<32x107xf32> -> vector<32x128xf32>
    %5 = vector.extract_strided_slice %1 {offsets = [0, 0], sizes = [1, 128], strides = [1, 1]} : vector<27x128xf32> to vector<1x128xf32>
    %6 = vector.broadcast %5 : vector<1x128xf32> to vector<32x128xf32>
    %7 = arith.mulf %4, %6 : vector<32x128xf32>
    %8 = arith.truncf %7 : vector<32x128xf32> to vector<32x128xbf16>
    %c0_3 = arith.constant 0 : index
    %c0_4 = arith.constant 0 : index
    %9 = vector.load %arg8[%c0_3, %c0_4] : memref<864x128xbf16, #tpu.memory_space<vmem>>, vector<32x128xbf16>
    tpu.vector_store %arg8[%c0_3, %c0_4], %8 {strides = array<i32>} : memref<864x128xbf16, #tpu.memory_space<vmem>>, vector<32x128xbf16>,
    %10 = vector.extract_strided_slice %0 {offsets = [0, 108], sizes = [32, 20], strides = [1, 1]} : vector<32x128xf32> to vector<32x20xf32>
    %11 = vector.extract_strided_slice %0 {offsets = [0, 0], sizes = [32, 108], strides = [1, 1]} : vector<32x128xf32> to vector<32x108xf32>
    %12 = tpu.concatenate %10, %11 in 1 : vector<32x20xf32>, vector<32x108xf32> -> vector<32x128xf32>
    %13 = vector.extract_strided_slice %1 {offsets = [1, 0], sizes = [1, 128], strides = [1, 1]} : vector<27x128xf32> to vector<1x128xf32>
    %14 = vector.broadcast %13 : vector<1x128xf32> to vector<32x128xf32>
    %15 = arith.mulf %12, %14 : vector<32x128xf32>
    %16 = arith.truncf %15 : vector<32x128xf32> to vector<32x128xbf16>
    %c32 = arith.constant 32 : index
    %c0_5 = arith.constant 0 : index
    %17 = vector.load %arg8[%c32, %c0_5] : memref<864x128xbf16, #tpu.memory_space<vmem>>, vector<32x128xbf16>
    tpu.vector_store %arg8[%c32, %c0_5], %16 {strides = array<i32>} : memref<864x128xbf16, #tpu.memory_space<vmem>>, vector<32x128xbf16>,
    %18 = vector.extract_strided_slice %0 {offsets = [0, 109], sizes = [32, 19], strides = [1, 1]} : vector<32x128xf32> to vector<32x19xf32>
    %19 = vector.extract_strided_slice %0 {offsets = [0, 0], sizes = [32, 109], strides = [1, 1]} : vector<32x128xf32> to vector<32x109xf32>
    %20 = tpu.concatenate %18, %19 in 1 : vector<32x19xf32>, vector<32x109xf32> -> vector<32x128xf32>
    %21 = vector.extract_strided_slice %1 {offsets = [2, 0], sizes = [1, 128], strides = [1, 1]} : vector<27x128xf32> to vector<1x128xf32>
    %22 = vector.broadcast %21 : vector<1x128xf32> to vector<32x128xf32>
    %23 = arith.mulf %20, %22 : vector<32x128xf32>
    %24 = arith.truncf %23 : vector<32x128xf32> to vector<32x128xbf16>
    %c64 = arith.constant 64 : index
    %c0_6 = arith.constant 0 : index
    %25 = vector.load %arg8[%c64, %c0_6] : memref<864x128xbf16, #tpu.memory_space<vmem>>, vector<32x128xbf16>
    tpu.vector_store %arg8[%c64, %c0_6], %24 {strides = array<i32>} : memref<864x128xbf16, #tpu.memory_space<vmem>>, vector<32x128xbf16>,
    %26 = vector.extract_strided_slice %0 {offsets = [0, 111], sizes = [32, 17], strides = [1, 1]} : vector<32x128xf32> to vector<32x17xf32>
    %27 = vector.extract_strided_slice %0 {offsets = [0, 0], sizes = [32, 111], strides = [1, 1]} : vector<32x128xf32> to vector<32x111xf32>
    %28 = tpu.concatenate %26, %27 in 1 : vector<32x17xf32>, vector<32x111xf32> -> vector<32x128xf32>
    %29 = vector.extract_strided_slice %1 {offsets = [3, 0], sizes = [1, 128], strides = [1, 1]} : vector<27x128xf32> to vector<1x128xf32>
    %30 = vector.broadcast %29 : vector<1x128xf32> to vector<32x128xf32>
    %31 = arith.mulf %28, %30 : vector<32x128xf32>
    %32 = arith.truncf %31 : vector<32x128xf32> to vector<32x128xbf16>
    %c96 = arith.constant 96 : index
    %c0_7 = arith.constant 0 : index
    %33 = vector.load %arg8[%c96, %c0_7] : memref<864x128xbf16, #tpu.memory_space<vmem>>, vector<32x128xbf16>
    tpu.vector_store %arg8[%c96, %c0_7], %32 {strides = array<i32>} : memref<864x128xbf16, #tpu.memory_space<vmem>>, vector<32x128xbf16>,
    %34 = vector.extract_strided_slice %0 {offsets = [0, 112], sizes = [32, 16], strides = [1, 1]} : vector<32x128xf32> to vector<32x16xf32>
    %35 = vector.extract_strided_slice %0 {offsets = [0, 0], sizes = [32, 112], strides = [1, 1]} : vector<32x128xf32> to vector<32x112xf32>
    %36 = tpu.concatenate %34, %35 in 1 : vector<32x16xf32>, vector<32x112xf32> -> vector<32x128xf32>
    %37 = vector.extract_strided_slice %1 {offsets = [4, 0], sizes = [1, 128], strides = [1, 1]} : vector<27x128xf32> to vector<1x128xf32>
    %38 = vector.broadcast %37 : vector<1x128xf32> to vector<32x128xf32>
    %39 = arith.mulf %36, %38 : vector<32x128xf32>
    %40 = arith.truncf %39 : vector<32x128xf32> to vector<32x128xbf16>
    %c128 = arith.constant 128 : index
    %c0_8 = arith.constant 0 : index
    %41 = vector.load %arg8[%c128, %c0_8] : memref<864x128xbf16, #tpu.memory_space<vmem>>, vector<32x128xbf16>
    tpu.vector_store %arg8[%c128, %c0_8], %40 {strides = array<i32>} : memref<864x128xbf16, #tpu.memory_space<vmem>>, vector<32x128xbf16>,
    %42 = vector.extract_strided_slice %0 {offsets = [0, 113], sizes = [32, 15], strides = [1, 1]} : vector<32x128xf32> to vector<32x15xf32>
    %43 = vector.extract_strided_slice %0 {offsets = [0, 0], sizes = [32, 113], strides = [1, 1]} : vector<32x128xf32> to vector<32x113xf32>
    %44 = tpu.concatenate %42, %43 in 1 : vector<32x15xf32>, vector<32x113xf32> -> vector<32x128xf32>
    %45 = vector.extract_strided_slice %1 {offsets = [5, 0], sizes = [1, 128], strides = [1, 1]} : vector<27x128xf32> to vector<1x128xf32>
    %46 = vector.broadcast %45 : vector<1x128xf32> to vector<32x128xf32>
    %47 = arith.mulf %44, %46 : vector<32x128xf32>
    %48 = arith.truncf %47 : vector<32x128xf32> to vector<32x128xbf16>
    %c160 = arith.constant 160 : index
    %c0_9 = arith.constant 0 : index
    %49 = vector.load %arg8[%c160, %c0_9] : memref<864x128xbf16, #tpu.memory_space<vmem>>, vector<32x128xbf16>
    tpu.vector_store %arg8[%c160, %c0_9], %48 {strides = array<i32>} : memref<864x128xbf16, #tpu.memory_space<vmem>>, vector<32x128xbf16>,
    %50 = vector.extract_strided_slice %0 {offsets = [0, 115], sizes = [32, 13], strides = [1, 1]} : vector<32x128xf32> to vector<32x13xf32>
    %51 = vector.extract_strided_slice %0 {offsets = [0, 0], sizes = [32, 115], strides = [1, 1]} : vector<32x128xf32> to vector<32x115xf32>
    %52 = tpu.concatenate %50, %51 in 1 : vector<32x13xf32>, vector<32x115xf32> -> vector<32x128xf32>
    %53 = vector.extract_strided_slice %1 {offsets = [6, 0], sizes = [1, 128], strides = [1, 1]} : vector<27x128xf32> to vector<1x128xf32>
    %54 = vector.broadcast %53 : vector<1x128xf32> to vector<32x128xf32>
    %55 = arith.mulf %52, %54 : vector<32x128xf32>
    %56 = arith.truncf %55 : vector<32x128xf32> to vector<32x128xbf16>
    %c192 = arith.constant 192 : index
    %c0_10 = arith.constant 0 : index
    %57 = vector.load %arg8[%c192, %c0_10] : memref<864x128xbf16, #tpu.memory_space<vmem>>, vector<32x128xbf16>
    tpu.vector_store %arg8[%c192, %c0_10], %56 {strides = array<i32>} : memref<864x128xbf16, #tpu.memory_space<vmem>>, vector<32x128xbf16>,
    %58 = vector.extract_strided_slice %0 {offsets = [0, 116], sizes = [32, 12], strides = [1, 1]} : vector<32x128xf32> to vector<32x12xf32>
    %59 = vector.extract_strided_slice %0 {offsets = [0, 0], sizes = [32, 116], strides = [1, 1]} : vector<32x128xf32> to vector<32x116xf32>
    %60 = tpu.concatenate %58, %59 in 1 : vector<32x12xf32>, vector<32x116xf32> -> vector<32x128xf32>
    %61 = vector.extract_strided_slice %1 {offsets = [7, 0], sizes = [1, 128], strides = [1, 1]} : vector<27x128xf32> to vector<1x128xf32>
    %62 = vector.broadcast %61 : vector<1x128xf32> to vector<32x128xf32>
    %63 = arith.mulf %60, %62 : vector<32x128xf32>
    %64 = arith.truncf %63 : vector<32x128xf32> to vector<32x128xbf16>
    %c224 = arith.constant 224 : index
    %c0_11 = arith.constant 0 : index
    %65 = vector.load %arg8[%c224, %c0_11] : memref<864x128xbf16, #tpu.memory_space<vmem>>, vector<32x128xbf16>
    tpu.vector_store %arg8[%c224, %c0_11], %64 {strides = array<i32>} : memref<864x128xbf16, #tpu.memory_space<vmem>>, vector<32x128xbf16>,
    %66 = vector.extract_strided_slice %0 {offsets = [0, 117], sizes = [32, 11], strides = [1, 1]} : vector<32x128xf32> to vector<32x11xf32>
    %67 = vector.extract_strided_slice %0 {offsets = [0, 0], sizes = [32, 117], strides = [1, 1]} : vector<32x128xf32> to vector<32x117xf32>
    %68 = tpu.concatenate %66, %67 in 1 : vector<32x11xf32>, vector<32x117xf32> -> vector<32x128xf32>
    %69 = vector.extract_strided_slice %1 {offsets = [8, 0], sizes = [1, 128], strides = [1, 1]} : vector<27x128xf32> to vector<1x128xf32>
    %70 = vector.broadcast %69 : vector<1x128xf32> to vector<32x128xf32>
    %71 = arith.mulf %68, %70 : vector<32x128xf32>
    %72 = arith.truncf %71 : vector<32x128xf32> to vector<32x128xbf16>
    %c256 = arith.constant 256 : index
    %c0_12 = arith.constant 0 : index
    %73 = vector.load %arg8[%c256, %c0_12] : memref<864x128xbf16, #tpu.memory_space<vmem>>, vector<32x128xbf16>
    tpu.vector_store %arg8[%c256, %c0_12], %72 {strides = array<i32>} : memref<864x128xbf16, #tpu.memory_space<vmem>>, vector<32x128xbf16>,
    %74 = vector.extract_strided_slice %0 {offsets = [0, 123], sizes = [32, 5], strides = [1, 1]} : vector<32x128xf32> to vector<32x5xf32>
    %75 = vector.extract_strided_slice %0 {offsets = [0, 0], sizes = [32, 123], strides = [1, 1]} : vector<32x128xf32> to vector<32x123xf32>
    %76 = tpu.concatenate %74, %75 in 1 : vector<32x5xf32>, vector<32x123xf32> -> vector<32x128xf32>
    %77 = vector.extract_strided_slice %1 {offsets = [9, 0], sizes = [1, 128], strides = [1, 1]} : vector<27x128xf32> to vector<1x128xf32>
    %78 = vector.broadcast %77 : vector<1x128xf32> to vector<32x128xf32>
    %79 = arith.mulf %76, %78 : vector<32x128xf32>
    %80 = arith.truncf %79 : vector<32x128xf32> to vector<32x128xbf16>
    %c288 = arith.constant 288 : index
    %c0_13 = arith.constant 0 : index
    %81 = vector.load %arg8[%c288, %c0_13] : memref<864x128xbf16, #tpu.memory_space<vmem>>, vector<32x128xbf16>
    tpu.vector_store %arg8[%c288, %c0_13], %80 {strides = array<i32>} : memref<864x128xbf16, #tpu.memory_space<vmem>>, vector<32x128xbf16>,
    %82 = vector.extract_strided_slice %0 {offsets = [0, 124], sizes = [32, 4], strides = [1, 1]} : vector<32x128xf32> to vector<32x4xf32>
    %83 = vector.extract_strided_slice %0 {offsets = [0, 0], sizes = [32, 124], strides = [1, 1]} : vector<32x128xf32> to vector<32x124xf32>
    %84 = tpu.concatenate %82, %83 in 1 : vector<32x4xf32>, vector<32x124xf32> -> vector<32x128xf32>
    %85 = vector.extract_strided_slice %1 {offsets = [10, 0], sizes = [1, 128], strides = [1, 1]} : vector<27x128xf32> to vector<1x128xf32>
    %86 = vector.broadcast %85 : vector<1x128xf32> to vector<32x128xf32>
    %87 = arith.mulf %84, %86 : vector<32x128xf32>
    %88 = arith.truncf %87 : vector<32x128xf32> to vector<32x128xbf16>
    %c320 = arith.constant 320 : index
    %c0_14 = arith.constant 0 : index
    %89 = vector.load %arg8[%c320, %c0_14] : memref<864x128xbf16, #tpu.memory_space<vmem>>, vector<32x128xbf16>
    tpu.vector_store %arg8[%c320, %c0_14], %88 {strides = array<i32>} : memref<864x128xbf16, #tpu.memory_space<vmem>>, vector<32x128xbf16>,
    %90 = vector.extract_strided_slice %0 {offsets = [0, 125], sizes = [32, 3], strides = [1, 1]} : vector<32x128xf32> to vector<32x3xf32>
    %91 = vector.extract_strided_slice %0 {offsets = [0, 0], sizes = [32, 125], strides = [1, 1]} : vector<32x128xf32> to vector<32x125xf32>
    %92 = tpu.concatenate %90, %91 in 1 : vector<32x3xf32>, vector<32x125xf32> -> vector<32x128xf32>
    %93 = vector.extract_strided_slice %1 {offsets = [11, 0], sizes = [1, 128], strides = [1, 1]} : vector<27x128xf32> to vector<1x128xf32>
    %94 = vector.broadcast %93 : vector<1x128xf32> to vector<32x128xf32>
    %95 = arith.mulf %92, %94 : vector<32x128xf32>
    %96 = arith.truncf %95 : vector<32x128xf32> to vector<32x128xbf16>
    %c352 = arith.constant 352 : index
    %c0_15 = arith.constant 0 : index
    %97 = vector.load %arg8[%c352, %c0_15] : memref<864x128xbf16, #tpu.memory_space<vmem>>, vector<32x128xbf16>
    tpu.vector_store %arg8[%c352, %c0_15], %96 {strides = array<i32>} : memref<864x128xbf16, #tpu.memory_space<vmem>>, vector<32x128xbf16>,
    %98 = vector.extract_strided_slice %0 {offsets = [0, 127], sizes = [32, 1], strides = [1, 1]} : vector<32x128xf32> to vector<32x1xf32>
    %99 = vector.extract_strided_slice %0 {offsets = [0, 0], sizes = [32, 127], strides = [1, 1]} : vector<32x128xf32> to vector<32x127xf32>
    %100 = tpu.concatenate %98, %99 in 1 : vector<32x1xf32>, vector<32x127xf32> -> vector<32x128xf32>
    %101 = vector.extract_strided_slice %1 {offsets = [12, 0], sizes = [1, 128], strides = [1, 1]} : vector<27x128xf32> to vector<1x128xf32>
    %102 = vector.broadcast %101 : vector<1x128xf32> to vector<32x128xf32>
    %103 = arith.mulf %100, %102 : vector<32x128xf32>
    %104 = arith.truncf %103 : vector<32x128xf32> to vector<32x128xbf16>
    %c384 = arith.constant 384 : index
    %c0_16 = arith.constant 0 : index
    %105 = vector.load %arg8[%c384, %c0_16] : memref<864x128xbf16, #tpu.memory_space<vmem>>, vector<32x128xbf16>
    tpu.vector_store %arg8[%c384, %c0_16], %104 {strides = array<i32>} : memref<864x128xbf16, #tpu.memory_space<vmem>>, vector<32x128xbf16>,
    %106 = vector.extract_strided_slice %1 {offsets = [13, 0], sizes = [1, 128], strides = [1, 1]} : vector<27x128xf32> to vector<1x128xf32>
    %107 = vector.broadcast %106 : vector<1x128xf32> to vector<32x128xf32>
    %108 = arith.mulf %0, %107 : vector<32x128xf32>
    %109 = arith.truncf %108 : vector<32x128xf32> to vector<32x128xbf16>
    %c416 = arith.constant 416 : index
    %c0_17 = arith.constant 0 : index
    %110 = vector.load %arg8[%c416, %c0_17] : memref<864x128xbf16, #tpu.memory_space<vmem>>, vector<32x128xbf16>
    tpu.vector_store %arg8[%c416, %c0_17], %109 {strides = array<i32>} : memref<864x128xbf16, #tpu.memory_space<vmem>>, vector<32x128xbf16>,
    %111 = vector.extract_strided_slice %0 {offsets = [0, 1], sizes = [32, 127], strides = [1, 1]} : vector<32x128xf32> to vector<32x127xf32>
    %112 = vector.extract_strided_slice %0 {offsets = [0, 0], sizes = [32, 1], strides = [1, 1]} : vector<32x128xf32> to vector<32x1xf32>
    %113 = tpu.concatenate %111, %112 in 1 : vector<32x127xf32>, vector<32x1xf32> -> vector<32x128xf32>
    %114 = vector.extract_strided_slice %1 {offsets = [14, 0], sizes = [1, 128], strides = [1, 1]} : vector<27x128xf32> to vector<1x128xf32>
    %115 = vector.broadcast %114 : vector<1x128xf32> to vector<32x128xf32>
    %116 = arith.mulf %113, %115 : vector<32x128xf32>
    %117 = arith.truncf %116 : vector<32x128xf32> to vector<32x128xbf16>
    %c448 = arith.constant 448 : index
    %c0_18 = arith.constant 0 : index
    %118 = vector.load %arg8[%c448, %c0_18] : memref<864x128xbf16, #tpu.memory_space<vmem>>, vector<32x128xbf16>
    tpu.vector_store %arg8[%c448, %c0_18], %117 {strides = array<i32>} : memref<864x128xbf16, #tpu.memory_space<vmem>>, vector<32x128xbf16>,
    %119 = vector.extract_strided_slice %0 {offsets = [0, 3], sizes = [32, 125], strides = [1, 1]} : vector<32x128xf32> to vector<32x125xf32>
    %120 = vector.extract_strided_slice %0 {offsets = [0, 0], sizes = [32, 3], strides = [1, 1]} : vector<32x128xf32> to vector<32x3xf32>
    %121 = tpu.concatenate %119, %120 in 1 : vector<32x125xf32>, vector<32x3xf32> -> vector<32x128xf32>
    %122 = vector.extract_strided_slice %1 {offsets = [15, 0], sizes = [1, 128], strides = [1, 1]} : vector<27x128xf32> to vector<1x128xf32>
    %123 = vector.broadcast %122 : vector<1x128xf32> to vector<32x128xf32>
    %124 = arith.mulf %121, %123 : vector<32x128xf32>
    %125 = arith.truncf %124 : vector<32x128xf32> to vector<32x128xbf16>
    %c480 = arith.constant 480 : index
    %c0_19 = arith.constant 0 : index
    %126 = vector.load %arg8[%c480, %c0_19] : memref<864x128xbf16, #tpu.memory_space<vmem>>, vector<32x128xbf16>
    tpu.vector_store %arg8[%c480, %c0_19], %125 {strides = array<i32>} : memref<864x128xbf16, #tpu.memory_space<vmem>>, vector<32x128xbf16>,
    %127 = vector.extract_strided_slice %0 {offsets = [0, 4], sizes = [32, 124], strides = [1, 1]} : vector<32x128xf32> to vector<32x124xf32>
    %128 = vector.extract_strided_slice %0 {offsets = [0, 0], sizes = [32, 4], strides = [1, 1]} : vector<32x128xf32> to vector<32x4xf32>
    %129 = tpu.concatenate %127, %128 in 1 : vector<32x124xf32>, vector<32x4xf32> -> vector<32x128xf32>
    %130 = vector.extract_strided_slice %1 {offsets = [16, 0], sizes = [1, 128], strides = [1, 1]} : vector<27x128xf32> to vector<1x128xf32>
    %131 = vector.broadcast %130 : vector<1x128xf32> to vector<32x128xf32>
    %132 = arith.mulf %129, %131 : vector<32x128xf32>
    %133 = arith.truncf %132 : vector<32x128xf32> to vector<32x128xbf16>
    %c512 = arith.constant 512 : index
    %c0_20 = arith.constant 0 : index
    %134 = vector.load %arg8[%c512, %c0_20] : memref<864x128xbf16, #tpu.memory_space<vmem>>, vector<32x128xbf16>
    tpu.vector_store %arg8[%c512, %c0_20], %133 {strides = array<i32>} : memref<864x128xbf16, #tpu.memory_space<vmem>>, vector<32x128xbf16>,
    %135 = vector.extract_strided_slice %0 {offsets = [0, 5], sizes = [32, 123], strides = [1, 1]} : vector<32x128xf32> to vector<32x123xf32>
    %136 = vector.extract_strided_slice %0 {offsets = [0, 0], sizes = [32, 5], strides = [1, 1]} : vector<32x128xf32> to vector<32x5xf32>
    %137 = tpu.concatenate %135, %136 in 1 : vector<32x123xf32>, vector<32x5xf32> -> vector<32x128xf32>
    %138 = vector.extract_strided_slice %1 {offsets = [17, 0], sizes = [1, 128], strides = [1, 1]} : vector<27x128xf32> to vector<1x128xf32>
    %139 = vector.broadcast %138 : vector<1x128xf32> to vector<32x128xf32>
    %140 = arith.mulf %137, %139 : vector<32x128xf32>
    %141 = arith.truncf %140 : vector<32x128xf32> to vector<32x128xbf16>
    %c544 = arith.constant 544 : index
    %c0_21 = arith.constant 0 : index
    %142 = vector.load %arg8[%c544, %c0_21] : memref<864x128xbf16, #tpu.memory_space<vmem>>, vector<32x128xbf16>
    tpu.vector_store %arg8[%c544, %c0_21], %141 {strides = array<i32>} : memref<864x128xbf16, #tpu.memory_space<vmem>>, vector<32x128xbf16>,
    %143 = vector.extract_strided_slice %0 {offsets = [0, 11], sizes = [32, 117], strides = [1, 1]} : vector<32x128xf32> to vector<32x117xf32>
    %144 = vector.extract_strided_slice %0 {offsets = [0, 0], sizes = [32, 11], strides = [1, 1]} : vector<32x128xf32> to vector<32x11xf32>
    %145 = tpu.concatenate %143, %144 in 1 : vector<32x117xf32>, vector<32x11xf32> -> vector<32x128xf32>
    %146 = vector.extract_strided_slice %1 {offsets = [18, 0], sizes = [1, 128], strides = [1, 1]} : vector<27x128xf32> to vector<1x128xf32>
    %147 = vector.broadcast %146 : vector<1x128xf32> to vector<32x128xf32>
    %148 = arith.mulf %145, %147 : vector<32x128xf32>
    %149 = arith.truncf %148 : vector<32x128xf32> to vector<32x128xbf16>
    %c576 = arith.constant 576 : index
    %c0_22 = arith.constant 0 : index
    %150 = vector.load %arg8[%c576, %c0_22] : memref<864x128xbf16, #tpu.memory_space<vmem>>, vector<32x128xbf16>
    tpu.vector_store %arg8[%c576, %c0_22], %149 {strides = array<i32>} : memref<864x128xbf16, #tpu.memory_space<vmem>>, vector<32x128xbf16>,
    %151 = vector.extract_strided_slice %0 {offsets = [0, 12], sizes = [32, 116], strides = [1, 1]} : vector<32x128xf32> to vector<32x116xf32>
    %152 = vector.extract_strided_slice %0 {offsets = [0, 0], sizes = [32, 12], strides = [1, 1]} : vector<32x128xf32> to vector<32x12xf32>
    %153 = tpu.concatenate %151, %152 in 1 : vector<32x116xf32>, vector<32x12xf32> -> vector<32x128xf32>
    %154 = vector.extract_strided_slice %1 {offsets = [19, 0], sizes = [1, 128], strides = [1, 1]} : vector<27x128xf32> to vector<1x128xf32>
    %155 = vector.broadcast %154 : vector<1x128xf32> to vector<32x128xf32>
    %156 = arith.mulf %153, %155 : vector<32x128xf32>
    %157 = arith.truncf %156 : vector<32x128xf32> to vector<32x128xbf16>
    %c608 = arith.constant 608 : index
    %c0_23 = arith.constant 0 : index
    %158 = vector.load %arg8[%c608, %c0_23] : memref<864x128xbf16, #tpu.memory_space<vmem>>, vector<32x128xbf16>
    tpu.vector_store %arg8[%c608, %c0_23], %157 {strides = array<i32>} : memref<864x128xbf16, #tpu.memory_space<vmem>>, vector<32x128xbf16>,
    %159 = vector.extract_strided_slice %0 {offsets = [0, 13], sizes = [32, 115], strides = [1, 1]} : vector<32x128xf32> to vector<32x115xf32>
    %160 = vector.extract_strided_slice %0 {offsets = [0, 0], sizes = [32, 13], strides = [1, 1]} : vector<32x128xf32> to vector<32x13xf32>
    %161 = tpu.concatenate %159, %160 in 1 : vector<32x115xf32>, vector<32x13xf32> -> vector<32x128xf32>
    %162 = vector.extract_strided_slice %1 {offsets = [20, 0], sizes = [1, 128], strides = [1, 1]} : vector<27x128xf32> to vector<1x128xf32>
    %163 = vector.broadcast %162 : vector<1x128xf32> to vector<32x128xf32>
    %164 = arith.mulf %161, %163 : vector<32x128xf32>
    %165 = arith.truncf %164 : vector<32x128xf32> to vector<32x128xbf16>
    %c640 = arith.constant 640 : index
    %c0_24 = arith.constant 0 : index
    %166 = vector.load %arg8[%c640, %c0_24] : memref<864x128xbf16, #tpu.memory_space<vmem>>, vector<32x128xbf16>
    tpu.vector_store %arg8[%c640, %c0_24], %165 {strides = array<i32>} : memref<864x128xbf16, #tpu.memory_space<vmem>>, vector<32x128xbf16>,
    %167 = vector.extract_strided_slice %0 {offsets = [0, 15], sizes = [32, 113], strides = [1, 1]} : vector<32x128xf32> to vector<32x113xf32>
    %168 = vector.extract_strided_slice %0 {offsets = [0, 0], sizes = [32, 15], strides = [1, 1]} : vector<32x128xf32> to vector<32x15xf32>
    %169 = tpu.concatenate %167, %168 in 1 : vector<32x113xf32>, vector<32x15xf32> -> vector<32x128xf32>
    %170 = vector.extract_strided_slice %1 {offsets = [21, 0], sizes = [1, 128], strides = [1, 1]} : vector<27x128xf32> to vector<1x128xf32>
    %171 = vector.broadcast %170 : vector<1x128xf32> to vector<32x128xf32>
    %172 = arith.mulf %169, %171 : vector<32x128xf32>
    %173 = arith.truncf %172 : vector<32x128xf32> to vector<32x128xbf16>
    %c672 = arith.constant 672 : index
    %c0_25 = arith.constant 0 : index
    %174 = vector.load %arg8[%c672, %c0_25] : memref<864x128xbf16, #tpu.memory_space<vmem>>, vector<32x128xbf16>
    tpu.vector_store %arg8[%c672, %c0_25], %173 {strides = array<i32>} : memref<864x128xbf16, #tpu.memory_space<vmem>>, vector<32x128xbf16>,
    %175 = vector.extract_strided_slice %0 {offsets = [0, 16], sizes = [32, 112], strides = [1, 1]} : vector<32x128xf32> to vector<32x112xf32>
    %176 = vector.extract_strided_slice %0 {offsets = [0, 0], sizes = [32, 16], strides = [1, 1]} : vector<32x128xf32> to vector<32x16xf32>
    %177 = tpu.concatenate %175, %176 in 1 : vector<32x112xf32>, vector<32x16xf32> -> vector<32x128xf32>
    %178 = vector.extract_strided_slice %1 {offsets = [22, 0], sizes = [1, 128], strides = [1, 1]} : vector<27x128xf32> to vector<1x128xf32>
    %179 = vector.broadcast %178 : vector<1x128xf32> to vector<32x128xf32>
    %180 = arith.mulf %177, %179 : vector<32x128xf32>
    %181 = arith.truncf %180 : vector<32x128xf32> to vector<32x128xbf16>
    %c704 = arith.constant 704 : index
    %c0_26 = arith.constant 0 : index
    %182 = vector.load %arg8[%c704, %c0_26] : memref<864x128xbf16, #tpu.memory_space<vmem>>, vector<32x128xbf16>
    tpu.vector_store %arg8[%c704, %c0_26], %181 {strides = array<i32>} : memref<864x128xbf16, #tpu.memory_space<vmem>>, vector<32x128xbf16>,
    %183 = vector.extract_strided_slice %0 {offsets = [0, 17], sizes = [32, 111], strides = [1, 1]} : vector<32x128xf32> to vector<32x111xf32>
    %184 = vector.extract_strided_slice %0 {offsets = [0, 0], sizes = [32, 17], strides = [1, 1]} : vector<32x128xf32> to vector<32x17xf32>
    %185 = tpu.concatenate %183, %184 in 1 : vector<32x111xf32>, vector<32x17xf32> -> vector<32x128xf32>
    %186 = vector.extract_strided_slice %1 {offsets = [23, 0], sizes = [1, 128], strides = [1, 1]} : vector<27x128xf32> to vector<1x128xf32>
    %187 = vector.broadcast %186 : vector<1x128xf32> to vector<32x128xf32>
    %188 = arith.mulf %185, %187 : vector<32x128xf32>
    %189 = arith.truncf %188 : vector<32x128xf32> to vector<32x128xbf16>
    %c736 = arith.constant 736 : index
    %c0_27 = arith.constant 0 : index
    %190 = vector.load %arg8[%c736, %c0_27] : memref<864x128xbf16, #tpu.memory_space<vmem>>, vector<32x128xbf16>
    tpu.vector_store %arg8[%c736, %c0_27], %189 {strides = array<i32>} : memref<864x128xbf16, #tpu.memory_space<vmem>>, vector<32x128xbf16>,
    %191 = vector.extract_strided_slice %0 {offsets = [0, 19], sizes = [32, 109], strides = [1, 1]} : vector<32x128xf32> to vector<32x109xf32>
    %192 = vector.extract_strided_slice %0 {offsets = [0, 0], sizes = [32, 19], strides = [1, 1]} : vector<32x128xf32> to vector<32x19xf32>
    %193 = tpu.concatenate %191, %192 in 1 : vector<32x109xf32>, vector<32x19xf32> -> vector<32x128xf32>
    %194 = vector.extract_strided_slice %1 {offsets = [24, 0], sizes = [1, 128], strides = [1, 1]} : vector<27x128xf32> to vector<1x128xf32>
    %195 = vector.broadcast %194 : vector<1x128xf32> to vector<32x128xf32>
    %196 = arith.mulf %193, %195 : vector<32x128xf32>
    %197 = arith.truncf %196 : vector<32x128xf32> to vector<32x128xbf16>
    %c768 = arith.constant 768 : index
    %c0_28 = arith.constant 0 : index
    %198 = vector.load %arg8[%c768, %c0_28] : memref<864x128xbf16, #tpu.memory_space<vmem>>, vector<32x128xbf16>
    tpu.vector_store %arg8[%c768, %c0_28], %197 {strides = array<i32>} : memref<864x128xbf16, #tpu.memory_space<vmem>>, vector<32x128xbf16>,
    %199 = vector.extract_strided_slice %0 {offsets = [0, 20], sizes = [32, 108], strides = [1, 1]} : vector<32x128xf32> to vector<32x108xf32>
    %200 = vector.extract_strided_slice %0 {offsets = [0, 0], sizes = [32, 20], strides = [1, 1]} : vector<32x128xf32> to vector<32x20xf32>
    %201 = tpu.concatenate %199, %200 in 1 : vector<32x108xf32>, vector<32x20xf32> -> vector<32x128xf32>
    %202 = vector.extract_strided_slice %1 {offsets = [25, 0], sizes = [1, 128], strides = [1, 1]} : vector<27x128xf32> to vector<1x128xf32>
    %203 = vector.broadcast %202 : vector<1x128xf32> to vector<32x128xf32>
    %204 = arith.mulf %201, %203 : vector<32x128xf32>
    %205 = arith.truncf %204 : vector<32x128xf32> to vector<32x128xbf16>
    %c800 = arith.constant 800 : index
    %c0_29 = arith.constant 0 : index
    %206 = vector.load %arg8[%c800, %c0_29] : memref<864x128xbf16, #tpu.memory_space<vmem>>, vector<32x128xbf16>
    tpu.vector_store %arg8[%c800, %c0_29], %205 {strides = array<i32>} : memref<864x128xbf16, #tpu.memory_space<vmem>>, vector<32x128xbf16>,
    %207 = vector.extract_strided_slice %0 {offsets = [0, 21], sizes = [32, 107], strides = [1, 1]} : vector<32x128xf32> to vector<32x107xf32>
    %208 = vector.extract_strided_slice %0 {offsets = [0, 0], sizes = [32, 21], strides = [1, 1]} : vector<32x128xf32> to vector<32x21xf32>
    %209 = tpu.concatenate %207, %208 in 1 : vector<32x107xf32>, vector<32x21xf32> -> vector<32x128xf32>
    %210 = vector.extract_strided_slice %1 {offsets = [26, 0], sizes = [1, 128], strides = [1, 1]} : vector<27x128xf32> to vector<1x128xf32>
    %211 = vector.broadcast %210 : vector<1x128xf32> to vector<32x128xf32>
    %212 = arith.mulf %209, %211 : vector<32x128xf32>
    %213 = arith.truncf %212 : vector<32x128xf32> to vector<32x128xbf16>
    %c832 = arith.constant 832 : index
    %c0_30 = arith.constant 0 : index
    %214 = vector.load %arg8[%c832, %c0_30] : memref<864x128xbf16, #tpu.memory_space<vmem>>, vector<32x128xbf16>
    tpu.vector_store %arg8[%c832, %c0_30], %213 {strides = array<i32>} : memref<864x128xbf16, #tpu.memory_space<vmem>>, vector<32x128xbf16>,
    %c0_31 = arith.constant 0 : index
    %c0_32 = arith.constant 0 : index
    %215 = vector.load %arg3[%c0_31, %c0_32] : memref<64x864xbf16, #tpu.memory_space<vmem>>, vector<64x864xbf16>
    %c0_33 = arith.constant 0 : index
    %c0_34 = arith.constant 0 : index
    %216 = vector.load %arg8[%c0_33, %c0_34] : memref<864x128xbf16, #tpu.memory_space<vmem>>, vector<864x128xbf16>
    %cst = arith.constant dense<0.000000e+00> : vector<64x128xf32>
    %217 = tpu.matmul %215, %216, %cst {dimension_numbers = #tpu.dot_dimension_numbers<[1], [0], [0], [1], [0, 0, 1, 1], [], []>} : vector<64x864xbf16>, vector<864x128xbf16>, vector<64x128xf32> -> vector<64x128xf32>
    %c0_35 = arith.constant 0 : index
    %c0_36 = arith.constant 0 : index
    %218 = vector.load %arg4[%c0_35, %c0_36] : memref<64x1xf32, #tpu.memory_space<vmem>>, vector<64x1xf32>
    %219 = vector.broadcast %218 : vector<64x1xf32> to vector<64x128xf32>
    %220 = arith.addf %217, %219 : vector<64x128xf32>
    %c0_37 = arith.constant 0 : index
    %c0_38 = arith.constant 0 : index
    %c0_39 = arith.constant 0 : index
    %221 = vector.load %arg0[%c0_37, %c0_38, %c0_39] : memref<3x32x128xf32, #tpu.memory_space<vmem>>, vector<1x32x128xf32>
    %222 = vector.shape_cast %221 : vector<1x32x128xf32> to vector<32x128xf32>
    %223 = vector.extract_strided_slice %220 {offsets = [0, 0], sizes = [32, 128], strides = [1, 1]} : vector<64x128xf32> to vector<32x128xf32>
    %224 = arith.addf %222, %223 : vector<32x128xf32>
    %225 = arith.negf %224 : vector<32x128xf32>
    %226 = math.exp %225 : vector<32x128xf32>
    %cst_40 = arith.constant 1.000000e+00 : f32
    %227 = vector.broadcast %cst_40 : f32 to vector<32x128xf32>
    %228 = arith.addf %227, %226 : vector<32x128xf32>
    %229 = arith.divf %227, %228 : vector<32x128xf32>
    %c1 = arith.constant 1 : index
    %c0_41 = arith.constant 0 : index
    %c0_42 = arith.constant 0 : index
    %230 = vector.load %arg0[%c1, %c0_41, %c0_42] : memref<3x32x128xf32, #tpu.memory_space<vmem>>, vector<1x32x128xf32>
    %231 = vector.shape_cast %230 : vector<1x32x128xf32> to vector<32x128xf32>
    %232 = vector.extract_strided_slice %220 {offsets = [32, 0], sizes = [32, 128], strides = [1, 1]} : vector<64x128xf32> to vector<32x128xf32>
    %233 = arith.addf %231, %232 : vector<32x128xf32>
    %234 = arith.negf %233 : vector<32x128xf32>
    %235 = math.exp %234 : vector<32x128xf32>
    %cst_43 = arith.constant 1.000000e+00 : f32
    %236 = vector.broadcast %cst_43 : f32 to vector<32x128xf32>
    %237 = arith.addf %236, %235 : vector<32x128xf32>
    %238 = arith.divf %236, %237 : vector<32x128xf32>
    %239 = vector.extract_strided_slice %229 {offsets = [0, 107], sizes = [32, 21], strides = [1, 1]} : vector<32x128xf32> to vector<32x21xf32>
    %240 = vector.extract_strided_slice %229 {offsets = [0, 0], sizes = [32, 107], strides = [1, 1]} : vector<32x128xf32> to vector<32x107xf32>
    %241 = tpu.concatenate %239, %240 in 1 : vector<32x21xf32>, vector<32x107xf32> -> vector<32x128xf32>
    %c0_44 = arith.constant 0 : index
    %c0_45 = arith.constant 0 : index
    %242 = vector.load %arg8[%c0_44, %c0_45] : memref<864x128xbf16, #tpu.memory_space<vmem>>, vector<32x128xbf16>
    %243 = arith.extf %242 : vector<32x128xbf16> to vector<32x128xf32>
    %244 = arith.mulf %241, %243 : vector<32x128xf32>
    %245 = arith.truncf %244 : vector<32x128xf32> to vector<32x128xbf16>
    %c0_46 = arith.constant 0 : index
    %c0_47 = arith.constant 0 : index
    %246 = vector.load %arg9[%c0_46, %c0_47] : memref<864x128xbf16, #tpu.memory_space<vmem>>, vector<32x128xbf16>
    tpu.vector_store %arg9[%c0_46, %c0_47], %245 {strides = array<i32>} : memref<864x128xbf16, #tpu.memory_space<vmem>>, vector<32x128xbf16>,
    %247 = vector.extract_strided_slice %229 {offsets = [0, 108], sizes = [32, 20], strides = [1, 1]} : vector<32x128xf32> to vector<32x20xf32>
    %248 = vector.extract_strided_slice %229 {offsets = [0, 0], sizes = [32, 108], strides = [1, 1]} : vector<32x128xf32> to vector<32x108xf32>
    %249 = tpu.concatenate %247, %248 in 1 : vector<32x20xf32>, vector<32x108xf32> -> vector<32x128xf32>
    %c32_48 = arith.constant 32 : index
    %c0_49 = arith.constant 0 : index
    %250 = vector.load %arg8[%c32_48, %c0_49] : memref<864x128xbf16, #tpu.memory_space<vmem>>, vector<32x128xbf16>
    %251 = arith.extf %250 : vector<32x128xbf16> to vector<32x128xf32>
    %252 = arith.mulf %249, %251 : vector<32x128xf32>
    %253 = arith.truncf %252 : vector<32x128xf32> to vector<32x128xbf16>
    %c32_50 = arith.constant 32 : index
    %c0_51 = arith.constant 0 : index
    %254 = vector.load %arg9[%c32_50, %c0_51] : memref<864x128xbf16, #tpu.memory_space<vmem>>, vector<32x128xbf16>
    tpu.vector_store %arg9[%c32_50, %c0_51], %253 {strides = array<i32>} : memref<864x128xbf16, #tpu.memory_space<vmem>>, vector<32x128xbf16>,
    %255 = vector.extract_strided_slice %229 {offsets = [0, 109], sizes = [32, 19], strides = [1, 1]} : vector<32x128xf32> to vector<32x19xf32>
    %256 = vector.extract_strided_slice %229 {offsets = [0, 0], sizes = [32, 109], strides = [1, 1]} : vector<32x128xf32> to vector<32x109xf32>
    %257 = tpu.concatenate %255, %256 in 1 : vector<32x19xf32>, vector<32x109xf32> -> vector<32x128xf32>
    %c64_52 = arith.constant 64 : index
    %c0_53 = arith.constant 0 : index
    %258 = vector.load %arg8[%c64_52, %c0_53] : memref<864x128xbf16, #tpu.memory_space<vmem>>, vector<32x128xbf16>
    %259 = arith.extf %258 : vector<32x128xbf16> to vector<32x128xf32>
    %260 = arith.mulf %257, %259 : vector<32x128xf32>
    %261 = arith.truncf %260 : vector<32x128xf32> to vector<32x128xbf16>
    %c64_54 = arith.constant 64 : index
    %c0_55 = arith.constant 0 : index
    %262 = vector.load %arg9[%c64_54, %c0_55] : memref<864x128xbf16, #tpu.memory_space<vmem>>, vector<32x128xbf16>
    tpu.vector_store %arg9[%c64_54, %c0_55], %261 {strides = array<i32>} : memref<864x128xbf16, #tpu.memory_space<vmem>>, vector<32x128xbf16>,
    %263 = vector.extract_strided_slice %229 {offsets = [0, 111], sizes = [32, 17], strides = [1, 1]} : vector<32x128xf32> to vector<32x17xf32>
    %264 = vector.extract_strided_slice %229 {offsets = [0, 0], sizes = [32, 111], strides = [1, 1]} : vector<32x128xf32> to vector<32x111xf32>
    %265 = tpu.concatenate %263, %264 in 1 : vector<32x17xf32>, vector<32x111xf32> -> vector<32x128xf32>
    %c96_56 = arith.constant 96 : index
    %c0_57 = arith.constant 0 : index
    %266 = vector.load %arg8[%c96_56, %c0_57] : memref<864x128xbf16, #tpu.memory_space<vmem>>, vector<32x128xbf16>
    %267 = arith.extf %266 : vector<32x128xbf16> to vector<32x128xf32>
    %268 = arith.mulf %265, %267 : vector<32x128xf32>
    %269 = arith.truncf %268 : vector<32x128xf32> to vector<32x128xbf16>
    %c96_58 = arith.constant 96 : index
    %c0_59 = arith.constant 0 : index
    %270 = vector.load %arg9[%c96_58, %c0_59] : memref<864x128xbf16, #tpu.memory_space<vmem>>, vector<32x128xbf16>
    tpu.vector_store %arg9[%c96_58, %c0_59], %269 {strides = array<i32>} : memref<864x128xbf16, #tpu.memory_space<vmem>>, vector<32x128xbf16>,
    %271 = vector.extract_strided_slice %229 {offsets = [0, 112], sizes = [32, 16], strides = [1, 1]} : vector<32x128xf32> to vector<32x16xf32>
    %272 = vector.extract_strided_slice %229 {offsets = [0, 0], sizes = [32, 112], strides = [1, 1]} : vector<32x128xf32> to vector<32x112xf32>
    %273 = tpu.concatenate %271, %272 in 1 : vector<32x16xf32>, vector<32x112xf32> -> vector<32x128xf32>
    %c128_60 = arith.constant 128 : index
    %c0_61 = arith.constant 0 : index
    %274 = vector.load %arg8[%c128_60, %c0_61] : memref<864x128xbf16, #tpu.memory_space<vmem>>, vector<32x128xbf16>
    %275 = arith.extf %274 : vector<32x128xbf16> to vector<32x128xf32>
    %276 = arith.mulf %273, %275 : vector<32x128xf32>
    %277 = arith.truncf %276 : vector<32x128xf32> to vector<32x128xbf16>
    %c128_62 = arith.constant 128 : index
    %c0_63 = arith.constant 0 : index
    %278 = vector.load %arg9[%c128_62, %c0_63] : memref<864x128xbf16, #tpu.memory_space<vmem>>, vector<32x128xbf16>
    tpu.vector_store %arg9[%c128_62, %c0_63], %277 {strides = array<i32>} : memref<864x128xbf16, #tpu.memory_space<vmem>>, vector<32x128xbf16>,
    %279 = vector.extract_strided_slice %229 {offsets = [0, 113], sizes = [32, 15], strides = [1, 1]} : vector<32x128xf32> to vector<32x15xf32>
    %280 = vector.extract_strided_slice %229 {offsets = [0, 0], sizes = [32, 113], strides = [1, 1]} : vector<32x128xf32> to vector<32x113xf32>
    %281 = tpu.concatenate %279, %280 in 1 : vector<32x15xf32>, vector<32x113xf32> -> vector<32x128xf32>
    %c160_64 = arith.constant 160 : index
    %c0_65 = arith.constant 0 : index
    %282 = vector.load %arg8[%c160_64, %c0_65] : memref<864x128xbf16, #tpu.memory_space<vmem>>, vector<32x128xbf16>
    %283 = arith.extf %282 : vector<32x128xbf16> to vector<32x128xf32>
    %284 = arith.mulf %281, %283 : vector<32x128xf32>
    %285 = arith.truncf %284 : vector<32x128xf32> to vector<32x128xbf16>
    %c160_66 = arith.constant 160 : index
    %c0_67 = arith.constant 0 : index
    %286 = vector.load %arg9[%c160_66, %c0_67] : memref<864x128xbf16, #tpu.memory_space<vmem>>, vector<32x128xbf16>
    tpu.vector_store %arg9[%c160_66, %c0_67], %285 {strides = array<i32>} : memref<864x128xbf16, #tpu.memory_space<vmem>>, vector<32x128xbf16>,
    %287 = vector.extract_strided_slice %229 {offsets = [0, 115], sizes = [32, 13], strides = [1, 1]} : vector<32x128xf32> to vector<32x13xf32>
    %288 = vector.extract_strided_slice %229 {offsets = [0, 0], sizes = [32, 115], strides = [1, 1]} : vector<32x128xf32> to vector<32x115xf32>
    %289 = tpu.concatenate %287, %288 in 1 : vector<32x13xf32>, vector<32x115xf32> -> vector<32x128xf32>
    %c192_68 = arith.constant 192 : index
    %c0_69 = arith.constant 0 : index
    %290 = vector.load %arg8[%c192_68, %c0_69] : memref<864x128xbf16, #tpu.memory_space<vmem>>, vector<32x128xbf16>
    %291 = arith.extf %290 : vector<32x128xbf16> to vector<32x128xf32>
    %292 = arith.mulf %289, %291 : vector<32x128xf32>
    %293 = arith.truncf %292 : vector<32x128xf32> to vector<32x128xbf16>
    %c192_70 = arith.constant 192 : index
    %c0_71 = arith.constant 0 : index
    %294 = vector.load %arg9[%c192_70, %c0_71] : memref<864x128xbf16, #tpu.memory_space<vmem>>, vector<32x128xbf16>
    tpu.vector_store %arg9[%c192_70, %c0_71], %293 {strides = array<i32>} : memref<864x128xbf16, #tpu.memory_space<vmem>>, vector<32x128xbf16>,
    %295 = vector.extract_strided_slice %229 {offsets = [0, 116], sizes = [32, 12], strides = [1, 1]} : vector<32x128xf32> to vector<32x12xf32>
    %296 = vector.extract_strided_slice %229 {offsets = [0, 0], sizes = [32, 116], strides = [1, 1]} : vector<32x128xf32> to vector<32x116xf32>
    %297 = tpu.concatenate %295, %296 in 1 : vector<32x12xf32>, vector<32x116xf32> -> vector<32x128xf32>
    %c224_72 = arith.constant 224 : index
    %c0_73 = arith.constant 0 : index
    %298 = vector.load %arg8[%c224_72, %c0_73] : memref<864x128xbf16, #tpu.memory_space<vmem>>, vector<32x128xbf16>
    %299 = arith.extf %298 : vector<32x128xbf16> to vector<32x128xf32>
    %300 = arith.mulf %297, %299 : vector<32x128xf32>
    %301 = arith.truncf %300 : vector<32x128xf32> to vector<32x128xbf16>
    %c224_74 = arith.constant 224 : index
    %c0_75 = arith.constant 0 : index
    %302 = vector.load %arg9[%c224_74, %c0_75] : memref<864x128xbf16, #tpu.memory_space<vmem>>, vector<32x128xbf16>
    tpu.vector_store %arg9[%c224_74, %c0_75], %301 {strides = array<i32>} : memref<864x128xbf16, #tpu.memory_space<vmem>>, vector<32x128xbf16>,
    %303 = vector.extract_strided_slice %229 {offsets = [0, 117], sizes = [32, 11], strides = [1, 1]} : vector<32x128xf32> to vector<32x11xf32>
    %304 = vector.extract_strided_slice %229 {offsets = [0, 0], sizes = [32, 117], strides = [1, 1]} : vector<32x128xf32> to vector<32x117xf32>
    %305 = tpu.concatenate %303, %304 in 1 : vector<32x11xf32>, vector<32x117xf32> -> vector<32x128xf32>
    %c256_76 = arith.constant 256 : index
    %c0_77 = arith.constant 0 : index
    %306 = vector.load %arg8[%c256_76, %c0_77] : memref<864x128xbf16, #tpu.memory_space<vmem>>, vector<32x128xbf16>
    %307 = arith.extf %306 : vector<32x128xbf16> to vector<32x128xf32>
    %308 = arith.mulf %305, %307 : vector<32x128xf32>
    %309 = arith.truncf %308 : vector<32x128xf32> to vector<32x128xbf16>
    %c256_78 = arith.constant 256 : index
    %c0_79 = arith.constant 0 : index
    %310 = vector.load %arg9[%c256_78, %c0_79] : memref<864x128xbf16, #tpu.memory_space<vmem>>, vector<32x128xbf16>
    tpu.vector_store %arg9[%c256_78, %c0_79], %309 {strides = array<i32>} : memref<864x128xbf16, #tpu.memory_space<vmem>>, vector<32x128xbf16>,
    %311 = vector.extract_strided_slice %229 {offsets = [0, 123], sizes = [32, 5], strides = [1, 1]} : vector<32x128xf32> to vector<32x5xf32>
    %312 = vector.extract_strided_slice %229 {offsets = [0, 0], sizes = [32, 123], strides = [1, 1]} : vector<32x128xf32> to vector<32x123xf32>
    %313 = tpu.concatenate %311, %312 in 1 : vector<32x5xf32>, vector<32x123xf32> -> vector<32x128xf32>
    %c288_80 = arith.constant 288 : index
    %c0_81 = arith.constant 0 : index
    %314 = vector.load %arg8[%c288_80, %c0_81] : memref<864x128xbf16, #tpu.memory_space<vmem>>, vector<32x128xbf16>
    %315 = arith.extf %314 : vector<32x128xbf16> to vector<32x128xf32>
    %316 = arith.mulf %313, %315 : vector<32x128xf32>
    %317 = arith.truncf %316 : vector<32x128xf32> to vector<32x128xbf16>
    %c288_82 = arith.constant 288 : index
    %c0_83 = arith.constant 0 : index
    %318 = vector.load %arg9[%c288_82, %c0_83] : memref<864x128xbf16, #tpu.memory_space<vmem>>, vector<32x128xbf16>
    tpu.vector_store %arg9[%c288_82, %c0_83], %317 {strides = array<i32>} : memref<864x128xbf16, #tpu.memory_space<vmem>>, vector<32x128xbf16>,
    %319 = vector.extract_strided_slice %229 {offsets = [0, 124], sizes = [32, 4], strides = [1, 1]} : vector<32x128xf32> to vector<32x4xf32>
    %320 = vector.extract_strided_slice %229 {offsets = [0, 0], sizes = [32, 124], strides = [1, 1]} : vector<32x128xf32> to vector<32x124xf32>
    %321 = tpu.concatenate %319, %320 in 1 : vector<32x4xf32>, vector<32x124xf32> -> vector<32x128xf32>
    %c320_84 = arith.constant 320 : index
    %c0_85 = arith.constant 0 : index
    %322 = vector.load %arg8[%c320_84, %c0_85] : memref<864x128xbf16, #tpu.memory_space<vmem>>, vector<32x128xbf16>
    %323 = arith.extf %322 : vector<32x128xbf16> to vector<32x128xf32>
    %324 = arith.mulf %321, %323 : vector<32x128xf32>
    %325 = arith.truncf %324 : vector<32x128xf32> to vector<32x128xbf16>
    %c320_86 = arith.constant 320 : index
    %c0_87 = arith.constant 0 : index
    %326 = vector.load %arg9[%c320_86, %c0_87] : memref<864x128xbf16, #tpu.memory_space<vmem>>, vector<32x128xbf16>
    tpu.vector_store %arg9[%c320_86, %c0_87], %325 {strides = array<i32>} : memref<864x128xbf16, #tpu.memory_space<vmem>>, vector<32x128xbf16>,
    %327 = vector.extract_strided_slice %229 {offsets = [0, 125], sizes = [32, 3], strides = [1, 1]} : vector<32x128xf32> to vector<32x3xf32>
    %328 = vector.extract_strided_slice %229 {offsets = [0, 0], sizes = [32, 125], strides = [1, 1]} : vector<32x128xf32> to vector<32x125xf32>
    %329 = tpu.concatenate %327, %328 in 1 : vector<32x3xf32>, vector<32x125xf32> -> vector<32x128xf32>
    %c352_88 = arith.constant 352 : index
    %c0_89 = arith.constant 0 : index
    %330 = vector.load %arg8[%c352_88, %c0_89] : memref<864x128xbf16, #tpu.memory_space<vmem>>, vector<32x128xbf16>
    %331 = arith.extf %330 : vector<32x128xbf16> to vector<32x128xf32>
    %332 = arith.mulf %329, %331 : vector<32x128xf32>
    %333 = arith.truncf %332 : vector<32x128xf32> to vector<32x128xbf16>
    %c352_90 = arith.constant 352 : index
    %c0_91 = arith.constant 0 : index
    %334 = vector.load %arg9[%c352_90, %c0_91] : memref<864x128xbf16, #tpu.memory_space<vmem>>, vector<32x128xbf16>
    tpu.vector_store %arg9[%c352_90, %c0_91], %333 {strides = array<i32>} : memref<864x128xbf16, #tpu.memory_space<vmem>>, vector<32x128xbf16>,
    %335 = vector.extract_strided_slice %229 {offsets = [0, 127], sizes = [32, 1], strides = [1, 1]} : vector<32x128xf32> to vector<32x1xf32>
    %336 = vector.extract_strided_slice %229 {offsets = [0, 0], sizes = [32, 127], strides = [1, 1]} : vector<32x128xf32> to vector<32x127xf32>
    %337 = tpu.concatenate %335, %336 in 1 : vector<32x1xf32>, vector<32x127xf32> -> vector<32x128xf32>
    %c384_92 = arith.constant 384 : index
    %c0_93 = arith.constant 0 : index
    %338 = vector.load %arg8[%c384_92, %c0_93] : memref<864x128xbf16, #tpu.memory_space<vmem>>, vector<32x128xbf16>
    %339 = arith.extf %338 : vector<32x128xbf16> to vector<32x128xf32>
    %340 = arith.mulf %337, %339 : vector<32x128xf32>
    %341 = arith.truncf %340 : vector<32x128xf32> to vector<32x128xbf16>
    %c384_94 = arith.constant 384 : index
    %c0_95 = arith.constant 0 : index
    %342 = vector.load %arg9[%c384_94, %c0_95] : memref<864x128xbf16, #tpu.memory_space<vmem>>, vector<32x128xbf16>
    tpu.vector_store %arg9[%c384_94, %c0_95], %341 {strides = array<i32>} : memref<864x128xbf16, #tpu.memory_space<vmem>>, vector<32x128xbf16>,
    %c416_96 = arith.constant 416 : index
    %c0_97 = arith.constant 0 : index
    %343 = vector.load %arg8[%c416_96, %c0_97] : memref<864x128xbf16, #tpu.memory_space<vmem>>, vector<32x128xbf16>
    %344 = arith.extf %343 : vector<32x128xbf16> to vector<32x128xf32>
    %345 = arith.mulf %229, %344 : vector<32x128xf32>
    %346 = arith.truncf %345 : vector<32x128xf32> to vector<32x128xbf16>
    %c416_98 = arith.constant 416 : index
    %c0_99 = arith.constant 0 : index
    %347 = vector.load %arg9[%c416_98, %c0_99] : memref<864x128xbf16, #tpu.memory_space<vmem>>, vector<32x128xbf16>
    tpu.vector_store %arg9[%c416_98, %c0_99], %346 {strides = array<i32>} : memref<864x128xbf16, #tpu.memory_space<vmem>>, vector<32x128xbf16>,
    %348 = vector.extract_strided_slice %229 {offsets = [0, 1], sizes = [32, 127], strides = [1, 1]} : vector<32x128xf32> to vector<32x127xf32>
    %349 = vector.extract_strided_slice %229 {offsets = [0, 0], sizes = [32, 1], strides = [1, 1]} : vector<32x128xf32> to vector<32x1xf32>
    %350 = tpu.concatenate %348, %349 in 1 : vector<32x127xf32>, vector<32x1xf32> -> vector<32x128xf32>
    %c448_100 = arith.constant 448 : index
    %c0_101 = arith.constant 0 : index
    %351 = vector.load %arg8[%c448_100, %c0_101] : memref<864x128xbf16, #tpu.memory_space<vmem>>, vector<32x128xbf16>
    %352 = arith.extf %351 : vector<32x128xbf16> to vector<32x128xf32>
    %353 = arith.mulf %350, %352 : vector<32x128xf32>
    %354 = arith.truncf %353 : vector<32x128xf32> to vector<32x128xbf16>
    %c448_102 = arith.constant 448 : index
    %c0_103 = arith.constant 0 : index
    %355 = vector.load %arg9[%c448_102, %c0_103] : memref<864x128xbf16, #tpu.memory_space<vmem>>, vector<32x128xbf16>
    tpu.vector_store %arg9[%c448_102, %c0_103], %354 {strides = array<i32>} : memref<864x128xbf16, #tpu.memory_space<vmem>>, vector<32x128xbf16>,
    %356 = vector.extract_strided_slice %229 {offsets = [0, 3], sizes = [32, 125], strides = [1, 1]} : vector<32x128xf32> to vector<32x125xf32>
    %357 = vector.extract_strided_slice %229 {offsets = [0, 0], sizes = [32, 3], strides = [1, 1]} : vector<32x128xf32> to vector<32x3xf32>
    %358 = tpu.concatenate %356, %357 in 1 : vector<32x125xf32>, vector<32x3xf32> -> vector<32x128xf32>
    %c480_104 = arith.constant 480 : index
    %c0_105 = arith.constant 0 : index
    %359 = vector.load %arg8[%c480_104, %c0_105] : memref<864x128xbf16, #tpu.memory_space<vmem>>, vector<32x128xbf16>
    %360 = arith.extf %359 : vector<32x128xbf16> to vector<32x128xf32>
    %361 = arith.mulf %358, %360 : vector<32x128xf32>
    %362 = arith.truncf %361 : vector<32x128xf32> to vector<32x128xbf16>
    %c480_106 = arith.constant 480 : index
    %c0_107 = arith.constant 0 : index
    %363 = vector.load %arg9[%c480_106, %c0_107] : memref<864x128xbf16, #tpu.memory_space<vmem>>, vector<32x128xbf16>
    tpu.vector_store %arg9[%c480_106, %c0_107], %362 {strides = array<i32>} : memref<864x128xbf16, #tpu.memory_space<vmem>>, vector<32x128xbf16>,
    %364 = vector.extract_strided_slice %229 {offsets = [0, 4], sizes = [32, 124], strides = [1, 1]} : vector<32x128xf32> to vector<32x124xf32>
    %365 = vector.extract_strided_slice %229 {offsets = [0, 0], sizes = [32, 4], strides = [1, 1]} : vector<32x128xf32> to vector<32x4xf32>
    %366 = tpu.concatenate %364, %365 in 1 : vector<32x124xf32>, vector<32x4xf32> -> vector<32x128xf32>
    %c512_108 = arith.constant 512 : index
    %c0_109 = arith.constant 0 : index
    %367 = vector.load %arg8[%c512_108, %c0_109] : memref<864x128xbf16, #tpu.memory_space<vmem>>, vector<32x128xbf16>
    %368 = arith.extf %367 : vector<32x128xbf16> to vector<32x128xf32>
    %369 = arith.mulf %366, %368 : vector<32x128xf32>
    %370 = arith.truncf %369 : vector<32x128xf32> to vector<32x128xbf16>
    %c512_110 = arith.constant 512 : index
    %c0_111 = arith.constant 0 : index
    %371 = vector.load %arg9[%c512_110, %c0_111] : memref<864x128xbf16, #tpu.memory_space<vmem>>, vector<32x128xbf16>
    tpu.vector_store %arg9[%c512_110, %c0_111], %370 {strides = array<i32>} : memref<864x128xbf16, #tpu.memory_space<vmem>>, vector<32x128xbf16>,
    %372 = vector.extract_strided_slice %229 {offsets = [0, 5], sizes = [32, 123], strides = [1, 1]} : vector<32x128xf32> to vector<32x123xf32>
    %373 = vector.extract_strided_slice %229 {offsets = [0, 0], sizes = [32, 5], strides = [1, 1]} : vector<32x128xf32> to vector<32x5xf32>
    %374 = tpu.concatenate %372, %373 in 1 : vector<32x123xf32>, vector<32x5xf32> -> vector<32x128xf32>
    %c544_112 = arith.constant 544 : index
    %c0_113 = arith.constant 0 : index
    %375 = vector.load %arg8[%c544_112, %c0_113] : memref<864x128xbf16, #tpu.memory_space<vmem>>, vector<32x128xbf16>
    %376 = arith.extf %375 : vector<32x128xbf16> to vector<32x128xf32>
    %377 = arith.mulf %374, %376 : vector<32x128xf32>
    %378 = arith.truncf %377 : vector<32x128xf32> to vector<32x128xbf16>
    %c544_114 = arith.constant 544 : index
    %c0_115 = arith.constant 0 : index
    %379 = vector.load %arg9[%c544_114, %c0_115] : memref<864x128xbf16, #tpu.memory_space<vmem>>, vector<32x128xbf16>
    tpu.vector_store %arg9[%c544_114, %c0_115], %378 {strides = array<i32>} : memref<864x128xbf16, #tpu.memory_space<vmem>>, vector<32x128xbf16>,
    %380 = vector.extract_strided_slice %229 {offsets = [0, 11], sizes = [32, 117], strides = [1, 1]} : vector<32x128xf32> to vector<32x117xf32>
    %381 = vector.extract_strided_slice %229 {offsets = [0, 0], sizes = [32, 11], strides = [1, 1]} : vector<32x128xf32> to vector<32x11xf32>
    %382 = tpu.concatenate %380, %381 in 1 : vector<32x117xf32>, vector<32x11xf32> -> vector<32x128xf32>
    %c576_116 = arith.constant 576 : index
    %c0_117 = arith.constant 0 : index
    %383 = vector.load %arg8[%c576_116, %c0_117] : memref<864x128xbf16, #tpu.memory_space<vmem>>, vector<32x128xbf16>
    %384 = arith.extf %383 : vector<32x128xbf16> to vector<32x128xf32>
    %385 = arith.mulf %382, %384 : vector<32x128xf32>
    %386 = arith.truncf %385 : vector<32x128xf32> to vector<32x128xbf16>
    %c576_118 = arith.constant 576 : index
    %c0_119 = arith.constant 0 : index
    %387 = vector.load %arg9[%c576_118, %c0_119] : memref<864x128xbf16, #tpu.memory_space<vmem>>, vector<32x128xbf16>
    tpu.vector_store %arg9[%c576_118, %c0_119], %386 {strides = array<i32>} : memref<864x128xbf16, #tpu.memory_space<vmem>>, vector<32x128xbf16>,
    %388 = vector.extract_strided_slice %229 {offsets = [0, 12], sizes = [32, 116], strides = [1, 1]} : vector<32x128xf32> to vector<32x116xf32>
    %389 = vector.extract_strided_slice %229 {offsets = [0, 0], sizes = [32, 12], strides = [1, 1]} : vector<32x128xf32> to vector<32x12xf32>
    %390 = tpu.concatenate %388, %389 in 1 : vector<32x116xf32>, vector<32x12xf32> -> vector<32x128xf32>
    %c608_120 = arith.constant 608 : index
    %c0_121 = arith.constant 0 : index
    %391 = vector.load %arg8[%c608_120, %c0_121] : memref<864x128xbf16, #tpu.memory_space<vmem>>, vector<32x128xbf16>
    %392 = arith.extf %391 : vector<32x128xbf16> to vector<32x128xf32>
    %393 = arith.mulf %390, %392 : vector<32x128xf32>
    %394 = arith.truncf %393 : vector<32x128xf32> to vector<32x128xbf16>
    %c608_122 = arith.constant 608 : index
    %c0_123 = arith.constant 0 : index
    %395 = vector.load %arg9[%c608_122, %c0_123] : memref<864x128xbf16, #tpu.memory_space<vmem>>, vector<32x128xbf16>
    tpu.vector_store %arg9[%c608_122, %c0_123], %394 {strides = array<i32>} : memref<864x128xbf16, #tpu.memory_space<vmem>>, vector<32x128xbf16>,
    %396 = vector.extract_strided_slice %229 {offsets = [0, 13], sizes = [32, 115], strides = [1, 1]} : vector<32x128xf32> to vector<32x115xf32>
    %397 = vector.extract_strided_slice %229 {offsets = [0, 0], sizes = [32, 13], strides = [1, 1]} : vector<32x128xf32> to vector<32x13xf32>
    %398 = tpu.concatenate %396, %397 in 1 : vector<32x115xf32>, vector<32x13xf32> -> vector<32x128xf32>
    %c640_124 = arith.constant 640 : index
    %c0_125 = arith.constant 0 : index
    %399 = vector.load %arg8[%c640_124, %c0_125] : memref<864x128xbf16, #tpu.memory_space<vmem>>, vector<32x128xbf16>
    %400 = arith.extf %399 : vector<32x128xbf16> to vector<32x128xf32>
    %401 = arith.mulf %398, %400 : vector<32x128xf32>
    %402 = arith.truncf %401 : vector<32x128xf32> to vector<32x128xbf16>
    %c640_126 = arith.constant 640 : index
    %c0_127 = arith.constant 0 : index
    %403 = vector.load %arg9[%c640_126, %c0_127] : memref<864x128xbf16, #tpu.memory_space<vmem>>, vector<32x128xbf16>
    tpu.vector_store %arg9[%c640_126, %c0_127], %402 {strides = array<i32>} : memref<864x128xbf16, #tpu.memory_space<vmem>>, vector<32x128xbf16>,
    %404 = vector.extract_strided_slice %229 {offsets = [0, 15], sizes = [32, 113], strides = [1, 1]} : vector<32x128xf32> to vector<32x113xf32>
    %405 = vector.extract_strided_slice %229 {offsets = [0, 0], sizes = [32, 15], strides = [1, 1]} : vector<32x128xf32> to vector<32x15xf32>
    %406 = tpu.concatenate %404, %405 in 1 : vector<32x113xf32>, vector<32x15xf32> -> vector<32x128xf32>
    %c672_128 = arith.constant 672 : index
    %c0_129 = arith.constant 0 : index
    %407 = vector.load %arg8[%c672_128, %c0_129] : memref<864x128xbf16, #tpu.memory_space<vmem>>, vector<32x128xbf16>
    %408 = arith.extf %407 : vector<32x128xbf16> to vector<32x128xf32>
    %409 = arith.mulf %406, %408 : vector<32x128xf32>
    %410 = arith.truncf %409 : vector<32x128xf32> to vector<32x128xbf16>
    %c672_130 = arith.constant 672 : index
    %c0_131 = arith.constant 0 : index
    %411 = vector.load %arg9[%c672_130, %c0_131] : memref<864x128xbf16, #tpu.memory_space<vmem>>, vector<32x128xbf16>
    tpu.vector_store %arg9[%c672_130, %c0_131], %410 {strides = array<i32>} : memref<864x128xbf16, #tpu.memory_space<vmem>>, vector<32x128xbf16>,
    %412 = vector.extract_strided_slice %229 {offsets = [0, 16], sizes = [32, 112], strides = [1, 1]} : vector<32x128xf32> to vector<32x112xf32>
    %413 = vector.extract_strided_slice %229 {offsets = [0, 0], sizes = [32, 16], strides = [1, 1]} : vector<32x128xf32> to vector<32x16xf32>
    %414 = tpu.concatenate %412, %413 in 1 : vector<32x112xf32>, vector<32x16xf32> -> vector<32x128xf32>
    %c704_132 = arith.constant 704 : index
    %c0_133 = arith.constant 0 : index
    %415 = vector.load %arg8[%c704_132, %c0_133] : memref<864x128xbf16, #tpu.memory_space<vmem>>, vector<32x128xbf16>
    %416 = arith.extf %415 : vector<32x128xbf16> to vector<32x128xf32>
    %417 = arith.mulf %414, %416 : vector<32x128xf32>
    %418 = arith.truncf %417 : vector<32x128xf32> to vector<32x128xbf16>
    %c704_134 = arith.constant 704 : index
    %c0_135 = arith.constant 0 : index
    %419 = vector.load %arg9[%c704_134, %c0_135] : memref<864x128xbf16, #tpu.memory_space<vmem>>, vector<32x128xbf16>
    tpu.vector_store %arg9[%c704_134, %c0_135], %418 {strides = array<i32>} : memref<864x128xbf16, #tpu.memory_space<vmem>>, vector<32x128xbf16>,
    %420 = vector.extract_strided_slice %229 {offsets = [0, 17], sizes = [32, 111], strides = [1, 1]} : vector<32x128xf32> to vector<32x111xf32>
    %421 = vector.extract_strided_slice %229 {offsets = [0, 0], sizes = [32, 17], strides = [1, 1]} : vector<32x128xf32> to vector<32x17xf32>
    %422 = tpu.concatenate %420, %421 in 1 : vector<32x111xf32>, vector<32x17xf32> -> vector<32x128xf32>
    %c736_136 = arith.constant 736 : index
    %c0_137 = arith.constant 0 : index
    %423 = vector.load %arg8[%c736_136, %c0_137] : memref<864x128xbf16, #tpu.memory_space<vmem>>, vector<32x128xbf16>
    %424 = arith.extf %423 : vector<32x128xbf16> to vector<32x128xf32>
    %425 = arith.mulf %422, %424 : vector<32x128xf32>
    %426 = arith.truncf %425 : vector<32x128xf32> to vector<32x128xbf16>
    %c736_138 = arith.constant 736 : index
    %c0_139 = arith.constant 0 : index
    %427 = vector.load %arg9[%c736_138, %c0_139] : memref<864x128xbf16, #tpu.memory_space<vmem>>, vector<32x128xbf16>
    tpu.vector_store %arg9[%c736_138, %c0_139], %426 {strides = array<i32>} : memref<864x128xbf16, #tpu.memory_space<vmem>>, vector<32x128xbf16>,
    %428 = vector.extract_strided_slice %229 {offsets = [0, 19], sizes = [32, 109], strides = [1, 1]} : vector<32x128xf32> to vector<32x109xf32>
    %429 = vector.extract_strided_slice %229 {offsets = [0, 0], sizes = [32, 19], strides = [1, 1]} : vector<32x128xf32> to vector<32x19xf32>
    %430 = tpu.concatenate %428, %429 in 1 : vector<32x109xf32>, vector<32x19xf32> -> vector<32x128xf32>
    %c768_140 = arith.constant 768 : index
    %c0_141 = arith.constant 0 : index
    %431 = vector.load %arg8[%c768_140, %c0_141] : memref<864x128xbf16, #tpu.memory_space<vmem>>, vector<32x128xbf16>
    %432 = arith.extf %431 : vector<32x128xbf16> to vector<32x128xf32>
    %433 = arith.mulf %430, %432 : vector<32x128xf32>
    %434 = arith.truncf %433 : vector<32x128xf32> to vector<32x128xbf16>
    %c768_142 = arith.constant 768 : index
    %c0_143 = arith.constant 0 : index
    %435 = vector.load %arg9[%c768_142, %c0_143] : memref<864x128xbf16, #tpu.memory_space<vmem>>, vector<32x128xbf16>
    tpu.vector_store %arg9[%c768_142, %c0_143], %434 {strides = array<i32>} : memref<864x128xbf16, #tpu.memory_space<vmem>>, vector<32x128xbf16>,
    %436 = vector.extract_strided_slice %229 {offsets = [0, 20], sizes = [32, 108], strides = [1, 1]} : vector<32x128xf32> to vector<32x108xf32>
    %437 = vector.extract_strided_slice %229 {offsets = [0, 0], sizes = [32, 20], strides = [1, 1]} : vector<32x128xf32> to vector<32x20xf32>
    %438 = tpu.concatenate %436, %437 in 1 : vector<32x108xf32>, vector<32x20xf32> -> vector<32x128xf32>
    %c800_144 = arith.constant 800 : index
    %c0_145 = arith.constant 0 : index
    %439 = vector.load %arg8[%c800_144, %c0_145] : memref<864x128xbf16, #tpu.memory_space<vmem>>, vector<32x128xbf16>
    %440 = arith.extf %439 : vector<32x128xbf16> to vector<32x128xf32>
    %441 = arith.mulf %438, %440 : vector<32x128xf32>
    %442 = arith.truncf %441 : vector<32x128xf32> to vector<32x128xbf16>
    %c800_146 = arith.constant 800 : index
    %c0_147 = arith.constant 0 : index
    %443 = vector.load %arg9[%c800_146, %c0_147] : memref<864x128xbf16, #tpu.memory_space<vmem>>, vector<32x128xbf16>
    tpu.vector_store %arg9[%c800_146, %c0_147], %442 {strides = array<i32>} : memref<864x128xbf16, #tpu.memory_space<vmem>>, vector<32x128xbf16>,
    %444 = vector.extract_strided_slice %229 {offsets = [0, 21], sizes = [32, 107], strides = [1, 1]} : vector<32x128xf32> to vector<32x107xf32>
    %445 = vector.extract_strided_slice %229 {offsets = [0, 0], sizes = [32, 21], strides = [1, 1]} : vector<32x128xf32> to vector<32x21xf32>
    %446 = tpu.concatenate %444, %445 in 1 : vector<32x107xf32>, vector<32x21xf32> -> vector<32x128xf32>
    %c832_148 = arith.constant 832 : index
    %c0_149 = arith.constant 0 : index
    %447 = vector.load %arg8[%c832_148, %c0_149] : memref<864x128xbf16, #tpu.memory_space<vmem>>, vector<32x128xbf16>
    %448 = arith.extf %447 : vector<32x128xbf16> to vector<32x128xf32>
    %449 = arith.mulf %446, %448 : vector<32x128xf32>
    %450 = arith.truncf %449 : vector<32x128xf32> to vector<32x128xbf16>
    %c832_150 = arith.constant 832 : index
    %c0_151 = arith.constant 0 : index
    %451 = vector.load %arg9[%c832_150, %c0_151] : memref<864x128xbf16, #tpu.memory_space<vmem>>, vector<32x128xbf16>
    tpu.vector_store %arg9[%c832_150, %c0_151], %450 {strides = array<i32>} : memref<864x128xbf16, #tpu.memory_space<vmem>>, vector<32x128xbf16>,
    %c0_152 = arith.constant 0 : index
    %c0_153 = arith.constant 0 : index
    %452 = vector.load %arg5[%c0_152, %c0_153] : memref<32x864xbf16, #tpu.memory_space<vmem>>, vector<32x864xbf16>
    %c0_154 = arith.constant 0 : index
    %c0_155 = arith.constant 0 : index
    %453 = vector.load %arg9[%c0_154, %c0_155] : memref<864x128xbf16, #tpu.memory_space<vmem>>, vector<864x128xbf16>
    %cst_156 = arith.constant dense<0.000000e+00> : vector<32x128xf32>
    %454 = tpu.matmul %452, %453, %cst_156 {dimension_numbers = #tpu.dot_dimension_numbers<[1], [0], [0], [1], [0, 0, 1, 1], [], []>} : vector<32x864xbf16>, vector<864x128xbf16>, vector<32x128xf32> -> vector<32x128xf32>
    %c0_157 = arith.constant 0 : index
    %c0_158 = arith.constant 0 : index
    %455 = vector.load %arg6[%c0_157, %c0_158] : memref<32x1xf32, #tpu.memory_space<vmem>>, vector<32x1xf32>
    %456 = vector.broadcast %455 : vector<32x1xf32> to vector<32x128xf32>
    %457 = arith.addf %454, %456 : vector<32x128xf32>
    %c2 = arith.constant 2 : index
    %c0_159 = arith.constant 0 : index
    %c0_160 = arith.constant 0 : index
    %458 = vector.load %arg0[%c2, %c0_159, %c0_160] : memref<3x32x128xf32, #tpu.memory_space<vmem>>, vector<1x32x128xf32>
    %459 = vector.shape_cast %458 : vector<1x32x128xf32> to vector<32x128xf32>
    %460 = arith.addf %459, %457 : vector<32x128xf32>
    %461 = math.tanh %460 : vector<32x128xf32>
    %cst_161 = arith.constant 1.000000e+00 : f32
    %462 = vector.broadcast %cst_161 : f32 to vector<32x128xf32>
    %463 = arith.subf %462, %238 : vector<32x128xf32>
    %464 = arith.mulf %463, %0 : vector<32x128xf32>
    %465 = arith.mulf %238, %461 : vector<32x128xf32>
    %466 = arith.addf %464, %465 : vector<32x128xf32>
    %c0_162 = arith.constant 0 : index
    %c0_163 = arith.constant 0 : index
    %467 = vector.load %arg7[%c0_162, %c0_163] : memref<32x128xf32, #tpu.memory_space<vmem>>, vector<32x128xf32>
    tpu.vector_store %arg7[%c0_162, %c0_163], %466 {strides = array<i32>} : memref<32x128xf32, #tpu.memory_space<vmem>>, vector<32x128xf32>,
    return
  }
}

</mosaic_0001>

<llo_original>
// kernel: tpu_custom_call.1
$region0: #{tpu_custom_call.1}
  #allocation0 [shape = 'u32[]', space=smem, size = 0x4, offset = 0x4, fixed_abs, tag = 'smem constant byte address 0x4 - core index']
  #allocation1 [shape = 'u32[144,128]{1,0:T(1,128)}', space=vmem, size = 0x12000, scoped, tag = 'internal scratch']
  %s0 = inlined_call_operand.hbm [shape: f32[8,128], index: 0, kind: input, shape index: {}]
  %s1 = inlined_call_operand.hbm [shape: f32[8,128], index: 1, kind: output, shape index: {}]
  %s2 = sld [smem:[#allocation0]]
  $region18: #{tpu_custom_call.1} parent=0
    _
  %s4 = ssub.s32 1, %s2
  %s5 = scalar_select 0, %s4, %s2
  $region1: #{tpu_custom_call.1} parent=0
    #allocation2 [shape = 'u8[4096]{0}', space=vmem, size = 0x1000, scoped, tag = 'input window, operand 0, single buffered']
    #allocation3 [shape = 's32[1]{0}', space=sflag, size = 0x4, scoped, tag = 'scoped memory for tpu_custom_call.1']
    #allocation4 [shape = 's32[1]{0}', space=sflag, size = 0x4, scoped, tag = 'scoped memory for tpu_custom_call.1']
    #allocation5 [shape = 'u8[4096]{0}', space=vmem, size = 0x1000, scoped, tag = 'output window, operand 0, single buffered']
    %6 = vsyncpa [#allocation3], 0
    %7 = vsyncpa [#allocation4], 0
    // Predicated region
    $region2: #{tpu_custom_call.1} parent=1 // pred_check
      _
    $region3: #{tpu_custom_call.1} parent=1 // pred_check_branch
      %9 = sbr.rel (0) target = $region5
    $region4: #{tpu_custom_call.1} parent=1 // pred_region
      %s11 = ssub.s32 128, 128
      %12 = vsyncadd [#allocation3], %s11
      %s14 = sshll.u32 [#allocation2], 4
      %s15 = int_to_ptr.vmem [resolvable:$true] %s14
      %17 = dma.hbm_to_vmem [thread:$0]  %s0, 128, %s15, [#allocation3]
    $region5: #{tpu_custom_call.1} parent=1 // pred_fallthru
      _
    // Predicated region
    $region6: #{tpu_custom_call.1} parent=1 // pred_check
      _
    $region7: #{tpu_custom_call.1} parent=1 // pred_check_branch
      %19 = sbr.rel (0) target = $region9
    $region8: #{tpu_custom_call.1} parent=1 // pred_region
      %20 = dma.done [#allocation3], 128
    $region9: #{tpu_custom_call.1} parent=1 // pred_fallthru
      _
    %v21 = vld [vmem:[#allocation2] sm:$0xff]
    %22 = vrot.lane.b32.xlu0 %v21, 1
    %v23 = vpop.permute.xlu0 %22
    %24 = vst [vmem:[#allocation5] sm:$0xff] %v23
    // Predicated region
    $region10: #{tpu_custom_call.1} parent=1 // pred_check
      _
    $region11: #{tpu_custom_call.1} parent=1 // pred_check_branch
      %26 = sbr.rel (0) target = $region13
    $region12: #{tpu_custom_call.1} parent=1 // pred_region
      %s28 = ssub.s32 128, 128
      %29 = vsyncadd [#allocation4], %s28
      %s31 = sshll.u32 [#allocation5], 4
      %s32 = int_to_ptr.vmem [resolvable:$true] %s31
      %34 = dma.vmem_to_hbm [thread:$0]  %s32, 128, %s1, [#allocation4]
    $region13: #{tpu_custom_call.1} parent=1 // pred_fallthru
      _
    // Predicated region
    $region14: #{tpu_custom_call.1} parent=1 // pred_check
      _
    $region15: #{tpu_custom_call.1} parent=1 // pred_check_branch
      %36 = sbr.rel (0) target = $region17
    $region16: #{tpu_custom_call.1} parent=1 // pred_region
      %37 = dma.done [#allocation4], 128
    $region17: #{tpu_custom_call.1} parent=1 // pred_fallthru
      _
    %38 = vsyncpa [#allocation3], 1
    %39 = vsyncpa [#allocation4], 1

// kernel: gru_forward.3
$region0: #{gru_forward.3}
  #allocation0 [shape = 'u32[]', space=smem, size = 0x4, offset = 0x4, fixed_abs, tag = 'smem constant byte address 0x4 - core index']
  #allocation1 [shape = 'u32[144,128]{1,0:T(1,128)}', space=vmem, size = 0x12000, scoped, tag = 'internal scratch']
  #allocation2 [shape = 'bf16[864,128]{1,0:T(16,128)(2,1)}', space=vmem, size = 0x36000, scoped, tag = 'scratch operand']
  #allocation3 [shape = 'bf16[864,128]{1,0:T(16,128)(2,1)}', space=vmem, size = 0x36000, scoped, tag = 'scratch operand']
  %s0 = inlined_call_operand.vmem [shape: f32[3,32,128], index: 0, kind: input, shape index: {}]
  %s1 = inlined_call_operand.vmem [shape: f32[32,128], index: 1, kind: input, shape index: {}]
  %s2 = inlined_call_operand.vmem [shape: f32[27,128], index: 2, kind: input, shape index: {}]
  %s3 = inlined_call_operand.vmem [shape: bf16[64,864], index: 3, kind: input, shape index: {}]
  %s4 = inlined_call_operand.vmem [shape: f32[64,1], index: 4, kind: input, shape index: {}]
  %s5 = inlined_call_operand.vmem [shape: bf16[32,864], index: 5, kind: input, shape index: {}]
  %s6 = inlined_call_operand.vmem [shape: f32[32,1], index: 6, kind: input, shape index: {}]
  %s7 = inlined_call_operand.vmem [shape: f32[32,128], index: 7, kind: output, shape index: {}]
  %s8 = sld [smem:[#allocation0]]
  $region38: #{gru_forward.3} parent=0
    _
  %s10 = ssub.s32 1, %s8
  %s11 = scalar_select 0, %s10, %s8
  // Predicated region
  $region2: #{gru_forward.3} parent=0 // pred_check
    _
  $region3: #{gru_forward.3} parent=0 // pred_check_branch
    %13 = sbr.rel (0) target = $region5
  $region4: #{gru_forward.3} parent=0 // pred_region
    _
  $region5: #{gru_forward.3} parent=0 // pred_fallthru
    _
  // Predicated region
  $region6: #{gru_forward.3} parent=0 // pred_check
    _
  $region7: #{gru_forward.3} parent=0 // pred_check_branch
    %15 = sbr.rel (0) target = $region9
  $region8: #{gru_forward.3} parent=0 // pred_region
    _
  $region9: #{gru_forward.3} parent=0 // pred_fallthru
    _
  // Predicated region
  $region10: #{gru_forward.3} parent=0 // pred_check
    _
  $region11: #{gru_forward.3} parent=0 // pred_check_branch
    %17 = sbr.rel (0) target = $region13
  $region12: #{gru_forward.3} parent=0 // pred_region
    _
  $region13: #{gru_forward.3} parent=0 // pred_fallthru
    _
  // Predicated region
  $region14: #{gru_forward.3} parent=0 // pred_check
    _
  $region15: #{gru_forward.3} parent=0 // pred_check_branch
    %19 = sbr.rel (0) target = $region17
  $region16: #{gru_forward.3} parent=0 // pred_region
    _
  $region17: #{gru_forward.3} parent=0 // pred_fallthru
    _
  // Predicated region
  $region18: #{gru_forward.3} parent=0 // pred_check
    _
  $region19: #{gru_forward.3} parent=0 // pred_check_branch
    %21 = sbr.rel (0) target = $region21
  $region20: #{gru_forward.3} parent=0 // pred_region
    _
  $region21: #{gru_forward.3} parent=0 // pred_fallthru
    _
  // Predicated region
  $region22: #{gru_forward.3} parent=0 // pred_check
    _
  $region23: #{gru_forward.3} parent=0 // pred_check_branch
    %23 = sbr.rel (0) target = $region25
  $region24: #{gru_forward.3} parent=0 // pred_region
    _
  $region25: #{gru_forward.3} parent=0 // pred_fallthru
    _
  // Predicated region
  $region26: #{gru_forward.3} parent=0 // pred_check
    _
  $region27: #{gru_forward.3} parent=0 // pred_check_branch
    %25 = sbr.rel (0) target = $region29
  $region28: #{gru_forward.3} parent=0 // pred_region
    _
  $region29: #{gru_forward.3} parent=0 // pred_fallthru
    _
  %v27 = vld [vmem:[%s1] sm:$0xff]
  %v28 = vld [vmem:[%s1 + $0x8] sm:$0xff]
  %v29 = vld [vmem:[%s1 + $0x10] sm:$0xff]
  %v30 = vld [vmem:[%s1 + $0x18] sm:$0xff]
  %v31 = vld [vmem:[%s2] sm:$0xff]
  %v32 = vld [vmem:[%s2 + $0x8] sm:$0xff]
  %v33 = vld [vmem:[%s2 + $0x10] sm:$0xff]
  %v34 = vld [vmem:[%s2 + $0x18] sm:$0x7]
  %39 = vrot.lane.b32.xlu0 %v27, 21
  %v40 = vpop.permute.xlu0 %39
  %41 = vrot.lane.b32.xlu0 %v28, 21
  %v42 = vpop.permute.xlu0 %41
  %43 = vrot.lane.b32.xlu0 %v29, 21
  %v44 = vpop.permute.xlu0 %43
  %45 = vrot.lane.b32.xlu0 %v30, 21
  %v46 = vpop.permute.xlu0 %45
  %v51 = vlaneseq
  %v52 = vshrl.u32 %v51, 7
  %v53 = vsub.s32 0, %v52
  %v54 = vrot.slane %v31, %v53
  %v55 = vmul.f32 %v40, %v54
  %v56 = vmul.f32 %v42, %v54
  %v57 = vmul.f32 %v44, %v54
  %v58 = vmul.f32 %v46, %v54
  %v59 = vpack.c.bf16 %v56, %v55
  %v60 = vpack.c.bf16 %v58, %v57
  %61 = vst [vmem:[#allocation2] sm:$0xff] %v59
  %62 = vst [vmem:[#allocation2 + $0x8] sm:$0xff] %v60
  %63 = vrot.lane.b32.xlu0 %v27, 20
  %v64 = vpop.permute.xlu0 %63
  %65 = vrot.lane.b32.xlu0 %v28, 20
  %v66 = vpop.permute.xlu0 %65
  %67 = vrot.lane.b32.xlu0 %v29, 20
  %v68 = vpop.permute.xlu0 %67
  %69 = vrot.lane.b32.xlu0 %v30, 20
  %v70 = vpop.permute.xlu0 %69
  %v75 = vlaneseq
  %v76 = vshrl.u32 %v75, 7
  %v77 = vsub.s32 1, %v76
  %v78 = vrot.slane %v31, %v77
  %v79 = vmul.f32 %v64, %v78
  %v80 = vmul.f32 %v66, %v78
  %v81 = vmul.f32 %v68, %v78
  %v82 = vmul.f32 %v70, %v78
  %v83 = vpack.c.bf16 %v80, %v79
  %v84 = vpack.c.bf16 %v82, %v81
  %85 = vst [vmem:[#allocation2 + $0x10] sm:$0xff] %v83
  %86 = vst [vmem:[#allocation2 + $0x18] sm:$0xff] %v84
  %87 = vrot.lane.b32.xlu0 %v27, 19
  %v88 = vpop.permute.xlu0 %87
  %89 = vrot.lane.b32.xlu0 %v28, 19
  %v90 = vpop.permute.xlu0 %89
  %91 = vrot.lane.b32.xlu0 %v29, 19
  %v92 = vpop.permute.xlu0 %91
  %93 = vrot.lane.b32.xlu0 %v30, 19
  %v94 = vpop.permute.xlu0 %93
  %v99 = vlaneseq
  %v100 = vshrl.u32 %v99, 7
  %v101 = vsub.s32 2, %v100
  %v102 = vrot.slane %v31, %v101
  %v103 = vmul.f32 %v88, %v102
  %v104 = vmul.f32 %v90, %v102
  %v105 = vmul.f32 %v92, %v102
  %v106 = vmul.f32 %v94, %v102
  %v107 = vpack.c.bf16 %v104, %v103
  %v108 = vpack.c.bf16 %v106, %v105
  %109 = vst [vmem:[#allocation2 + $0x20] sm:$0xff] %v107
  %110 = vst [vmem:[#allocation2 + $0x28] sm:$0xff] %v108
  %111 = vrot.lane.b32.xlu0 %v27, 17
  %v112 = vpop.permute.xlu0 %111
  %113 = vrot.lane.b32.xlu0 %v28, 17
  %v114 = vpop.permute.xlu0 %113
  %115 = vrot.lane.b32.xlu0 %v29, 17
  %v116 = vpop.permute.xlu0 %115
  %117 = vrot.lane.b32.xlu0 %v30, 17
  %v118 = vpop.permute.xlu0 %117
  %v123 = vlaneseq
  %v124 = vshrl.u32 %v123, 7
  %v125 = vsub.s32 3, %v124
  %v126 = vrot.slane %v31, %v125
  %v127 = vmul.f32 %v112, %v126
  %v128 = vmul.f32 %v114, %v126
  %v129 = vmul.f32 %v116, %v126
  %v130 = vmul.f32 %v118, %v126
  %v131 = vpack.c.bf16 %v128, %v127
  %v132 = vpack.c.bf16 %v130, %v129
  %133 = vst [vmem:[#allocation2 + $0x30] sm:$0xff] %v131
  %134 = vst [vmem:[#allocation2 + $0x38] sm:$0xff] %v132
  %135 = vrot.lane.b32.xlu0 %v27, 16
  %v136 = vpop.permute.xlu0 %135
  %137 = vrot.lane.b32.xlu0 %v28, 16
  %v138 = vpop.permute.xlu0 %137
  %139 = vrot.lane.b32.xlu0 %v29, 16
  %v140 = vpop.permute.xlu0 %139
  %141 = vrot.lane.b32.xlu0 %v30, 16
  %v142 = vpop.permute.xlu0 %141
  %v147 = vlaneseq
  %v148 = vshrl.u32 %v147, 7
  %v149 = vsub.s32 4, %v148
  %v150 = vrot.slane %v31, %v149
  %v151 = vmul.f32 %v136, %v150
  %v152 = vmul.f32 %v138, %v150
  %v153 = vmul.f32 %v140, %v150
  %v154 = vmul.f32 %v142, %v150
  %v155 = vpack.c.bf16 %v152, %v151
  %v156 = vpack.c.bf16 %v154, %v153
  %157 = vst [vmem:[#allocation2 + $0x40] sm:$0xff] %v155
  %158 = vst [vmem:[#allocation2 + $0x48] sm:$0xff] %v156
  %159 = vrot.lane.b32.xlu0 %v27, 15
  %v160 = vpop.permute.xlu0 %159
  %161 = vrot.lane.b32.xlu0 %v28, 15
  %v162 = vpop.permute.xlu0 %161
  %163 = vrot.lane.b32.xlu0 %v29, 15
  %v164 = vpop.permute.xlu0 %163
  %165 = vrot.lane.b32.xlu0 %v30, 15
  %v166 = vpop.permute.xlu0 %165
  %v171 = vlaneseq
  %v172 = vshrl.u32 %v171, 7
  %v173 = vsub.s32 5, %v172
  %v174 = vrot.slane %v31, %v173
  %v175 = vmul.f32 %v160, %v174
  %v176 = vmul.f32 %v162, %v174
  %v177 = vmul.f32 %v164, %v174
  %v178 = vmul.f32 %v166, %v174
  %v179 = vpack.c.bf16 %v176, %v175
  %v180 = vpack.c.bf16 %v178, %v177
  %181 = vst [vmem:[#allocation2 + $0x50] sm:$0xff] %v179
  %182 = vst [vmem:[#allocation2 + $0x58] sm:$0xff] %v180
  %183 = vrot.lane.b32.xlu0 %v27, 13
  %v184 = vpop.permute.xlu0 %183
  %185 = vrot.lane.b32.xlu0 %v28, 13
  %v186 = vpop.permute.xlu0 %185
  %187 = vrot.lane.b32.xlu0 %v29, 13
  %v188 = vpop.permute.xlu0 %187
  %189 = vrot.lane.b32.xlu0 %v30, 13
  %v190 = vpop.permute.xlu0 %189
  %v195 = vlaneseq
  %v196 = vshrl.u32 %v195, 7
  %v197 = vsub.s32 6, %v196
  %v198 = vrot.slane %v31, %v197
  %v199 = vmul.f32 %v184, %v198
  %v200 = vmul.f32 %v186, %v198
  %v201 = vmul.f32 %v188, %v198
  %v202 = vmul.f32 %v190, %v198
  %v203 = vpack.c.bf16 %v200, %v199
  %v204 = vpack.c.bf16 %v202, %v201
  %205 = vst [vmem:[#allocation2 + $0x60] sm:$0xff] %v203
  %206 = vst [vmem:[#allocation2 + $0x68] sm:$0xff] %v204
  %207 = vrot.lane.b32.xlu0 %v27, 12
  %v208 = vpop.permute.xlu0 %207
  %209 = vrot.lane.b32.xlu0 %v28, 12
  %v210 = vpop.permute.xlu0 %209
  %211 = vrot.lane.b32.xlu0 %v29, 12
  %v212 = vpop.permute.xlu0 %211
  %213 = vrot.lane.b32.xlu0 %v30, 12
  %v214 = vpop.permute.xlu0 %213
  %v219 = vlaneseq
  %v220 = vshrl.u32 %v219, 7
  %v221 = vsub.s32 7, %v220
  %v222 = vrot.slane %v31, %v221
  %v223 = vmul.f32 %v208, %v222
  %v224 = vmul.f32 %v210, %v222
  %v225 = vmul.f32 %v212, %v222
  %v226 = vmul.f32 %v214, %v222
  %v227 = vpack.c.bf16 %v224, %v223
  %v228 = vpack.c.bf16 %v226, %v225
  %229 = vst [vmem:[#allocation2 + $0x70] sm:$0xff] %v227
  %230 = vst [vmem:[#allocation2 + $0x78] sm:$0xff] %v228
  %231 = vrot.lane.b32.xlu0 %v27, 11
  %v232 = vpop.permute.xlu0 %231
  %233 = vrot.lane.b32.xlu0 %v28, 11
  %v234 = vpop.permute.xlu0 %233
  %235 = vrot.lane.b32.xlu0 %v29, 11
  %v236 = vpop.permute.xlu0 %235
  %237 = vrot.lane.b32.xlu0 %v30, 11
  %v238 = vpop.permute.xlu0 %237
  %v243 = vlaneseq
  %v244 = vshrl.u32 %v243, 7
  %v245 = vsub.s32 0, %v244
  %v246 = vrot.slane %v32, %v245
  %v247 = vmul.f32 %v232, %v246
  %v248 = vmul.f32 %v234, %v246
  %v249 = vmul.f32 %v236, %v246
  %v250 = vmul.f32 %v238, %v246
  %v251 = vpack.c.bf16 %v248, %v247
  %v252 = vpack.c.bf16 %v250, %v249
  %253 = vst [vmem:[#allocation2 + $0x80] sm:$0xff] %v251
  %254 = vst [vmem:[#allocation2 + $0x88] sm:$0xff] %v252
  %255 = vrot.lane.b32.xlu0 %v27, 5
  %v256 = vpop.permute.xlu0 %255
  %257 = vrot.lane.b32.xlu0 %v28, 5
  %v258 = vpop.permute.xlu0 %257
  %259 = vrot.lane.b32.xlu0 %v29, 5
  %v260 = vpop.permute.xlu0 %259
  %261 = vrot.lane.b32.xlu0 %v30, 5
  %v262 = vpop.permute.xlu0 %261
  %v267 = vlaneseq
  %v268 = vshrl.u32 %v267, 7
  %v269 = vsub.s32 1, %v268
  %v270 = vrot.slane %v32, %v269
  %v271 = vmul.f32 %v256, %v270
  %v272 = vmul.f32 %v258, %v270
  %v273 = vmul.f32 %v260, %v270
  %v274 = vmul.f32 %v262, %v270
  %v275 = vpack.c.bf16 %v272, %v271
  %v276 = vpack.c.bf16 %v274, %v273
  %277 = vst [vmem:[#allocation2 + $0x90] sm:$0xff] %v275
  %278 = vst [vmem:[#allocation2 + $0x98] sm:$0xff] %v276
  %279 = vrot.lane.b32.xlu0 %v27, 4
  %v280 = vpop.permute.xlu0 %279
  %281 = vrot.lane.b32.xlu0 %v28, 4
  %v282 = vpop.permute.xlu0 %281
  %283 = vrot.lane.b32.xlu0 %v29, 4
  %v284 = vpop.permute.xlu0 %283
  %285 = vrot.lane.b32.xlu0 %v30, 4
  %v286 = vpop.permute.xlu0 %285
  %v291 = vlaneseq
  %v292 = vshrl.u32 %v291, 7
  %v293 = vsub.s32 2, %v292
  %v294 = vrot.slane %v32, %v293
  %v295 = vmul.f32 %v280, %v294
  %v296 = vmul.f32 %v282, %v294
  %v297 = vmul.f32 %v284, %v294
  %v298 = vmul.f32 %v286, %v294
  %v299 = vpack.c.bf16 %v296, %v295
  %v300 = vpack.c.bf16 %v298, %v297
  %301 = vst [vmem:[#allocation2 + $0xa0] sm:$0xff] %v299
  %302 = vst [vmem:[#allocation2 + $0xa8] sm:$0xff] %v300
  %303 = vrot.lane.b32.xlu0 %v27, 3
  %v304 = vpop.permute.xlu0 %303
  %305 = vrot.lane.b32.xlu0 %v28, 3
  %v306 = vpop.permute.xlu0 %305
  %307 = vrot.lane.b32.xlu0 %v29, 3
  %v308 = vpop.permute.xlu0 %307
  %309 = vrot.lane.b32.xlu0 %v30, 3
  %v310 = vpop.permute.xlu0 %309
  %v315 = vlaneseq
  %v316 = vshrl.u32 %v315, 7
  %v317 = vsub.s32 3, %v316
  %v318 = vrot.slane %v32, %v317
  %v319 = vmul.f32 %v304, %v318
  %v320 = vmul.f32 %v306, %v318
  %v321 = vmul.f32 %v308, %v318
  %v322 = vmul.f32 %v310, %v318
  %v323 = vpack.c.bf16 %v320, %v319
  %v324 = vpack.c.bf16 %v322, %v321
  %325 = vst [vmem:[#allocation2 + $0xb0] sm:$0xff] %v323
  %326 = vst [vmem:[#allocation2 + $0xb8] sm:$0xff] %v324
  %327 = vrot.lane.b32.xlu0 %v27, 1
  %v328 = vpop.permute.xlu0 %327
  %329 = vrot.lane.b32.xlu0 %v28, 1
  %v330 = vpop.permute.xlu0 %329
  %331 = vrot.lane.b32.xlu0 %v29, 1
  %v332 = vpop.permute.xlu0 %331
  %333 = vrot.lane.b32.xlu0 %v30, 1
  %v334 = vpop.permute.xlu0 %333
  %v339 = vlaneseq
  %v340 = vshrl.u32 %v339, 7
  %v341 = vsub.s32 4, %v340
  %v342 = vrot.slane %v32, %v341
  %v343 = vmul.f32 %v328, %v342
  %v344 = vmul.f32 %v330, %v342
  %v345 = vmul.f32 %v332, %v342
  %v346 = vmul.f32 %v334, %v342
  %v347 = vpack.c.bf16 %v344, %v343
  %v348 = vpack.c.bf16 %v346, %v345
  %349 = vst [vmem:[#allocation2 + $0xc0] sm:$0xff] %v347
  %350 = vst [vmem:[#allocation2 + $0xc8] sm:$0xff] %v348
  %v351 = vlaneseq
  %v352 = vshrl.u32 %v351, 7
  %v353 = vsub.s32 5, %v352
  %v354 = vrot.slane %v32, %v353
  %v355 = vmul.f32 %v27, %v354
  %v356 = vmul.f32 %v28, %v354
  %v357 = vmul.f32 %v29, %v354
  %v358 = vmul.f32 %v30, %v354
  %v359 = vpack.c.bf16 %v356, %v355
  %v360 = vpack.c.bf16 %v358, %v357
  %361 = vst [vmem:[#allocation2 + $0xd0] sm:$0xff] %v359
  %362 = vst [vmem:[#allocation2 + $0xd8] sm:$0xff] %v360
  %363 = vrot.lane.b32.xlu0 %v27, 127
  %v364 = vpop.permute.xlu0 %363
  %365 = vrot.lane.b32.xlu0 %v28, 127
  %v366 = vpop.permute.xlu0 %365
  %367 = vrot.lane.b32.xlu0 %v29, 127
  %v368 = vpop.permute.xlu0 %367
  %369 = vrot.lane.b32.xlu0 %v30, 127
  %v370 = vpop.permute.xlu0 %369
  %v375 = vlaneseq
  %v376 = vshrl.u32 %v375, 7
  %v377 = vsub.s32 6, %v376
  %v378 = vrot.slane %v32, %v377
  %v379 = vmul.f32 %v364, %v378
  %v380 = vmul.f32 %v366, %v378
  %v381 = vmul.f32 %v368, %v378
  %v382 = vmul.f32 %v370, %v378
  %v383 = vpack.c.bf16 %v380, %v379
  %v384 = vpack.c.bf16 %v382, %v381
  %385 = vst [vmem:[#allocation2 + $0xe0] sm:$0xff] %v383
  %386 = vst [vmem:[#allocation2 + $0xe8] sm:$0xff] %v384
  %387 = vrot.lane.b32.xlu0 %v27, 125
  %v388 = vpop.permute.xlu0 %387
  %389 = vrot.lane.b32.xlu0 %v28, 125
  %v390 = vpop.permute.xlu0 %389
  %391 = vrot.lane.b32.xlu0 %v29, 125
  %v392 = vpop.permute.xlu0 %391
  %393 = vrot.lane.b32.xlu0 %v30, 125
  %v394 = vpop.permute.xlu0 %393
  %v399 = vlaneseq
  %v400 = vshrl.u32 %v399, 7
  %v401 = vsub.s32 7, %v400
  %v402 = vrot.slane %v32, %v401
  %v403 = vmul.f32 %v388, %v402
  %v404 = vmul.f32 %v390, %v402
  %v405 = vmul.f32 %v392, %v402
  %v406 = vmul.f32 %v394, %v402
  %v407 = vpack.c.bf16 %v404, %v403
  %v408 = vpack.c.bf16 %v406, %v405
  %409 = vst [vmem:[#allocation2 + $0xf0] sm:$0xff] %v407
  %410 = vst [vmem:[#allocation2 + $0xf8] sm:$0xff] %v408
  %411 = vrot.lane.b32.xlu0 %v27, 124
  %v412 = vpop.permute.xlu0 %411
  %413 = vrot.lane.b32.xlu0 %v28, 124
  %v414 = vpop.permute.xlu0 %413
  %415 = vrot.lane.b32.xlu0 %v29, 124
  %v416 = vpop.permute.xlu0 %415
  %417 = vrot.lane.b32.xlu0 %v30, 124
  %v418 = vpop.permute.xlu0 %417
  %v423 = vlaneseq
  %v424 = vshrl.u32 %v423, 7
  %v425 = vsub.s32 0, %v424
  %v426 = vrot.slane %v33, %v425
  %v427 = vmul.f32 %v412, %v426
  %v428 = vmul.f32 %v414, %v426
  %v429 = vmul.f32 %v416, %v426
  %v430 = vmul.f32 %v418, %v426
  %v431 = vpack.c.bf16 %v428, %v427
  %v432 = vpack.c.bf16 %v430, %v429
  %433 = vst [vmem:[#allocation2 + $0x100] sm:$0xff] %v431
  %434 = vst [vmem:[#allocation2 + $0x108] sm:$0xff] %v432
  %435 = vrot.lane.b32.xlu0 %v27, 123
  %v436 = vpop.permute.xlu0 %435
  %437 = vrot.lane.b32.xlu0 %v28, 123
  %v438 = vpop.permute.xlu0 %437
  %439 = vrot.lane.b32.xlu0 %v29, 123
  %v440 = vpop.permute.xlu0 %439
  %441 = vrot.lane.b32.xlu0 %v30, 123
  %v442 = vpop.permute.xlu0 %441
  %v447 = vlaneseq
  %v448 = vshrl.u32 %v447, 7
  %v449 = vsub.s32 1, %v448
  %v450 = vrot.slane %v33, %v449
  %v451 = vmul.f32 %v436, %v450
  %v452 = vmul.f32 %v438, %v450
  %v453 = vmul.f32 %v440, %v450
  %v454 = vmul.f32 %v442, %v450
  %v455 = vpack.c.bf16 %v452, %v451
  %v456 = vpack.c.bf16 %v454, %v453
  %457 = vst [vmem:[#allocation2 + $0x110] sm:$0xff] %v455
  %458 = vst [vmem:[#allocation2 + $0x118] sm:$0xff] %v456
  %459 = vrot.lane.b32.xlu0 %v27, 117
  %v460 = vpop.permute.xlu0 %459
  %461 = vrot.lane.b32.xlu0 %v28, 117
  %v462 = vpop.permute.xlu0 %461
  %463 = vrot.lane.b32.xlu0 %v29, 117
  %v464 = vpop.permute.xlu0 %463
  %465 = vrot.lane.b32.xlu0 %v30, 117
  %v466 = vpop.permute.xlu0 %465
  %v471 = vlaneseq
  %v472 = vshrl.u32 %v471, 7
  %v473 = vsub.s32 2, %v472
  %v474 = vrot.slane %v33, %v473
  %v475 = vmul.f32 %v460, %v474
  %v476 = vmul.f32 %v462, %v474
  %v477 = vmul.f32 %v464, %v474
  %v478 = vmul.f32 %v466, %v474
  %v479 = vpack.c.bf16 %v476, %v475
  %v480 = vpack.c.bf16 %v478, %v477
  %481 = vst [vmem:[#allocation2 + $0x120] sm:$0xff] %v479
  %482 = vst [vmem:[#allocation2 + $0x128] sm:$0xff] %v480
  %483 = vrot.lane.b32.xlu0 %v27, 116
  %v484 = vpop.permute.xlu0 %483
  %485 = vrot.lane.b32.xlu0 %v28, 116
  %v486 = vpop.permute.xlu0 %485
  %487 = vrot.lane.b32.xlu0 %v29, 116
  %v488 = vpop.permute.xlu0 %487
  %489 = vrot.lane.b32.xlu0 %v30, 116
  %v490 = vpop.permute.xlu0 %489
  %v495 = vlaneseq
  %v496 = vshrl.u32 %v495, 7
  %v497 = vsub.s32 3, %v496
  %v498 = vrot.slane %v33, %v497
  %v499 = vmul.f32 %v484, %v498
  %v500 = vmul.f32 %v486, %v498
  %v501 = vmul.f32 %v488, %v498
  %v502 = vmul.f32 %v490, %v498
  %v503 = vpack.c.bf16 %v500, %v499
  %v504 = vpack.c.bf16 %v502, %v501
  %505 = vst [vmem:[#allocation2 + $0x130] sm:$0xff] %v503
  %506 = vst [vmem:[#allocation2 + $0x138] sm:$0xff] %v504
  %507 = vrot.lane.b32.xlu0 %v27, 115
  %v508 = vpop.permute.xlu0 %507
  %509 = vrot.lane.b32.xlu0 %v28, 115
  %v510 = vpop.permute.xlu0 %509
  %511 = vrot.lane.b32.xlu0 %v29, 115
  %v512 = vpop.permute.xlu0 %511
  %513 = vrot.lane.b32.xlu0 %v30, 115
  %v514 = vpop.permute.xlu0 %513
  %v519 = vlaneseq
  %v520 = vshrl.u32 %v519, 7
  %v521 = vsub.s32 4, %v520
  %v522 = vrot.slane %v33, %v521
  %v523 = vmul.f32 %v508, %v522
  %v524 = vmul.f32 %v510, %v522
  %v525 = vmul.f32 %v512, %v522
  %v526 = vmul.f32 %v514, %v522
  %v527 = vpack.c.bf16 %v524, %v523
  %v528 = vpack.c.bf16 %v526, %v525
  %529 = vst [vmem:[#allocation2 + $0x140] sm:$0xff] %v527
  %530 = vst [vmem:[#allocation2 + $0x148] sm:$0xff] %v528
  %531 = vrot.lane.b32.xlu0 %v27, 113
  %v532 = vpop.permute.xlu0 %531
  %533 = vrot.lane.b32.xlu0 %v28, 113
  %v534 = vpop.permute.xlu0 %533
  %535 = vrot.lane.b32.xlu0 %v29, 113
  %v536 = vpop.permute.xlu0 %535
  %537 = vrot.lane.b32.xlu0 %v30, 113
  %v538 = vpop.permute.xlu0 %537
  %v543 = vlaneseq
  %v544 = vshrl.u32 %v543, 7
  %v545 = vsub.s32 5, %v544
  %v546 = vrot.slane %v33, %v545
  %v547 = vmul.f32 %v532, %v546
  %v548 = vmul.f32 %v534, %v546
  %v549 = vmul.f32 %v536, %v546
  %v550 = vmul.f32 %v538, %v546
  %v551 = vpack.c.bf16 %v548, %v547
  %v552 = vpack.c.bf16 %v550, %v549
  %553 = vst [vmem:[#allocation2 + $0x150] sm:$0xff] %v551
  %554 = vst [vmem:[#allocation2 + $0x158] sm:$0xff] %v552
  %555 = vrot.lane.b32.xlu0 %v27, 112
  %v556 = vpop.permute.xlu0 %555
  %557 = vrot.lane.b32.xlu0 %v28, 112
  %v558 = vpop.permute.xlu0 %557
  %559 = vrot.lane.b32.xlu0 %v29, 112
  %v560 = vpop.permute.xlu0 %559
  %561 = vrot.lane.b32.xlu0 %v30, 112
  %v562 = vpop.permute.xlu0 %561
  %v567 = vlaneseq
  %v568 = vshrl.u32 %v567, 7
  %v569 = vsub.s32 6, %v568
  %v570 = vrot.slane %v33, %v569
  %v571 = vmul.f32 %v556, %v570
  %v572 = vmul.f32 %v558, %v570
  %v573 = vmul.f32 %v560, %v570
  %v574 = vmul.f32 %v562, %v570
  %v575 = vpack.c.bf16 %v572, %v571
  %v576 = vpack.c.bf16 %v574, %v573
  %577 = vst [vmem:[#allocation2 + $0x160] sm:$0xff] %v575
  %578 = vst [vmem:[#allocation2 + $0x168] sm:$0xff] %v576
  %579 = vrot.lane.b32.xlu0 %v27, 111
  %v580 = vpop.permute.xlu0 %579
  %581 = vrot.lane.b32.xlu0 %v28, 111
  %v582 = vpop.permute.xlu0 %581
  %583 = vrot.lane.b32.xlu0 %v29, 111
  %v584 = vpop.permute.xlu0 %583
  %585 = vrot.lane.b32.xlu0 %v30, 111
  %v586 = vpop.permute.xlu0 %585
  %v591 = vlaneseq
  %v592 = vshrl.u32 %v591, 7
  %v593 = vsub.s32 7, %v592
  %v594 = vrot.slane %v33, %v593
  %v595 = vmul.f32 %v580, %v594
  %v596 = vmul.f32 %v582, %v594
  %v597 = vmul.f32 %v584, %v594
  %v598 = vmul.f32 %v586, %v594
  %v599 = vpack.c.bf16 %v596, %v595
  %v600 = vpack.c.bf16 %v598, %v597
  %601 = vst [vmem:[#allocation2 + $0x170] sm:$0xff] %v599
  %602 = vst [vmem:[#allocation2 + $0x178] sm:$0xff] %v600
  %603 = vrot.lane.b32.xlu0 %v27, 109
  %v604 = vpop.permute.xlu0 %603
  %605 = vrot.lane.b32.xlu0 %v28, 109
  %v606 = vpop.permute.xlu0 %605
  %607 = vrot.lane.b32.xlu0 %v29, 109
  %v608 = vpop.permute.xlu0 %607
  %609 = vrot.lane.b32.xlu0 %v30, 109
  %v610 = vpop.permute.xlu0 %609
  %v615 = vlaneseq
  %v616 = vshrl.u32 %v615, 7
  %v617 = vsub.s32 0, %v616
  %v618 = vrot.slane %v34, %v617
  %v619 = vmul.f32 %v604, %v618
  %v620 = vmul.f32 %v606, %v618
  %v621 = vmul.f32 %v608, %v618
  %v622 = vmul.f32 %v610, %v618
  %v623 = vpack.c.bf16 %v620, %v619
  %v624 = vpack.c.bf16 %v622, %v621
  %625 = vst [vmem:[#allocation2 + $0x180] sm:$0xff] %v623
  %626 = vst [vmem:[#allocation2 + $0x188] sm:$0xff] %v624
  %627 = vrot.lane.b32.xlu0 %v27, 108
  %v628 = vpop.permute.xlu0 %627
  %629 = vrot.lane.b32.xlu0 %v28, 108
  %v630 = vpop.permute.xlu0 %629
  %631 = vrot.lane.b32.xlu0 %v29, 108
  %v632 = vpop.permute.xlu0 %631
  %633 = vrot.lane.b32.xlu0 %v30, 108
  %v634 = vpop.permute.xlu0 %633
  %v639 = vlaneseq
  %v640 = vshrl.u32 %v639, 7
  %v641 = vsub.s32 1, %v640
  %v642 = vrot.slane %v34, %v641
  %v643 = vmul.f32 %v628, %v642
  %v644 = vmul.f32 %v630, %v642
  %v645 = vmul.f32 %v632, %v642
  %v646 = vmul.f32 %v634, %v642
  %v647 = vpack.c.bf16 %v644, %v643
  %v648 = vpack.c.bf16 %v646, %v645
  %649 = vst [vmem:[#allocation2 + $0x190] sm:$0xff] %v647
  %650 = vst [vmem:[#allocation2 + $0x198] sm:$0xff] %v648
  %651 = vrot.lane.b32.xlu0 %v27, 107
  %v652 = vpop.permute.xlu0 %651
  %653 = vrot.lane.b32.xlu0 %v28, 107
  %v654 = vpop.permute.xlu0 %653
  %655 = vrot.lane.b32.xlu0 %v29, 107
  %v656 = vpop.permute.xlu0 %655
  %657 = vrot.lane.b32.xlu0 %v30, 107
  %v658 = vpop.permute.xlu0 %657
  %v663 = vlaneseq
  %v664 = vshrl.u32 %v663, 7
  %v665 = vsub.s32 2, %v664
  %v666 = vrot.slane %v34, %v665
  %v667 = vmul.f32 %v652, %v666
  %v668 = vmul.f32 %v654, %v666
  %v669 = vmul.f32 %v656, %v666
  %v670 = vmul.f32 %v658, %v666
  %v671 = vpack.c.bf16 %v668, %v667
  %v672 = vpack.c.bf16 %v670, %v669
  %673 = vst [vmem:[#allocation2 + $0x1a0] sm:$0xff] %v671
  %674 = vst [vmem:[#allocation2 + $0x1a8] sm:$0xff] %v672
  %v675 = vld [vmem:[%s3] sm:$0xff]
  %v676 = vld [vmem:[%s3 + $0x8] sm:$0xff]
  %v677 = vld [vmem:[%s3 + $0x10] sm:$0xff]
  %v678 = vld [vmem:[%s3 + $0x18] sm:$0xf]
  %v679 = vld [vmem:[%s3 + $0x1c] sm:$0xff]
  %v680 = vld [vmem:[%s3 + $0x24] sm:$0xff]
  %v681 = vld [vmem:[%s3 + $0x2c] sm:$0xff]
  %v682 = vld [vmem:[%s3 + $0x34] sm:$0xf]
  %v683 = vld [vmem:[%s3 + $0x38] sm:$0xff]
  %v684 = vld [vmem:[%s3 + $0x40] sm:$0xff]
  %v685 = vld [vmem:[%s3 + $0x48] sm:$0xff]
  %v686 = vld [vmem:[%s3 + $0x50] sm:$0xf]
  %v687 = vld [vmem:[%s3 + $0x54] sm:$0xff]
  %v688 = vld [vmem:[%s3 + $0x5c] sm:$0xff]
  %v689 = vld [vmem:[%s3 + $0x64] sm:$0xff]
  %v690 = vld [vmem:[%s3 + $0x6c] sm:$0xf]
  %v691 = vld [vmem:[%s3 + $0x70] sm:$0xff]
  %v692 = vld [vmem:[%s3 + $0x78] sm:$0xff]
  %v693 = vld [vmem:[%s3 + $0x80] sm:$0xff]
  %v694 = vld [vmem:[%s3 + $0x88] sm:$0xf]
  %v695 = vld [vmem:[%s3 + $0x8c] sm:$0xff]
  %v696 = vld [vmem:[%s3 + $0x94] sm:$0xff]
  %v697 = vld [vmem:[%s3 + $0x9c] sm:$0xff]
  %v698 = vld [vmem:[%s3 + $0xa4] sm:$0xf]
  %v699 = vld [vmem:[%s3 + $0xa8] sm:$0xff]
  %v700 = vld [vmem:[%s3 + $0xb0] sm:$0xff]
  %v701 = vld [vmem:[%s3 + $0xb8] sm:$0xff]
  %v702 = vld [vmem:[%s3 + $0xc0] sm:$0xf]
  %v703 = vld [vmem:[%s3 + $0xc4] sm:$0xff]
  %v704 = vld [vmem:[%s3 + $0xcc] sm:$0xff]
  %v705 = vld [vmem:[%s3 + $0xd4] sm:$0xff]
  %v706 = vld [vmem:[%s3 + $0xdc] sm:$0xf]
  %v707 = vld [vmem:[#allocation2] sm:$0xff]
  %v708 = vld [vmem:[#allocation2 + $0x8] sm:$0xff]
  %v709 = vld [vmem:[#allocation2 + $0x10] sm:$0xff]
  %v710 = vld [vmem:[#allocation2 + $0x18] sm:$0xff]
  %v711 = vld [vmem:[#allocation2 + $0x20] sm:$0xff]
  %v712 = vld [vmem:[#allocation2 + $0x28] sm:$0xff]
  %v713 = vld [vmem:[#allocation2 + $0x30] sm:$0xff]
  %v714 = vld [vmem:[#allocation2 + $0x38] sm:$0xff]
  %v715 = vld [vmem:[#allocation2 + $0x40] sm:$0xff]
  %v716 = vld [vmem:[#allocation2 + $0x48] sm:$0xff]
  %v717 = vld [vmem:[#allocation2 + $0x50] sm:$0xff]
  %v718 = vld [vmem:[#allocation2 + $0x58] sm:$0xff]
  %v719 = vld [vmem:[#allocation2 + $0x60] sm:$0xff]
  %v720 = vld [vmem:[#allocation2 + $0x68] sm:$0xff]
  %v721 = vld [vmem:[#allocation2 + $0x70] sm:$0xff]
  %v722 = vld [vmem:[#allocation2 + $0x78] sm:$0xff]
  %v723 = vld [vmem:[#allocation2 + $0x80] sm:$0xff]
  %v724 = vld [vmem:[#allocation2 + $0x88] sm:$0xff]
  %v725 = vld [vmem:[#allocation2 + $0x90] sm:$0xff]
  %v726 = vld [vmem:[#allocation2 + $0x98] sm:$0xff]
  %v727 = vld [vmem:[#allocation2 + $0xa0] sm:$0xff]
  %v728 = vld [vmem:[#allocation2 + $0xa8] sm:$0xff]
  %v729 = vld [vmem:[#allocation2 + $0xb0] sm:$0xff]
  %v730 = vld [vmem:[#allocation2 + $0xb8] sm:$0xff]
  %v731 = vld [vmem:[#allocation2 + $0xc0] sm:$0xff]
  %v732 = vld [vmem:[#allocation2 + $0xc8] sm:$0xff]
  %v733 = vld [vmem:[#allocation2 + $0xd0] sm:$0xff]
  %v734 = vld [vmem:[#allocation2 + $0xd8] sm:$0xff]
  %v735 = vld [vmem:[#allocation2 + $0xe0] sm:$0xff]
  %v736 = vld [vmem:[#allocation2 + $0xe8] sm:$0xff]
  %v737 = vld [vmem:[#allocation2 + $0xf0] sm:$0xff]
  %v738 = vld [vmem:[#allocation2 + $0xf8] sm:$0xff]
  %v739 = vld [vmem:[#allocation2 + $0x100] sm:$0xff]
  %v740 = vld [vmem:[#allocation2 + $0x108] sm:$0xff]
  %v741 = vld [vmem:[#allocation2 + $0x110] sm:$0xff]
  %v742 = vld [vmem:[#allocation2 + $0x118] sm:$0xff]
  %v743 = vld [vmem:[#allocation2 + $0x120] sm:$0xff]
  %v744 = vld [vmem:[#allocation2 + $0x128] sm:$0xff]
  %v745 = vld [vmem:[#allocation2 + $0x130] sm:$0xff]
  %v746 = vld [vmem:[#allocation2 + $0x138] sm:$0xff]
  %v747 = vld [vmem:[#allocation2 + $0x140] sm:$0xff]
  %v748 = vld [vmem:[#allocation2 + $0x148] sm:$0xff]
  %v749 = vld [vmem:[#allocation2 + $0x150] sm:$0xff]
  %v750 = vld [vmem:[#allocation2 + $0x158] sm:$0xff]
  %v751 = vld [vmem:[#allocation2 + $0x160] sm:$0xff]
  %v752 = vld [vmem:[#allocation2 + $0x168] sm:$0xff]
  %v753 = vld [vmem:[#allocation2 + $0x170] sm:$0xff]
  %v754 = vld [vmem:[#allocation2 + $0x178] sm:$0xff]
  %v755 = vld [vmem:[#allocation2 + $0x180] sm:$0xff]
  %v756 = vld [vmem:[#allocation2 + $0x188] sm:$0xff]
  %v757 = vld [vmem:[#allocation2 + $0x190] sm:$0xff]
  %v758 = vld [vmem:[#allocation2 + $0x198] sm:$0xff]
  %v759 = vld [vmem:[#allocation2 + $0x1a0] sm:$0xff]
  %v760 = vld [vmem:[#allocation2 + $0x1a8] sm:$0xff]
  %v761 = vld [vmem:[%s4] sm:$0xff]
  %v762 = vld [vmem:[%s4 + $0x8] sm:$0xff]
  %v763 = vld [vmem:[%s4 + $0x10] sm:$0xff]
  %v764 = vld [vmem:[%s4 + $0x18] sm:$0xff]
  %v765 = vld [vmem:[%s4 + $0x20] sm:$0xff]
  %v766 = vld [vmem:[%s4 + $0x28] sm:$0xff]
  %v767 = vld [vmem:[%s4 + $0x30] sm:$0xff]
  %v768 = vld [vmem:[%s4 + $0x38] sm:$0xff]
  %770 = vset.pattern.permute.xlu0 0
  %771 = vperm.xlu0 %770, %v761
  %v772 = vpop.permute.xlu0 %771
  %775 = vset.pattern.permute.xlu0 0
  %776 = vperm.xlu0 %775, %v762
  %v777 = vpop.permute.xlu0 %776
  %780 = vset.pattern.permute.xlu0 0
  %781 = vperm.xlu0 %780, %v763
  %v782 = vpop.permute.xlu0 %781
  %785 = vset.pattern.permute.xlu0 0
  %786 = vperm.xlu0 %785, %v764
  %v787 = vpop.permute.xlu0 %786
  %790 = vset.pattern.permute.xlu0 0
  %791 = vperm.xlu0 %790, %v765
  %v792 = vpop.permute.xlu0 %791
  %795 = vset.pattern.permute.xlu0 0
  %796 = vperm.xlu0 %795, %v766
  %v797 = vpop.permute.xlu0 %796
  %800 = vset.pattern.permute.xlu0 0
  %801 = vperm.xlu0 %800, %v767
  %v802 = vpop.permute.xlu0 %801
  %805 = vset.pattern.permute.xlu0 0
  %806 = vperm.xlu0 %805, %v768
  %v807 = vpop.permute.xlu0 %806
  %v841 = vunpack.c.l.b16 %v675
  %v842 = vunpack.c.h.b16 %v675
  %v843 = vunpack.c.l.b16 %v676
  %v844 = vunpack.c.h.b16 %v676
  %v845 = vunpack.c.l.b16 %v677
  %v846 = vunpack.c.h.b16 %v677
  %v847 = vunpack.c.l.b16 %v678
  %v848 = vunpack.c.l.b16 %v679
  %v849 = vunpack.c.h.b16 %v679
  %v850 = vunpack.c.l.b16 %v680
  %v851 = vunpack.c.h.b16 %v680
  %v852 = vunpack.c.l.b16 %v681
  %v853 = vunpack.c.h.b16 %v681
  %v854 = vunpack.c.l.b16 %v682
  %v855 = vunpack.c.l.b16 %v683
  %v856 = vunpack.c.h.b16 %v683
  %v857 = vunpack.c.l.b16 %v684
  %v858 = vunpack.c.h.b16 %v684
  %v859 = vunpack.c.l.b16 %v685
  %v860 = vunpack.c.h.b16 %v685
  %v861 = vunpack.c.l.b16 %v686
  %v862 = vunpack.c.l.b16 %v687
  %v863 = vunpack.c.h.b16 %v687
  %v864 = vunpack.c.l.b16 %v688
  %v865 = vunpack.c.h.b16 %v688
  %v866 = vunpack.c.l.b16 %v689
  %v867 = vunpack.c.h.b16 %v689
  %v868 = vunpack.c.l.b16 %v690
  %v869 = vunpack.c.l.b16 %v691
  %v870 = vunpack.c.h.b16 %v691
  %v871 = vunpack.c.l.b16 %v692
  %v872 = vunpack.c.h.b16 %v692
  %v873 = vunpack.c.l.b16 %v693
  %v874 = vunpack.c.h.b16 %v693
  %v875 = vunpack.c.l.b16 %v694
  %v876 = vunpack.c.l.b16 %v695
  %v877 = vunpack.c.h.b16 %v695
  %v878 = vunpack.c.l.b16 %v696
  %v879 = vunpack.c.h.b16 %v696
  %v880 = vunpack.c.l.b16 %v697
  %v881 = vunpack.c.h.b16 %v697
  %v882 = vunpack.c.l.b16 %v698
  %v883 = vunpack.c.l.b16 %v699
  %v884 = vunpack.c.h.b16 %v699
  %v885 = vunpack.c.l.b16 %v700
  %v886 = vunpack.c.h.b16 %v700
  %v887 = vunpack.c.l.b16 %v701
  %v888 = vunpack.c.h.b16 %v701
  %v889 = vunpack.c.l.b16 %v702
  %v890 = vunpack.c.l.b16 %v703
  %v891 = vunpack.c.h.b16 %v703
  %v892 = vunpack.c.l.b16 %v704
  %v893 = vunpack.c.h.b16 %v704
  %v894 = vunpack.c.l.b16 %v705
  %v895 = vunpack.c.h.b16 %v705
  %v896 = vunpack.c.l.b16 %v706
  %v897 = vpack.c.b16 %v848, %v841
  %v898 = vpack.c.b16 %v849, %v842
  %v899 = vpack.c.b16 %v850, %v843
  %v900 = vpack.c.b16 %v851, %v844
  %v901 = vpack.c.b16 %v852, %v845
  %v902 = vpack.c.b16 %v853, %v846
  %v903 = vpack.c.b16 %v854, %v847
  %v904 = vpack.c.b16 %v862, %v855
  %v905 = vpack.c.b16 %v863, %v856
  %v906 = vpack.c.b16 %v864, %v857
  %v907 = vpack.c.b16 %v865, %v858
  %v908 = vpack.c.b16 %v866, %v859
  %v909 = vpack.c.b16 %v867, %v860
  %v910 = vpack.c.b16 %v868, %v861
  %v911 = vpack.c.b16 %v876, %v869
  %v912 = vpack.c.b16 %v877, %v870
  %v913 = vpack.c.b16 %v878, %v871
  %v914 = vpack.c.b16 %v879, %v872
  %v915 = vpack.c.b16 %v880, %v873
  %v916 = vpack.c.b16 %v881, %v874
  %v917 = vpack.c.b16 %v882, %v875
  %v918 = vpack.c.b16 %v890, %v883
  %v919 = vpack.c.b16 %v891, %v884
  %v920 = vpack.c.b16 %v892, %v885
  %v921 = vpack.c.b16 %v893, %v886
  %v922 = vpack.c.b16 %v894, %v887
  %v923 = vpack.c.b16 %v895, %v888
  %v924 = vpack.c.b16 %v896, %v889
  %vm949 = vcmask 785408
  %v951 = vsel %vm949, %v903, 0
  %v954 = vsel %vm949, %v910, 0
  %v957 = vsel %vm949, %v917, 0
  %v960 = vsel %vm949, %v924, 0
  %962 = vmatprep.subr.bf16.mxu0 0
  %963 = vmatpush1.bf16.msra.mxu0 %v707
  %964 = vmatprep.subr.bf16.mxu0 0
  %965 = vmatpush1.bf16.msra.mxu0 %v708
  %966 = vmatprep.subr.bf16.mxu0 0
  %967 = vmatpush1.bf16.msra.mxu0 %v709
  %968 = vmatprep.subr.bf16.mxu0 0
  %969 = vmatpush1.bf16.msra.mxu0 %v710
  %970 = vmatprep.subr.bf16.mxu0 0
  %971 = vmatpush1.bf16.msra.mxu0 %v711
  %972 = vmatprep.subr.bf16.mxu0 0
  %973 = vmatpush1.bf16.msra.mxu0 %v712
  %974 = vmatprep.subr.bf16.mxu0 0
  %975 = vmatpush1.bf16.msra.mxu0 %v713
  %976 = vmatprep.subr.bf16.mxu0 0
  %977 = vmatpush1.bf16.msra.mxu0 %v714
  %978 = vmatprep.subr.bf16.mxu0 0
  %979 = vmatpush1.bf16.msra.mxu0 %v715
  %980 = vmatprep.subr.bf16.mxu0 0
  %981 = vmatpush1.bf16.msra.mxu0 %v716
  %982 = vmatprep.subr.bf16.mxu0 0
  %983 = vmatpush1.bf16.msra.mxu0 %v717
  %984 = vmatprep.subr.bf16.mxu0 0
  %985 = vmatpush1.bf16.msra.mxu0 %v718
  %986 = vmatprep.subr.bf16.mxu0 0
  %987 = vmatpush1.bf16.msra.mxu0 %v719
  %988 = vmatprep.subr.bf16.mxu0 0
  %989 = vmatpush1.bf16.msra.mxu0 %v720
  %990 = vmatprep.subr.bf16.mxu0 0
  %991 = vmatpush1.bf16.msra.mxu0 %v721
  %992 = vmatprep.subr.bf16.mxu0 0
  %993 = vmatpush1.bf16.msra.mxu0 %v722
  %994 = vmatprep.mubr.bf16.mxu0 %v898
  %995 = vmatmul.mubr.bf16.gmra.mrb[0].mxu0 %v897
  %v996 = vpop.f32.mrb[0].mxu0
  %v997 = vadd.f32 %v772, %v996
  %v998 = vpop.f32.mrb[0].mxu0
  %v999 = vpop.f32.mrb[0].mxu0
  %v1000 = vadd.f32 %v777, %v999
  %v1001 = vpop.f32.mrb[0].mxu0
  %1002 = vmatprep.mubr.bf16.mxu0 %v905
  %1003 = vmatmul.mubr.bf16.gmra.mrb[0].mxu0 %v904
  %v1004 = vpop.f32.mrb[0].mxu0
  %v1005 = vadd.f32 %v782, %v1004
  %v1006 = vpop.f32.mrb[0].mxu0
  %v1007 = vpop.f32.mrb[0].mxu0
  %v1008 = vadd.f32 %v787, %v1007
  %v1009 = vpop.f32.mrb[0].mxu0
  %1010 = vmatprep.mubr.bf16.mxu0 %v912
  %1011 = vmatmul.mubr.bf16.gmra.mrb[0].mxu0 %v911
  %v1012 = vpop.f32.mrb[0].mxu0
  %v1013 = vadd.f32 %v792, %v1012
  %v1014 = vpop.f32.mrb[0].mxu0
  %v1015 = vpop.f32.mrb[0].mxu0
  %v1016 = vadd.f32 %v797, %v1015
  %v1017 = vpop.f32.mrb[0].mxu0
  %1018 = vmatprep.mubr.bf16.mxu0 %v919
  %1019 = vmatmul.mubr.bf16.gmra.mrb[0].mxu0 %v918
  %v1020 = vpop.f32.mrb[0].mxu0
  %v1021 = vadd.f32 %v802, %v1020
  %v1022 = vpop.f32.mrb[0].mxu0
  %v1023 = vpop.f32.mrb[0].mxu0
  %v1024 = vadd.f32 %v807, %v1023
  %v1025 = vpop.f32.mrb[0].mxu0
  %1026 = vdwg.mxu0
  %1027 = vmatprep.subr.bf16.mxu0 0
  %1028 = vmatpush1.bf16.msra.mxu0 %v723
  %1029 = vmatprep.subr.bf16.mxu0 0
  %1030 = vmatpush1.bf16.msra.mxu0 %v724
  %1031 = vmatprep.subr.bf16.mxu0 0
  %1032 = vmatpush1.bf16.msra.mxu0 %v725
  %1033 = vmatprep.subr.bf16.mxu0 0
  %1034 = vmatpush1.bf16.msra.mxu0 %v726
  %1035 = vmatprep.subr.bf16.mxu0 0
  %1036 = vmatpush1.bf16.msra.mxu0 %v727
  %1037 = vmatprep.subr.bf16.mxu0 0
  %1038 = vmatpush1.bf16.msra.mxu0 %v728
  %1039 = vmatprep.subr.bf16.mxu0 0
  %1040 = vmatpush1.bf16.msra.mxu0 %v729
  %1041 = vmatprep.subr.bf16.mxu0 0
  %1042 = vmatpush1.bf16.msra.mxu0 %v730
  %1043 = vmatprep.subr.bf16.mxu0 0
  %1044 = vmatpush1.bf16.msra.mxu0 %v731
  %1045 = vmatprep.subr.bf16.mxu0 0
  %1046 = vmatpush1.bf16.msra.mxu0 %v732
  %1047 = vmatprep.subr.bf16.mxu0 0
  %1048 = vmatpush1.bf16.msra.mxu0 %v733
  %1049 = vmatprep.subr.bf16.mxu0 0
  %1050 = vmatpush1.bf16.msra.mxu0 %v734
  %1051 = vmatprep.subr.bf16.mxu0 0
  %1052 = vmatpush1.bf16.msra.mxu0 %v735
  %1053 = vmatprep.subr.bf16.mxu0 0
  %1054 = vmatpush1.bf16.msra.mxu0 %v736
  %1055 = vmatprep.subr.bf16.mxu0 0
  %1056 = vmatpush1.bf16.msra.mxu0 %v737
  %1057 = vmatprep.subr.bf16.mxu0 0
  %1058 = vmatpush1.bf16.msra.mxu0 %v738
  %1059 = vmatprep.mubr.bf16.mxu0 %v900
  %1060 = vmatmul.mubr.bf16.gmra.mrb[0].mxu0 %v899
  %v1061 = vpop.f32.mrb[0].mxu0
  %v1062 = vadd.f32 %v997, %v1061
  %v1063 = vpop.f32.mrb[0].mxu0
  %v1064 = vpop.f32.mrb[0].mxu0
  %v1065 = vadd.f32 %v1000, %v1064
  %v1066 = vpop.f32.mrb[0].mxu0
  %1067 = vmatprep.mubr.bf16.mxu0 %v907
  %1068 = vmatmul.mubr.bf16.gmra.mrb[0].mxu0 %v906
  %v1069 = vpop.f32.mrb[0].mxu0
  %v1070 = vadd.f32 %v1005, %v1069
  %v1071 = vpop.f32.mrb[0].mxu0
  %v1072 = vpop.f32.mrb[0].mxu0
  %v1073 = vadd.f32 %v1008, %v1072
  %v1074 = vpop.f32.mrb[0].mxu0
  %1075 = vmatprep.mubr.bf16.mxu0 %v914
  %1076 = vmatmul.mubr.bf16.gmra.mrb[0].mxu0 %v913
  %v1077 = vpop.f32.mrb[0].mxu0
  %v1078 = vadd.f32 %v1013, %v1077
  %v1079 = vpop.f32.mrb[0].mxu0
  %v1080 = vpop.f32.mrb[0].mxu0
  %v1081 = vadd.f32 %v1016, %v1080
  %v1082 = vpop.f32.mrb[0].mxu0
  %1083 = vmatprep.mubr.bf16.mxu0 %v921
  %1084 = vmatmul.mubr.bf16.gmra.mrb[0].mxu0 %v920
  %v1085 = vpop.f32.mrb[0].mxu0
  %v1086 = vadd.f32 %v1021, %v1085
  %v1087 = vpop.f32.mrb[0].mxu0
  %v1088 = vpop.f32.mrb[0].mxu0
  %v1089 = vadd.f32 %v1024, %v1088
  %v1090 = vpop.f32.mrb[0].mxu0
  %1091 = vdwg.mxu0
  %1092 = vmatprep.subr.bf16.mxu0 0
  %1093 = vmatpush1.bf16.msra.mxu0 %v739
  %1094 = vmatprep.subr.bf16.mxu0 0
  %1095 = vmatpush1.bf16.msra.mxu0 %v740
  %1096 = vmatprep.subr.bf16.mxu0 0
  %1097 = vmatpush1.bf16.msra.mxu0 %v741
  %1098 = vmatprep.subr.bf16.mxu0 0
  %1099 = vmatpush1.bf16.msra.mxu0 %v742
  %1100 = vmatprep.subr.bf16.mxu0 0
  %1101 = vmatpush1.bf16.msra.mxu0 %v743
  %1102 = vmatprep.subr.bf16.mxu0 0
  %1103 = vmatpush1.bf16.msra.mxu0 %v744
  %1104 = vmatprep.subr.bf16.mxu0 0
  %1105 = vmatpush1.bf16.msra.mxu0 %v745
  %1106 = vmatprep.subr.bf16.mxu0 0
  %1107 = vmatpush1.bf16.msra.mxu0 %v746
  %1108 = vmatprep.subr.bf16.mxu0 0
  %1109 = vmatpush1.bf16.msra.mxu0 %v747
  %1110 = vmatprep.subr.bf16.mxu0 0
  %1111 = vmatpush1.bf16.msra.mxu0 %v748
  %1112 = vmatprep.subr.bf16.mxu0 0
  %1113 = vmatpush1.bf16.msra.mxu0 %v749
  %1114 = vmatprep.subr.bf16.mxu0 0
  %1115 = vmatpush1.bf16.msra.mxu0 %v750
  %1116 = vmatprep.subr.bf16.mxu0 0
  %1117 = vmatpush1.bf16.msra.mxu0 %v751
  %1118 = vmatprep.subr.bf16.mxu0 0
  %1119 = vmatpush1.bf16.msra.mxu0 %v752
  %1120 = vmatprep.subr.bf16.mxu0 0
  %1121 = vmatpush1.bf16.msra.mxu0 %v753
  %1122 = vmatprep.subr.bf16.mxu0 0
  %1123 = vmatpush1.bf16.msra.mxu0 %v754
  %1124 = vmatprep.mubr.bf16.mxu0 %v902
  %1125 = vmatmul.mubr.bf16.gmra.mrb[0].mxu0 %v901
  %v1126 = vpop.f32.mrb[0].mxu0
  %v1127 = vadd.f32 %v1062, %v1126
  %v1128 = vpop.f32.mrb[0].mxu0
  %v1129 = vpop.f32.mrb[0].mxu0
  %v1130 = vadd.f32 %v1065, %v1129
  %v1131 = vpop.f32.mrb[0].mxu0
  %1132 = vmatprep.mubr.bf16.mxu0 %v909
  %1133 = vmatmul.mubr.bf16.gmra.mrb[0].mxu0 %v908
  %v1134 = vpop.f32.mrb[0].mxu0
  %v1135 = vadd.f32 %v1070, %v1134
  %v1136 = vpop.f32.mrb[0].mxu0
  %v1137 = vpop.f32.mrb[0].mxu0
  %v1138 = vadd.f32 %v1073, %v1137
  %v1139 = vpop.f32.mrb[0].mxu0
  %1140 = vmatprep.mubr.bf16.mxu0 %v916
  %1141 = vmatmul.mubr.bf16.gmra.mrb[0].mxu0 %v915
  %v1142 = vpop.f32.mrb[0].mxu0
  %v1143 = vadd.f32 %v1078, %v1142
  %v1144 = vpop.f32.mrb[0].mxu0
  %v1145 = vpop.f32.mrb[0].mxu0
  %v1146 = vadd.f32 %v1081, %v1145
  %v1147 = vpop.f32.mrb[0].mxu0
  %1148 = vmatprep.mubr.bf16.mxu0 %v923
  %1149 = vmatmul.mubr.bf16.gmra.mrb[0].mxu0 %v922
  %v1150 = vpop.f32.mrb[0].mxu0
  %v1151 = vadd.f32 %v1086, %v1150
  %v1152 = vpop.f32.mrb[0].mxu0
  %v1153 = vpop.f32.mrb[0].mxu0
  %v1154 = vadd.f32 %v1089, %v1153
  %v1155 = vpop.f32.mrb[0].mxu0
  %1156 = vdwg.mxu0
  %1157 = vmatprep.subr.bf16.mxu0 0
  %1158 = vmatpush1.bf16.msra.mxu0 %v755
  %1159 = vmatprep.subr.bf16.mxu0 0
  %1160 = vmatpush1.bf16.msra.mxu0 %v756
  %1161 = vmatprep.subr.bf16.mxu0 0
  %1162 = vmatpush1.bf16.msra.mxu0 %v757
  %1163 = vmatprep.subr.bf16.mxu0 0
  %1164 = vmatpush1.bf16.msra.mxu0 %v758
  %1165 = vmatprep.subr.bf16.mxu0 0
  %1166 = vmatpush1.bf16.msra.mxu0 %v759
  %1167 = vmatprep.subr.bf16.mxu0 0
  %1168 = vmatpush1.bf16.msra.mxu0 %v760
  %1169 = vmatprep.subr.bf16.mxu0 0
  %1170 = vmatpush1.bf16.msra.mxu0 0
  %1171 = vmatprep.subr.bf16.mxu0 0
  %1172 = vmatpush1.bf16.msra.mxu0 0
  %1173 = vmatprep.subr.bf16.mxu0 0
  %1174 = vmatpush1.bf16.msra.mxu0 0
  %1175 = vmatprep.subr.bf16.mxu0 0
  %1176 = vmatpush1.bf16.msra.mxu0 0
  %1177 = vmatprep.subr.bf16.mxu0 0
  %1178 = vmatpush1.bf16.msra.mxu0 0
  %1179 = vmatprep.subr.bf16.mxu0 0
  %1180 = vmatpush1.bf16.msra.mxu0 0
  %1181 = vmatprep.subr.bf16.mxu0 0
  %1182 = vmatpush1.bf16.msra.mxu0 0
  %1183 = vmatprep.subr.bf16.mxu0 0
  %1184 = vmatpush1.bf16.msra.mxu0 0
  %1185 = vmatprep.subr.bf16.mxu0 0
  %1186 = vmatpush1.bf16.msra.mxu0 0
  %1187 = vmatprep.subr.bf16.mxu0 0
  %1188 = vmatpush1.bf16.msra.mxu0 0
  %1189 = vmatprep.mubr.bf16.mxu0 0
  %1190 = vmatmul.mubr.bf16.gmra.mrb[0].mxu0 %v951
  %v1191 = vpop.f32.mrb[0].mxu0
  %v1192 = vadd.f32 %v1127, %v1191
  %v1193 = vpop.f32.mrb[0].mxu0
  %v1194 = vpop.f32.mrb[0].mxu0
  %v1195 = vadd.f32 %v1130, %v1194
  %v1196 = vpop.f32.mrb[0].mxu0
  %1197 = vmatprep.mubr.bf16.mxu0 0
  %1198 = vmatmul.mubr.bf16.gmra.mrb[0].mxu0 %v954
  %v1199 = vpop.f32.mrb[0].mxu0
  %v1200 = vadd.f32 %v1135, %v1199
  %v1201 = vpop.f32.mrb[0].mxu0
  %v1202 = vpop.f32.mrb[0].mxu0
  %v1203 = vadd.f32 %v1138, %v1202
  %v1204 = vpop.f32.mrb[0].mxu0
  %1205 = vmatprep.mubr.bf16.mxu0 0
  %1206 = vmatmul.mubr.bf16.gmra.mrb[0].mxu0 %v957
  %v1207 = vpop.f32.mrb[0].mxu0
  %v1208 = vadd.f32 %v1143, %v1207
  %v1209 = vpop.f32.mrb[0].mxu0
  %v1210 = vpop.f32.mrb[0].mxu0
  %v1211 = vadd.f32 %v1146, %v1210
  %v1212 = vpop.f32.mrb[0].mxu0
  %1213 = vmatprep.mubr.bf16.mxu0 0
  %1214 = vmatmul.mubr.bf16.gmra.mrb[0].mxu0 %v960
  %v1215 = vpop.f32.mrb[0].mxu0
  %v1216 = vadd.f32 %v1151, %v1215
  %v1217 = vpop.f32.mrb[0].mxu0
  %v1218 = vpop.f32.mrb[0].mxu0
  %v1219 = vadd.f32 %v1154, %v1218
  %v1220 = vpop.f32.mrb[0].mxu0
  %1221 = vdwg.mxu0
  %v1222 = vld [vmem:[%s0] sm:$0xff]
  %v1223 = vld [vmem:[%s0 + $0x8] sm:$0xff]
  %v1224 = vld [vmem:[%s0 + $0x10] sm:$0xff]
  %v1225 = vld [vmem:[%s0 + $0x18] sm:$0xff]
  %v1226 = vadd.f32 %v1222, %v1192
  %v1227 = vadd.f32 %v1223, %v1195
  %v1228 = vadd.f32 %v1224, %v1200
  %v1229 = vadd.f32 %v1225, %v1203
  %v1230 = vxor.u32 %v1226, 2147483648
  %v1231 = vxor.u32 %v1227, 2147483648
  %v1232 = vxor.u32 %v1228, 2147483648
  %v1233 = vxor.u32 %v1229, 2147483648
  %v1234 = vmul.f32 %v1230, 1.442695
  %v1235 = vpow.pop %v1234
  %v1236 = vmul.f32 %v1231, 1.442695
  %v1237 = vpow.pop %v1236
  %v1238 = vmul.f32 %v1232, 1.442695
  %v1239 = vpow.pop %v1238
  %v1240 = vmul.f32 %v1233, 1.442695
  %v1241 = vpow.pop %v1240
  %v1242 = vadd.f32 %v1235, 1.0
  %v1243 = vadd.f32 %v1237, 1.0
  %v1244 = vadd.f32 %v1239, 1.0
  %v1245 = vadd.f32 %v1241, 1.0
  %v1246 = vrcp.pop %v1242
  %v1247 = vmul.f32 1.0, %v1246
  %v1248 = vrcp.pop %v1243
  %v1249 = vmul.f32 1.0, %v1248
  %v1250 = vrcp.pop %v1244
  %v1251 = vmul.f32 1.0, %v1250
  %v1252 = vrcp.pop %v1245
  %v1253 = vmul.f32 1.0, %v1252
  %s1254 = scalar_lea.vmem %s0, 32
  %v1255 = vld [vmem:[%s1254] sm:$0xff]
  %v1256 = vld [vmem:[%s1254 + $0x8] sm:$0xff]
  %v1257 = vld [vmem:[%s1254 + $0x10] sm:$0xff]
  %v1258 = vld [vmem:[%s1254 + $0x18] sm:$0xff]
  %v1259 = vadd.f32 %v1255, %v1208
  %v1260 = vadd.f32 %v1256, %v1211
  %v1261 = vadd.f32 %v1257, %v1216
  %v1262 = vadd.f32 %v1258, %v1219
  %v1263 = vxor.u32 %v1259, 2147483648
  %v1264 = vxor.u32 %v1260, 2147483648
  %v1265 = vxor.u32 %v1261, 2147483648
  %v1266 = vxor.u32 %v1262, 2147483648
  %v1267 = vmul.f32 %v1263, 1.442695
  %v1268 = vpow.pop %v1267
  %v1269 = vmul.f32 %v1264, 1.442695
  %v1270 = vpow.pop %v1269
  %v1271 = vmul.f32 %v1265, 1.442695
  %v1272 = vpow.pop %v1271
  %v1273 = vmul.f32 %v1266, 1.442695
  %v1274 = vpow.pop %v1273
  %v1275 = vadd.f32 %v1268, 1.0
  %v1276 = vadd.f32 %v1270, 1.0
  %v1277 = vadd.f32 %v1272, 1.0
  %v1278 = vadd.f32 %v1274, 1.0
  %v1279 = vrcp.pop %v1275
  %v1280 = vmul.f32 1.0, %v1279
  %v1281 = vrcp.pop %v1276
  %v1282 = vmul.f32 1.0, %v1281
  %v1283 = vrcp.pop %v1277
  %v1284 = vmul.f32 1.0, %v1283
  %v1285 = vrcp.pop %v1278
  %v1286 = vmul.f32 1.0, %v1285
  %1291 = vrot.lane.b32.xlu0 %v1247, 21
  %v1292 = vpop.permute.xlu0 %1291
  %1293 = vrot.lane.b32.xlu0 %v1249, 21
  %v1294 = vpop.permute.xlu0 %1293
  %1295 = vrot.lane.b32.xlu0 %v1251, 21
  %v1296 = vpop.permute.xlu0 %1295
  %1297 = vrot.lane.b32.xlu0 %v1253, 21
  %v1298 = vpop.permute.xlu0 %1297
  %v1303 = vld [vmem:[#allocation2] sm:$0xff]
  %v1304 = vld [vmem:[#allocation2 + $0x8] sm:$0xff]
  %v1305 = vunpack.c.l.bf16 %v1303
  %v1306 = vunpack.c.h.bf16 %v1303
  %v1307 = vunpack.c.l.bf16 %v1304
  %v1308 = vunpack.c.h.bf16 %v1304
  %v1309 = vmul.f32 %v1292, %v1305
  %v1310 = vmul.f32 %v1294, %v1306
  %v1311 = vmul.f32 %v1296, %v1307
  %v1312 = vmul.f32 %v1298, %v1308
  %v1313 = vpack.c.bf16 %v1310, %v1309
  %v1314 = vpack.c.bf16 %v1312, %v1311
  %1315 = vst [vmem:[#allocation3] sm:$0xff] %v1313
  %1316 = vst [vmem:[#allocation3 + $0x8] sm:$0xff] %v1314
  %1317 = vrot.lane.b32.xlu0 %v1247, 20
  %v1318 = vpop.permute.xlu0 %1317
  %1319 = vrot.lane.b32.xlu0 %v1249, 20
  %v1320 = vpop.permute.xlu0 %1319
  %1321 = vrot.lane.b32.xlu0 %v1251, 20
  %v1322 = vpop.permute.xlu0 %1321
  %1323 = vrot.lane.b32.xlu0 %v1253, 20
  %v1324 = vpop.permute.xlu0 %1323
  %v1329 = vld [vmem:[#allocation2 + $0x10] sm:$0xff]
  %v1330 = vld [vmem:[#allocation2 + $0x18] sm:$0xff]
  %v1331 = vunpack.c.l.bf16 %v1329
  %v1332 = vunpack.c.h.bf16 %v1329
  %v1333 = vunpack.c.l.bf16 %v1330
  %v1334 = vunpack.c.h.bf16 %v1330
  %v1335 = vmul.f32 %v1318, %v1331
  %v1336 = vmul.f32 %v1320, %v1332
  %v1337 = vmul.f32 %v1322, %v1333
  %v1338 = vmul.f32 %v1324, %v1334
  %v1339 = vpack.c.bf16 %v1336, %v1335
  %v1340 = vpack.c.bf16 %v1338, %v1337
  %1341 = vst [vmem:[#allocation3 + $0x10] sm:$0xff] %v1339
  %1342 = vst [vmem:[#allocation3 + $0x18] sm:$0xff] %v1340
  %1343 = vrot.lane.b32.xlu0 %v1247, 19
  %v1344 = vpop.permute.xlu0 %1343
  %1345 = vrot.lane.b32.xlu0 %v1249, 19
  %v1346 = vpop.permute.xlu0 %1345
  %1347 = vrot.lane.b32.xlu0 %v1251, 19
  %v1348 = vpop.permute.xlu0 %1347
  %1349 = vrot.lane.b32.xlu0 %v1253, 19
  %v1350 = vpop.permute.xlu0 %1349
  %v1355 = vld [vmem:[#allocation2 + $0x20] sm:$0xff]
  %v1356 = vld [vmem:[#allocation2 + $0x28] sm:$0xff]
  %v1357 = vunpack.c.l.bf16 %v1355
  %v1358 = vunpack.c.h.bf16 %v1355
  %v1359 = vunpack.c.l.bf16 %v1356
  %v1360 = vunpack.c.h.bf16 %v1356
  %v1361 = vmul.f32 %v1344, %v1357
  %v1362 = vmul.f32 %v1346, %v1358
  %v1363 = vmul.f32 %v1348, %v1359
  %v1364 = vmul.f32 %v1350, %v1360
  %v1365 = vpack.c.bf16 %v1362, %v1361
  %v1366 = vpack.c.bf16 %v1364, %v1363
  %1367 = vst [vmem:[#allocation3 + $0x20] sm:$0xff] %v1365
  %1368 = vst [vmem:[#allocation3 + $0x28] sm:$0xff] %v1366
  %1369 = vrot.lane.b32.xlu0 %v1247, 17
  %v1370 = vpop.permute.xlu0 %1369
  %1371 = vrot.lane.b32.xlu0 %v1249, 17
  %v1372 = vpop.permute.xlu0 %1371
  %1373 = vrot.lane.b32.xlu0 %v1251, 17
  %v1374 = vpop.permute.xlu0 %1373
  %1375 = vrot.lane.b32.xlu0 %v1253, 17
  %v1376 = vpop.permute.xlu0 %1375
  %v1381 = vld [vmem:[#allocation2 + $0x30] sm:$0xff]
  %v1382 = vld [vmem:[#allocation2 + $0x38] sm:$0xff]
  %v1383 = vunpack.c.l.bf16 %v1381
  %v1384 = vunpack.c.h.bf16 %v1381
  %v1385 = vunpack.c.l.bf16 %v1382
  %v1386 = vunpack.c.h.bf16 %v1382
  %v1387 = vmul.f32 %v1370, %v1383
  %v1388 = vmul.f32 %v1372, %v1384
  %v1389 = vmul.f32 %v1374, %v1385
  %v1390 = vmul.f32 %v1376, %v1386
  %v1391 = vpack.c.bf16 %v1388, %v1387
  %v1392 = vpack.c.bf16 %v1390, %v1389
  %1393 = vst [vmem:[#allocation3 + $0x30] sm:$0xff] %v1391
  %1394 = vst [vmem:[#allocation3 + $0x38] sm:$0xff] %v1392
  %1395 = vrot.lane.b32.xlu0 %v1247, 16
  %v1396 = vpop.permute.xlu0 %1395
  %1397 = vrot.lane.b32.xlu0 %v1249, 16
  %v1398 = vpop.permute.xlu0 %1397
  %1399 = vrot.lane.b32.xlu0 %v1251, 16
  %v1400 = vpop.permute.xlu0 %1399
  %1401 = vrot.lane.b32.xlu0 %v1253, 16
  %v1402 = vpop.permute.xlu0 %1401
  %v1407 = vld [vmem:[#allocation2 + $0x40] sm:$0xff]
  %v1408 = vld [vmem:[#allocation2 + $0x48] sm:$0xff]
  %v1409 = vunpack.c.l.bf16 %v1407
  %v1410 = vunpack.c.h.bf16 %v1407
  %v1411 = vunpack.c.l.bf16 %v1408
  %v1412 = vunpack.c.h.bf16 %v1408
  %v1413 = vmul.f32 %v1396, %v1409
  %v1414 = vmul.f32 %v1398, %v1410
  %v1415 = vmul.f32 %v1400, %v1411
  %v1416 = vmul.f32 %v1402, %v1412
  %v1417 = vpack.c.bf16 %v1414, %v1413
  %v1418 = vpack.c.bf16 %v1416, %v1415
  %1419 = vst [vmem:[#allocation3 + $0x40] sm:$0xff] %v1417
  %1420 = vst [vmem:[#allocation3 + $0x48] sm:$0xff] %v1418
  %1421 = vrot.lane.b32.xlu0 %v1247, 15
  %v1422 = vpop.permute.xlu0 %1421
  %1423 = vrot.lane.b32.xlu0 %v1249, 15
  %v1424 = vpop.permute.xlu0 %1423
  %1425 = vrot.lane.b32.xlu0 %v1251, 15
  %v1426 = vpop.permute.xlu0 %1425
  %1427 = vrot.lane.b32.xlu0 %v1253, 15
  %v1428 = vpop.permute.xlu0 %1427
  %v1433 = vld [vmem:[#allocation2 + $0x50] sm:$0xff]
  %v1434 = vld [vmem:[#allocation2 + $0x58] sm:$0xff]
  %v1435 = vunpack.c.l.bf16 %v1433
  %v1436 = vunpack.c.h.bf16 %v1433
  %v1437 = vunpack.c.l.bf16 %v1434
  %v1438 = vunpack.c.h.bf16 %v1434
  %v1439 = vmul.f32 %v1422, %v1435
  %v1440 = vmul.f32 %v1424, %v1436
  %v1441 = vmul.f32 %v1426, %v1437
  %v1442 = vmul.f32 %v1428, %v1438
  %v1443 = vpack.c.bf16 %v1440, %v1439
  %v1444 = vpack.c.bf16 %v1442, %v1441
  %1445 = vst [vmem:[#allocation3 + $0x50] sm:$0xff] %v1443
  %1446 = vst [vmem:[#allocation3 + $0x58] sm:$0xff] %v1444
  %1447 = vrot.lane.b32.xlu0 %v1247, 13
  %v1448 = vpop.permute.xlu0 %1447
  %1449 = vrot.lane.b32.xlu0 %v1249, 13
  %v1450 = vpop.permute.xlu0 %1449
  %1451 = vrot.lane.b32.xlu0 %v1251, 13
  %v1452 = vpop.permute.xlu0 %1451
  %1453 = vrot.lane.b32.xlu0 %v1253, 13
  %v1454 = vpop.permute.xlu0 %1453
  %v1459 = vld [vmem:[#allocation2 + $0x60] sm:$0xff]
  %v1460 = vld [vmem:[#allocation2 + $0x68] sm:$0xff]
  %v1461 = vunpack.c.l.bf16 %v1459
  %v1462 = vunpack.c.h.bf16 %v1459
  %v1463 = vunpack.c.l.bf16 %v1460
  %v1464 = vunpack.c.h.bf16 %v1460
  %v1465 = vmul.f32 %v1448, %v1461
  %v1466 = vmul.f32 %v1450, %v1462
  %v1467 = vmul.f32 %v1452, %v1463
  %v1468 = vmul.f32 %v1454, %v1464
  %v1469 = vpack.c.bf16 %v1466, %v1465
  %v1470 = vpack.c.bf16 %v1468, %v1467
  %1471 = vst [vmem:[#allocation3 + $0x60] sm:$0xff] %v1469
  %1472 = vst [vmem:[#allocation3 + $0x68] sm:$0xff] %v1470
  %1473 = vrot.lane.b32.xlu0 %v1247, 12
  %v1474 = vpop.permute.xlu0 %1473
  %1475 = vrot.lane.b32.xlu0 %v1249, 12
  %v1476 = vpop.permute.xlu0 %1475
  %1477 = vrot.lane.b32.xlu0 %v1251, 12
  %v1478 = vpop.permute.xlu0 %1477
  %1479 = vrot.lane.b32.xlu0 %v1253, 12
  %v1480 = vpop.permute.xlu0 %1479
  %v1485 = vld [vmem:[#allocation2 + $0x70] sm:$0xff]
  %v1486 = vld [vmem:[#allocation2 + $0x78] sm:$0xff]
  %v1487 = vunpack.c.l.bf16 %v1485
  %v1488 = vunpack.c.h.bf16 %v1485
  %v1489 = vunpack.c.l.bf16 %v1486
  %v1490 = vunpack.c.h.bf16 %v1486
  %v1491 = vmul.f32 %v1474, %v1487
  %v1492 = vmul.f32 %v1476, %v1488
  %v1493 = vmul.f32 %v1478, %v1489
  %v1494 = vmul.f32 %v1480, %v1490
  %v1495 = vpack.c.bf16 %v1492, %v1491
  %v1496 = vpack.c.bf16 %v1494, %v1493
  %1497 = vst [vmem:[#allocation3 + $0x70] sm:$0xff] %v1495
  %1498 = vst [vmem:[#allocation3 + $0x78] sm:$0xff] %v1496
  %1499 = vrot.lane.b32.xlu0 %v1247, 11
  %v1500 = vpop.permute.xlu0 %1499
  %1501 = vrot.lane.b32.xlu0 %v1249, 11
  %v1502 = vpop.permute.xlu0 %1501
  %1503 = vrot.lane.b32.xlu0 %v1251, 11
  %v1504 = vpop.permute.xlu0 %1503
  %1505 = vrot.lane.b32.xlu0 %v1253, 11
  %v1506 = vpop.permute.xlu0 %1505
  %v1511 = vld [vmem:[#allocation2 + $0x80] sm:$0xff]
  %v1512 = vld [vmem:[#allocation2 + $0x88] sm:$0xff]
  %v1513 = vunpack.c.l.bf16 %v1511
  %v1514 = vunpack.c.h.bf16 %v1511
  %v1515 = vunpack.c.l.bf16 %v1512
  %v1516 = vunpack.c.h.bf16 %v1512
  %v1517 = vmul.f32 %v1500, %v1513
  %v1518 = vmul.f32 %v1502, %v1514
  %v1519 = vmul.f32 %v1504, %v1515
  %v1520 = vmul.f32 %v1506, %v1516
  %v1521 = vpack.c.bf16 %v1518, %v1517
  %v1522 = vpack.c.bf16 %v1520, %v1519
  %1523 = vst [vmem:[#allocation3 + $0x80] sm:$0xff] %v1521
  %1524 = vst [vmem:[#allocation3 + $0x88] sm:$0xff] %v1522
  %1525 = vrot.lane.b32.xlu0 %v1247, 5
  %v1526 = vpop.permute.xlu0 %1525
  %1527 = vrot.lane.b32.xlu0 %v1249, 5
  %v1528 = vpop.permute.xlu0 %1527
  %1529 = vrot.lane.b32.xlu0 %v1251, 5
  %v1530 = vpop.permute.xlu0 %1529
  %1531 = vrot.lane.b32.xlu0 %v1253, 5
  %v1532 = vpop.permute.xlu0 %1531
  %v1537 = vld [vmem:[#allocation2 + $0x90] sm:$0xff]
  %v1538 = vld [vmem:[#allocation2 + $0x98] sm:$0xff]
  %v1539 = vunpack.c.l.bf16 %v1537
  %v1540 = vunpack.c.h.bf16 %v1537
  %v1541 = vunpack.c.l.bf16 %v1538
  %v1542 = vunpack.c.h.bf16 %v1538
  %v1543 = vmul.f32 %v1526, %v1539
  %v1544 = vmul.f32 %v1528, %v1540
  %v1545 = vmul.f32 %v1530, %v1541
  %v1546 = vmul.f32 %v1532, %v1542
  %v1547 = vpack.c.bf16 %v1544, %v1543
  %v1548 = vpack.c.bf16 %v1546, %v1545
  %1549 = vst [vmem:[#allocation3 + $0x90] sm:$0xff] %v1547
  %1550 = vst [vmem:[#allocation3 + $0x98] sm:$0xff] %v1548
  %1551 = vrot.lane.b32.xlu0 %v1247, 4
  %v1552 = vpop.permute.xlu0 %1551
  %1553 = vrot.lane.b32.xlu0 %v1249, 4
  %v1554 = vpop.permute.xlu0 %1553
  %1555 = vrot.lane.b32.xlu0 %v1251, 4
  %v1556 = vpop.permute.xlu0 %1555
  %1557 = vrot.lane.b32.xlu0 %v1253, 4
  %v1558 = vpop.permute.xlu0 %1557
  %v1563 = vld [vmem:[#allocation2 + $0xa0] sm:$0xff]
  %v1564 = vld [vmem:[#allocation2 + $0xa8] sm:$0xff]
  %v1565 = vunpack.c.l.bf16 %v1563
  %v1566 = vunpack.c.h.bf16 %v1563
  %v1567 = vunpack.c.l.bf16 %v1564
  %v1568 = vunpack.c.h.bf16 %v1564
  %v1569 = vmul.f32 %v1552, %v1565
  %v1570 = vmul.f32 %v1554, %v1566
  %v1571 = vmul.f32 %v1556, %v1567
  %v1572 = vmul.f32 %v1558, %v1568
  %v1573 = vpack.c.bf16 %v1570, %v1569
  %v1574 = vpack.c.bf16 %v1572, %v1571
  %1575 = vst [vmem:[#allocation3 + $0xa0] sm:$0xff] %v1573
  %1576 = vst [vmem:[#allocation3 + $0xa8] sm:$0xff] %v1574
  %1577 = vrot.lane.b32.xlu0 %v1247, 3
  %v1578 = vpop.permute.xlu0 %1577
  %1579 = vrot.lane.b32.xlu0 %v1249, 3
  %v1580 = vpop.permute.xlu0 %1579
  %1581 = vrot.lane.b32.xlu0 %v1251, 3
  %v1582 = vpop.permute.xlu0 %1581
  %1583 = vrot.lane.b32.xlu0 %v1253, 3
  %v1584 = vpop.permute.xlu0 %1583
  %v1589 = vld [vmem:[#allocation2 + $0xb0] sm:$0xff]
  %v1590 = vld [vmem:[#allocation2 + $0xb8] sm:$0xff]
  %v1591 = vunpack.c.l.bf16 %v1589
  %v1592 = vunpack.c.h.bf16 %v1589
  %v1593 = vunpack.c.l.bf16 %v1590
  %v1594 = vunpack.c.h.bf16 %v1590
  %v1595 = vmul.f32 %v1578, %v1591
  %v1596 = vmul.f32 %v1580, %v1592
  %v1597 = vmul.f32 %v1582, %v1593
  %v1598 = vmul.f32 %v1584, %v1594
  %v1599 = vpack.c.bf16 %v1596, %v1595
  %v1600 = vpack.c.bf16 %v1598, %v1597
  %1601 = vst [vmem:[#allocation3 + $0xb0] sm:$0xff] %v1599
  %1602 = vst [vmem:[#allocation3 + $0xb8] sm:$0xff] %v1600
  %1603 = vrot.lane.b32.xlu0 %v1247, 1
  %v1604 = vpop.permute.xlu0 %1603
  %1605 = vrot.lane.b32.xlu0 %v1249, 1
  %v1606 = vpop.permute.xlu0 %1605
  %1607 = vrot.lane.b32.xlu0 %v1251, 1
  %v1608 = vpop.permute.xlu0 %1607
  %1609 = vrot.lane.b32.xlu0 %v1253, 1
  %v1610 = vpop.permute.xlu0 %1609
  %v1615 = vld [vmem:[#allocation2 + $0xc0] sm:$0xff]
  %v1616 = vld [vmem:[#allocation2 + $0xc8] sm:$0xff]
  %v1617 = vunpack.c.l.bf16 %v1615
  %v1618 = vunpack.c.h.bf16 %v1615
  %v1619 = vunpack.c.l.bf16 %v1616
  %v1620 = vunpack.c.h.bf16 %v1616
  %v1621 = vmul.f32 %v1604, %v1617
  %v1622 = vmul.f32 %v1606, %v1618
  %v1623 = vmul.f32 %v1608, %v1619
  %v1624 = vmul.f32 %v1610, %v1620
  %v1625 = vpack.c.bf16 %v1622, %v1621
  %v1626 = vpack.c.bf16 %v1624, %v1623
  %1627 = vst [vmem:[#allocation3 + $0xc0] sm:$0xff] %v1625
  %1628 = vst [vmem:[#allocation3 + $0xc8] sm:$0xff] %v1626
  %v1629 = vld [vmem:[#allocation2 + $0xd0] sm:$0xff]
  %v1630 = vld [vmem:[#allocation2 + $0xd8] sm:$0xff]
  %v1631 = vunpack.c.l.bf16 %v1629
  %v1632 = vunpack.c.h.bf16 %v1629
  %v1633 = vunpack.c.l.bf16 %v1630
  %v1634 = vunpack.c.h.bf16 %v1630
  %v1635 = vmul.f32 %v1247, %v1631
  %v1636 = vmul.f32 %v1249, %v1632
  %v1637 = vmul.f32 %v1251, %v1633
  %v1638 = vmul.f32 %v1253, %v1634
  %v1639 = vpack.c.bf16 %v1636, %v1635
  %v1640 = vpack.c.bf16 %v1638, %v1637
  %1641 = vst [vmem:[#allocation3 + $0xd0] sm:$0xff] %v1639
  %1642 = vst [vmem:[#allocation3 + $0xd8] sm:$0xff] %v1640
  %1643 = vrot.lane.b32.xlu0 %v1247, 127
  %v1644 = vpop.permute.xlu0 %1643
  %1645 = vrot.lane.b32.xlu0 %v1249, 127
  %v1646 = vpop.permute.xlu0 %1645
  %1647 = vrot.lane.b32.xlu0 %v1251, 127
  %v1648 = vpop.permute.xlu0 %1647
  %1649 = vrot.lane.b32.xlu0 %v1253, 127
  %v1650 = vpop.permute.xlu0 %1649
  %v1655 = vld [vmem:[#allocation2 + $0xe0] sm:$0xff]
  %v1656 = vld [vmem:[#allocation2 + $0xe8] sm:$0xff]
  %v1657 = vunpack.c.l.bf16 %v1655
  %v1658 = vunpack.c.h.bf16 %v1655
  %v1659 = vunpack.c.l.bf16 %v1656
  %v1660 = vunpack.c.h.bf16 %v1656
  %v1661 = vmul.f32 %v1644, %v1657
  %v1662 = vmul.f32 %v1646, %v1658
  %v1663 = vmul.f32 %v1648, %v1659
  %v1664 = vmul.f32 %v1650, %v1660
  %v1665 = vpack.c.bf16 %v1662, %v1661
  %v1666 = vpack.c.bf16 %v1664, %v1663
  %1667 = vst [vmem:[#allocation3 + $0xe0] sm:$0xff] %v1665
  %1668 = vst [vmem:[#allocation3 + $0xe8] sm:$0xff] %v1666
  %1669 = vrot.lane.b32.xlu0 %v1247, 125
  %v1670 = vpop.permute.xlu0 %1669
  %1671 = vrot.lane.b32.xlu0 %v1249, 125
  %v1672 = vpop.permute.xlu0 %1671
  %1673 = vrot.lane.b32.xlu0 %v1251, 125
  %v1674 = vpop.permute.xlu0 %1673
  %1675 = vrot.lane.b32.xlu0 %v1253, 125
  %v1676 = vpop.permute.xlu0 %1675
  %v1681 = vld [vmem:[#allocation2 + $0xf0] sm:$0xff]
  %v1682 = vld [vmem:[#allocation2 + $0xf8] sm:$0xff]
  %v1683 = vunpack.c.l.bf16 %v1681
  %v1684 = vunpack.c.h.bf16 %v1681
  %v1685 = vunpack.c.l.bf16 %v1682
  %v1686 = vunpack.c.h.bf16 %v1682
  %v1687 = vmul.f32 %v1670, %v1683
  %v1688 = vmul.f32 %v1672, %v1684
  %v1689 = vmul.f32 %v1674, %v1685
  %v1690 = vmul.f32 %v1676, %v1686
  %v1691 = vpack.c.bf16 %v1688, %v1687
  %v1692 = vpack.c.bf16 %v1690, %v1689
  %1693 = vst [vmem:[#allocation3 + $0xf0] sm:$0xff] %v1691
  %1694 = vst [vmem:[#allocation3 + $0xf8] sm:$0xff] %v1692
  %1695 = vrot.lane.b32.xlu0 %v1247, 124
  %v1696 = vpop.permute.xlu0 %1695
  %1697 = vrot.lane.b32.xlu0 %v1249, 124
  %v1698 = vpop.permute.xlu0 %1697
  %1699 = vrot.lane.b32.xlu0 %v1251, 124
  %v1700 = vpop.permute.xlu0 %1699
  %1701 = vrot.lane.b32.xlu0 %v1253, 124
  %v1702 = vpop.permute.xlu0 %1701
  %v1707 = vld [vmem:[#allocation2 + $0x100] sm:$0xff]
  %v1708 = vld [vmem:[#allocation2 + $0x108] sm:$0xff]
  %v1709 = vunpack.c.l.bf16 %v1707
  %v1710 = vunpack.c.h.bf16 %v1707
  %v1711 = vunpack.c.l.bf16 %v1708
  %v1712 = vunpack.c.h.bf16 %v1708
  %v1713 = vmul.f32 %v1696, %v1709
  %v1714 = vmul.f32 %v1698, %v1710
  %v1715 = vmul.f32 %v1700, %v1711
  %v1716 = vmul.f32 %v1702, %v1712
  %v1717 = vpack.c.bf16 %v1714, %v1713
  %v1718 = vpack.c.bf16 %v1716, %v1715
  %1719 = vst [vmem:[#allocation3 + $0x100] sm:$0xff] %v1717
  %1720 = vst [vmem:[#allocation3 + $0x108] sm:$0xff] %v1718
  %1721 = vrot.lane.b32.xlu0 %v1247, 123
  %v1722 = vpop.permute.xlu0 %1721
  %1723 = vrot.lane.b32.xlu0 %v1249, 123
  %v1724 = vpop.permute.xlu0 %1723
  %1725 = vrot.lane.b32.xlu0 %v1251, 123
  %v1726 = vpop.permute.xlu0 %1725
  %1727 = vrot.lane.b32.xlu0 %v1253, 123
  %v1728 = vpop.permute.xlu0 %1727
  %v1733 = vld [vmem:[#allocation2 + $0x110] sm:$0xff]
  %v1734 = vld [vmem:[#allocation2 + $0x118] sm:$0xff]
  %v1735 = vunpack.c.l.bf16 %v1733
  %v1736 = vunpack.c.h.bf16 %v1733
  %v1737 = vunpack.c.l.bf16 %v1734
  %v1738 = vunpack.c.h.bf16 %v1734
  %v1739 = vmul.f32 %v1722, %v1735
  %v1740 = vmul.f32 %v1724, %v1736
  %v1741 = vmul.f32 %v1726, %v1737
  %v1742 = vmul.f32 %v1728, %v1738
  %v1743 = vpack.c.bf16 %v1740, %v1739
  %v1744 = vpack.c.bf16 %v1742, %v1741
  %1745 = vst [vmem:[#allocation3 + $0x110] sm:$0xff] %v1743
  %1746 = vst [vmem:[#allocation3 + $0x118] sm:$0xff] %v1744
  %1747 = vrot.lane.b32.xlu0 %v1247, 117
  %v1748 = vpop.permute.xlu0 %1747
  %1749 = vrot.lane.b32.xlu0 %v1249, 117
  %v1750 = vpop.permute.xlu0 %1749
  %1751 = vrot.lane.b32.xlu0 %v1251, 117
  %v1752 = vpop.permute.xlu0 %1751
  %1753 = vrot.lane.b32.xlu0 %v1253, 117
  %v1754 = vpop.permute.xlu0 %1753
  %v1759 = vld [vmem:[#allocation2 + $0x120] sm:$0xff]
  %v1760 = vld [vmem:[#allocation2 + $0x128] sm:$0xff]
  %v1761 = vunpack.c.l.bf16 %v1759
  %v1762 = vunpack.c.h.bf16 %v1759
  %v1763 = vunpack.c.l.bf16 %v1760
  %v1764 = vunpack.c.h.bf16 %v1760
  %v1765 = vmul.f32 %v1748, %v1761
  %v1766 = vmul.f32 %v1750, %v1762
  %v1767 = vmul.f32 %v1752, %v1763
  %v1768 = vmul.f32 %v1754, %v1764
  %v1769 = vpack.c.bf16 %v1766, %v1765
  %v1770 = vpack.c.bf16 %v1768, %v1767
  %1771 = vst [vmem:[#allocation3 + $0x120] sm:$0xff] %v1769
  %1772 = vst [vmem:[#allocation3 + $0x128] sm:$0xff] %v1770
  %1773 = vrot.lane.b32.xlu0 %v1247, 116
  %v1774 = vpop.permute.xlu0 %1773
  %1775 = vrot.lane.b32.xlu0 %v1249, 116
  %v1776 = vpop.permute.xlu0 %1775
  %1777 = vrot.lane.b32.xlu0 %v1251, 116
  %v1778 = vpop.permute.xlu0 %1777
  %1779 = vrot.lane.b32.xlu0 %v1253, 116
  %v1780 = vpop.permute.xlu0 %1779
  %v1785 = vld [vmem:[#allocation2 + $0x130] sm:$0xff]
  %v1786 = vld [vmem:[#allocation2 + $0x138] sm:$0xff]
  %v1787 = vunpack.c.l.bf16 %v1785
  %v1788 = vunpack.c.h.bf16 %v1785
  %v1789 = vunpack.c.l.bf16 %v1786
  %v1790 = vunpack.c.h.bf16 %v1786
  %v1791 = vmul.f32 %v1774, %v1787
  %v1792 = vmul.f32 %v1776, %v1788
  %v1793 = vmul.f32 %v1778, %v1789
  %v1794 = vmul.f32 %v1780, %v1790
  %v1795 = vpack.c.bf16 %v1792, %v1791
  %v1796 = vpack.c.bf16 %v1794, %v1793
  %1797 = vst [vmem:[#allocation3 + $0x130] sm:$0xff] %v1795
  %1798 = vst [vmem:[#allocation3 + $0x138] sm:$0xff] %v1796
  %1799 = vrot.lane.b32.xlu0 %v1247, 115
  %v1800 = vpop.permute.xlu0 %1799
  %1801 = vrot.lane.b32.xlu0 %v1249, 115
  %v1802 = vpop.permute.xlu0 %1801
  %1803 = vrot.lane.b32.xlu0 %v1251, 115
  %v1804 = vpop.permute.xlu0 %1803
  %1805 = vrot.lane.b32.xlu0 %v1253, 115
  %v1806 = vpop.permute.xlu0 %1805
  %v1811 = vld [vmem:[#allocation2 + $0x140] sm:$0xff]
  %v1812 = vld [vmem:[#allocation2 + $0x148] sm:$0xff]
  %v1813 = vunpack.c.l.bf16 %v1811
  %v1814 = vunpack.c.h.bf16 %v1811
  %v1815 = vunpack.c.l.bf16 %v1812
  %v1816 = vunpack.c.h.bf16 %v1812
  %v1817 = vmul.f32 %v1800, %v1813
  %v1818 = vmul.f32 %v1802, %v1814
  %v1819 = vmul.f32 %v1804, %v1815
  %v1820 = vmul.f32 %v1806, %v1816
  %v1821 = vpack.c.bf16 %v1818, %v1817
  %v1822 = vpack.c.bf16 %v1820, %v1819
  %1823 = vst [vmem:[#allocation3 + $0x140] sm:$0xff] %v1821
  %1824 = vst [vmem:[#allocation3 + $0x148] sm:$0xff] %v1822
  %1825 = vrot.lane.b32.xlu0 %v1247, 113
  %v1826 = vpop.permute.xlu0 %1825
  %1827 = vrot.lane.b32.xlu0 %v1249, 113
  %v1828 = vpop.permute.xlu0 %1827
  %1829 = vrot.lane.b32.xlu0 %v1251, 113
  %v1830 = vpop.permute.xlu0 %1829
  %1831 = vrot.lane.b32.xlu0 %v1253, 113
  %v1832 = vpop.permute.xlu0 %1831
  %v1837 = vld [vmem:[#allocation2 + $0x150] sm:$0xff]
  %v1838 = vld [vmem:[#allocation2 + $0x158] sm:$0xff]
  %v1839 = vunpack.c.l.bf16 %v1837
  %v1840 = vunpack.c.h.bf16 %v1837
  %v1841 = vunpack.c.l.bf16 %v1838
  %v1842 = vunpack.c.h.bf16 %v1838
  %v1843 = vmul.f32 %v1826, %v1839
  %v1844 = vmul.f32 %v1828, %v1840
  %v1845 = vmul.f32 %v1830, %v1841
  %v1846 = vmul.f32 %v1832, %v1842
  %v1847 = vpack.c.bf16 %v1844, %v1843
  %v1848 = vpack.c.bf16 %v1846, %v1845
  %1849 = vst [vmem:[#allocation3 + $0x150] sm:$0xff] %v1847
  %1850 = vst [vmem:[#allocation3 + $0x158] sm:$0xff] %v1848
  %1851 = vrot.lane.b32.xlu0 %v1247, 112
  %v1852 = vpop.permute.xlu0 %1851
  %1853 = vrot.lane.b32.xlu0 %v1249, 112
  %v1854 = vpop.permute.xlu0 %1853
  %1855 = vrot.lane.b32.xlu0 %v1251, 112
  %v1856 = vpop.permute.xlu0 %1855
  %1857 = vrot.lane.b32.xlu0 %v1253, 112
  %v1858 = vpop.permute.xlu0 %1857
  %v1863 = vld [vmem:[#allocation2 + $0x160] sm:$0xff]
  %v1864 = vld [vmem:[#allocation2 + $0x168] sm:$0xff]
  %v1865 = vunpack.c.l.bf16 %v1863
  %v1866 = vunpack.c.h.bf16 %v1863
  %v1867 = vunpack.c.l.bf16 %v1864
  %v1868 = vunpack.c.h.bf16 %v1864
  %v1869 = vmul.f32 %v1852, %v1865
  %v1870 = vmul.f32 %v1854, %v1866
  %v1871 = vmul.f32 %v1856, %v1867
  %v1872 = vmul.f32 %v1858, %v1868
  %v1873 = vpack.c.bf16 %v1870, %v1869
  %v1874 = vpack.c.bf16 %v1872, %v1871
  %1875 = vst [vmem:[#allocation3 + $0x160] sm:$0xff] %v1873
  %1876 = vst [vmem:[#allocation3 + $0x168] sm:$0xff] %v1874
  %1877 = vrot.lane.b32.xlu0 %v1247, 111
  %v1878 = vpop.permute.xlu0 %1877
  %1879 = vrot.lane.b32.xlu0 %v1249, 111
  %v1880 = vpop.permute.xlu0 %1879
  %1881 = vrot.lane.b32.xlu0 %v1251, 111
  %v1882 = vpop.permute.xlu0 %1881
  %1883 = vrot.lane.b32.xlu0 %v1253, 111
  %v1884 = vpop.permute.xlu0 %1883
  %v1889 = vld [vmem:[#allocation2 + $0x170] sm:$0xff]
  %v1890 = vld [vmem:[#allocation2 + $0x178] sm:$0xff]
  %v1891 = vunpack.c.l.bf16 %v1889
  %v1892 = vunpack.c.h.bf16 %v1889
  %v1893 = vunpack.c.l.bf16 %v1890
  %v1894 = vunpack.c.h.bf16 %v1890
  %v1895 = vmul.f32 %v1878, %v1891
  %v1896 = vmul.f32 %v1880, %v1892
  %v1897 = vmul.f32 %v1882, %v1893
  %v1898 = vmul.f32 %v1884, %v1894
  %v1899 = vpack.c.bf16 %v1896, %v1895
  %v1900 = vpack.c.bf16 %v1898, %v1897
  %1901 = vst [vmem:[#allocation3 + $0x170] sm:$0xff] %v1899
  %1902 = vst [vmem:[#allocation3 + $0x178] sm:$0xff] %v1900
  %1903 = vrot.lane.b32.xlu0 %v1247, 109
  %v1904 = vpop.permute.xlu0 %1903
  %1905 = vrot.lane.b32.xlu0 %v1249, 109
  %v1906 = vpop.permute.xlu0 %1905
  %1907 = vrot.lane.b32.xlu0 %v1251, 109
  %v1908 = vpop.permute.xlu0 %1907
  %1909 = vrot.lane.b32.xlu0 %v1253, 109
  %v1910 = vpop.permute.xlu0 %1909
  %v1915 = vld [vmem:[#allocation2 + $0x180] sm:$0xff]
  %v1916 = vld [vmem:[#allocation2 + $0x188] sm:$0xff]
  %v1917 = vunpack.c.l.bf16 %v1915
  %v1918 = vunpack.c.h.bf16 %v1915
  %v1919 = vunpack.c.l.bf16 %v1916
  %v1920 = vunpack.c.h.bf16 %v1916
  %v1921 = vmul.f32 %v1904, %v1917
  %v1922 = vmul.f32 %v1906, %v1918
  %v1923 = vmul.f32 %v1908, %v1919
  %v1924 = vmul.f32 %v1910, %v1920
  %v1925 = vpack.c.bf16 %v1922, %v1921
  %v1926 = vpack.c.bf16 %v1924, %v1923
  %1927 = vst [vmem:[#allocation3 + $0x180] sm:$0xff] %v1925
  %1928 = vst [vmem:[#allocation3 + $0x188] sm:$0xff] %v1926
  %1929 = vrot.lane.b32.xlu0 %v1247, 108
  %v1930 = vpop.permute.xlu0 %1929
  %1931 = vrot.lane.b32.xlu0 %v1249, 108
  %v1932 = vpop.permute.xlu0 %1931
  %1933 = vrot.lane.b32.xlu0 %v1251, 108
  %v1934 = vpop.permute.xlu0 %1933
  %1935 = vrot.lane.b32.xlu0 %v1253, 108
  %v1936 = vpop.permute.xlu0 %1935
  %v1941 = vld [vmem:[#allocation2 + $0x190] sm:$0xff]
  %v1942 = vld [vmem:[#allocation2 + $0x198] sm:$0xff]
  %v1943 = vunpack.c.l.bf16 %v1941
  %v1944 = vunpack.c.h.bf16 %v1941
  %v1945 = vunpack.c.l.bf16 %v1942
  %v1946 = vunpack.c.h.bf16 %v1942
  %v1947 = vmul.f32 %v1930, %v1943
  %v1948 = vmul.f32 %v1932, %v1944
  %v1949 = vmul.f32 %v1934, %v1945
  %v1950 = vmul.f32 %v1936, %v1946
  %v1951 = vpack.c.bf16 %v1948, %v1947
  %v1952 = vpack.c.bf16 %v1950, %v1949
  %1953 = vst [vmem:[#allocation3 + $0x190] sm:$0xff] %v1951
  %1954 = vst [vmem:[#allocation3 + $0x198] sm:$0xff] %v1952
  %1955 = vrot.lane.b32.xlu0 %v1247, 107
  %v1956 = vpop.permute.xlu0 %1955
  %1957 = vrot.lane.b32.xlu0 %v1249, 107
  %v1958 = vpop.permute.xlu0 %1957
  %1959 = vrot.lane.b32.xlu0 %v1251, 107
  %v1960 = vpop.permute.xlu0 %1959
  %1961 = vrot.lane.b32.xlu0 %v1253, 107
  %v1962 = vpop.permute.xlu0 %1961
  %v1967 = vld [vmem:[#allocation2 + $0x1a0] sm:$0xff]
  %v1968 = vld [vmem:[#allocation2 + $0x1a8] sm:$0xff]
  %v1969 = vunpack.c.l.bf16 %v1967
  %v1970 = vunpack.c.h.bf16 %v1967
  %v1971 = vunpack.c.l.bf16 %v1968
  %v1972 = vunpack.c.h.bf16 %v1968
  %v1973 = vmul.f32 %v1956, %v1969
  %v1974 = vmul.f32 %v1958, %v1970
  %v1975 = vmul.f32 %v1960, %v1971
  %v1976 = vmul.f32 %v1962, %v1972
  %v1977 = vpack.c.bf16 %v1974, %v1973
  %v1978 = vpack.c.bf16 %v1976, %v1975
  %1979 = vst [vmem:[#allocation3 + $0x1a0] sm:$0xff] %v1977
  %1980 = vst [vmem:[#allocation3 + $0x1a8] sm:$0xff] %v1978
  %v1981 = vld [vmem:[%s5] sm:$0xff]
  %v1982 = vld [vmem:[%s5 + $0x8] sm:$0xff]
  %v1983 = vld [vmem:[%s5 + $0x10] sm:$0xff]
  %v1984 = vld [vmem:[%s5 + $0x18] sm:$0xf]
  %v1985 = vld [vmem:[%s5 + $0x1c] sm:$0xff]
  %v1986 = vld [vmem:[%s5 + $0x24] sm:$0xff]
  %v1987 = vld [vmem:[%s5 + $0x2c] sm:$0xff]
  %v1988 = vld [vmem:[%s5 + $0x34] sm:$0xf]
  %v1989 = vld [vmem:[%s5 + $0x38] sm:$0xff]
  %v1990 = vld [vmem:[%s5 + $0x40] sm:$0xff]
  %v1991 = vld [vmem:[%s5 + $0x48] sm:$0xff]
  %v1992 = vld [vmem:[%s5 + $0x50] sm:$0xf]
  %v1993 = vld [vmem:[%s5 + $0x54] sm:$0xff]
  %v1994 = vld [vmem:[%s5 + $0x5c] sm:$0xff]
  %v1995 = vld [vmem:[%s5 + $0x64] sm:$0xff]
  %v1996 = vld [vmem:[%s5 + $0x6c] sm:$0xf]
  %v1997 = vld [vmem:[#allocation3] sm:$0xff]
  %v1998 = vld [vmem:[#allocation3 + $0x8] sm:$0xff]
  %v1999 = vld [vmem:[#allocation3 + $0x10] sm:$0xff]
  %v2000 = vld [vmem:[#allocation3 + $0x18] sm:$0xff]
  %v2001 = vld [vmem:[#allocation3 + $0x20] sm:$0xff]
  %v2002 = vld [vmem:[#allocation3 + $0x28] sm:$0xff]
  %v2003 = vld [vmem:[#allocation3 + $0x30] sm:$0xff]
  %v2004 = vld [vmem:[#allocation3 + $0x38] sm:$0xff]
  %v2005 = vld [vmem:[#allocation3 + $0x40] sm:$0xff]
  %v2006 = vld [vmem:[#allocation3 + $0x48] sm:$0xff]
  %v2007 = vld [vmem:[#allocation3 + $0x50] sm:$0xff]
  %v2008 = vld [vmem:[#allocation3 + $0x58] sm:$0xff]
  %v2009 = vld [vmem:[#allocation3 + $0x60] sm:$0xff]
  %v2010 = vld [vmem:[#allocation3 + $0x68] sm:$0xff]
  %v2011 = vld [vmem:[#allocation3 + $0x70] sm:$0xff]
  %v2012 = vld [vmem:[#allocation3 + $0x78] sm:$0xff]
  %v2013 = vld [vmem:[#allocation3 + $0x80] sm:$0xff]
  %v2014 = vld [vmem:[#allocation3 + $0x88] sm:$0xff]
  %v2015 = vld [vmem:[#allocation3 + $0x90] sm:$0xff]
  %v2016 = vld [vmem:[#allocation3 + $0x98] sm:$0xff]
  %v2017 = vld [vmem:[#allocation3 + $0xa0] sm:$0xff]
  %v2018 = vld [vmem:[#allocation3 + $0xa8] sm:$0xff]
  %v2019 = vld [vmem:[#allocation3 + $0xb0] sm:$0xff]
  %v2020 = vld [vmem:[#allocation3 + $0xb8] sm:$0xff]
  %v2021 = vld [vmem:[#allocation3 + $0xc0] sm:$0xff]
  %v2022 = vld [vmem:[#allocation3 + $0xc8] sm:$0xff]
  %v2023 = vld [vmem:[#allocation3 + $0xd0] sm:$0xff]
  %v2024 = vld [vmem:[#allocation3 + $0xd8] sm:$0xff]
  %v2025 = vld [vmem:[#allocation3 + $0xe0] sm:$0xff]
  %v2026 = vld [vmem:[#allocation3 + $0xe8] sm:$0xff]
  %v2027 = vld [vmem:[#allocation3 + $0xf0] sm:$0xff]
  %v2028 = vld [vmem:[#allocation3 + $0xf8] sm:$0xff]
  %v2029 = vld [vmem:[#allocation3 + $0x100] sm:$0xff]
  %v2030 = vld [vmem:[#allocation3 + $0x108] sm:$0xff]
  %v2031 = vld [vmem:[#allocation3 + $0x110] sm:$0xff]
  %v2032 = vld [vmem:[#allocation3 + $0x118] sm:$0xff]
  %v2033 = vld [vmem:[#allocation3 + $0x120] sm:$0xff]
  %v2034 = vld [vmem:[#allocation3 + $0x128] sm:$0xff]
  %v2035 = vld [vmem:[#allocation3 + $0x130] sm:$0xff]
  %v2036 = vld [vmem:[#allocation3 + $0x138] sm:$0xff]
  %v2037 = vld [vmem:[#allocation3 + $0x140] sm:$0xff]
  %v2038 = vld [vmem:[#allocation3 + $0x148] sm:$0xff]
  %v2039 = vld [vmem:[#allocation3 + $0x150] sm:$0xff]
  %v2040 = vld [vmem:[#allocation3 + $0x158] sm:$0xff]
  %v2041 = vld [vmem:[#allocation3 + $0x160] sm:$0xff]
  %v2042 = vld [vmem:[#allocation3 + $0x168] sm:$0xff]
  %v2043 = vld [vmem:[#allocation3 + $0x170] sm:$0xff]
  %v2044 = vld [vmem:[#allocation3 + $0x178] sm:$0xff]
  %v2045 = vld [vmem:[#allocation3 + $0x180] sm:$0xff]
  %v2046 = vld [vmem:[#allocation3 + $0x188] sm:$0xff]
  %v2047 = vld [vmem:[#allocation3 + $0x190] sm:$0xff]
  %v2048 = vld [vmem:[#allocation3 + $0x198] sm:$0xff]
  %v2049 = vld [vmem:[#allocation3 + $0x1a0] sm:$0xff]
  %v2050 = vld [vmem:[#allocation3 + $0x1a8] sm:$0xff]
  %v2051 = vld [vmem:[%s6] sm:$0xff]
  %v2052 = vld [vmem:[%s6 + $0x8] sm:$0xff]
  %v2053 = vld [vmem:[%s6 + $0x10] sm:$0xff]
  %v2054 = vld [vmem:[%s6 + $0x18] sm:$0xff]
  %2056 = vset.pattern.permute.xlu0 0
  %2057 = vperm.xlu0 %2056, %v2051
  %v2058 = vpop.permute.xlu0 %2057
  %2061 = vset.pattern.permute.xlu0 0
  %2062 = vperm.xlu0 %2061, %v2052
  %v2063 = vpop.permute.xlu0 %2062
  %2066 = vset.pattern.permute.xlu0 0
  %2067 = vperm.xlu0 %2066, %v2053
  %v2068 = vpop.permute.xlu0 %2067
  %2071 = vset.pattern.permute.xlu0 0
  %2072 = vperm.xlu0 %2071, %v2054
  %v2073 = vpop.permute.xlu0 %2072
  %v2091 = vunpack.c.l.b16 %v1981
  %v2092 = vunpack.c.h.b16 %v1981
  %v2093 = vunpack.c.l.b16 %v1982
  %v2094 = vunpack.c.h.b16 %v1982
  %v2095 = vunpack.c.l.b16 %v1983
  %v2096 = vunpack.c.h.b16 %v1983
  %v2097 = vunpack.c.l.b16 %v1984
  %v2098 = vunpack.c.l.b16 %v1985
  %v2099 = vunpack.c.h.b16 %v1985
  %v2100 = vunpack.c.l.b16 %v1986
  %v2101 = vunpack.c.h.b16 %v1986
  %v2102 = vunpack.c.l.b16 %v1987
  %v2103 = vunpack.c.h.b16 %v1987
  %v2104 = vunpack.c.l.b16 %v1988
  %v2105 = vunpack.c.l.b16 %v1989
  %v2106 = vunpack.c.h.b16 %v1989
  %v2107 = vunpack.c.l.b16 %v1990
  %v2108 = vunpack.c.h.b16 %v1990
  %v2109 = vunpack.c.l.b16 %v1991
  %v2110 = vunpack.c.h.b16 %v1991
  %v2111 = vunpack.c.l.b16 %v1992
  %v2112 = vunpack.c.l.b16 %v1993
  %v2113 = vunpack.c.h.b16 %v1993
  %v2114 = vunpack.c.l.b16 %v1994
  %v2115 = vunpack.c.h.b16 %v1994
  %v2116 = vunpack.c.l.b16 %v1995
  %v2117 = vunpack.c.h.b16 %v1995
  %v2118 = vunpack.c.l.b16 %v1996
  %v2119 = vpack.c.b16 %v2098, %v2091
  %v2120 = vpack.c.b16 %v2099, %v2092
  %v2121 = vpack.c.b16 %v2100, %v2093
  %v2122 = vpack.c.b16 %v2101, %v2094
  %v2123 = vpack.c.b16 %v2102, %v2095
  %v2124 = vpack.c.b16 %v2103, %v2096
  %v2125 = vpack.c.b16 %v2104, %v2097
  %v2126 = vpack.c.b16 %v2112, %v2105
  %v2127 = vpack.c.b16 %v2113, %v2106
  %v2128 = vpack.c.b16 %v2114, %v2107
  %v2129 = vpack.c.b16 %v2115, %v2108
  %v2130 = vpack.c.b16 %v2116, %v2109
  %v2131 = vpack.c.b16 %v2117, %v2110
  %v2132 = vpack.c.b16 %v2118, %v2111
  %v2146 = vsel %vm949, %v2125, 0
  %v2149 = vsel %vm949, %v2132, 0
  %2151 = vmatprep.subr.bf16.mxu0 0
  %2152 = vmatpush1.bf16.msra.mxu0 %v1997
  %2153 = vmatprep.subr.bf16.mxu0 0
  %2154 = vmatpush1.bf16.msra.mxu0 %v1998
  %2155 = vmatprep.subr.bf16.mxu0 0
  %2156 = vmatpush1.bf16.msra.mxu0 %v1999
  %2157 = vmatprep.subr.bf16.mxu0 0
  %2158 = vmatpush1.bf16.msra.mxu0 %v2000
  %2159 = vmatprep.subr.bf16.mxu0 0
  %2160 = vmatpush1.bf16.msra.mxu0 %v2001
  %2161 = vmatprep.subr.bf16.mxu0 0
  %2162 = vmatpush1.bf16.msra.mxu0 %v2002
  %2163 = vmatprep.subr.bf16.mxu0 0
  %2164 = vmatpush1.bf16.msra.mxu0 %v2003
  %2165 = vmatprep.subr.bf16.mxu0 0
  %2166 = vmatpush1.bf16.msra.mxu0 %v2004
  %2167 = vmatprep.subr.bf16.mxu0 0
  %2168 = vmatpush1.bf16.msra.mxu0 %v2005
  %2169 = vmatprep.subr.bf16.mxu0 0
  %2170 = vmatpush1.bf16.msra.mxu0 %v2006
  %2171 = vmatprep.subr.bf16.mxu0 0
  %2172 = vmatpush1.bf16.msra.mxu0 %v2007
  %2173 = vmatprep.subr.bf16.mxu0 0
  %2174 = vmatpush1.bf16.msra.mxu0 %v2008
  %2175 = vmatprep.subr.bf16.mxu0 0
  %2176 = vmatpush1.bf16.msra.mxu0 %v2009
  %2177 = vmatprep.subr.bf16.mxu0 0
  %2178 = vmatpush1.bf16.msra.mxu0 %v2010
  %2179 = vmatprep.subr.bf16.mxu0 0
  %2180 = vmatpush1.bf16.msra.mxu0 %v2011
  %2181 = vmatprep.subr.bf16.mxu0 0
  %2182 = vmatpush1.bf16.msra.mxu0 %v2012
  %2183 = vmatprep.mubr.bf16.mxu0 %v2120
  %2184 = vmatmul.mubr.bf16.gmra.mrb[0].mxu0 %v2119
  %v2185 = vpop.f32.mrb[0].mxu0
  %v2186 = vadd.f32 %v2058, %v2185
  %v2187 = vpop.f32.mrb[0].mxu0
  %v2188 = vpop.f32.mrb[0].mxu0
  %v2189 = vadd.f32 %v2063, %v2188
  %v2190 = vpop.f32.mrb[0].mxu0
  %2191 = vmatprep.mubr.bf16.mxu0 %v2127
  %2192 = vmatmul.mubr.bf16.gmra.mrb[0].mxu0 %v2126
  %v2193 = vpop.f32.mrb[0].mxu0
  %v2194 = vadd.f32 %v2068, %v2193
  %v2195 = vpop.f32.mrb[0].mxu0
  %v2196 = vpop.f32.mrb[0].mxu0
  %v2197 = vadd.f32 %v2073, %v2196
  %v2198 = vpop.f32.mrb[0].mxu0
  %2199 = vdwg.mxu0
  %2200 = vmatprep.subr.bf16.mxu0 0
  %2201 = vmatpush1.bf16.msra.mxu0 %v2013
  %2202 = vmatprep.subr.bf16.mxu0 0
  %2203 = vmatpush1.bf16.msra.mxu0 %v2014
  %2204 = vmatprep.subr.bf16.mxu0 0
  %2205 = vmatpush1.bf16.msra.mxu0 %v2015
  %2206 = vmatprep.subr.bf16.mxu0 0
  %2207 = vmatpush1.bf16.msra.mxu0 %v2016
  %2208 = vmatprep.subr.bf16.mxu0 0
  %2209 = vmatpush1.bf16.msra.mxu0 %v2017
  %2210 = vmatprep.subr.bf16.mxu0 0
  %2211 = vmatpush1.bf16.msra.mxu0 %v2018
  %2212 = vmatprep.subr.bf16.mxu0 0
  %2213 = vmatpush1.bf16.msra.mxu0 %v2019
  %2214 = vmatprep.subr.bf16.mxu0 0
  %2215 = vmatpush1.bf16.msra.mxu0 %v2020
  %2216 = vmatprep.subr.bf16.mxu0 0
  %2217 = vmatpush1.bf16.msra.mxu0 %v2021
  %2218 = vmatprep.subr.bf16.mxu0 0
  %2219 = vmatpush1.bf16.msra.mxu0 %v2022
  %2220 = vmatprep.subr.bf16.mxu0 0
  %2221 = vmatpush1.bf16.msra.mxu0 %v2023
  %2222 = vmatprep.subr.bf16.mxu0 0
  %2223 = vmatpush1.bf16.msra.mxu0 %v2024
  %2224 = vmatprep.subr.bf16.mxu0 0
  %2225 = vmatpush1.bf16.msra.mxu0 %v2025
  %2226 = vmatprep.subr.bf16.mxu0 0
  %2227 = vmatpush1.bf16.msra.mxu0 %v2026
  %2228 = vmatprep.subr.bf16.mxu0 0
  %2229 = vmatpush1.bf16.msra.mxu0 %v2027
  %2230 = vmatprep.subr.bf16.mxu0 0
  %2231 = vmatpush1.bf16.msra.mxu0 %v2028
  %2232 = vmatprep.mubr.bf16.mxu0 %v2122
  %2233 = vmatmul.mubr.bf16.gmra.mrb[0].mxu0 %v2121
  %v2234 = vpop.f32.mrb[0].mxu0
  %v2235 = vadd.f32 %v2186, %v2234
  %v2236 = vpop.f32.mrb[0].mxu0
  %v2237 = vpop.f32.mrb[0].mxu0
  %v2238 = vadd.f32 %v2189, %v2237
  %v2239 = vpop.f32.mrb[0].mxu0
  %2240 = vmatprep.mubr.bf16.mxu0 %v2129
  %2241 = vmatmul.mubr.bf16.gmra.mrb[0].mxu0 %v2128
  %v2242 = vpop.f32.mrb[0].mxu0
  %v2243 = vadd.f32 %v2194, %v2242
  %v2244 = vpop.f32.mrb[0].mxu0
  %v2245 = vpop.f32.mrb[0].mxu0
  %v2246 = vadd.f32 %v2197, %v2245
  %v2247 = vpop.f32.mrb[0].mxu0
  %2248 = vdwg.mxu0
  %2249 = vmatprep.subr.bf16.mxu0 0
  %2250 = vmatpush1.bf16.msra.mxu0 %v2029
  %2251 = vmatprep.subr.bf16.mxu0 0
  %2252 = vmatpush1.bf16.msra.mxu0 %v2030
  %2253 = vmatprep.subr.bf16.mxu0 0
  %2254 = vmatpush1.bf16.msra.mxu0 %v2031
  %2255 = vmatprep.subr.bf16.mxu0 0
  %2256 = vmatpush1.bf16.msra.mxu0 %v2032
  %2257 = vmatprep.subr.bf16.mxu0 0
  %2258 = vmatpush1.bf16.msra.mxu0 %v2033
  %2259 = vmatprep.subr.bf16.mxu0 0
  %2260 = vmatpush1.bf16.msra.mxu0 %v2034
  %2261 = vmatprep.subr.bf16.mxu0 0
  %2262 = vmatpush1.bf16.msra.mxu0 %v2035
  %2263 = vmatprep.subr.bf16.mxu0 0
  %2264 = vmatpush1.bf16.msra.mxu0 %v2036
  %2265 = vmatprep.subr.bf16.mxu0 0
  %2266 = vmatpush1.bf16.msra.mxu0 %v2037
  %2267 = vmatprep.subr.bf16.mxu0 0
  %2268 = vmatpush1.bf16.msra.mxu0 %v2038
  %2269 = vmatprep.subr.bf16.mxu0 0
  %2270 = vmatpush1.bf16.msra.mxu0 %v2039
  %2271 = vmatprep.subr.bf16.mxu0 0
  %2272 = vmatpush1.bf16.msra.mxu0 %v2040
  %2273 = vmatprep.subr.bf16.mxu0 0
  %2274 = vmatpush1.bf16.msra.mxu0 %v2041
  %2275 = vmatprep.subr.bf16.mxu0 0
  %2276 = vmatpush1.bf16.msra.mxu0 %v2042
  %2277 = vmatprep.subr.bf16.mxu0 0
  %2278 = vmatpush1.bf16.msra.mxu0 %v2043
  %2279 = vmatprep.subr.bf16.mxu0 0
  %2280 = vmatpush1.bf16.msra.mxu0 %v2044
  %2281 = vmatprep.mubr.bf16.mxu0 %v2124
  %2282 = vmatmul.mubr.bf16.gmra.mrb[0].mxu0 %v2123
  %v2283 = vpop.f32.mrb[0].mxu0
  %v2284 = vadd.f32 %v2235, %v2283
  %v2285 = vpop.f32.mrb[0].mxu0
  %v2286 = vpop.f32.mrb[0].mxu0
  %v2287 = vadd.f32 %v2238, %v2286
  %v2288 = vpop.f32.mrb[0].mxu0
  %2289 = vmatprep.mubr.bf16.mxu0 %v2131
  %2290 = vmatmul.mubr.bf16.gmra.mrb[0].mxu0 %v2130
  %v2291 = vpop.f32.mrb[0].mxu0
  %v2292 = vadd.f32 %v2243, %v2291
  %v2293 = vpop.f32.mrb[0].mxu0
  %v2294 = vpop.f32.mrb[0].mxu0
  %v2295 = vadd.f32 %v2246, %v2294
  %v2296 = vpop.f32.mrb[0].mxu0
  %2297 = vdwg.mxu0
  %2298 = vmatprep.subr.bf16.mxu0 0
  %2299 = vmatpush1.bf16.msra.mxu0 %v2045
  %2300 = vmatprep.subr.bf16.mxu0 0
  %2301 = vmatpush1.bf16.msra.mxu0 %v2046
  %2302 = vmatprep.subr.bf16.mxu0 0
  %2303 = vmatpush1.bf16.msra.mxu0 %v2047
  %2304 = vmatprep.subr.bf16.mxu0 0
  %2305 = vmatpush1.bf16.msra.mxu0 %v2048
  %2306 = vmatprep.subr.bf16.mxu0 0
  %2307 = vmatpush1.bf16.msra.mxu0 %v2049
  %2308 = vmatprep.subr.bf16.mxu0 0
  %2309 = vmatpush1.bf16.msra.mxu0 %v2050
  %2310 = vmatprep.subr.bf16.mxu0 0
  %2311 = vmatpush1.bf16.msra.mxu0 0
  %2312 = vmatprep.subr.bf16.mxu0 0
  %2313 = vmatpush1.bf16.msra.mxu0 0
  %2314 = vmatprep.subr.bf16.mxu0 0
  %2315 = vmatpush1.bf16.msra.mxu0 0
  %2316 = vmatprep.subr.bf16.mxu0 0
  %2317 = vmatpush1.bf16.msra.mxu0 0
  %2318 = vmatprep.subr.bf16.mxu0 0
  %2319 = vmatpush1.bf16.msra.mxu0 0
  %2320 = vmatprep.subr.bf16.mxu0 0
  %2321 = vmatpush1.bf16.msra.mxu0 0
  %2322 = vmatprep.subr.bf16.mxu0 0
  %2323 = vmatpush1.bf16.msra.mxu0 0
  %2324 = vmatprep.subr.bf16.mxu0 0
  %2325 = vmatpush1.bf16.msra.mxu0 0
  %2326 = vmatprep.subr.bf16.mxu0 0
  %2327 = vmatpush1.bf16.msra.mxu0 0
  %2328 = vmatprep.subr.bf16.mxu0 0
  %2329 = vmatpush1.bf16.msra.mxu0 0
  %2330 = vmatprep.mubr.bf16.mxu0 0
  %2331 = vmatmul.mubr.bf16.gmra.mrb[0].mxu0 %v2146
  %v2332 = vpop.f32.mrb[0].mxu0
  %v2333 = vadd.f32 %v2284, %v2332
  %v2334 = vpop.f32.mrb[0].mxu0
  %v2335 = vpop.f32.mrb[0].mxu0
  %v2336 = vadd.f32 %v2287, %v2335
  %v2337 = vpop.f32.mrb[0].mxu0
  %2338 = vmatprep.mubr.bf16.mxu0 0
  %2339 = vmatmul.mubr.bf16.gmra.mrb[0].mxu0 %v2149
  %v2340 = vpop.f32.mrb[0].mxu0
  %v2341 = vadd.f32 %v2292, %v2340
  %v2342 = vpop.f32.mrb[0].mxu0
  %v2343 = vpop.f32.mrb[0].mxu0
  %v2344 = vadd.f32 %v2295, %v2343
  %v2345 = vpop.f32.mrb[0].mxu0
  %2346 = vdwg.mxu0
  %s2347 = scalar_lea.vmem %s0, 64
  %v2348 = vld [vmem:[%s2347] sm:$0xff]
  %v2349 = vld [vmem:[%s2347 + $0x8] sm:$0xff]
  %v2350 = vld [vmem:[%s2347 + $0x10] sm:$0xff]
  %v2351 = vld [vmem:[%s2347 + $0x18] sm:$0xff]
  %v2352 = vadd.f32 %v2348, %v2333
  %v2353 = vadd.f32 %v2349, %v2336
  %v2354 = vadd.f32 %v2350, %v2341
  %v2355 = vadd.f32 %v2351, %v2344
  %v2356 = vtanh.pop %v2352
  %v2357 = vtanh.pop %v2353
  %v2358 = vtanh.pop %v2354
  %v2359 = vtanh.pop %v2355
  %v2360 = vsub.f32 1.0, %v1280
  %v2361 = vsub.f32 1.0, %v1282
  %v2362 = vsub.f32 1.0, %v1284
  %v2363 = vsub.f32 1.0, %v1286
  %v2364 = vmul.f32 %v2360, %v27
  %v2365 = vmul.f32 %v2361, %v28
  %v2366 = vmul.f32 %v2362, %v29
  %v2367 = vmul.f32 %v2363, %v30
  %v2368 = vmul.f32 %v1280, %v2356
  %v2369 = vmul.f32 %v1282, %v2357
  %v2370 = vmul.f32 %v1284, %v2358
  %v2371 = vmul.f32 %v1286, %v2359
  %v2372 = vadd.f32 %v2364, %v2368
  %v2373 = vadd.f32 %v2365, %v2369
  %v2374 = vadd.f32 %v2366, %v2370
  %v2375 = vadd.f32 %v2367, %v2371
  %2376 = vst [vmem:[%s7] sm:$0xff] %v2372
  %2377 = vst [vmem:[%s7 + $0x8] sm:$0xff] %v2373
  %2378 = vst [vmem:[%s7 + $0x10] sm:$0xff] %v2374
  %2379 = vst [vmem:[%s7 + $0x18] sm:$0xff] %v2375
  // Predicated region
  $region30: #{gru_forward.3} parent=0 // pred_check
    _
  $region31: #{gru_forward.3} parent=0 // pred_check_branch
    %2381 = sbr.rel (0) target = $region33
  $region32: #{gru_forward.3} parent=0 // pred_region
    _
  $region33: #{gru_forward.3} parent=0 // pred_fallthru
    _
  // Predicated region
  $region34: #{gru_forward.3} parent=0 // pred_check
    _
  $region35: #{gru_forward.3} parent=0 // pred_check_branch
    %2383 = sbr.rel (0) target = $region37
  $region36: #{gru_forward.3} parent=0 // pred_region
    _
  $region37: #{gru_forward.3} parent=0 // pred_fallthru
    _

// kernel: gru_forward.2
$region0: #{gru_forward.2}
  #allocation0 [shape = 'u32[]', space=smem, size = 0x4, offset = 0x4, fixed_abs, tag = 'smem constant byte address 0x4 - core index']
  #allocation1 [shape = 'u32[144,128]{1,0:T(1,128)}', space=vmem, size = 0x12000, scoped, tag = 'internal scratch']
  %s0 = inlined_call_operand.vmem [shape: bf16[2,1024], index: 0, kind: input, shape index: {}]
  %s1 = inlined_call_operand.hbm [shape: bf16[1024,6144], index: 1, kind: input, shape index: {}]
  %s2 = inlined_call_operand.hbm [shape: f32[1,6144], index: 2, kind: input, shape index: {}]
  %s3 = inlined_call_operand.vmem [shape: f32[2,6144], index: 3, kind: output, shape index: {}]
  %s4 = sld [smem:[#allocation0]]
  $region53: #{gru_forward.2} parent=0
    _
  %s6 = ssub.s32 1, %s4
  %s7 = scalar_select 0, %s6, %s4
  $region1: #{gru_forward.2} parent=0
    #allocation2 [shape = 'u8[6291456]{0}', space=vmem, size = 0x600000, scoped, tag = 'input window, operand 1']
    #allocation3 [shape = 's32[2]{0}', space=sflag, size = 0x8, scoped, tag = 'scoped memory for gru_forward.2']
    #allocation4 [shape = 'u8[12288]{0}', space=vmem, size = 0x3000, scoped, tag = 'input window, operand 2']
    #allocation5 [shape = 's32[2]{0}', space=sflag, size = 0x8, scoped, tag = 'scoped memory for gru_forward.2']
    %8 = vsyncpa [#allocation3], 0
    %s9 = scalar_lea.sflag [#allocation3], 1
    %10 = vsyncpa %s9, 0
    %11 = vsyncpa [#allocation5], 0
    %s12 = scalar_lea.sflag [#allocation5], 1
    %13 = vsyncpa %s12, 0
    loop: start=0, step=1, limit=6
    $region2: #{gru_forward.2} parent=1 // loop_pre_header
      _
    $region3: #{gru_forward.2} parent=1 // loop_header
      %s15 = sphi 0, %s19
      %p16 = scmp.ge.s32.totalorder %s15, 6
      %s23 = sphi 0, %s23
      %s25 = sphi 0, %s23
      %s26 = sphi 0, %s25
      %s40 = sphi 0, %s26
      %s46 = sphi 0, %s48
      %s49 = sphi 0, %s46
      %s50 = sphi 0, %s49
      %s66 = sphi 0, %s50
      %s72 = sphi 0, %s74
      %s75 = sphi 0, %s72
      %s76 = sphi 0, %s75
      %s92 = sphi 0, %s76
      %s98 = sphi 0, %s100
      %s101 = sphi 0, %s98
      %s102 = sphi 0, %s101
      %s118 = sphi 0, %s102
    $region4: #{gru_forward.2} parent=1 // loop_header_branch
      %18 = sbr.rel (%p16) target = $region8
    $region5: #{gru_forward.2} parent=1 // loop_body
      %s20 = ssub.s32 %s15, 1
      %s21 = ssub.s32 %s15, 2
      %s22 = sadd.s32 %s15, 1
      %s24 = sadd.s32 %s23, 1
      %p27 = scmp.eq.s32.totalorder %s15, 3
      %p28 = scmp.ne.s32.totalorder %s23, %s25
      %p29 = scmp.eq.s32.totalorder %s15, 0
      %p30 = por %p28, %p29
      %p31 = scmp.ne.s32.totalorder %s23, %s25
      %p32 = scmp.eq.s32.totalorder %s20, 3
      %p33 = por %p31, %p32
      %p34 = scmp.ne.s32.totalorder %s25, %s26
      %p35 = scmp.eq.s32.totalorder %s20, 0
      %p36 = por %p34, %p35
      %p37 = scmp.ne.s32.totalorder %s25, %s26
      %p38 = scmp.eq.s32.totalorder %s21, 3
      %p39 = por %p37, %p38
      %p41 = scmp.ne.s32.totalorder %s26, %s40
      %p42 = scmp.eq.s32.totalorder %s21, 0
      %p43 = por %p41, %p42
      %s44 = ssub.s32 %s15, %s22
      %p45 = scmp.eq.s32.totalorder %s44, 0
      %s47 = sadd.s32 %s46, 1
      %s48 = scalar_select %p45, %s46, %s47
      %p51 = pneg %p45
      %p52 = scmp.eq.s32.totalorder %s15, 3
      %p53 = por %p51, %p52
      %p54 = scmp.ne.s32.totalorder %s46, %s49
      %p55 = scmp.eq.s32.totalorder %s15, 0
      %p56 = por %p54, %p55
      %p57 = scmp.ne.s32.totalorder %s46, %s49
      %p58 = scmp.eq.s32.totalorder %s20, 3
      %p59 = por %p57, %p58
      %p60 = scmp.ne.s32.totalorder %s49, %s50
      %p61 = scmp.eq.s32.totalorder %s20, 0
      %p62 = por %p60, %p61
      %p63 = scmp.ne.s32.totalorder %s49, %s50
      %p64 = scmp.eq.s32.totalorder %s21, 3
      %p65 = por %p63, %p64
      %p67 = scmp.ne.s32.totalorder %s50, %s66
      %p68 = scmp.eq.s32.totalorder %s21, 0
      %p69 = por %p67, %p68
      %s70 = ssub.s32 %s15, %s22
      %p71 = scmp.eq.s32.totalorder %s70, 0
      %s73 = sadd.s32 %s72, 1
      %s74 = scalar_select %p71, %s72, %s73
      %p77 = pneg %p71
      %p78 = scmp.eq.s32.totalorder %s15, 3
      %p79 = por %p77, %p78
      %p80 = scmp.ne.s32.totalorder %s72, %s75
      %p81 = scmp.eq.s32.totalorder %s15, 0
      %p82 = por %p80, %p81
      %p83 = scmp.ne.s32.totalorder %s72, %s75
      %p84 = scmp.eq.s32.totalorder %s20, 3
      %p85 = por %p83, %p84
      %p86 = scmp.ne.s32.totalorder %s75, %s76
      %p87 = scmp.eq.s32.totalorder %s20, 0
      %p88 = por %p86, %p87
      %p89 = scmp.ne.s32.totalorder %s75, %s76
      %p90 = scmp.eq.s32.totalorder %s21, 3
      %p91 = por %p89, %p90
      %p93 = scmp.ne.s32.totalorder %s76, %s92
      %p94 = scmp.eq.s32.totalorder %s21, 0
      %p95 = por %p93, %p94
      %s96 = ssub.s32 %s15, %s22
      %p97 = scmp.eq.s32.totalorder %s96, 0
      %s99 = sadd.s32 %s98, 1
      %s100 = scalar_select %p97, %s98, %s99
      %p103 = pneg %p97
      %p104 = scmp.eq.s32.totalorder %s15, 3
      %p105 = por %p103, %p104
      %p106 = scmp.ne.s32.totalorder %s98, %s101
      %p107 = scmp.eq.s32.totalorder %s15, 0
      %p108 = por %p106, %p107
      %p109 = scmp.ne.s32.totalorder %s98, %s101
      %p110 = scmp.eq.s32.totalorder %s20, 3
      %p111 = por %p109, %p110
      %p112 = scmp.ne.s32.totalorder %s101, %s102
      %p113 = scmp.eq.s32.totalorder %s20, 0
      %p114 = por %p112, %p113
      %p115 = scmp.ne.s32.totalorder %s101, %s102
      %p116 = scmp.eq.s32.totalorder %s21, 3
      %p117 = por %p115, %p116
      %p119 = scmp.ne.s32.totalorder %s102, %s118
      %p120 = scmp.eq.s32.totalorder %s21, 0
      %p121 = por %p119, %p120
      %p122 = scmp.le.s32.totalorder 1, %s15
      %p123 = scmp.lt.s32.totalorder %s15, 5
      %p124 = pnand %p122, %p123
      %p125 = pneg %p124
      // Predicated region
      $region9: #{gru_forward.2} parent=5 // pred_check
        _
      $region10: #{gru_forward.2} parent=5 // pred_check_branch
        %127 = sbr.rel (%p124) target = $region12
      $region11: #{gru_forward.2} parent=5 // pred_region
        %s128 = ssub.s32 %s15, 1
        // Predicated region
        $region13: #{gru_forward.2} parent=11 // pred_check
          %p129 = pneg %p36
        $region14: #{gru_forward.2} parent=11 // pred_check_branch
          %131 = sbr.rel (%p129) target = $region16
        $region15: #{gru_forward.2} parent=11 // pred_region
          _
        $region16: #{gru_forward.2} parent=11 // pred_fallthru
          _
      $region12: #{gru_forward.2} parent=5 // pred_fallthru
        _
      %p132 = scmp.lt.s32.totalorder %s15, 4
      // Predicated region
      $region17: #{gru_forward.2} parent=5 // pred_check
        %p133 = pneg %p132
      $region18: #{gru_forward.2} parent=5 // pred_check_branch
        %135 = sbr.rel (%p133) target = $region20
      $region19: #{gru_forward.2} parent=5 // pred_region
        // Predicated region
        $region21: #{gru_forward.2} parent=19 // pred_check
          %p136 = pneg %p56
        $region22: #{gru_forward.2} parent=19 // pred_check_branch
          %138 = sbr.rel (%p136) target = $region24
        $region23: #{gru_forward.2} parent=19 // pred_region
          %s139 = sand.u32 %s46, 1
          %s140 = scalar_lea.sflag [#allocation3], %s139
          %s141 = sand.u32 %s46, 1
          %s142 = smul.addr %s141, 6144
          %s143 = scalar_lea.vmem [#allocation2], %s142
          %s144 = smul.u32 12, %s15
          %s146 = ssub.s32 98304, 98304
          %147 = vsyncadd %s140, %s146
          %s148 = smul.addr %s144, 64
          %s149 = scalar_lea.hbm %s1, %s148
          %s150 = sshll.u32 %s143, 4
          %s151 = int_to_ptr.vmem [resolvable:$true] %s150
          %156 = dma.hbm_to_vmem [thread:$0]  %s149, 98304, %s151, %s140, 3072, 768, 48
        $region24: #{gru_forward.2} parent=19 // pred_fallthru
          _
        // Predicated region
        $region25: #{gru_forward.2} parent=19 // pred_check
          %p157 = pneg %p82
        $region26: #{gru_forward.2} parent=19 // pred_check_branch
          %159 = sbr.rel (%p157) target = $region28
        $region27: #{gru_forward.2} parent=19 // pred_region
          %s160 = sand.u32 %s72, 1
          %s161 = scalar_lea.sflag [#allocation5], %s160
          %s162 = sand.u32 %s72, 1
          %s163 = smul.addr %s162, 12
          %s164 = scalar_lea.vmem [#allocation4], %s163
          %s165 = smul.u32 12, %s15
          %s167 = ssub.s32 192, 192
          %168 = vsyncadd %s161, %s167
          %s169 = smul.addr %s165, 16
          %s170 = scalar_lea.hbm %s2, %s169
          %s172 = sshll.u32 %s164, 4
          %s173 = int_to_ptr.vmem [resolvable:$true] %s172
          %175 = dma.hbm_to_vmem [thread:$0]  %s170, 192, %s173, %s161
        $region28: #{gru_forward.2} parent=19 // pred_fallthru
          _
      $region20: #{gru_forward.2} parent=5 // pred_fallthru
        _
      %p176 = scmp.le.s32.totalorder 1, %s15
      %p177 = scmp.lt.s32.totalorder %s15, 5
      %p178 = pnand %p176, %p177
      %p179 = pneg %p178
      // Predicated region
      $region29: #{gru_forward.2} parent=5 // pred_check
        _
      $region30: #{gru_forward.2} parent=5 // pred_check_branch
        %181 = sbr.rel (%p178) target = $region32
      $region31: #{gru_forward.2} parent=5 // pred_region
        %s182 = ssub.s32 %s15, 1
        %s183 = sand.u32 %s49, 1
        %s184 = scalar_lea.sflag [#allocation3], %s183
        %s185 = sand.u32 %s49, 1
        %s186 = smul.addr %s185, 6144
        %s187 = scalar_lea.vmem [#allocation2], %s186
        // Predicated region
        $region33: #{gru_forward.2} parent=31 // pred_check
          %p188 = pneg %p62
        $region34: #{gru_forward.2} parent=31 // pred_check_branch
          %190 = sbr.rel (%p188) target = $region36
        $region35: #{gru_forward.2} parent=31 // pred_region
          %191 = dma.done %s184, 98304
        $region36: #{gru_forward.2} parent=31 // pred_fallthru
          _
        %s192 = sand.u32 %s75, 1
        %s193 = scalar_lea.sflag [#allocation5], %s192
        %s194 = sand.u32 %s75, 1
        %s195 = smul.addr %s194, 12
        %s196 = scalar_lea.vmem [#allocation4], %s195
        // Predicated region
        $region37: #{gru_forward.2} parent=31 // pred_check
          %p197 = pneg %p88
        $region38: #{gru_forward.2} parent=31 // pred_check_branch
          %199 = sbr.rel (%p197) target = $region40
        $region39: #{gru_forward.2} parent=31 // pred_region
          %200 = dma.done %s193, 192
        $region40: #{gru_forward.2} parent=31 // pred_fallthru
          _
        %p201 = pneg %p36
        %p202 = pneg %p33
        %s203 = sand.u32 %s49, 1
        %s204 = scalar_lea.sflag [#allocation3], %s203
        %s205 = sand.u32 %s49, 1
        %s206 = smul.addr %s205, 6144
        %s207 = scalar_lea.vmem [#allocation2], %s206
        %p208 = pneg %p62
        %p209 = pneg %p59
        %s210 = sand.u32 %s75, 1
        %s211 = scalar_lea.sflag [#allocation5], %s210
        %s212 = sand.u32 %s75, 1
        %s213 = smul.addr %s212, 12
        %s214 = scalar_lea.vmem [#allocation4], %s213
        %p215 = pneg %p88
        %p216 = pneg %p85
        %p217 = pneg %p114
        %p218 = pneg %p111
        %s219 = smul.u32 12, %s20
        %p220 = scmp.lt.s32.totalorder %s219, 47
        %s221 = scalar_select %p220, %s219, 47
        %s222 = smul.addr %s221, 2
        %s223 = scalar_lea.vmem %s3, %s222
        %s224 = smul.u32 12, %s20
        %s225 = smul.u32 12, %s20
        %s226 = smul.u32 12, %s20
        %p227 = scmp.lt.s32.totalorder %s226, 47
        %s228 = scalar_select %p227, %s226, 47
        %s229 = smul.addr %s228, 2
        %s230 = scalar_lea.vmem %s3, %s229
        %s231 = smul.u32 12, %s20
        %v232 = vld [vmem:[%s0] sm:$0xff]
        %v233 = vld [vmem:[%s187] sm:$0xff]
        %v234 = vld [vmem:[%s187 + $0x8] sm:$0xff]
        %v235 = vld [vmem:[%s187 + $0x10] sm:$0xff]
        %v236 = vld [vmem:[%s187 + $0x18] sm:$0xff]
        %v237 = vld [vmem:[%s187 + $0x20] sm:$0xff]
        %v238 = vld [vmem:[%s187 + $0x28] sm:$0xff]
        %v239 = vld [vmem:[%s187 + $0x30] sm:$0xff]
        %v240 = vld [vmem:[%s187 + $0x38] sm:$0xff]
        %v241 = vld [vmem:[%s187 + $0x40] sm:$0xff]
        %v242 = vld [vmem:[%s187 + $0x48] sm:$0xff]
        %v243 = vld [vmem:[%s187 + $0x50] sm:$0xff]
        %v244 = vld [vmem:[%s187 + $0x58] sm:$0xff]
        %v245 = vld [vmem:[%s187 + $0x60] sm:$0xff]
        %v246 = vld [vmem:[%s187 + $0x68] sm:$0xff]
        %v247 = vld [vmem:[%s187 + $0x70] sm:$0xff]
        %v248 = vld [vmem:[%s187 + $0x78] sm:$0xff]
        %v249 = vld [vmem:[%s187 + $0x80] sm:$0xff]
        %v250 = vld [vmem:[%s187 + $0x88] sm:$0xff]
        %v251 = vld [vmem:[%s187 + $0x90] sm:$0xff]
        %v252 = vld [vmem:[%s187 + $0x98] sm:$0xff]
        %v253 = vld [vmem:[%s187 + $0xa0] sm:$0xff]
        %v254 = vld [vmem:[%s187 + $0xa8] sm:$0xff]
        %v255 = vld [vmem:[%s187 + $0xb0] sm:$0xff]
        %v256 = vld [vmem:[%s187 + $0xb8] sm:$0xff]
        %v257 = vld [vmem:[%s187 + $0xc0] sm:$0xff]
        %v258 = vld [vmem:[%s187 + $0xc8] sm:$0xff]
        %v259 = vld [vmem:[%s187 + $0xd0] sm:$0xff]
        %v260 = vld [vmem:[%s187 + $0xd8] sm:$0xff]
        %v261 = vld [vmem:[%s187 + $0xe0] sm:$0xff]
        %v262 = vld [vmem:[%s187 + $0xe8] sm:$0xff]
        %v263 = vld [vmem:[%s187 + $0xf0] sm:$0xff]
        %v264 = vld [vmem:[%s187 + $0xf8] sm:$0xff]
        %v265 = vld [vmem:[%s187 + $0x100] sm:$0xff]
        %v266 = vld [vmem:[%s187 + $0x108] sm:$0xff]
        %v267 = vld [vmem:[%s187 + $0x110] sm:$0xff]
        %v268 = vld [vmem:[%s187 + $0x118] sm:$0xff]
        %v269 = vld [vmem:[%s187 + $0x120] sm:$0xff]
        %v270 = vld [vmem:[%s187 + $0x128] sm:$0xff]
        %v271 = vld [vmem:[%s187 + $0x130] sm:$0xff]
        %v272 = vld [vmem:[%s187 + $0x138] sm:$0xff]
        %v273 = vld [vmem:[%s187 + $0x140] sm:$0xff]
        %v274 = vld [vmem:[%s187 + $0x148] sm:$0xff]
        %v275 = vld [vmem:[%s187 + $0x150] sm:$0xff]
        %v276 = vld [vmem:[%s187 + $0x158] sm:$0xff]
        %v277 = vld [vmem:[%s187 + $0x160] sm:$0xff]
        %v278 = vld [vmem:[%s187 + $0x168] sm:$0xff]
        %v279 = vld [vmem:[%s187 + $0x170] sm:$0xff]
        %v280 = vld [vmem:[%s187 + $0x178] sm:$0xff]
        %v281 = vld [vmem:[%s187 + $0x180] sm:$0xff]
        %v282 = vld [vmem:[%s187 + $0x188] sm:$0xff]
        %v283 = vld [vmem:[%s187 + $0x190] sm:$0xff]
        %v284 = vld [vmem:[%s187 + $0x198] sm:$0xff]
        %v285 = vld [vmem:[%s187 + $0x1a0] sm:$0xff]
        %v286 = vld [vmem:[%s187 + $0x1a8] sm:$0xff]
        %v287 = vld [vmem:[%s187 + $0x1b0] sm:$0xff]
        %v288 = vld [vmem:[%s187 + $0x1b8] sm:$0xff]
        %v289 = vld [vmem:[%s187 + $0x1c0] sm:$0xff]
        %v290 = vld [vmem:[%s187 + $0x1c8] sm:$0xff]
        %v291 = vld [vmem:[%s187 + $0x1d0] sm:$0xff]
        %v292 = vld [vmem:[%s187 + $0x1d8] sm:$0xff]
        %v293 = vld [vmem:[%s187 + $0x1e0] sm:$0xff]
        %v294 = vld [vmem:[%s187 + $0x1e8] sm:$0xff]
        %v295 = vld [vmem:[%s187 + $0x1f0] sm:$0xff]
        %v296 = vld [vmem:[%s187 + $0x1f8] sm:$0xff]
        %v297 = vld [vmem:[%s187 + $0x200] sm:$0xff]
        %v298 = vld [vmem:[%s187 + $0x208] sm:$0xff]
        %v299 = vld [vmem:[%s187 + $0x210] sm:$0xff]
        %v300 = vld [vmem:[%s187 + $0x218] sm:$0xff]
        %v301 = vld [vmem:[%s187 + $0x220] sm:$0xff]
        %v302 = vld [vmem:[%s187 + $0x228] sm:$0xff]
        %v303 = vld [vmem:[%s187 + $0x230] sm:$0xff]
        %v304 = vld [vmem:[%s187 + $0x238] sm:$0xff]
        %v305 = vld [vmem:[%s187 + $0x240] sm:$0xff]
        %v306 = vld [vmem:[%s187 + $0x248] sm:$0xff]
        %v307 = vld [vmem:[%s187 + $0x250] sm:$0xff]
        %v308 = vld [vmem:[%s187 + $0x258] sm:$0xff]
        %v309 = vld [vmem:[%s187 + $0x260] sm:$0xff]
        %v310 = vld [vmem:[%s187 + $0x268] sm:$0xff]
        %v311 = vld [vmem:[%s187 + $0x270] sm:$0xff]
        %v312 = vld [vmem:[%s187 + $0x278] sm:$0xff]
        %v313 = vld [vmem:[%s187 + $0x280] sm:$0xff]
        %v314 = vld [vmem:[%s187 + $0x288] sm:$0xff]
        %v315 = vld [vmem:[%s187 + $0x290] sm:$0xff]
        %v316 = vld [vmem:[%s187 + $0x298] sm:$0xff]
        %v317 = vld [vmem:[%s187 + $0x2a0] sm:$0xff]
        %v318 = vld [vmem:[%s187 + $0x2a8] sm:$0xff]
        %v319 = vld [vmem:[%s187 + $0x2b0] sm:$0xff]
        %v320 = vld [vmem:[%s187 + $0x2b8] sm:$0xff]
        %v321 = vld [vmem:[%s187 + $0x2c0] sm:$0xff]
        %v322 = vld [vmem:[%s187 + $0x2c8] sm:$0xff]
        %v323 = vld [vmem:[%s187 + $0x2d0] sm:$0xff]
        %v324 = vld [vmem:[%s187 + $0x2d8] sm:$0xff]
        %v325 = vld [vmem:[%s187 + $0x2e0] sm:$0xff]
        %v326 = vld [vmem:[%s187 + $0x2e8] sm:$0xff]
        %v327 = vld [vmem:[%s187 + $0x2f0] sm:$0xff]
        %v328 = vld [vmem:[%s187 + $0x2f8] sm:$0xff]
        %v329 = vld [vmem:[%s187 + $0x300] sm:$0xff]
        %v330 = vld [vmem:[%s187 + $0x308] sm:$0xff]
        %v331 = vld [vmem:[%s187 + $0x310] sm:$0xff]
        %v332 = vld [vmem:[%s187 + $0x318] sm:$0xff]
        %v333 = vld [vmem:[%s187 + $0x320] sm:$0xff]
        %v334 = vld [vmem:[%s187 + $0x328] sm:$0xff]
        %v335 = vld [vmem:[%s187 + $0x330] sm:$0xff]
        %v336 = vld [vmem:[%s187 + $0x338] sm:$0xff]
        %v337 = vld [vmem:[%s187 + $0x340] sm:$0xff]
        %v338 = vld [vmem:[%s187 + $0x348] sm:$0xff]
        %v339 = vld [vmem:[%s187 + $0x350] sm:$0xff]
        %v340 = vld [vmem:[%s187 + $0x358] sm:$0xff]
        %v341 = vld [vmem:[%s187 + $0x360] sm:$0xff]
        %v342 = vld [vmem:[%s187 + $0x368] sm:$0xff]
        %v343 = vld [vmem:[%s187 + $0x370] sm:$0xff]
        %v344 = vld [vmem:[%s187 + $0x378] sm:$0xff]
        %v345 = vld [vmem:[%s187 + $0x380] sm:$0xff]
        %v346 = vld [vmem:[%s187 + $0x388] sm:$0xff]
        %v347 = vld [vmem:[%s187 + $0x390] sm:$0xff]
        %v348 = vld [vmem:[%s187 + $0x398] sm:$0xff]
        %v349 = vld [vmem:[%s187 + $0x3a0] sm:$0xff]
        %v350 = vld [vmem:[%s187 + $0x3a8] sm:$0xff]
        %v351 = vld [vmem:[%s187 + $0x3b0] sm:$0xff]
        %v352 = vld [vmem:[%s187 + $0x3b8] sm:$0xff]
        %v353 = vld [vmem:[%s187 + $0x3c0] sm:$0xff]
        %v354 = vld [vmem:[%s187 + $0x3c8] sm:$0xff]
        %v355 = vld [vmem:[%s187 + $0x3d0] sm:$0xff]
        %v356 = vld [vmem:[%s187 + $0x3d8] sm:$0xff]
        %v357 = vld [vmem:[%s187 + $0x3e0] sm:$0xff]
        %v358 = vld [vmem:[%s187 + $0x3e8] sm:$0xff]
        %v359 = vld [vmem:[%s187 + $0x3f0] sm:$0xff]
        %v360 = vld [vmem:[%s187 + $0x3f8] sm:$0xff]
        %v361 = vld [vmem:[%s187 + $0x400] sm:$0xff]
        %v362 = vld [vmem:[%s187 + $0x408] sm:$0xff]
        %v363 = vld [vmem:[%s187 + $0x410] sm:$0xff]
        %v364 = vld [vmem:[%s187 + $0x418] sm:$0xff]
        %v365 = vld [vmem:[%s187 + $0x420] sm:$0xff]
        %v366 = vld [vmem:[%s187 + $0x428] sm:$0xff]
        %v367 = vld [vmem:[%s187 + $0x430] sm:$0xff]
        %v368 = vld [vmem:[%s187 + $0x438] sm:$0xff]
        %v369 = vld [vmem:[%s187 + $0x440] sm:$0xff]
        %v370 = vld [vmem:[%s187 + $0x448] sm:$0xff]
        %v371 = vld [vmem:[%s187 + $0x450] sm:$0xff]
        %v372 = vld [vmem:[%s187 + $0x458] sm:$0xff]
        %v373 = vld [vmem:[%s187 + $0x460] sm:$0xff]
        %v374 = vld [vmem:[%s187 + $0x468] sm:$0xff]
        %v375 = vld [vmem:[%s187 + $0x470] sm:$0xff]
        %v376 = vld [vmem:[%s187 + $0x478] sm:$0xff]
        %v377 = vld [vmem:[%s187 + $0x480] sm:$0xff]
        %v378 = vld [vmem:[%s187 + $0x488] sm:$0xff]
        %v379 = vld [vmem:[%s187 + $0x490] sm:$0xff]
        %v380 = vld [vmem:[%s187 + $0x498] sm:$0xff]
        %v381 = vld [vmem:[%s187 + $0x4a0] sm:$0xff]
        %v382 = vld [vmem:[%s187 + $0x4a8] sm:$0xff]
        %v383 = vld [vmem:[%s187 + $0x4b0] sm:$0xff]
        %v384 = vld [vmem:[%s187 + $0x4b8] sm:$0xff]
        %v385 = vld [vmem:[%s187 + $0x4c0] sm:$0xff]
        %v386 = vld [vmem:[%s187 + $0x4c8] sm:$0xff]
        %v387 = vld [vmem:[%s187 + $0x4d0] sm:$0xff]
        %v388 = vld [vmem:[%s187 + $0x4d8] sm:$0xff]
        %v389 = vld [vmem:[%s187 + $0x4e0] sm:$0xff]
        %v390 = vld [vmem:[%s187 + $0x4e8] sm:$0xff]
        %v391 = vld [vmem:[%s187 + $0x4f0] sm:$0xff]
        %v392 = vld [vmem:[%s187 + $0x4f8] sm:$0xff]
        %v393 = vld [vmem:[%s187 + $0x500] sm:$0xff]
        %v394 = vld [vmem:[%s187 + $0x508] sm:$0xff]
        %v395 = vld [vmem:[%s187 + $0x510] sm:$0xff]
        %v396 = vld [vmem:[%s187 + $0x518] sm:$0xff]
        %v397 = vld [vmem:[%s187 + $0x520] sm:$0xff]
        %v398 = vld [vmem:[%s187 + $0x528] sm:$0xff]
        %v399 = vld [vmem:[%s187 + $0x530] sm:$0xff]
        %v400 = vld [vmem:[%s187 + $0x538] sm:$0xff]
        %v401 = vld [vmem:[%s187 + $0x540] sm:$0xff]
        %v402 = vld [vmem:[%s187 + $0x548] sm:$0xff]
        %v403 = vld [vmem:[%s187 + $0x550] sm:$0xff]
        %v404 = vld [vmem:[%s187 + $0x558] sm:$0xff]
        %v405 = vld [vmem:[%s187 + $0x560] sm:$0xff]
        %v406 = vld [vmem:[%s187 + $0x568] sm:$0xff]
        %v407 = vld [vmem:[%s187 + $0x570] sm:$0xff]
        %v408 = vld [vmem:[%s187 + $0x578] sm:$0xff]
        %v409 = vld [vmem:[%s187 + $0x580] sm:$0xff]
        %v410 = vld [vmem:[%s187 + $0x588] sm:$0xff]
        %v411 = vld [vmem:[%s187 + $0x590] sm:$0xff]
        %v412 = vld [vmem:[%s187 + $0x598] sm:$0xff]
        %v413 = vld [vmem:[%s187 + $0x5a0] sm:$0xff]
        %v414 = vld [vmem:[%s187 + $0x5a8] sm:$0xff]
        %v415 = vld [vmem:[%s187 + $0x5b0] sm:$0xff]
        %v416 = vld [vmem:[%s187 + $0x5b8] sm:$0xff]
        %v417 = vld [vmem:[%s187 + $0x5c0] sm:$0xff]
        %v418 = vld [vmem:[%s187 + $0x5c8] sm:$0xff]
        %v419 = vld [vmem:[%s187 + $0x5d0] sm:$0xff]
        %v420 = vld [vmem:[%s187 + $0x5d8] sm:$0xff]
        %v421 = vld [vmem:[%s187 + $0x5e0] sm:$0xff]
        %v422 = vld [vmem:[%s187 + $0x5e8] sm:$0xff]
        %v423 = vld [vmem:[%s187 + $0x5f0] sm:$0xff]
        %v424 = vld [vmem:[%s187 + $0x5f8] sm:$0xff]
        %v425 = vld [vmem:[%s187 + $0x600] sm:$0xff]
        %v426 = vld [vmem:[%s187 + $0x608] sm:$0xff]
        %v427 = vld [vmem:[%s187 + $0x610] sm:$0xff]
        %v428 = vld [vmem:[%s187 + $0x618] sm:$0xff]
        %v429 = vld [vmem:[%s187 + $0x620] sm:$0xff]
        %v430 = vld [vmem:[%s187 + $0x628] sm:$0xff]
        %v431 = vld [vmem:[%s187 + $0x630] sm:$0xff]
        %v432 = vld [vmem:[%s187 + $0x638] sm:$0xff]
        %v433 = vld [vmem:[%s187 + $0x640] sm:$0xff]
        %v434 = vld [vmem:[%s187 + $0x648] sm:$0xff]
        %v435 = vld [vmem:[%s187 + $0x650] sm:$0xff]
        %v436 = vld [vmem:[%s187 + $0x658] sm:$0xff]
        %v437 = vld [vmem:[%s187 + $0x660] sm:$0xff]
        %v438 = vld [vmem:[%s187 + $0x668] sm:$0xff]
        %v439 = vld [vmem:[%s187 + $0x670] sm:$0xff]
        %v440 = vld [vmem:[%s187 + $0x678] sm:$0xff]
        %v441 = vld [vmem:[%s187 + $0x680] sm:$0xff]
        %v442 = vld [vmem:[%s187 + $0x688] sm:$0xff]
        %v443 = vld [vmem:[%s187 + $0x690] sm:$0xff]
        %v444 = vld [vmem:[%s187 + $0x698] sm:$0xff]
        %v445 = vld [vmem:[%s187 + $0x6a0] sm:$0xff]
        %v446 = vld [vmem:[%s187 + $0x6a8] sm:$0xff]
        %v447 = vld [vmem:[%s187 + $0x6b0] sm:$0xff]
        %v448 = vld [vmem:[%s187 + $0x6b8] sm:$0xff]
        %v449 = vld [vmem:[%s187 + $0x6c0] sm:$0xff]
        %v450 = vld [vmem:[%s187 + $0x6c8] sm:$0xff]
        %v451 = vld [vmem:[%s187 + $0x6d0] sm:$0xff]
        %v452 = vld [vmem:[%s187 + $0x6d8] sm:$0xff]
        %v453 = vld [vmem:[%s187 + $0x6e0] sm:$0xff]
        %v454 = vld [vmem:[%s187 + $0x6e8] sm:$0xff]
        %v455 = vld [vmem:[%s187 + $0x6f0] sm:$0xff]
        %v456 = vld [vmem:[%s187 + $0x6f8] sm:$0xff]
        %v457 = vld [vmem:[%s187 + $0x700] sm:$0xff]
        %v458 = vld [vmem:[%s187 + $0x708] sm:$0xff]
        %v459 = vld [vmem:[%s187 + $0x710] sm:$0xff]
        %v460 = vld [vmem:[%s187 + $0x718] sm:$0xff]
        %v461 = vld [vmem:[%s187 + $0x720] sm:$0xff]
        %v462 = vld [vmem:[%s187 + $0x728] sm:$0xff]
        %v463 = vld [vmem:[%s187 + $0x730] sm:$0xff]
        %v464 = vld [vmem:[%s187 + $0x738] sm:$0xff]
        %v465 = vld [vmem:[%s187 + $0x740] sm:$0xff]
        %v466 = vld [vmem:[%s187 + $0x748] sm:$0xff]
        %v467 = vld [vmem:[%s187 + $0x750] sm:$0xff]
        %v468 = vld [vmem:[%s187 + $0x758] sm:$0xff]
        %v469 = vld [vmem:[%s187 + $0x760] sm:$0xff]
        %v470 = vld [vmem:[%s187 + $0x768] sm:$0xff]
        %v471 = vld [vmem:[%s187 + $0x770] sm:$0xff]
        %v472 = vld [vmem:[%s187 + $0x778] sm:$0xff]
        %v473 = vld [vmem:[%s187 + $0x780] sm:$0xff]
        %v474 = vld [vmem:[%s187 + $0x788] sm:$0xff]
        %v475 = vld [vmem:[%s187 + $0x790] sm:$0xff]
        %v476 = vld [vmem:[%s187 + $0x798] sm:$0xff]
        %v477 = vld [vmem:[%s187 + $0x7a0] sm:$0xff]
        %v478 = vld [vmem:[%s187 + $0x7a8] sm:$0xff]
        %v479 = vld [vmem:[%s187 + $0x7b0] sm:$0xff]
        %v480 = vld [vmem:[%s187 + $0x7b8] sm:$0xff]
        %v481 = vld [vmem:[%s187 + $0x7c0] sm:$0xff]
        %v482 = vld [vmem:[%s187 + $0x7c8] sm:$0xff]
        %v483 = vld [vmem:[%s187 + $0x7d0] sm:$0xff]
        %v484 = vld [vmem:[%s187 + $0x7d8] sm:$0xff]
        %v485 = vld [vmem:[%s187 + $0x7e0] sm:$0xff]
        %v486 = vld [vmem:[%s187 + $0x7e8] sm:$0xff]
        %v487 = vld [vmem:[%s187 + $0x7f0] sm:$0xff]
        %v488 = vld [vmem:[%s187 + $0x7f8] sm:$0xff]
        %v489 = vld [vmem:[%s187 + $0x800] sm:$0xff]
        %v490 = vld [vmem:[%s187 + $0x808] sm:$0xff]
        %v491 = vld [vmem:[%s187 + $0x810] sm:$0xff]
        %v492 = vld [vmem:[%s187 + $0x818] sm:$0xff]
        %v493 = vld [vmem:[%s187 + $0x820] sm:$0xff]
        %v494 = vld [vmem:[%s187 + $0x828] sm:$0xff]
        %v495 = vld [vmem:[%s187 + $0x830] sm:$0xff]
        %v496 = vld [vmem:[%s187 + $0x838] sm:$0xff]
        %v497 = vld [vmem:[%s187 + $0x840] sm:$0xff]
        %v498 = vld [vmem:[%s187 + $0x848] sm:$0xff]
        %v499 = vld [vmem:[%s187 + $0x850] sm:$0xff]
        %v500 = vld [vmem:[%s187 + $0x858] sm:$0xff]
        %v501 = vld [vmem:[%s187 + $0x860] sm:$0xff]
        %v502 = vld [vmem:[%s187 + $0x868] sm:$0xff]
        %v503 = vld [vmem:[%s187 + $0x870] sm:$0xff]
        %v504 = vld [vmem:[%s187 + $0x878] sm:$0xff]
        %v505 = vld [vmem:[%s187 + $0x880] sm:$0xff]
        %v506 = vld [vmem:[%s187 + $0x888] sm:$0xff]
        %v507 = vld [vmem:[%s187 + $0x890] sm:$0xff]
        %v508 = vld [vmem:[%s187 + $0x898] sm:$0xff]
        %v509 = vld [vmem:[%s187 + $0x8a0] sm:$0xff]
        %v510 = vld [vmem:[%s187 + $0x8a8] sm:$0xff]
        %v511 = vld [vmem:[%s187 + $0x8b0] sm:$0xff]
        %v512 = vld [vmem:[%s187 + $0x8b8] sm:$0xff]
        %v513 = vld [vmem:[%s187 + $0x8c0] sm:$0xff]
        %v514 = vld [vmem:[%s187 + $0x8c8] sm:$0xff]
        %v515 = vld [vmem:[%s187 + $0x8d0] sm:$0xff]
        %v516 = vld [vmem:[%s187 + $0x8d8] sm:$0xff]
        %v517 = vld [vmem:[%s187 + $0x8e0] sm:$0xff]
        %v518 = vld [vmem:[%s187 + $0x8e8] sm:$0xff]
        %v519 = vld [vmem:[%s187 + $0x8f0] sm:$0xff]
        %v520 = vld [vmem:[%s187 + $0x8f8] sm:$0xff]
        %v521 = vld [vmem:[%s187 + $0x900] sm:$0xff]
        %v522 = vld [vmem:[%s187 + $0x908] sm:$0xff]
        %v523 = vld [vmem:[%s187 + $0x910] sm:$0xff]
        %v524 = vld [vmem:[%s187 + $0x918] sm:$0xff]
        %v525 = vld [vmem:[%s187 + $0x920] sm:$0xff]
        %v526 = vld [vmem:[%s187 + $0x928] sm:$0xff]
        %v527 = vld [vmem:[%s187 + $0x930] sm:$0xff]
        %v528 = vld [vmem:[%s187 + $0x938] sm:$0xff]
        %v529 = vld [vmem:[%s187 + $0x940] sm:$0xff]
        %v530 = vld [vmem:[%s187 + $0x948] sm:$0xff]
        %v531 = vld [vmem:[%s187 + $0x950] sm:$0xff]
        %v532 = vld [vmem:[%s187 + $0x958] sm:$0xff]
        %v533 = vld [vmem:[%s187 + $0x960] sm:$0xff]
        %v534 = vld [vmem:[%s187 + $0x968] sm:$0xff]
        %v535 = vld [vmem:[%s187 + $0x970] sm:$0xff]
        %v536 = vld [vmem:[%s187 + $0x978] sm:$0xff]
        %v537 = vld [vmem:[%s187 + $0x980] sm:$0xff]
        %v538 = vld [vmem:[%s187 + $0x988] sm:$0xff]
        %v539 = vld [vmem:[%s187 + $0x990] sm:$0xff]
        %v540 = vld [vmem:[%s187 + $0x998] sm:$0xff]
        %v541 = vld [vmem:[%s187 + $0x9a0] sm:$0xff]
        %v542 = vld [vmem:[%s187 + $0x9a8] sm:$0xff]
        %v543 = vld [vmem:[%s187 + $0x9b0] sm:$0xff]
        %v544 = vld [vmem:[%s187 + $0x9b8] sm:$0xff]
        %v545 = vld [vmem:[%s187 + $0x9c0] sm:$0xff]
        %v546 = vld [vmem:[%s187 + $0x9c8] sm:$0xff]
        %v547 = vld [vmem:[%s187 + $0x9d0] sm:$0xff]
        %v548 = vld [vmem:[%s187 + $0x9d8] sm:$0xff]
        %v549 = vld [vmem:[%s187 + $0x9e0] sm:$0xff]
        %v550 = vld [vmem:[%s187 + $0x9e8] sm:$0xff]
        %v551 = vld [vmem:[%s187 + $0x9f0] sm:$0xff]
        %v552 = vld [vmem:[%s187 + $0x9f8] sm:$0xff]
        %v553 = vld [vmem:[%s187 + $0xa00] sm:$0xff]
        %v554 = vld [vmem:[%s187 + $0xa08] sm:$0xff]
        %v555 = vld [vmem:[%s187 + $0xa10] sm:$0xff]
        %v556 = vld [vmem:[%s187 + $0xa18] sm:$0xff]
        %v557 = vld [vmem:[%s187 + $0xa20] sm:$0xff]
        %v558 = vld [vmem:[%s187 + $0xa28] sm:$0xff]
        %v559 = vld [vmem:[%s187 + $0xa30] sm:$0xff]
        %v560 = vld [vmem:[%s187 + $0xa38] sm:$0xff]
        %v561 = vld [vmem:[%s187 + $0xa40] sm:$0xff]
        %v562 = vld [vmem:[%s187 + $0xa48] sm:$0xff]
        %v563 = vld [vmem:[%s187 + $0xa50] sm:$0xff]
        %v564 = vld [vmem:[%s187 + $0xa58] sm:$0xff]
        %v565 = vld [vmem:[%s187 + $0xa60] sm:$0xff]
        %v566 = vld [vmem:[%s187 + $0xa68] sm:$0xff]
        %v567 = vld [vmem:[%s187 + $0xa70] sm:$0xff]
        %v568 = vld [vmem:[%s187 + $0xa78] sm:$0xff]
        %v569 = vld [vmem:[%s187 + $0xa80] sm:$0xff]
        %v570 = vld [vmem:[%s187 + $0xa88] sm:$0xff]
        %v571 = vld [vmem:[%s187 + $0xa90] sm:$0xff]
        %v572 = vld [vmem:[%s187 + $0xa98] sm:$0xff]
        %v573 = vld [vmem:[%s187 + $0xaa0] sm:$0xff]
        %v574 = vld [vmem:[%s187 + $0xaa8] sm:$0xff]
        %v575 = vld [vmem:[%s187 + $0xab0] sm:$0xff]
        %v576 = vld [vmem:[%s187 + $0xab8] sm:$0xff]
        %v577 = vld [vmem:[%s187 + $0xac0] sm:$0xff]
        %v578 = vld [vmem:[%s187 + $0xac8] sm:$0xff]
        %v579 = vld [vmem:[%s187 + $0xad0] sm:$0xff]
        %v580 = vld [vmem:[%s187 + $0xad8] sm:$0xff]
        %v581 = vld [vmem:[%s187 + $0xae0] sm:$0xff]
        %v582 = vld [vmem:[%s187 + $0xae8] sm:$0xff]
        %v583 = vld [vmem:[%s187 + $0xaf0] sm:$0xff]
        %v584 = vld [vmem:[%s187 + $0xaf8] sm:$0xff]
        %v585 = vld [vmem:[%s187 + $0xb00] sm:$0xff]
        %v586 = vld [vmem:[%s187 + $0xb08] sm:$0xff]
        %v587 = vld [vmem:[%s187 + $0xb10] sm:$0xff]
        %v588 = vld [vmem:[%s187 + $0xb18] sm:$0xff]
        %v589 = vld [vmem:[%s187 + $0xb20] sm:$0xff]
        %v590 = vld [vmem:[%s187 + $0xb28] sm:$0xff]
        %v591 = vld [vmem:[%s187 + $0xb30] sm:$0xff]
        %v592 = vld [vmem:[%s187 + $0xb38] sm:$0xff]
        %v593 = vld [vmem:[%s187 + $0xb40] sm:$0xff]
        %v594 = vld [vmem:[%s187 + $0xb48] sm:$0xff]
        %v595 = vld [vmem:[%s187 + $0xb50] sm:$0xff]
        %v596 = vld [vmem:[%s187 + $0xb58] sm:$0xff]
        %v597 = vld [vmem:[%s187 + $0xb60] sm:$0xff]
        %v598 = vld [vmem:[%s187 + $0xb68] sm:$0xff]
        %v599 = vld [vmem:[%s187 + $0xb70] sm:$0xff]
        %v600 = vld [vmem:[%s187 + $0xb78] sm:$0xff]
        %v601 = vld [vmem:[%s187 + $0xb80] sm:$0xff]
        %v602 = vld [vmem:[%s187 + $0xb88] sm:$0xff]
        %v603 = vld [vmem:[%s187 + $0xb90] sm:$0xff]
        %v604 = vld [vmem:[%s187 + $0xb98] sm:$0xff]
        %v605 = vld [vmem:[%s187 + $0xba0] sm:$0xff]
        %v606 = vld [vmem:[%s187 + $0xba8] sm:$0xff]
        %v607 = vld [vmem:[%s187 + $0xbb0] sm:$0xff]
        %v608 = vld [vmem:[%s187 + $0xbb8] sm:$0xff]
        %v609 = vld [vmem:[%s187 + $0xbc0] sm:$0xff]
        %v610 = vld [vmem:[%s187 + $0xbc8] sm:$0xff]
        %v611 = vld [vmem:[%s187 + $0xbd0] sm:$0xff]
        %v612 = vld [vmem:[%s187 + $0xbd8] sm:$0xff]
        %v613 = vld [vmem:[%s187 + $0xbe0] sm:$0xff]
        %v614 = vld [vmem:[%s187 + $0xbe8] sm:$0xff]
        %v615 = vld [vmem:[%s187 + $0xbf0] sm:$0xff]
        %v616 = vld [vmem:[%s187 + $0xbf8] sm:$0xff]
        %v617 = vld [vmem:[%s187 + $0xc00] sm:$0xff]
        %v618 = vld [vmem:[%s187 + $0xc08] sm:$0xff]
        %v619 = vld [vmem:[%s187 + $0xc10] sm:$0xff]
        %v620 = vld [vmem:[%s187 + $0xc18] sm:$0xff]
        %v621 = vld [vmem:[%s187 + $0xc20] sm:$0xff]
        %v622 = vld [vmem:[%s187 + $0xc28] sm:$0xff]
        %v623 = vld [vmem:[%s187 + $0xc30] sm:$0xff]
        %v624 = vld [vmem:[%s187 + $0xc38] sm:$0xff]
        %v625 = vld [vmem:[%s187 + $0xc40] sm:$0xff]
        %v626 = vld [vmem:[%s187 + $0xc48] sm:$0xff]
        %v627 = vld [vmem:[%s187 + $0xc50] sm:$0xff]
        %v628 = vld [vmem:[%s187 + $0xc58] sm:$0xff]
        %v629 = vld [vmem:[%s187 + $0xc60] sm:$0xff]
        %v630 = vld [vmem:[%s187 + $0xc68] sm:$0xff]
        %v631 = vld [vmem:[%s187 + $0xc70] sm:$0xff]
        %v632 = vld [vmem:[%s187 + $0xc78] sm:$0xff]
        %v633 = vld [vmem:[%s187 + $0xc80] sm:$0xff]
        %v634 = vld [vmem:[%s187 + $0xc88] sm:$0xff]
        %v635 = vld [vmem:[%s187 + $0xc90] sm:$0xff]
        %v636 = vld [vmem:[%s187 + $0xc98] sm:$0xff]
        %v637 = vld [vmem:[%s187 + $0xca0] sm:$0xff]
        %v638 = vld [vmem:[%s187 + $0xca8] sm:$0xff]
        %v639 = vld [vmem:[%s187 + $0xcb0] sm:$0xff]
        %v640 = vld [vmem:[%s187 + $0xcb8] sm:$0xff]
        %v641 = vld [vmem:[%s187 + $0xcc0] sm:$0xff]
        %v642 = vld [vmem:[%s187 + $0xcc8] sm:$0xff]
        %v643 = vld [vmem:[%s187 + $0xcd0] sm:$0xff]
        %v644 = vld [vmem:[%s187 + $0xcd8] sm:$0xff]
        %v645 = vld [vmem:[%s187 + $0xce0] sm:$0xff]
        %v646 = vld [vmem:[%s187 + $0xce8] sm:$0xff]
        %v647 = vld [vmem:[%s187 + $0xcf0] sm:$0xff]
        %v648 = vld [vmem:[%s187 + $0xcf8] sm:$0xff]
        %v649 = vld [vmem:[%s187 + $0xd00] sm:$0xff]
        %v650 = vld [vmem:[%s187 + $0xd08] sm:$0xff]
        %v651 = vld [vmem:[%s187 + $0xd10] sm:$0xff]
        %v652 = vld [vmem:[%s187 + $0xd18] sm:$0xff]
        %v653 = vld [vmem:[%s187 + $0xd20] sm:$0xff]
        %v654 = vld [vmem:[%s187 + $0xd28] sm:$0xff]
        %v655 = vld [vmem:[%s187 + $0xd30] sm:$0xff]
        %v656 = vld [vmem:[%s187 + $0xd38] sm:$0xff]
        %v657 = vld [vmem:[%s187 + $0xd40] sm:$0xff]
        %v658 = vld [vmem:[%s187 + $0xd48] sm:$0xff]
        %v659 = vld [vmem:[%s187 + $0xd50] sm:$0xff]
        %v660 = vld [vmem:[%s187 + $0xd58] sm:$0xff]
        %v661 = vld [vmem:[%s187 + $0xd60] sm:$0xff]
        %v662 = vld [vmem:[%s187 + $0xd68] sm:$0xff]
        %v663 = vld [vmem:[%s187 + $0xd70] sm:$0xff]
        %v664 = vld [vmem:[%s187 + $0xd78] sm:$0xff]
        %v665 = vld [vmem:[%s187 + $0xd80] sm:$0xff]
        %v666 = vld [vmem:[%s187 + $0xd88] sm:$0xff]
        %v667 = vld [vmem:[%s187 + $0xd90] sm:$0xff]
        %v668 = vld [vmem:[%s187 + $0xd98] sm:$0xff]
        %v669 = vld [vmem:[%s187 + $0xda0] sm:$0xff]
        %v670 = vld [vmem:[%s187 + $0xda8] sm:$0xff]
        %v671 = vld [vmem:[%s187 + $0xdb0] sm:$0xff]
        %v672 = vld [vmem:[%s187 + $0xdb8] sm:$0xff]
        %v673 = vld [vmem:[%s187 + $0xdc0] sm:$0xff]
        %v674 = vld [vmem:[%s187 + $0xdc8] sm:$0xff]
        %v675 = vld [vmem:[%s187 + $0xdd0] sm:$0xff]
        %v676 = vld [vmem:[%s187 + $0xdd8] sm:$0xff]
        %v677 = vld [vmem:[%s187 + $0xde0] sm:$0xff]
        %v678 = vld [vmem:[%s187 + $0xde8] sm:$0xff]
        %v679 = vld [vmem:[%s187 + $0xdf0] sm:$0xff]
        %v680 = vld [vmem:[%s187 + $0xdf8] sm:$0xff]
        %v681 = vld [vmem:[%s187 + $0xe00] sm:$0xff]
        %v682 = vld [vmem:[%s187 + $0xe08] sm:$0xff]
        %v683 = vld [vmem:[%s187 + $0xe10] sm:$0xff]
        %v684 = vld [vmem:[%s187 + $0xe18] sm:$0xff]
        %v685 = vld [vmem:[%s187 + $0xe20] sm:$0xff]
        %v686 = vld [vmem:[%s187 + $0xe28] sm:$0xff]
        %v687 = vld [vmem:[%s187 + $0xe30] sm:$0xff]
        %v688 = vld [vmem:[%s187 + $0xe38] sm:$0xff]
        %v689 = vld [vmem:[%s187 + $0xe40] sm:$0xff]
        %v690 = vld [vmem:[%s187 + $0xe48] sm:$0xff]
        %v691 = vld [vmem:[%s187 + $0xe50] sm:$0xff]
        %v692 = vld [vmem:[%s187 + $0xe58] sm:$0xff]
        %v693 = vld [vmem:[%s187 + $0xe60] sm:$0xff]
        %v694 = vld [vmem:[%s187 + $0xe68] sm:$0xff]
        %v695 = vld [vmem:[%s187 + $0xe70] sm:$0xff]
        %v696 = vld [vmem:[%s187 + $0xe78] sm:$0xff]
        %v697 = vld [vmem:[%s187 + $0xe80] sm:$0xff]
        %v698 = vld [vmem:[%s187 + $0xe88] sm:$0xff]
        %v699 = vld [vmem:[%s187 + $0xe90] sm:$0xff]
        %v700 = vld [vmem:[%s187 + $0xe98] sm:$0xff]
        %v701 = vld [vmem:[%s187 + $0xea0] sm:$0xff]
        %v702 = vld [vmem:[%s187 + $0xea8] sm:$0xff]
        %v703 = vld [vmem:[%s187 + $0xeb0] sm:$0xff]
        %v704 = vld [vmem:[%s187 + $0xeb8] sm:$0xff]
        %v705 = vld [vmem:[%s187 + $0xec0] sm:$0xff]
        %v706 = vld [vmem:[%s187 + $0xec8] sm:$0xff]
        %v707 = vld [vmem:[%s187 + $0xed0] sm:$0xff]
        %v708 = vld [vmem:[%s187 + $0xed8] sm:$0xff]
        %v709 = vld [vmem:[%s187 + $0xee0] sm:$0xff]
        %v710 = vld [vmem:[%s187 + $0xee8] sm:$0xff]
        %v711 = vld [vmem:[%s187 + $0xef0] sm:$0xff]
        %v712 = vld [vmem:[%s187 + $0xef8] sm:$0xff]
        %v713 = vld [vmem:[%s187 + $0xf00] sm:$0xff]
        %v714 = vld [vmem:[%s187 + $0xf08] sm:$0xff]
        %v715 = vld [vmem:[%s187 + $0xf10] sm:$0xff]
        %v716 = vld [vmem:[%s187 + $0xf18] sm:$0xff]
        %v717 = vld [vmem:[%s187 + $0xf20] sm:$0xff]
        %v718 = vld [vmem:[%s187 + $0xf28] sm:$0xff]
        %v719 = vld [vmem:[%s187 + $0xf30] sm:$0xff]
        %v720 = vld [vmem:[%s187 + $0xf38] sm:$0xff]
        %v721 = vld [vmem:[%s187 + $0xf40] sm:$0xff]
        %v722 = vld [vmem:[%s187 + $0xf48] sm:$0xff]
        %v723 = vld [vmem:[%s187 + $0xf50] sm:$0xff]
        %v724 = vld [vmem:[%s187 + $0xf58] sm:$0xff]
        %v725 = vld [vmem:[%s187 + $0xf60] sm:$0xff]
        %v726 = vld [vmem:[%s187 + $0xf68] sm:$0xff]
        %v727 = vld [vmem:[%s187 + $0xf70] sm:$0xff]
        %v728 = vld [vmem:[%s187 + $0xf78] sm:$0xff]
        %v729 = vld [vmem:[%s187 + $0xf80] sm:$0xff]
        %v730 = vld [vmem:[%s187 + $0xf88] sm:$0xff]
        %v731 = vld [vmem:[%s187 + $0xf90] sm:$0xff]
        %v732 = vld [vmem:[%s187 + $0xf98] sm:$0xff]
        %v733 = vld [vmem:[%s187 + $0xfa0] sm:$0xff]
        %v734 = vld [vmem:[%s187 + $0xfa8] sm:$0xff]
        %v735 = vld [vmem:[%s187 + $0xfb0] sm:$0xff]
        %v736 = vld [vmem:[%s187 + $0xfb8] sm:$0xff]
        %v737 = vld [vmem:[%s187 + $0xfc0] sm:$0xff]
        %v738 = vld [vmem:[%s187 + $0xfc8] sm:$0xff]
        %v739 = vld [vmem:[%s187 + $0xfd0] sm:$0xff]
        %v740 = vld [vmem:[%s187 + $0xfd8] sm:$0xff]
        %v741 = vld [vmem:[%s187 + $0xfe0] sm:$0xff]
        %v742 = vld [vmem:[%s187 + $0xfe8] sm:$0xff]
        %v743 = vld [vmem:[%s187 + $0xff0] sm:$0xff]
        %v744 = vld [vmem:[%s187 + $0xff8] sm:$0xff]
        %v745 = vld [vmem:[%s187 + $0x1000] sm:$0xff]
        %v746 = vld [vmem:[%s187 + $0x1008] sm:$0xff]
        %v747 = vld [vmem:[%s187 + $0x1010] sm:$0xff]
        %v748 = vld [vmem:[%s187 + $0x1018] sm:$0xff]
        %v749 = vld [vmem:[%s187 + $0x1020] sm:$0xff]
        %v750 = vld [vmem:[%s187 + $0x1028] sm:$0xff]
        %v751 = vld [vmem:[%s187 + $0x1030] sm:$0xff]
        %v752 = vld [vmem:[%s187 + $0x1038] sm:$0xff]
        %v753 = vld [vmem:[%s187 + $0x1040] sm:$0xff]
        %v754 = vld [vmem:[%s187 + $0x1048] sm:$0xff]
        %v755 = vld [vmem:[%s187 + $0x1050] sm:$0xff]
        %v756 = vld [vmem:[%s187 + $0x1058] sm:$0xff]
        %v757 = vld [vmem:[%s187 + $0x1060] sm:$0xff]
        %v758 = vld [vmem:[%s187 + $0x1068] sm:$0xff]
        %v759 = vld [vmem:[%s187 + $0x1070] sm:$0xff]
        %v760 = vld [vmem:[%s187 + $0x1078] sm:$0xff]
        %v761 = vld [vmem:[%s187 + $0x1080] sm:$0xff]
        %v762 = vld [vmem:[%s187 + $0x1088] sm:$0xff]
        %v763 = vld [vmem:[%s187 + $0x1090] sm:$0xff]
        %v764 = vld [vmem:[%s187 + $0x1098] sm:$0xff]
        %v765 = vld [vmem:[%s187 + $0x10a0] sm:$0xff]
        %v766 = vld [vmem:[%s187 + $0x10a8] sm:$0xff]
        %v767 = vld [vmem:[%s187 + $0x10b0] sm:$0xff]
        %v768 = vld [vmem:[%s187 + $0x10b8] sm:$0xff]
        %v769 = vld [vmem:[%s187 + $0x10c0] sm:$0xff]
        %v770 = vld [vmem:[%s187 + $0x10c8] sm:$0xff]
        %v771 = vld [vmem:[%s187 + $0x10d0] sm:$0xff]
        %v772 = vld [vmem:[%s187 + $0x10d8] sm:$0xff]
        %v773 = vld [vmem:[%s187 + $0x10e0] sm:$0xff]
        %v774 = vld [vmem:[%s187 + $0x10e8] sm:$0xff]
        %v775 = vld [vmem:[%s187 + $0x10f0] sm:$0xff]
        %v776 = vld [vmem:[%s187 + $0x10f8] sm:$0xff]
        %v777 = vld [vmem:[%s187 + $0x1100] sm:$0xff]
        %v778 = vld [vmem:[%s187 + $0x1108] sm:$0xff]
        %v779 = vld [vmem:[%s187 + $0x1110] sm:$0xff]
        %v780 = vld [vmem:[%s187 + $0x1118] sm:$0xff]
        %v781 = vld [vmem:[%s187 + $0x1120] sm:$0xff]
        %v782 = vld [vmem:[%s187 + $0x1128] sm:$0xff]
        %v783 = vld [vmem:[%s187 + $0x1130] sm:$0xff]
        %v784 = vld [vmem:[%s187 + $0x1138] sm:$0xff]
        %v785 = vld [vmem:[%s187 + $0x1140] sm:$0xff]
        %v786 = vld [vmem:[%s187 + $0x1148] sm:$0xff]
        %v787 = vld [vmem:[%s187 + $0x1150] sm:$0xff]
        %v788 = vld [vmem:[%s187 + $0x1158] sm:$0xff]
        %v789 = vld [vmem:[%s187 + $0x1160] sm:$0xff]
        %v790 = vld [vmem:[%s187 + $0x1168] sm:$0xff]
        %v791 = vld [vmem:[%s187 + $0x1170] sm:$0xff]
        %v792 = vld [vmem:[%s187 + $0x1178] sm:$0xff]
        %v793 = vld [vmem:[%s187 + $0x1180] sm:$0xff]
        %v794 = vld [vmem:[%s187 + $0x1188] sm:$0xff]
        %v795 = vld [vmem:[%s187 + $0x1190] sm:$0xff]
        %v796 = vld [vmem:[%s187 + $0x1198] sm:$0xff]
        %v797 = vld [vmem:[%s187 + $0x11a0] sm:$0xff]
        %v798 = vld [vmem:[%s187 + $0x11a8] sm:$0xff]
        %v799 = vld [vmem:[%s187 + $0x11b0] sm:$0xff]
        %v800 = vld [vmem:[%s187 + $0x11b8] sm:$0xff]
        %v801 = vld [vmem:[%s187 + $0x11c0] sm:$0xff]
        %v802 = vld [vmem:[%s187 + $0x11c8] sm:$0xff]
        %v803 = vld [vmem:[%s187 + $0x11d0] sm:$0xff]
        %v804 = vld [vmem:[%s187 + $0x11d8] sm:$0xff]
        %v805 = vld [vmem:[%s187 + $0x11e0] sm:$0xff]
        %v806 = vld [vmem:[%s187 + $0x11e8] sm:$0xff]
        %v807 = vld [vmem:[%s187 + $0x11f0] sm:$0xff]
        %v808 = vld [vmem:[%s187 + $0x11f8] sm:$0xff]
        %v809 = vld [vmem:[%s187 + $0x1200] sm:$0xff]
        %v810 = vld [vmem:[%s187 + $0x1208] sm:$0xff]
        %v811 = vld [vmem:[%s187 + $0x1210] sm:$0xff]
        %v812 = vld [vmem:[%s187 + $0x1218] sm:$0xff]
        %v813 = vld [vmem:[%s187 + $0x1220] sm:$0xff]
        %v814 = vld [vmem:[%s187 + $0x1228] sm:$0xff]
        %v815 = vld [vmem:[%s187 + $0x1230] sm:$0xff]
        %v816 = vld [vmem:[%s187 + $0x1238] sm:$0xff]
        %v817 = vld [vmem:[%s187 + $0x1240] sm:$0xff]
        %v818 = vld [vmem:[%s187 + $0x1248] sm:$0xff]
        %v819 = vld [vmem:[%s187 + $0x1250] sm:$0xff]
        %v820 = vld [vmem:[%s187 + $0x1258] sm:$0xff]
        %v821 = vld [vmem:[%s187 + $0x1260] sm:$0xff]
        %v822 = vld [vmem:[%s187 + $0x1268] sm:$0xff]
        %v823 = vld [vmem:[%s187 + $0x1270] sm:$0xff]
        %v824 = vld [vmem:[%s187 + $0x1278] sm:$0xff]
        %v825 = vld [vmem:[%s187 + $0x1280] sm:$0xff]
        %v826 = vld [vmem:[%s187 + $0x1288] sm:$0xff]
        %v827 = vld [vmem:[%s187 + $0x1290] sm:$0xff]
        %v828 = vld [vmem:[%s187 + $0x1298] sm:$0xff]
        %v829 = vld [vmem:[%s187 + $0x12a0] sm:$0xff]
        %v830 = vld [vmem:[%s187 + $0x12a8] sm:$0xff]
        %v831 = vld [vmem:[%s187 + $0x12b0] sm:$0xff]
        %v832 = vld [vmem:[%s187 + $0x12b8] sm:$0xff]
        %v833 = vld [vmem:[%s187 + $0x12c0] sm:$0xff]
        %v834 = vld [vmem:[%s187 + $0x12c8] sm:$0xff]
        %v835 = vld [vmem:[%s187 + $0x12d0] sm:$0xff]
        %v836 = vld [vmem:[%s187 + $0x12d8] sm:$0xff]
        %v837 = vld [vmem:[%s187 + $0x12e0] sm:$0xff]
        %v838 = vld [vmem:[%s187 + $0x12e8] sm:$0xff]
        %v839 = vld [vmem:[%s187 + $0x12f0] sm:$0xff]
        %v840 = vld [vmem:[%s187 + $0x12f8] sm:$0xff]
        %v841 = vld [vmem:[%s187 + $0x1300] sm:$0xff]
        %v842 = vld [vmem:[%s187 + $0x1308] sm:$0xff]
        %v843 = vld [vmem:[%s187 + $0x1310] sm:$0xff]
        %v844 = vld [vmem:[%s187 + $0x1318] sm:$0xff]
        %v845 = vld [vmem:[%s187 + $0x1320] sm:$0xff]
        %v846 = vld [vmem:[%s187 + $0x1328] sm:$0xff]
        %v847 = vld [vmem:[%s187 + $0x1330] sm:$0xff]
        %v848 = vld [vmem:[%s187 + $0x1338] sm:$0xff]
        %v849 = vld [vmem:[%s187 + $0x1340] sm:$0xff]
        %v850 = vld [vmem:[%s187 + $0x1348] sm:$0xff]
        %v851 = vld [vmem:[%s187 + $0x1350] sm:$0xff]
        %v852 = vld [vmem:[%s187 + $0x1358] sm:$0xff]
        %v853 = vld [vmem:[%s187 + $0x1360] sm:$0xff]
        %v854 = vld [vmem:[%s187 + $0x1368] sm:$0xff]
        %v855 = vld [vmem:[%s187 + $0x1370] sm:$0xff]
        %v856 = vld [vmem:[%s187 + $0x1378] sm:$0xff]
        %v857 = vld [vmem:[%s187 + $0x1380] sm:$0xff]
        %v858 = vld [vmem:[%s187 + $0x1388] sm:$0xff]
        %v859 = vld [vmem:[%s187 + $0x1390] sm:$0xff]
        %v860 = vld [vmem:[%s187 + $0x1398] sm:$0xff]
        %v861 = vld [vmem:[%s187 + $0x13a0] sm:$0xff]
        %v862 = vld [vmem:[%s187 + $0x13a8] sm:$0xff]
        %v863 = vld [vmem:[%s187 + $0x13b0] sm:$0xff]
        %v864 = vld [vmem:[%s187 + $0x13b8] sm:$0xff]
        %v865 = vld [vmem:[%s187 + $0x13c0] sm:$0xff]
        %v866 = vld [vmem:[%s187 + $0x13c8] sm:$0xff]
        %v867 = vld [vmem:[%s187 + $0x13d0] sm:$0xff]
        %v868 = vld [vmem:[%s187 + $0x13d8] sm:$0xff]
        %v869 = vld [vmem:[%s187 + $0x13e0] sm:$0xff]
        %v870 = vld [vmem:[%s187 + $0x13e8] sm:$0xff]
        %v871 = vld [vmem:[%s187 + $0x13f0] sm:$0xff]
        %v872 = vld [vmem:[%s187 + $0x13f8] sm:$0xff]
        %v873 = vld [vmem:[%s187 + $0x1400] sm:$0xff]
        %v874 = vld [vmem:[%s187 + $0x1408] sm:$0xff]
        %v875 = vld [vmem:[%s187 + $0x1410] sm:$0xff]
        %v876 = vld [vmem:[%s187 + $0x1418] sm:$0xff]
        %v877 = vld [vmem:[%s187 + $0x1420] sm:$0xff]
        %v878 = vld [vmem:[%s187 + $0x1428] sm:$0xff]
        %v879 = vld [vmem:[%s187 + $0x1430] sm:$0xff]
        %v880 = vld [vmem:[%s187 + $0x1438] sm:$0xff]
        %v881 = vld [vmem:[%s187 + $0x1440] sm:$0xff]
        %v882 = vld [vmem:[%s187 + $0x1448] sm:$0xff]
        %v883 = vld [vmem:[%s187 + $0x1450] sm:$0xff]
        %v884 = vld [vmem:[%s187 + $0x1458] sm:$0xff]
        %v885 = vld [vmem:[%s187 + $0x1460] sm:$0xff]
        %v886 = vld [vmem:[%s187 + $0x1468] sm:$0xff]
        %v887 = vld [vmem:[%s187 + $0x1470] sm:$0xff]
        %v888 = vld [vmem:[%s187 + $0x1478] sm:$0xff]
        %v889 = vld [vmem:[%s187 + $0x1480] sm:$0xff]
        %v890 = vld [vmem:[%s187 + $0x1488] sm:$0xff]
        %v891 = vld [vmem:[%s187 + $0x1490] sm:$0xff]
        %v892 = vld [vmem:[%s187 + $0x1498] sm:$0xff]
        %v893 = vld [vmem:[%s187 + $0x14a0] sm:$0xff]
        %v894 = vld [vmem:[%s187 + $0x14a8] sm:$0xff]
        %v895 = vld [vmem:[%s187 + $0x14b0] sm:$0xff]
        %v896 = vld [vmem:[%s187 + $0x14b8] sm:$0xff]
        %v897 = vld [vmem:[%s187 + $0x14c0] sm:$0xff]
        %v898 = vld [vmem:[%s187 + $0x14c8] sm:$0xff]
        %v899 = vld [vmem:[%s187 + $0x14d0] sm:$0xff]
        %v900 = vld [vmem:[%s187 + $0x14d8] sm:$0xff]
        %v901 = vld [vmem:[%s187 + $0x14e0] sm:$0xff]
        %v902 = vld [vmem:[%s187 + $0x14e8] sm:$0xff]
        %v903 = vld [vmem:[%s187 + $0x14f0] sm:$0xff]
        %v904 = vld [vmem:[%s187 + $0x14f8] sm:$0xff]
        %v905 = vld [vmem:[%s187 + $0x1500] sm:$0xff]
        %v906 = vld [vmem:[%s187 + $0x1508] sm:$0xff]
        %v907 = vld [vmem:[%s187 + $0x1510] sm:$0xff]
        %v908 = vld [vmem:[%s187 + $0x1518] sm:$0xff]
        %v909 = vld [vmem:[%s187 + $0x1520] sm:$0xff]
        %v910 = vld [vmem:[%s187 + $0x1528] sm:$0xff]
        %v911 = vld [vmem:[%s187 + $0x1530] sm:$0xff]
        %v912 = vld [vmem:[%s187 + $0x1538] sm:$0xff]
        %v913 = vld [vmem:[%s187 + $0x1540] sm:$0xff]
        %v914 = vld [vmem:[%s187 + $0x1548] sm:$0xff]
        %v915 = vld [vmem:[%s187 + $0x1550] sm:$0xff]
        %v916 = vld [vmem:[%s187 + $0x1558] sm:$0xff]
        %v917 = vld [vmem:[%s187 + $0x1560] sm:$0xff]
        %v918 = vld [vmem:[%s187 + $0x1568] sm:$0xff]
        %v919 = vld [vmem:[%s187 + $0x1570] sm:$0xff]
        %v920 = vld [vmem:[%s187 + $0x1578] sm:$0xff]
        %v921 = vld [vmem:[%s187 + $0x1580] sm:$0xff]
        %v922 = vld [vmem:[%s187 + $0x1588] sm:$0xff]
        %v923 = vld [vmem:[%s187 + $0x1590] sm:$0xff]
        %v924 = vld [vmem:[%s187 + $0x1598] sm:$0xff]
        %v925 = vld [vmem:[%s187 + $0x15a0] sm:$0xff]
        %v926 = vld [vmem:[%s187 + $0x15a8] sm:$0xff]
        %v927 = vld [vmem:[%s187 + $0x15b0] sm:$0xff]
        %v928 = vld [vmem:[%s187 + $0x15b8] sm:$0xff]
        %v929 = vld [vmem:[%s187 + $0x15c0] sm:$0xff]
        %v930 = vld [vmem:[%s187 + $0x15c8] sm:$0xff]
        %v931 = vld [vmem:[%s187 + $0x15d0] sm:$0xff]
        %v932 = vld [vmem:[%s187 + $0x15d8] sm:$0xff]
        %v933 = vld [vmem:[%s187 + $0x15e0] sm:$0xff]
        %v934 = vld [vmem:[%s187 + $0x15e8] sm:$0xff]
        %v935 = vld [vmem:[%s187 + $0x15f0] sm:$0xff]
        %v936 = vld [vmem:[%s187 + $0x15f8] sm:$0xff]
        %v937 = vld [vmem:[%s187 + $0x1600] sm:$0xff]
        %v938 = vld [vmem:[%s187 + $0x1608] sm:$0xff]
        %v939 = vld [vmem:[%s187 + $0x1610] sm:$0xff]
        %v940 = vld [vmem:[%s187 + $0x1618] sm:$0xff]
        %v941 = vld [vmem:[%s187 + $0x1620] sm:$0xff]
        %v942 = vld [vmem:[%s187 + $0x1628] sm:$0xff]
        %v943 = vld [vmem:[%s187 + $0x1630] sm:$0xff]
        %v944 = vld [vmem:[%s187 + $0x1638] sm:$0xff]
        %v945 = vld [vmem:[%s187 + $0x1640] sm:$0xff]
        %v946 = vld [vmem:[%s187 + $0x1648] sm:$0xff]
        %v947 = vld [vmem:[%s187 + $0x1650] sm:$0xff]
        %v948 = vld [vmem:[%s187 + $0x1658] sm:$0xff]
        %v949 = vld [vmem:[%s187 + $0x1660] sm:$0xff]
        %v950 = vld [vmem:[%s187 + $0x1668] sm:$0xff]
        %v951 = vld [vmem:[%s187 + $0x1670] sm:$0xff]
        %v952 = vld [vmem:[%s187 + $0x1678] sm:$0xff]
        %v953 = vld [vmem:[%s187 + $0x1680] sm:$0xff]
        %v954 = vld [vmem:[%s187 + $0x1688] sm:$0xff]
        %v955 = vld [vmem:[%s187 + $0x1690] sm:$0xff]
        %v956 = vld [vmem:[%s187 + $0x1698] sm:$0xff]
        %v957 = vld [vmem:[%s187 + $0x16a0] sm:$0xff]
        %v958 = vld [vmem:[%s187 + $0x16a8] sm:$0xff]
        %v959 = vld [vmem:[%s187 + $0x16b0] sm:$0xff]
        %v960 = vld [vmem:[%s187 + $0x16b8] sm:$0xff]
        %v961 = vld [vmem:[%s187 + $0x16c0] sm:$0xff]
        %v962 = vld [vmem:[%s187 + $0x16c8] sm:$0xff]
        %v963 = vld [vmem:[%s187 + $0x16d0] sm:$0xff]
        %v964 = vld [vmem:[%s187 + $0x16d8] sm:$0xff]
        %v965 = vld [vmem:[%s187 + $0x16e0] sm:$0xff]
        %v966 = vld [vmem:[%s187 + $0x16e8] sm:$0xff]
        %v967 = vld [vmem:[%s187 + $0x16f0] sm:$0xff]
        %v968 = vld [vmem:[%s187 + $0x16f8] sm:$0xff]
        %v969 = vld [vmem:[%s187 + $0x1700] sm:$0xff]
        %v970 = vld [vmem:[%s187 + $0x1708] sm:$0xff]
        %v971 = vld [vmem:[%s187 + $0x1710] sm:$0xff]
        %v972 = vld [vmem:[%s187 + $0x1718] sm:$0xff]
        %v973 = vld [vmem:[%s187 + $0x1720] sm:$0xff]
        %v974 = vld [vmem:[%s187 + $0x1728] sm:$0xff]
        %v975 = vld [vmem:[%s187 + $0x1730] sm:$0xff]
        %v976 = vld [vmem:[%s187 + $0x1738] sm:$0xff]
        %v977 = vld [vmem:[%s187 + $0x1740] sm:$0xff]
        %v978 = vld [vmem:[%s187 + $0x1748] sm:$0xff]
        %v979 = vld [vmem:[%s187 + $0x1750] sm:$0xff]
        %v980 = vld [vmem:[%s187 + $0x1758] sm:$0xff]
        %v981 = vld [vmem:[%s187 + $0x1760] sm:$0xff]
        %v982 = vld [vmem:[%s187 + $0x1768] sm:$0xff]
        %v983 = vld [vmem:[%s187 + $0x1770] sm:$0xff]
        %v984 = vld [vmem:[%s187 + $0x1778] sm:$0xff]
        %v985 = vld [vmem:[%s187 + $0x1780] sm:$0xff]
        %v986 = vld [vmem:[%s187 + $0x1788] sm:$0xff]
        %v987 = vld [vmem:[%s187 + $0x1790] sm:$0xff]
        %v988 = vld [vmem:[%s187 + $0x1798] sm:$0xff]
        %v989 = vld [vmem:[%s187 + $0x17a0] sm:$0xff]
        %v990 = vld [vmem:[%s187 + $0x17a8] sm:$0xff]
        %v991 = vld [vmem:[%s187 + $0x17b0] sm:$0xff]
        %v992 = vld [vmem:[%s187 + $0x17b8] sm:$0xff]
        %v993 = vld [vmem:[%s187 + $0x17c0] sm:$0xff]
        %v994 = vld [vmem:[%s187 + $0x17c8] sm:$0xff]
        %v995 = vld [vmem:[%s187 + $0x17d0] sm:$0xff]
        %v996 = vld [vmem:[%s187 + $0x17d8] sm:$0xff]
        %v997 = vld [vmem:[%s187 + $0x17e0] sm:$0xff]
        %v998 = vld [vmem:[%s187 + $0x17e8] sm:$0xff]
        %v999 = vld [vmem:[%s187 + $0x17f0] sm:$0xff]
        %v1000 = vld [vmem:[%s187 + $0x17f8] sm:$0xff]
        %v1001 = vld [vmem:[%s196] sm:$0xff]
        %v1002 = vld [vmem:[%s196 + $0x8] sm:$0xf]
        %v1005 = vlaneseq
        %v1006 = vshrl.u32 %v1005, 7
        %v1007 = vsub.s32 0, %v1006
        %v1008 = vrot.slane %v1001, %v1007
        %v1009 = vlaneseq
        %v1010 = vshrl.u32 %v1009, 7
        %v1011 = vsub.s32 1, %v1010
        %v1012 = vrot.slane %v1001, %v1011
        %v1013 = vlaneseq
        %v1014 = vshrl.u32 %v1013, 7
        %v1015 = vsub.s32 2, %v1014
        %v1016 = vrot.slane %v1001, %v1015
        %v1017 = vlaneseq
        %v1018 = vshrl.u32 %v1017, 7
        %v1019 = vsub.s32 3, %v1018
        %v1020 = vrot.slane %v1001, %v1019
        %v1021 = vlaneseq
        %v1022 = vshrl.u32 %v1021, 7
        %v1023 = vsub.s32 4, %v1022
        %v1024 = vrot.slane %v1001, %v1023
        %v1025 = vlaneseq
        %v1026 = vshrl.u32 %v1025, 7
        %v1027 = vsub.s32 5, %v1026
        %v1028 = vrot.slane %v1001, %v1027
        %v1029 = vlaneseq
        %v1030 = vshrl.u32 %v1029, 7
        %v1031 = vsub.s32 6, %v1030
        %v1032 = vrot.slane %v1001, %v1031
        %v1033 = vlaneseq
        %v1034 = vshrl.u32 %v1033, 7
        %v1035 = vsub.s32 7, %v1034
        %v1036 = vrot.slane %v1001, %v1035
        %v1037 = vlaneseq
        %v1038 = vshrl.u32 %v1037, 7
        %v1039 = vsub.s32 0, %v1038
        %v1040 = vrot.slane %v1002, %v1039
        %v1041 = vlaneseq
        %v1042 = vshrl.u32 %v1041, 7
        %v1043 = vsub.s32 1, %v1042
        %v1044 = vrot.slane %v1002, %v1043
        %v1045 = vlaneseq
        %v1046 = vshrl.u32 %v1045, 7
        %v1047 = vsub.s32 2, %v1046
        %v1048 = vrot.slane %v1002, %v1047
        %v1049 = vlaneseq
        %v1050 = vshrl.u32 %v1049, 7
        %v1051 = vsub.s32 3, %v1050
        %v1052 = vrot.slane %v1002, %v1051
        %v1066 = vcombine.high %v232, %v232
        %v1068 = vunpack.c.l.s4 1966171168
        %v1069 = vunpack.c.0.s8 %v1068
        %v1070 = vlaneseq
        %v1071 = vshrl.u32 %v1070, 7
        %v1072 = vsub.s32 %v1069, %v1071
        %v1073 = vrot.slane %v232, %v1072
        %v1075 = vunpack.c.l.s4 1966171168
        %v1076 = vunpack.c.0.s8 %v1075
        %v1077 = vlaneseq
        %v1078 = vshrl.u32 %v1077, 7
        %v1079 = vsub.s32 %v1076, %v1078
        %v1080 = vrot.slane %v1066, %v1079
        %v1081 = vcombine.high %v1073, %v1073
        %v1082 = vcombine.high %v1080, %v1080
        %v1084 = vunpack.c.l.s4 1966171168
        %v1085 = vunpack.c.0.s8 %v1084
        %v1086 = vlaneseq
        %v1087 = vshrl.u32 %v1086, 7
        %v1088 = vsub.s32 %v1085, %v1087
        %v1089 = vrot.slane %v1073, %v1088
        %v1091 = vunpack.c.l.s4 1966171168
        %v1092 = vunpack.c.0.s8 %v1091
        %v1093 = vlaneseq
        %v1094 = vshrl.u32 %v1093, 7
        %v1095 = vsub.s32 %v1092, %v1094
        %v1096 = vrot.slane %v1080, %v1095
        %v1098 = vunpack.c.l.s4 1966171168
        %v1099 = vunpack.c.0.s8 %v1098
        %v1100 = vlaneseq
        %v1101 = vshrl.u32 %v1100, 7
        %v1102 = vsub.s32 %v1099, %v1101
        %v1103 = vrot.slane %v1081, %v1102
        %v1105 = vunpack.c.l.s4 1966171168
        %v1106 = vunpack.c.0.s8 %v1105
        %v1107 = vlaneseq
        %v1108 = vshrl.u32 %v1107, 7
        %v1109 = vsub.s32 %v1106, %v1108
        %v1110 = vrot.slane %v1082, %v1109
        %v1111 = vcombine.high %v1089, %v1089
        %v1112 = vcombine.high %v1096, %v1096
        %v1113 = vcombine.high %v1103, %v1103
        %v1114 = vcombine.high %v1110, %v1110
        %v1891 = vunpack.c.l.b16 %v233
        %v1892 = vunpack.c.h.b16 %v233
        %v1893 = vunpack.c.l.b16 %v234
        %v1894 = vunpack.c.h.b16 %v234
        %v1895 = vunpack.c.l.b16 %v235
        %v1896 = vunpack.c.h.b16 %v235
        %v1897 = vunpack.c.l.b16 %v236
        %v1898 = vunpack.c.h.b16 %v236
        %v1899 = vunpack.c.l.b16 %v237
        %v1900 = vunpack.c.h.b16 %v237
        %v1901 = vunpack.c.l.b16 %v238
        %v1902 = vunpack.c.h.b16 %v238
        %v1903 = vunpack.c.l.b16 %v239
        %v1904 = vunpack.c.h.b16 %v239
        %v1905 = vunpack.c.l.b16 %v240
        %v1906 = vunpack.c.h.b16 %v240
        %v1907 = vunpack.c.l.b16 %v241
        %v1908 = vunpack.c.h.b16 %v241
        %v1909 = vunpack.c.l.b16 %v242
        %v1910 = vunpack.c.h.b16 %v242
        %v1911 = vunpack.c.l.b16 %v243
        %v1912 = vunpack.c.h.b16 %v243
        %v1913 = vunpack.c.l.b16 %v244
        %v1914 = vunpack.c.h.b16 %v244
        %v1915 = vunpack.c.l.b16 %v245
        %v1916 = vunpack.c.h.b16 %v245
        %v1917 = vunpack.c.l.b16 %v246
        %v1918 = vunpack.c.h.b16 %v246
        %v1919 = vunpack.c.l.b16 %v247
        %v1920 = vunpack.c.h.b16 %v247
        %v1921 = vunpack.c.l.b16 %v248
        %v1922 = vunpack.c.h.b16 %v248
        %v1923 = vunpack.c.l.b16 %v249
        %v1924 = vunpack.c.h.b16 %v249
        %v1925 = vunpack.c.l.b16 %v250
        %v1926 = vunpack.c.h.b16 %v250
        %v1927 = vunpack.c.l.b16 %v251
        %v1928 = vunpack.c.h.b16 %v251
        %v1929 = vunpack.c.l.b16 %v252
        %v1930 = vunpack.c.h.b16 %v252
        %v1931 = vunpack.c.l.b16 %v253
        %v1932 = vunpack.c.h.b16 %v253
        %v1933 = vunpack.c.l.b16 %v254
        %v1934 = vunpack.c.h.b16 %v254
        %v1935 = vunpack.c.l.b16 %v255
        %v1936 = vunpack.c.h.b16 %v255
        %v1937 = vunpack.c.l.b16 %v256
        %v1938 = vunpack.c.h.b16 %v256
        %v1939 = vunpack.c.l.b16 %v257
        %v1940 = vunpack.c.h.b16 %v257
        %v1941 = vunpack.c.l.b16 %v258
        %v1942 = vunpack.c.h.b16 %v258
        %v1943 = vunpack.c.l.b16 %v259
        %v1944 = vunpack.c.h.b16 %v259
        %v1945 = vunpack.c.l.b16 %v260
        %v1946 = vunpack.c.h.b16 %v260
        %v1947 = vunpack.c.l.b16 %v261
        %v1948 = vunpack.c.h.b16 %v261
        %v1949 = vunpack.c.l.b16 %v262
        %v1950 = vunpack.c.h.b16 %v262
        %v1951 = vunpack.c.l.b16 %v263
        %v1952 = vunpack.c.h.b16 %v263
        %v1953 = vunpack.c.l.b16 %v264
        %v1954 = vunpack.c.h.b16 %v264
        %v1955 = vunpack.c.l.b16 %v265
        %v1956 = vunpack.c.h.b16 %v265
        %v1957 = vunpack.c.l.b16 %v266
        %v1958 = vunpack.c.h.b16 %v266
        %v1959 = vunpack.c.l.b16 %v267
        %v1960 = vunpack.c.h.b16 %v267
        %v1961 = vunpack.c.l.b16 %v268
        %v1962 = vunpack.c.h.b16 %v268
        %v1963 = vunpack.c.l.b16 %v269
        %v1964 = vunpack.c.h.b16 %v269
        %v1965 = vunpack.c.l.b16 %v270
        %v1966 = vunpack.c.h.b16 %v270
        %v1967 = vunpack.c.l.b16 %v271
        %v1968 = vunpack.c.h.b16 %v271
        %v1969 = vunpack.c.l.b16 %v272
        %v1970 = vunpack.c.h.b16 %v272
        %v1971 = vunpack.c.l.b16 %v273
        %v1972 = vunpack.c.h.b16 %v273
        %v1973 = vunpack.c.l.b16 %v274
        %v1974 = vunpack.c.h.b16 %v274
        %v1975 = vunpack.c.l.b16 %v275
        %v1976 = vunpack.c.h.b16 %v275
        %v1977 = vunpack.c.l.b16 %v276
        %v1978 = vunpack.c.h.b16 %v276
        %v1979 = vunpack.c.l.b16 %v277
        %v1980 = vunpack.c.h.b16 %v277
        %v1981 = vunpack.c.l.b16 %v278
        %v1982 = vunpack.c.h.b16 %v278
        %v1983 = vunpack.c.l.b16 %v279
        %v1984 = vunpack.c.h.b16 %v279
        %v1985 = vunpack.c.l.b16 %v280
        %v1986 = vunpack.c.h.b16 %v280
        %v1987 = vunpack.c.l.b16 %v281
        %v1988 = vunpack.c.h.b16 %v281
        %v1989 = vunpack.c.l.b16 %v282
        %v1990 = vunpack.c.h.b16 %v282
        %v1991 = vunpack.c.l.b16 %v283
        %v1992 = vunpack.c.h.b16 %v283
        %v1993 = vunpack.c.l.b16 %v284
        %v1994 = vunpack.c.h.b16 %v284
        %v1995 = vunpack.c.l.b16 %v285
        %v1996 = vunpack.c.h.b16 %v285
        %v1997 = vunpack.c.l.b16 %v286
        %v1998 = vunpack.c.h.b16 %v286
        %v1999 = vunpack.c.l.b16 %v287
        %v2000 = vunpack.c.h.b16 %v287
        %v2001 = vunpack.c.l.b16 %v288
        %v2002 = vunpack.c.h.b16 %v288
        %v2003 = vunpack.c.l.b16 %v289
        %v2004 = vunpack.c.h.b16 %v289
        %v2005 = vunpack.c.l.b16 %v290
        %v2006 = vunpack.c.h.b16 %v290
        %v2007 = vunpack.c.l.b16 %v291
        %v2008 = vunpack.c.h.b16 %v291
        %v2009 = vunpack.c.l.b16 %v292
        %v2010 = vunpack.c.h.b16 %v292
        %v2011 = vunpack.c.l.b16 %v293
        %v2012 = vunpack.c.h.b16 %v293
        %v2013 = vunpack.c.l.b16 %v294
        %v2014 = vunpack.c.h.b16 %v294
        %v2015 = vunpack.c.l.b16 %v295
        %v2016 = vunpack.c.h.b16 %v295
        %v2017 = vunpack.c.l.b16 %v296
        %v2018 = vunpack.c.h.b16 %v296
        %v2019 = vunpack.c.l.b16 %v297
        %v2020 = vunpack.c.h.b16 %v297
        %v2021 = vunpack.c.l.b16 %v298
        %v2022 = vunpack.c.h.b16 %v298
        %v2023 = vunpack.c.l.b16 %v299
        %v2024 = vunpack.c.h.b16 %v299
        %v2025 = vunpack.c.l.b16 %v300
        %v2026 = vunpack.c.h.b16 %v300
        %v2027 = vunpack.c.l.b16 %v301
        %v2028 = vunpack.c.h.b16 %v301
        %v2029 = vunpack.c.l.b16 %v302
        %v2030 = vunpack.c.h.b16 %v302
        %v2031 = vunpack.c.l.b16 %v303
        %v2032 = vunpack.c.h.b16 %v303
        %v2033 = vunpack.c.l.b16 %v304
        %v2034 = vunpack.c.h.b16 %v304
        %v2035 = vunpack.c.l.b16 %v305
        %v2036 = vunpack.c.h.b16 %v305
        %v2037 = vunpack.c.l.b16 %v306
        %v2038 = vunpack.c.h.b16 %v306
        %v2039 = vunpack.c.l.b16 %v307
        %v2040 = vunpack.c.h.b16 %v307
        %v2041 = vunpack.c.l.b16 %v308
        %v2042 = vunpack.c.h.b16 %v308
        %v2043 = vunpack.c.l.b16 %v309
        %v2044 = vunpack.c.h.b16 %v309
        %v2045 = vunpack.c.l.b16 %v310
        %v2046 = vunpack.c.h.b16 %v310
        %v2047 = vunpack.c.l.b16 %v311
        %v2048 = vunpack.c.h.b16 %v311
        %v2049 = vunpack.c.l.b16 %v312
        %v2050 = vunpack.c.h.b16 %v312
        %v2051 = vunpack.c.l.b16 %v313
        %v2052 = vunpack.c.h.b16 %v313
        %v2053 = vunpack.c.l.b16 %v314
        %v2054 = vunpack.c.h.b16 %v314
        %v2055 = vunpack.c.l.b16 %v315
        %v2056 = vunpack.c.h.b16 %v315
        %v2057 = vunpack.c.l.b16 %v316
        %v2058 = vunpack.c.h.b16 %v316
        %v2059 = vunpack.c.l.b16 %v317
        %v2060 = vunpack.c.h.b16 %v317
        %v2061 = vunpack.c.l.b16 %v318
        %v2062 = vunpack.c.h.b16 %v318
        %v2063 = vunpack.c.l.b16 %v319
        %v2064 = vunpack.c.h.b16 %v319
        %v2065 = vunpack.c.l.b16 %v320
        %v2066 = vunpack.c.h.b16 %v320
        %v2067 = vunpack.c.l.b16 %v321
        %v2068 = vunpack.c.h.b16 %v321
        %v2069 = vunpack.c.l.b16 %v322
        %v2070 = vunpack.c.h.b16 %v322
        %v2071 = vunpack.c.l.b16 %v323
        %v2072 = vunpack.c.h.b16 %v323
        %v2073 = vunpack.c.l.b16 %v324
        %v2074 = vunpack.c.h.b16 %v324
        %v2075 = vunpack.c.l.b16 %v325
        %v2076 = vunpack.c.h.b16 %v325
        %v2077 = vunpack.c.l.b16 %v326
        %v2078 = vunpack.c.h.b16 %v326
        %v2079 = vunpack.c.l.b16 %v327
        %v2080 = vunpack.c.h.b16 %v327
        %v2081 = vunpack.c.l.b16 %v328
        %v2082 = vunpack.c.h.b16 %v328
        %v2083 = vunpack.c.l.b16 %v329
        %v2084 = vunpack.c.h.b16 %v329
        %v2085 = vunpack.c.l.b16 %v330
        %v2086 = vunpack.c.h.b16 %v330
        %v2087 = vunpack.c.l.b16 %v331
        %v2088 = vunpack.c.h.b16 %v331
        %v2089 = vunpack.c.l.b16 %v332
        %v2090 = vunpack.c.h.b16 %v332
        %v2091 = vunpack.c.l.b16 %v333
        %v2092 = vunpack.c.h.b16 %v333
        %v2093 = vunpack.c.l.b16 %v334
        %v2094 = vunpack.c.h.b16 %v334
        %v2095 = vunpack.c.l.b16 %v335
        %v2096 = vunpack.c.h.b16 %v335
        %v2097 = vunpack.c.l.b16 %v336
        %v2098 = vunpack.c.h.b16 %v336
        %v2099 = vunpack.c.l.b16 %v337
        %v2100 = vunpack.c.h.b16 %v337
        %v2101 = vunpack.c.l.b16 %v338
        %v2102 = vunpack.c.h.b16 %v338
        %v2103 = vunpack.c.l.b16 %v339
        %v2104 = vunpack.c.h.b16 %v339
        %v2105 = vunpack.c.l.b16 %v340
        %v2106 = vunpack.c.h.b16 %v340
        %v2107 = vunpack.c.l.b16 %v341
        %v2108 = vunpack.c.h.b16 %v341
        %v2109 = vunpack.c.l.b16 %v342
        %v2110 = vunpack.c.h.b16 %v342
        %v2111 = vunpack.c.l.b16 %v343
        %v2112 = vunpack.c.h.b16 %v343
        %v2113 = vunpack.c.l.b16 %v344
        %v2114 = vunpack.c.h.b16 %v344
        %v2115 = vunpack.c.l.b16 %v345
        %v2116 = vunpack.c.h.b16 %v345
        %v2117 = vunpack.c.l.b16 %v346
        %v2118 = vunpack.c.h.b16 %v346
        %v2119 = vunpack.c.l.b16 %v347
        %v2120 = vunpack.c.h.b16 %v347
        %v2121 = vunpack.c.l.b16 %v348
        %v2122 = vunpack.c.h.b16 %v348
        %v2123 = vunpack.c.l.b16 %v349
        %v2124 = vunpack.c.h.b16 %v349
        %v2125 = vunpack.c.l.b16 %v350
        %v2126 = vunpack.c.h.b16 %v350
        %v2127 = vunpack.c.l.b16 %v351
        %v2128 = vunpack.c.h.b16 %v351
        %v2129 = vunpack.c.l.b16 %v352
        %v2130 = vunpack.c.h.b16 %v352
        %v2131 = vunpack.c.l.b16 %v353
        %v2132 = vunpack.c.h.b16 %v353
        %v2133 = vunpack.c.l.b16 %v354
        %v2134 = vunpack.c.h.b16 %v354
        %v2135 = vunpack.c.l.b16 %v355
        %v2136 = vunpack.c.h.b16 %v355
        %v2137 = vunpack.c.l.b16 %v356
        %v2138 = vunpack.c.h.b16 %v356
        %v2139 = vunpack.c.l.b16 %v357
        %v2140 = vunpack.c.h.b16 %v357
        %v2141 = vunpack.c.l.b16 %v358
        %v2142 = vunpack.c.h.b16 %v358
        %v2143 = vunpack.c.l.b16 %v359
        %v2144 = vunpack.c.h.b16 %v359
        %v2145 = vunpack.c.l.b16 %v360
        %v2146 = vunpack.c.h.b16 %v360
        %v2147 = vunpack.c.l.b16 %v361
        %v2148 = vunpack.c.h.b16 %v361
        %v2149 = vunpack.c.l.b16 %v362
        %v2150 = vunpack.c.h.b16 %v362
        %v2151 = vunpack.c.l.b16 %v363
        %v2152 = vunpack.c.h.b16 %v363
        %v2153 = vunpack.c.l.b16 %v364
        %v2154 = vunpack.c.h.b16 %v364
        %v2155 = vunpack.c.l.b16 %v365
        %v2156 = vunpack.c.h.b16 %v365
        %v2157 = vunpack.c.l.b16 %v366
        %v2158 = vunpack.c.h.b16 %v366
        %v2159 = vunpack.c.l.b16 %v367
        %v2160 = vunpack.c.h.b16 %v367
        %v2161 = vunpack.c.l.b16 %v368
        %v2162 = vunpack.c.h.b16 %v368
        %v2163 = vunpack.c.l.b16 %v369
        %v2164 = vunpack.c.h.b16 %v369
        %v2165 = vunpack.c.l.b16 %v370
        %v2166 = vunpack.c.h.b16 %v370
        %v2167 = vunpack.c.l.b16 %v371
        %v2168 = vunpack.c.h.b16 %v371
        %v2169 = vunpack.c.l.b16 %v372
        %v2170 = vunpack.c.h.b16 %v372
        %v2171 = vunpack.c.l.b16 %v373
        %v2172 = vunpack.c.h.b16 %v373
        %v2173 = vunpack.c.l.b16 %v374
        %v2174 = vunpack.c.h.b16 %v374
        %v2175 = vunpack.c.l.b16 %v375
        %v2176 = vunpack.c.h.b16 %v375
        %v2177 = vunpack.c.l.b16 %v376
        %v2178 = vunpack.c.h.b16 %v376
        %v2179 = vunpack.c.l.b16 %v377
        %v2180 = vunpack.c.h.b16 %v377
        %v2181 = vunpack.c.l.b16 %v378
        %v2182 = vunpack.c.h.b16 %v378
        %v2183 = vunpack.c.l.b16 %v379
        %v2184 = vunpack.c.h.b16 %v379
        %v2185 = vunpack.c.l.b16 %v380
        %v2186 = vunpack.c.h.b16 %v380
        %v2187 = vunpack.c.l.b16 %v381
        %v2188 = vunpack.c.h.b16 %v381
        %v2189 = vunpack.c.l.b16 %v382
        %v2190 = vunpack.c.h.b16 %v382
        %v2191 = vunpack.c.l.b16 %v383
        %v2192 = vunpack.c.h.b16 %v383
        %v2193 = vunpack.c.l.b16 %v384
        %v2194 = vunpack.c.h.b16 %v384
        %v2195 = vunpack.c.l.b16 %v385
        %v2196 = vunpack.c.h.b16 %v385
        %v2197 = vunpack.c.l.b16 %v386
        %v2198 = vunpack.c.h.b16 %v386
        %v2199 = vunpack.c.l.b16 %v387
        %v2200 = vunpack.c.h.b16 %v387
        %v2201 = vunpack.c.l.b16 %v388
        %v2202 = vunpack.c.h.b16 %v388
        %v2203 = vunpack.c.l.b16 %v389
        %v2204 = vunpack.c.h.b16 %v389
        %v2205 = vunpack.c.l.b16 %v390
        %v2206 = vunpack.c.h.b16 %v390
        %v2207 = vunpack.c.l.b16 %v391
        %v2208 = vunpack.c.h.b16 %v391
        %v2209 = vunpack.c.l.b16 %v392
        %v2210 = vunpack.c.h.b16 %v392
        %v2211 = vunpack.c.l.b16 %v393
        %v2212 = vunpack.c.h.b16 %v393
        %v2213 = vunpack.c.l.b16 %v394
        %v2214 = vunpack.c.h.b16 %v394
        %v2215 = vunpack.c.l.b16 %v395
        %v2216 = vunpack.c.h.b16 %v395
        %v2217 = vunpack.c.l.b16 %v396
        %v2218 = vunpack.c.h.b16 %v396
        %v2219 = vunpack.c.l.b16 %v397
        %v2220 = vunpack.c.h.b16 %v397
        %v2221 = vunpack.c.l.b16 %v398
        %v2222 = vunpack.c.h.b16 %v398
        %v2223 = vunpack.c.l.b16 %v399
        %v2224 = vunpack.c.h.b16 %v399
        %v2225 = vunpack.c.l.b16 %v400
        %v2226 = vunpack.c.h.b16 %v400
        %v2227 = vunpack.c.l.b16 %v401
        %v2228 = vunpack.c.h.b16 %v401
        %v2229 = vunpack.c.l.b16 %v402
        %v2230 = vunpack.c.h.b16 %v402
        %v2231 = vunpack.c.l.b16 %v403
        %v2232 = vunpack.c.h.b16 %v403
        %v2233 = vunpack.c.l.b16 %v404
        %v2234 = vunpack.c.h.b16 %v404
        %v2235 = vunpack.c.l.b16 %v405
        %v2236 = vunpack.c.h.b16 %v405
        %v2237 = vunpack.c.l.b16 %v406
        %v2238 = vunpack.c.h.b16 %v406
        %v2239 = vunpack.c.l.b16 %v407
        %v2240 = vunpack.c.h.b16 %v407
        %v2241 = vunpack.c.l.b16 %v408
        %v2242 = vunpack.c.h.b16 %v408
        %v2243 = vunpack.c.l.b16 %v409
        %v2244 = vunpack.c.h.b16 %v409
        %v2245 = vunpack.c.l.b16 %v410
        %v2246 = vunpack.c.h.b16 %v410
        %v2247 = vunpack.c.l.b16 %v411
        %v2248 = vunpack.c.h.b16 %v411
        %v2249 = vunpack.c.l.b16 %v412
        %v2250 = vunpack.c.h.b16 %v412
        %v2251 = vunpack.c.l.b16 %v413
        %v2252 = vunpack.c.h.b16 %v413
        %v2253 = vunpack.c.l.b16 %v414
        %v2254 = vunpack.c.h.b16 %v414
        %v2255 = vunpack.c.l.b16 %v415
        %v2256 = vunpack.c.h.b16 %v415
        %v2257 = vunpack.c.l.b16 %v416
        %v2258 = vunpack.c.h.b16 %v416
        %v2259 = vunpack.c.l.b16 %v417
        %v2260 = vunpack.c.h.b16 %v417
        %v2261 = vunpack.c.l.b16 %v418
        %v2262 = vunpack.c.h.b16 %v418
        %v2263 = vunpack.c.l.b16 %v419
        %v2264 = vunpack.c.h.b16 %v419
        %v2265 = vunpack.c.l.b16 %v420
        %v2266 = vunpack.c.h.b16 %v420
        %v2267 = vunpack.c.l.b16 %v421
        %v2268 = vunpack.c.h.b16 %v421
        %v2269 = vunpack.c.l.b16 %v422
        %v2270 = vunpack.c.h.b16 %v422
        %v2271 = vunpack.c.l.b16 %v423
        %v2272 = vunpack.c.h.b16 %v423
        %v2273 = vunpack.c.l.b16 %v424
        %v2274 = vunpack.c.h.b16 %v424
        %v2275 = vunpack.c.l.b16 %v425
        %v2276 = vunpack.c.h.b16 %v425
        %v2277 = vunpack.c.l.b16 %v426
        %v2278 = vunpack.c.h.b16 %v426
        %v2279 = vunpack.c.l.b16 %v427
        %v2280 = vunpack.c.h.b16 %v427
        %v2281 = vunpack.c.l.b16 %v428
        %v2282 = vunpack.c.h.b16 %v428
        %v2283 = vunpack.c.l.b16 %v429
        %v2284 = vunpack.c.h.b16 %v429
        %v2285 = vunpack.c.l.b16 %v430
        %v2286 = vunpack.c.h.b16 %v430
        %v2287 = vunpack.c.l.b16 %v431
        %v2288 = vunpack.c.h.b16 %v431
        %v2289 = vunpack.c.l.b16 %v432
        %v2290 = vunpack.c.h.b16 %v432
        %v2291 = vunpack.c.l.b16 %v433
        %v2292 = vunpack.c.h.b16 %v433
        %v2293 = vunpack.c.l.b16 %v434
        %v2294 = vunpack.c.h.b16 %v434
        %v2295 = vunpack.c.l.b16 %v435
        %v2296 = vunpack.c.h.b16 %v435
        %v2297 = vunpack.c.l.b16 %v436
        %v2298 = vunpack.c.h.b16 %v436
        %v2299 = vunpack.c.l.b16 %v437
        %v2300 = vunpack.c.h.b16 %v437
        %v2301 = vunpack.c.l.b16 %v438
        %v2302 = vunpack.c.h.b16 %v438
        %v2303 = vunpack.c.l.b16 %v439
        %v2304 = vunpack.c.h.b16 %v439
        %v2305 = vunpack.c.l.b16 %v440
        %v2306 = vunpack.c.h.b16 %v440
        %v2307 = vunpack.c.l.b16 %v441
        %v2308 = vunpack.c.h.b16 %v441
        %v2309 = vunpack.c.l.b16 %v442
        %v2310 = vunpack.c.h.b16 %v442
        %v2311 = vunpack.c.l.b16 %v443
        %v2312 = vunpack.c.h.b16 %v443
        %v2313 = vunpack.c.l.b16 %v444
        %v2314 = vunpack.c.h.b16 %v444
        %v2315 = vunpack.c.l.b16 %v445
        %v2316 = vunpack.c.h.b16 %v445
        %v2317 = vunpack.c.l.b16 %v446
        %v2318 = vunpack.c.h.b16 %v446
        %v2319 = vunpack.c.l.b16 %v447
        %v2320 = vunpack.c.h.b16 %v447
        %v2321 = vunpack.c.l.b16 %v448
        %v2322 = vunpack.c.h.b16 %v448
        %v2323 = vunpack.c.l.b16 %v449
        %v2324 = vunpack.c.h.b16 %v449
        %v2325 = vunpack.c.l.b16 %v450
        %v2326 = vunpack.c.h.b16 %v450
        %v2327 = vunpack.c.l.b16 %v451
        %v2328 = vunpack.c.h.b16 %v451
        %v2329 = vunpack.c.l.b16 %v452
        %v2330 = vunpack.c.h.b16 %v452
        %v2331 = vunpack.c.l.b16 %v453
        %v2332 = vunpack.c.h.b16 %v453
        %v2333 = vunpack.c.l.b16 %v454
        %v2334 = vunpack.c.h.b16 %v454
        %v2335 = vunpack.c.l.b16 %v455
        %v2336 = vunpack.c.h.b16 %v455
        %v2337 = vunpack.c.l.b16 %v456
        %v2338 = vunpack.c.h.b16 %v456
        %v2339 = vunpack.c.l.b16 %v457
        %v2340 = vunpack.c.h.b16 %v457
        %v2341 = vunpack.c.l.b16 %v458
        %v2342 = vunpack.c.h.b16 %v458
        %v2343 = vunpack.c.l.b16 %v459
        %v2344 = vunpack.c.h.b16 %v459
        %v2345 = vunpack.c.l.b16 %v460
        %v2346 = vunpack.c.h.b16 %v460
        %v2347 = vunpack.c.l.b16 %v461
        %v2348 = vunpack.c.h.b16 %v461
        %v2349 = vunpack.c.l.b16 %v462
        %v2350 = vunpack.c.h.b16 %v462
        %v2351 = vunpack.c.l.b16 %v463
        %v2352 = vunpack.c.h.b16 %v463
        %v2353 = vunpack.c.l.b16 %v464
        %v2354 = vunpack.c.h.b16 %v464
        %v2355 = vunpack.c.l.b16 %v465
        %v2356 = vunpack.c.h.b16 %v465
        %v2357 = vunpack.c.l.b16 %v466
        %v2358 = vunpack.c.h.b16 %v466
        %v2359 = vunpack.c.l.b16 %v467
        %v2360 = vunpack.c.h.b16 %v467
        %v2361 = vunpack.c.l.b16 %v468
        %v2362 = vunpack.c.h.b16 %v468
        %v2363 = vunpack.c.l.b16 %v469
        %v2364 = vunpack.c.h.b16 %v469
        %v2365 = vunpack.c.l.b16 %v470
        %v2366 = vunpack.c.h.b16 %v470
        %v2367 = vunpack.c.l.b16 %v471
        %v2368 = vunpack.c.h.b16 %v471
        %v2369 = vunpack.c.l.b16 %v472
        %v2370 = vunpack.c.h.b16 %v472
        %v2371 = vunpack.c.l.b16 %v473
        %v2372 = vunpack.c.h.b16 %v473
        %v2373 = vunpack.c.l.b16 %v474
        %v2374 = vunpack.c.h.b16 %v474
        %v2375 = vunpack.c.l.b16 %v475
        %v2376 = vunpack.c.h.b16 %v475
        %v2377 = vunpack.c.l.b16 %v476
        %v2378 = vunpack.c.h.b16 %v476
        %v2379 = vunpack.c.l.b16 %v477
        %v2380 = vunpack.c.h.b16 %v477
        %v2381 = vunpack.c.l.b16 %v478
        %v2382 = vunpack.c.h.b16 %v478
        %v2383 = vunpack.c.l.b16 %v479
        %v2384 = vunpack.c.h.b16 %v479
        %v2385 = vunpack.c.l.b16 %v480
        %v2386 = vunpack.c.h.b16 %v480
        %v2387 = vunpack.c.l.b16 %v481
        %v2388 = vunpack.c.h.b16 %v481
        %v2389 = vunpack.c.l.b16 %v482
        %v2390 = vunpack.c.h.b16 %v482
        %v2391 = vunpack.c.l.b16 %v483
        %v2392 = vunpack.c.h.b16 %v483
        %v2393 = vunpack.c.l.b16 %v484
        %v2394 = vunpack.c.h.b16 %v484
        %v2395 = vunpack.c.l.b16 %v485
        %v2396 = vunpack.c.h.b16 %v485
        %v2397 = vunpack.c.l.b16 %v486
        %v2398 = vunpack.c.h.b16 %v486
        %v2399 = vunpack.c.l.b16 %v487
        %v2400 = vunpack.c.h.b16 %v487
        %v2401 = vunpack.c.l.b16 %v488
        %v2402 = vunpack.c.h.b16 %v488
        %v2403 = vunpack.c.l.b16 %v489
        %v2404 = vunpack.c.h.b16 %v489
        %v2405 = vunpack.c.l.b16 %v490
        %v2406 = vunpack.c.h.b16 %v490
        %v2407 = vunpack.c.l.b16 %v491
        %v2408 = vunpack.c.h.b16 %v491
        %v2409 = vunpack.c.l.b16 %v492
        %v2410 = vunpack.c.h.b16 %v492
        %v2411 = vunpack.c.l.b16 %v493
        %v2412 = vunpack.c.h.b16 %v493
        %v2413 = vunpack.c.l.b16 %v494
        %v2414 = vunpack.c.h.b16 %v494
        %v2415 = vunpack.c.l.b16 %v495
        %v2416 = vunpack.c.h.b16 %v495
        %v2417 = vunpack.c.l.b16 %v496
        %v2418 = vunpack.c.h.b16 %v496
        %v2419 = vunpack.c.l.b16 %v497
        %v2420 = vunpack.c.h.b16 %v497
        %v2421 = vunpack.c.l.b16 %v498
        %v2422 = vunpack.c.h.b16 %v498
        %v2423 = vunpack.c.l.b16 %v499
        %v2424 = vunpack.c.h.b16 %v499
        %v2425 = vunpack.c.l.b16 %v500
        %v2426 = vunpack.c.h.b16 %v500
        %v2427 = vunpack.c.l.b16 %v501
        %v2428 = vunpack.c.h.b16 %v501
        %v2429 = vunpack.c.l.b16 %v502
        %v2430 = vunpack.c.h.b16 %v502
        %v2431 = vunpack.c.l.b16 %v503
        %v2432 = vunpack.c.h.b16 %v503
        %v2433 = vunpack.c.l.b16 %v504
        %v2434 = vunpack.c.h.b16 %v504
        %v2435 = vunpack.c.l.b16 %v505
        %v2436 = vunpack.c.h.b16 %v505
        %v2437 = vunpack.c.l.b16 %v506
        %v2438 = vunpack.c.h.b16 %v506
        %v2439 = vunpack.c.l.b16 %v507
        %v2440 = vunpack.c.h.b16 %v507
        %v2441 = vunpack.c.l.b16 %v508
        %v2442 = vunpack.c.h.b16 %v508
        %v2443 = vunpack.c.l.b16 %v509
        %v2444 = vunpack.c.h.b16 %v509
        %v2445 = vunpack.c.l.b16 %v510
        %v2446 = vunpack.c.h.b16 %v510
        %v2447 = vunpack.c.l.b16 %v511
        %v2448 = vunpack.c.h.b16 %v511
        %v2449 = vunpack.c.l.b16 %v512
        %v2450 = vunpack.c.h.b16 %v512
        %v2451 = vunpack.c.l.b16 %v513
        %v2452 = vunpack.c.h.b16 %v513
        %v2453 = vunpack.c.l.b16 %v514
        %v2454 = vunpack.c.h.b16 %v514
        %v2455 = vunpack.c.l.b16 %v515
        %v2456 = vunpack.c.h.b16 %v515
        %v2457 = vunpack.c.l.b16 %v516
        %v2458 = vunpack.c.h.b16 %v516
        %v2459 = vunpack.c.l.b16 %v517
        %v2460 = vunpack.c.h.b16 %v517
        %v2461 = vunpack.c.l.b16 %v518
        %v2462 = vunpack.c.h.b16 %v518
        %v2463 = vunpack.c.l.b16 %v519
        %v2464 = vunpack.c.h.b16 %v519
        %v2465 = vunpack.c.l.b16 %v520
        %v2466 = vunpack.c.h.b16 %v520
        %v2467 = vunpack.c.l.b16 %v521
        %v2468 = vunpack.c.h.b16 %v521
        %v2469 = vunpack.c.l.b16 %v522
        %v2470 = vunpack.c.h.b16 %v522
        %v2471 = vunpack.c.l.b16 %v523
        %v2472 = vunpack.c.h.b16 %v523
        %v2473 = vunpack.c.l.b16 %v524
        %v2474 = vunpack.c.h.b16 %v524
        %v2475 = vunpack.c.l.b16 %v525
        %v2476 = vunpack.c.h.b16 %v525
        %v2477 = vunpack.c.l.b16 %v526
        %v2478 = vunpack.c.h.b16 %v526
        %v2479 = vunpack.c.l.b16 %v527
        %v2480 = vunpack.c.h.b16 %v527
        %v2481 = vunpack.c.l.b16 %v528
        %v2482 = vunpack.c.h.b16 %v528
        %v2483 = vunpack.c.l.b16 %v529
        %v2484 = vunpack.c.h.b16 %v529
        %v2485 = vunpack.c.l.b16 %v530
        %v2486 = vunpack.c.h.b16 %v530
        %v2487 = vunpack.c.l.b16 %v531
        %v2488 = vunpack.c.h.b16 %v531
        %v2489 = vunpack.c.l.b16 %v532
        %v2490 = vunpack.c.h.b16 %v532
        %v2491 = vunpack.c.l.b16 %v533
        %v2492 = vunpack.c.h.b16 %v533
        %v2493 = vunpack.c.l.b16 %v534
        %v2494 = vunpack.c.h.b16 %v534
        %v2495 = vunpack.c.l.b16 %v535
        %v2496 = vunpack.c.h.b16 %v535
        %v2497 = vunpack.c.l.b16 %v536
        %v2498 = vunpack.c.h.b16 %v536
        %v2499 = vunpack.c.l.b16 %v537
        %v2500 = vunpack.c.h.b16 %v537
        %v2501 = vunpack.c.l.b16 %v538
        %v2502 = vunpack.c.h.b16 %v538
        %v2503 = vunpack.c.l.b16 %v539
        %v2504 = vunpack.c.h.b16 %v539
        %v2505 = vunpack.c.l.b16 %v540
        %v2506 = vunpack.c.h.b16 %v540
        %v2507 = vunpack.c.l.b16 %v541
        %v2508 = vunpack.c.h.b16 %v541
        %v2509 = vunpack.c.l.b16 %v542
        %v2510 = vunpack.c.h.b16 %v542
        %v2511 = vunpack.c.l.b16 %v543
        %v2512 = vunpack.c.h.b16 %v543
        %v2513 = vunpack.c.l.b16 %v544
        %v2514 = vunpack.c.h.b16 %v544
        %v2515 = vunpack.c.l.b16 %v545
        %v2516 = vunpack.c.h.b16 %v545
        %v2517 = vunpack.c.l.b16 %v546
        %v2518 = vunpack.c.h.b16 %v546
        %v2519 = vunpack.c.l.b16 %v547
        %v2520 = vunpack.c.h.b16 %v547
        %v2521 = vunpack.c.l.b16 %v548
        %v2522 = vunpack.c.h.b16 %v548
        %v2523 = vunpack.c.l.b16 %v549
        %v2524 = vunpack.c.h.b16 %v549
        %v2525 = vunpack.c.l.b16 %v550
        %v2526 = vunpack.c.h.b16 %v550
        %v2527 = vunpack.c.l.b16 %v551
        %v2528 = vunpack.c.h.b16 %v551
        %v2529 = vunpack.c.l.b16 %v552
        %v2530 = vunpack.c.h.b16 %v552
        %v2531 = vunpack.c.l.b16 %v553
        %v2532 = vunpack.c.h.b16 %v553
        %v2533 = vunpack.c.l.b16 %v554
        %v2534 = vunpack.c.h.b16 %v554
        %v2535 = vunpack.c.l.b16 %v555
        %v2536 = vunpack.c.h.b16 %v555
        %v2537 = vunpack.c.l.b16 %v556
        %v2538 = vunpack.c.h.b16 %v556
        %v2539 = vunpack.c.l.b16 %v557
        %v2540 = vunpack.c.h.b16 %v557
        %v2541 = vunpack.c.l.b16 %v558
        %v2542 = vunpack.c.h.b16 %v558
        %v2543 = vunpack.c.l.b16 %v559
        %v2544 = vunpack.c.h.b16 %v559
        %v2545 = vunpack.c.l.b16 %v560
        %v2546 = vunpack.c.h.b16 %v560
        %v2547 = vunpack.c.l.b16 %v561
        %v2548 = vunpack.c.h.b16 %v561
        %v2549 = vunpack.c.l.b16 %v562
        %v2550 = vunpack.c.h.b16 %v562
        %v2551 = vunpack.c.l.b16 %v563
        %v2552 = vunpack.c.h.b16 %v563
        %v2553 = vunpack.c.l.b16 %v564
        %v2554 = vunpack.c.h.b16 %v564
        %v2555 = vunpack.c.l.b16 %v565
        %v2556 = vunpack.c.h.b16 %v565
        %v2557 = vunpack.c.l.b16 %v566
        %v2558 = vunpack.c.h.b16 %v566
        %v2559 = vunpack.c.l.b16 %v567
        %v2560 = vunpack.c.h.b16 %v567
        %v2561 = vunpack.c.l.b16 %v568
        %v2562 = vunpack.c.h.b16 %v568
        %v2563 = vunpack.c.l.b16 %v569
        %v2564 = vunpack.c.h.b16 %v569
        %v2565 = vunpack.c.l.b16 %v570
        %v2566 = vunpack.c.h.b16 %v570
        %v2567 = vunpack.c.l.b16 %v571
        %v2568 = vunpack.c.h.b16 %v571
        %v2569 = vunpack.c.l.b16 %v572
        %v2570 = vunpack.c.h.b16 %v572
        %v2571 = vunpack.c.l.b16 %v573
        %v2572 = vunpack.c.h.b16 %v573
        %v2573 = vunpack.c.l.b16 %v574
        %v2574 = vunpack.c.h.b16 %v574
        %v2575 = vunpack.c.l.b16 %v575
        %v2576 = vunpack.c.h.b16 %v575
        %v2577 = vunpack.c.l.b16 %v576
        %v2578 = vunpack.c.h.b16 %v576
        %v2579 = vunpack.c.l.b16 %v577
        %v2580 = vunpack.c.h.b16 %v577
        %v2581 = vunpack.c.l.b16 %v578
        %v2582 = vunpack.c.h.b16 %v578
        %v2583 = vunpack.c.l.b16 %v579
        %v2584 = vunpack.c.h.b16 %v579
        %v2585 = vunpack.c.l.b16 %v580
        %v2586 = vunpack.c.h.b16 %v580
        %v2587 = vunpack.c.l.b16 %v581
        %v2588 = vunpack.c.h.b16 %v581
        %v2589 = vunpack.c.l.b16 %v582
        %v2590 = vunpack.c.h.b16 %v582
        %v2591 = vunpack.c.l.b16 %v583
        %v2592 = vunpack.c.h.b16 %v583
        %v2593 = vunpack.c.l.b16 %v584
        %v2594 = vunpack.c.h.b16 %v584
        %v2595 = vunpack.c.l.b16 %v585
        %v2596 = vunpack.c.h.b16 %v585
        %v2597 = vunpack.c.l.b16 %v586
        %v2598 = vunpack.c.h.b16 %v586
        %v2599 = vunpack.c.l.b16 %v587
        %v2600 = vunpack.c.h.b16 %v587
        %v2601 = vunpack.c.l.b16 %v588
        %v2602 = vunpack.c.h.b16 %v588
        %v2603 = vunpack.c.l.b16 %v589
        %v2604 = vunpack.c.h.b16 %v589
        %v2605 = vunpack.c.l.b16 %v590
        %v2606 = vunpack.c.h.b16 %v590
        %v2607 = vunpack.c.l.b16 %v591
        %v2608 = vunpack.c.h.b16 %v591
        %v2609 = vunpack.c.l.b16 %v592
        %v2610 = vunpack.c.h.b16 %v592
        %v2611 = vunpack.c.l.b16 %v593
        %v2612 = vunpack.c.h.b16 %v593
        %v2613 = vunpack.c.l.b16 %v594
        %v2614 = vunpack.c.h.b16 %v594
        %v2615 = vunpack.c.l.b16 %v595
        %v2616 = vunpack.c.h.b16 %v595
        %v2617 = vunpack.c.l.b16 %v596
        %v2618 = vunpack.c.h.b16 %v596
        %v2619 = vunpack.c.l.b16 %v597
        %v2620 = vunpack.c.h.b16 %v597
        %v2621 = vunpack.c.l.b16 %v598
        %v2622 = vunpack.c.h.b16 %v598
        %v2623 = vunpack.c.l.b16 %v599
        %v2624 = vunpack.c.h.b16 %v599
        %v2625 = vunpack.c.l.b16 %v600
        %v2626 = vunpack.c.h.b16 %v600
        %v2627 = vunpack.c.l.b16 %v601
        %v2628 = vunpack.c.h.b16 %v601
        %v2629 = vunpack.c.l.b16 %v602
        %v2630 = vunpack.c.h.b16 %v602
        %v2631 = vunpack.c.l.b16 %v603
        %v2632 = vunpack.c.h.b16 %v603
        %v2633 = vunpack.c.l.b16 %v604
        %v2634 = vunpack.c.h.b16 %v604
        %v2635 = vunpack.c.l.b16 %v605
        %v2636 = vunpack.c.h.b16 %v605
        %v2637 = vunpack.c.l.b16 %v606
        %v2638 = vunpack.c.h.b16 %v606
        %v2639 = vunpack.c.l.b16 %v607
        %v2640 = vunpack.c.h.b16 %v607
        %v2641 = vunpack.c.l.b16 %v608
        %v2642 = vunpack.c.h.b16 %v608
        %v2643 = vunpack.c.l.b16 %v609
        %v2644 = vunpack.c.h.b16 %v609
        %v2645 = vunpack.c.l.b16 %v610
        %v2646 = vunpack.c.h.b16 %v610
        %v2647 = vunpack.c.l.b16 %v611
        %v2648 = vunpack.c.h.b16 %v611
        %v2649 = vunpack.c.l.b16 %v612
        %v2650 = vunpack.c.h.b16 %v612
        %v2651 = vunpack.c.l.b16 %v613
        %v2652 = vunpack.c.h.b16 %v613
        %v2653 = vunpack.c.l.b16 %v614
        %v2654 = vunpack.c.h.b16 %v614
        %v2655 = vunpack.c.l.b16 %v615
        %v2656 = vunpack.c.h.b16 %v615
        %v2657 = vunpack.c.l.b16 %v616
        %v2658 = vunpack.c.h.b16 %v616
        %v2659 = vunpack.c.l.b16 %v617
        %v2660 = vunpack.c.h.b16 %v617
        %v2661 = vunpack.c.l.b16 %v618
        %v2662 = vunpack.c.h.b16 %v618
        %v2663 = vunpack.c.l.b16 %v619
        %v2664 = vunpack.c.h.b16 %v619
        %v2665 = vunpack.c.l.b16 %v620
        %v2666 = vunpack.c.h.b16 %v620
        %v2667 = vunpack.c.l.b16 %v621
        %v2668 = vunpack.c.h.b16 %v621
        %v2669 = vunpack.c.l.b16 %v622
        %v2670 = vunpack.c.h.b16 %v622
        %v2671 = vunpack.c.l.b16 %v623
        %v2672 = vunpack.c.h.b16 %v623
        %v2673 = vunpack.c.l.b16 %v624
        %v2674 = vunpack.c.h.b16 %v624
        %v2675 = vunpack.c.l.b16 %v625
        %v2676 = vunpack.c.h.b16 %v625
        %v2677 = vunpack.c.l.b16 %v626
        %v2678 = vunpack.c.h.b16 %v626
        %v2679 = vunpack.c.l.b16 %v627
        %v2680 = vunpack.c.h.b16 %v627
        %v2681 = vunpack.c.l.b16 %v628
        %v2682 = vunpack.c.h.b16 %v628
        %v2683 = vunpack.c.l.b16 %v629
        %v2684 = vunpack.c.h.b16 %v629
        %v2685 = vunpack.c.l.b16 %v630
        %v2686 = vunpack.c.h.b16 %v630
        %v2687 = vunpack.c.l.b16 %v631
        %v2688 = vunpack.c.h.b16 %v631
        %v2689 = vunpack.c.l.b16 %v632
        %v2690 = vunpack.c.h.b16 %v632
        %v2691 = vunpack.c.l.b16 %v633
        %v2692 = vunpack.c.h.b16 %v633
        %v2693 = vunpack.c.l.b16 %v634
        %v2694 = vunpack.c.h.b16 %v634
        %v2695 = vunpack.c.l.b16 %v635
        %v2696 = vunpack.c.h.b16 %v635
        %v2697 = vunpack.c.l.b16 %v636
        %v2698 = vunpack.c.h.b16 %v636
        %v2699 = vunpack.c.l.b16 %v637
        %v2700 = vunpack.c.h.b16 %v637
        %v2701 = vunpack.c.l.b16 %v638
        %v2702 = vunpack.c.h.b16 %v638
        %v2703 = vunpack.c.l.b16 %v639
        %v2704 = vunpack.c.h.b16 %v639
        %v2705 = vunpack.c.l.b16 %v640
        %v2706 = vunpack.c.h.b16 %v640
        %v2707 = vunpack.c.l.b16 %v641
        %v2708 = vunpack.c.h.b16 %v641
        %v2709 = vunpack.c.l.b16 %v642
        %v2710 = vunpack.c.h.b16 %v642
        %v2711 = vunpack.c.l.b16 %v643
        %v2712 = vunpack.c.h.b16 %v643
        %v2713 = vunpack.c.l.b16 %v644
        %v2714 = vunpack.c.h.b16 %v644
        %v2715 = vunpack.c.l.b16 %v645
        %v2716 = vunpack.c.h.b16 %v645
        %v2717 = vunpack.c.l.b16 %v646
        %v2718 = vunpack.c.h.b16 %v646
        %v2719 = vunpack.c.l.b16 %v647
        %v2720 = vunpack.c.h.b16 %v647
        %v2721 = vunpack.c.l.b16 %v648
        %v2722 = vunpack.c.h.b16 %v648
        %v2723 = vunpack.c.l.b16 %v649
        %v2724 = vunpack.c.h.b16 %v649
        %v2725 = vunpack.c.l.b16 %v650
        %v2726 = vunpack.c.h.b16 %v650
        %v2727 = vunpack.c.l.b16 %v651
        %v2728 = vunpack.c.h.b16 %v651
        %v2729 = vunpack.c.l.b16 %v652
        %v2730 = vunpack.c.h.b16 %v652
        %v2731 = vunpack.c.l.b16 %v653
        %v2732 = vunpack.c.h.b16 %v653
        %v2733 = vunpack.c.l.b16 %v654
        %v2734 = vunpack.c.h.b16 %v654
        %v2735 = vunpack.c.l.b16 %v655
        %v2736 = vunpack.c.h.b16 %v655
        %v2737 = vunpack.c.l.b16 %v656
        %v2738 = vunpack.c.h.b16 %v656
        %v2739 = vunpack.c.l.b16 %v657
        %v2740 = vunpack.c.h.b16 %v657
        %v2741 = vunpack.c.l.b16 %v658
        %v2742 = vunpack.c.h.b16 %v658
        %v2743 = vunpack.c.l.b16 %v659
        %v2744 = vunpack.c.h.b16 %v659
        %v2745 = vunpack.c.l.b16 %v660
        %v2746 = vunpack.c.h.b16 %v660
        %v2747 = vunpack.c.l.b16 %v661
        %v2748 = vunpack.c.h.b16 %v661
        %v2749 = vunpack.c.l.b16 %v662
        %v2750 = vunpack.c.h.b16 %v662
        %v2751 = vunpack.c.l.b16 %v663
        %v2752 = vunpack.c.h.b16 %v663
        %v2753 = vunpack.c.l.b16 %v664
        %v2754 = vunpack.c.h.b16 %v664
        %v2755 = vunpack.c.l.b16 %v665
        %v2756 = vunpack.c.h.b16 %v665
        %v2757 = vunpack.c.l.b16 %v666
        %v2758 = vunpack.c.h.b16 %v666
        %v2759 = vunpack.c.l.b16 %v667
        %v2760 = vunpack.c.h.b16 %v667
        %v2761 = vunpack.c.l.b16 %v668
        %v2762 = vunpack.c.h.b16 %v668
        %v2763 = vunpack.c.l.b16 %v669
        %v2764 = vunpack.c.h.b16 %v669
        %v2765 = vunpack.c.l.b16 %v670
        %v2766 = vunpack.c.h.b16 %v670
        %v2767 = vunpack.c.l.b16 %v671
        %v2768 = vunpack.c.h.b16 %v671
        %v2769 = vunpack.c.l.b16 %v672
        %v2770 = vunpack.c.h.b16 %v672
        %v2771 = vunpack.c.l.b16 %v673
        %v2772 = vunpack.c.h.b16 %v673
        %v2773 = vunpack.c.l.b16 %v674
        %v2774 = vunpack.c.h.b16 %v674
        %v2775 = vunpack.c.l.b16 %v675
        %v2776 = vunpack.c.h.b16 %v675
        %v2777 = vunpack.c.l.b16 %v676
        %v2778 = vunpack.c.h.b16 %v676
        %v2779 = vunpack.c.l.b16 %v677
        %v2780 = vunpack.c.h.b16 %v677
        %v2781 = vunpack.c.l.b16 %v678
        %v2782 = vunpack.c.h.b16 %v678
        %v2783 = vunpack.c.l.b16 %v679
        %v2784 = vunpack.c.h.b16 %v679
        %v2785 = vunpack.c.l.b16 %v680
        %v2786 = vunpack.c.h.b16 %v680
        %v2787 = vunpack.c.l.b16 %v681
        %v2788 = vunpack.c.h.b16 %v681
        %v2789 = vunpack.c.l.b16 %v682
        %v2790 = vunpack.c.h.b16 %v682
        %v2791 = vunpack.c.l.b16 %v683
        %v2792 = vunpack.c.h.b16 %v683
        %v2793 = vunpack.c.l.b16 %v684
        %v2794 = vunpack.c.h.b16 %v684
        %v2795 = vunpack.c.l.b16 %v685
        %v2796 = vunpack.c.h.b16 %v685
        %v2797 = vunpack.c.l.b16 %v686
        %v2798 = vunpack.c.h.b16 %v686
        %v2799 = vunpack.c.l.b16 %v687
        %v2800 = vunpack.c.h.b16 %v687
        %v2801 = vunpack.c.l.b16 %v688
        %v2802 = vunpack.c.h.b16 %v688
        %v2803 = vunpack.c.l.b16 %v689
        %v2804 = vunpack.c.h.b16 %v689
        %v2805 = vunpack.c.l.b16 %v690
        %v2806 = vunpack.c.h.b16 %v690
        %v2807 = vunpack.c.l.b16 %v691
        %v2808 = vunpack.c.h.b16 %v691
        %v2809 = vunpack.c.l.b16 %v692
        %v2810 = vunpack.c.h.b16 %v692
        %v2811 = vunpack.c.l.b16 %v693
        %v2812 = vunpack.c.h.b16 %v693
        %v2813 = vunpack.c.l.b16 %v694
        %v2814 = vunpack.c.h.b16 %v694
        %v2815 = vunpack.c.l.b16 %v695
        %v2816 = vunpack.c.h.b16 %v695
        %v2817 = vunpack.c.l.b16 %v696
        %v2818 = vunpack.c.h.b16 %v696
        %v2819 = vunpack.c.l.b16 %v697
        %v2820 = vunpack.c.h.b16 %v697
        %v2821 = vunpack.c.l.b16 %v698
        %v2822 = vunpack.c.h.b16 %v698
        %v2823 = vunpack.c.l.b16 %v699
        %v2824 = vunpack.c.h.b16 %v699
        %v2825 = vunpack.c.l.b16 %v700
        %v2826 = vunpack.c.h.b16 %v700
        %v2827 = vunpack.c.l.b16 %v701
        %v2828 = vunpack.c.h.b16 %v701
        %v2829 = vunpack.c.l.b16 %v702
        %v2830 = vunpack.c.h.b16 %v702
        %v2831 = vunpack.c.l.b16 %v703
        %v2832 = vunpack.c.h.b16 %v703
        %v2833 = vunpack.c.l.b16 %v704
        %v2834 = vunpack.c.h.b16 %v704
        %v2835 = vunpack.c.l.b16 %v705
        %v2836 = vunpack.c.h.b16 %v705
        %v2837 = vunpack.c.l.b16 %v706
        %v2838 = vunpack.c.h.b16 %v706
        %v2839 = vunpack.c.l.b16 %v707
        %v2840 = vunpack.c.h.b16 %v707
        %v2841 = vunpack.c.l.b16 %v708
        %v2842 = vunpack.c.h.b16 %v708
        %v2843 = vunpack.c.l.b16 %v709
        %v2844 = vunpack.c.h.b16 %v709
        %v2845 = vunpack.c.l.b16 %v710
        %v2846 = vunpack.c.h.b16 %v710
        %v2847 = vunpack.c.l.b16 %v711
        %v2848 = vunpack.c.h.b16 %v711
        %v2849 = vunpack.c.l.b16 %v712
        %v2850 = vunpack.c.h.b16 %v712
        %v2851 = vunpack.c.l.b16 %v713
        %v2852 = vunpack.c.h.b16 %v713
        %v2853 = vunpack.c.l.b16 %v714
        %v2854 = vunpack.c.h.b16 %v714
        %v2855 = vunpack.c.l.b16 %v715
        %v2856 = vunpack.c.h.b16 %v715
        %v2857 = vunpack.c.l.b16 %v716
        %v2858 = vunpack.c.h.b16 %v716
        %v2859 = vunpack.c.l.b16 %v717
        %v2860 = vunpack.c.h.b16 %v717
        %v2861 = vunpack.c.l.b16 %v718
        %v2862 = vunpack.c.h.b16 %v718
        %v2863 = vunpack.c.l.b16 %v719
        %v2864 = vunpack.c.h.b16 %v719
        %v2865 = vunpack.c.l.b16 %v720
        %v2866 = vunpack.c.h.b16 %v720
        %v2867 = vunpack.c.l.b16 %v721
        %v2868 = vunpack.c.h.b16 %v721
        %v2869 = vunpack.c.l.b16 %v722
        %v2870 = vunpack.c.h.b16 %v722
        %v2871 = vunpack.c.l.b16 %v723
        %v2872 = vunpack.c.h.b16 %v723
        %v2873 = vunpack.c.l.b16 %v724
        %v2874 = vunpack.c.h.b16 %v724
        %v2875 = vunpack.c.l.b16 %v725
        %v2876 = vunpack.c.h.b16 %v725
        %v2877 = vunpack.c.l.b16 %v726
        %v2878 = vunpack.c.h.b16 %v726
        %v2879 = vunpack.c.l.b16 %v727
        %v2880 = vunpack.c.h.b16 %v727
        %v2881 = vunpack.c.l.b16 %v728
        %v2882 = vunpack.c.h.b16 %v728
        %v2883 = vunpack.c.l.b16 %v729
        %v2884 = vunpack.c.h.b16 %v729
        %v2885 = vunpack.c.l.b16 %v730
        %v2886 = vunpack.c.h.b16 %v730
        %v2887 = vunpack.c.l.b16 %v731
        %v2888 = vunpack.c.h.b16 %v731
        %v2889 = vunpack.c.l.b16 %v732
        %v2890 = vunpack.c.h.b16 %v732
        %v2891 = vunpack.c.l.b16 %v733
        %v2892 = vunpack.c.h.b16 %v733
        %v2893 = vunpack.c.l.b16 %v734
        %v2894 = vunpack.c.h.b16 %v734
        %v2895 = vunpack.c.l.b16 %v735
        %v2896 = vunpack.c.h.b16 %v735
        %v2897 = vunpack.c.l.b16 %v736
        %v2898 = vunpack.c.h.b16 %v736
        %v2899 = vunpack.c.l.b16 %v737
        %v2900 = vunpack.c.h.b16 %v737
        %v2901 = vunpack.c.l.b16 %v738
        %v2902 = vunpack.c.h.b16 %v738
        %v2903 = vunpack.c.l.b16 %v739
        %v2904 = vunpack.c.h.b16 %v739
        %v2905 = vunpack.c.l.b16 %v740
        %v2906 = vunpack.c.h.b16 %v740
        %v2907 = vunpack.c.l.b16 %v741
        %v2908 = vunpack.c.h.b16 %v741
        %v2909 = vunpack.c.l.b16 %v742
        %v2910 = vunpack.c.h.b16 %v742
        %v2911 = vunpack.c.l.b16 %v743
        %v2912 = vunpack.c.h.b16 %v743
        %v2913 = vunpack.c.l.b16 %v744
        %v2914 = vunpack.c.h.b16 %v744
        %v2915 = vunpack.c.l.b16 %v745
        %v2916 = vunpack.c.h.b16 %v745
        %v2917 = vunpack.c.l.b16 %v746
        %v2918 = vunpack.c.h.b16 %v746
        %v2919 = vunpack.c.l.b16 %v747
        %v2920 = vunpack.c.h.b16 %v747
        %v2921 = vunpack.c.l.b16 %v748
        %v2922 = vunpack.c.h.b16 %v748
        %v2923 = vunpack.c.l.b16 %v749
        %v2924 = vunpack.c.h.b16 %v749
        %v2925 = vunpack.c.l.b16 %v750
        %v2926 = vunpack.c.h.b16 %v750
        %v2927 = vunpack.c.l.b16 %v751
        %v2928 = vunpack.c.h.b16 %v751
        %v2929 = vunpack.c.l.b16 %v752
        %v2930 = vunpack.c.h.b16 %v752
        %v2931 = vunpack.c.l.b16 %v753
        %v2932 = vunpack.c.h.b16 %v753
        %v2933 = vunpack.c.l.b16 %v754
        %v2934 = vunpack.c.h.b16 %v754
        %v2935 = vunpack.c.l.b16 %v755
        %v2936 = vunpack.c.h.b16 %v755
        %v2937 = vunpack.c.l.b16 %v756
        %v2938 = vunpack.c.h.b16 %v756
        %v2939 = vunpack.c.l.b16 %v757
        %v2940 = vunpack.c.h.b16 %v757
        %v2941 = vunpack.c.l.b16 %v758
        %v2942 = vunpack.c.h.b16 %v758
        %v2943 = vunpack.c.l.b16 %v759
        %v2944 = vunpack.c.h.b16 %v759
        %v2945 = vunpack.c.l.b16 %v760
        %v2946 = vunpack.c.h.b16 %v760
        %v2947 = vunpack.c.l.b16 %v761
        %v2948 = vunpack.c.h.b16 %v761
        %v2949 = vunpack.c.l.b16 %v762
        %v2950 = vunpack.c.h.b16 %v762
        %v2951 = vunpack.c.l.b16 %v763
        %v2952 = vunpack.c.h.b16 %v763
        %v2953 = vunpack.c.l.b16 %v764
        %v2954 = vunpack.c.h.b16 %v764
        %v2955 = vunpack.c.l.b16 %v765
        %v2956 = vunpack.c.h.b16 %v765
        %v2957 = vunpack.c.l.b16 %v766
        %v2958 = vunpack.c.h.b16 %v766
        %v2959 = vunpack.c.l.b16 %v767
        %v2960 = vunpack.c.h.b16 %v767
        %v2961 = vunpack.c.l.b16 %v768
        %v2962 = vunpack.c.h.b16 %v768
        %v2963 = vunpack.c.l.b16 %v769
        %v2964 = vunpack.c.h.b16 %v769
        %v2965 = vunpack.c.l.b16 %v770
        %v2966 = vunpack.c.h.b16 %v770
        %v2967 = vunpack.c.l.b16 %v771
        %v2968 = vunpack.c.h.b16 %v771
        %v2969 = vunpack.c.l.b16 %v772
        %v2970 = vunpack.c.h.b16 %v772
        %v2971 = vunpack.c.l.b16 %v773
        %v2972 = vunpack.c.h.b16 %v773
        %v2973 = vunpack.c.l.b16 %v774
        %v2974 = vunpack.c.h.b16 %v774
        %v2975 = vunpack.c.l.b16 %v775
        %v2976 = vunpack.c.h.b16 %v775
        %v2977 = vunpack.c.l.b16 %v776
        %v2978 = vunpack.c.h.b16 %v776
        %v2979 = vunpack.c.l.b16 %v777
        %v2980 = vunpack.c.h.b16 %v777
        %v2981 = vunpack.c.l.b16 %v778
        %v2982 = vunpack.c.h.b16 %v778
        %v2983 = vunpack.c.l.b16 %v779
        %v2984 = vunpack.c.h.b16 %v779
        %v2985 = vunpack.c.l.b16 %v780
        %v2986 = vunpack.c.h.b16 %v780
        %v2987 = vunpack.c.l.b16 %v781
        %v2988 = vunpack.c.h.b16 %v781
        %v2989 = vunpack.c.l.b16 %v782
        %v2990 = vunpack.c.h.b16 %v782
        %v2991 = vunpack.c.l.b16 %v783
        %v2992 = vunpack.c.h.b16 %v783
        %v2993 = vunpack.c.l.b16 %v784
        %v2994 = vunpack.c.h.b16 %v784
        %v2995 = vunpack.c.l.b16 %v785
        %v2996 = vunpack.c.h.b16 %v785
        %v2997 = vunpack.c.l.b16 %v786
        %v2998 = vunpack.c.h.b16 %v786
        %v2999 = vunpack.c.l.b16 %v787
        %v3000 = vunpack.c.h.b16 %v787
        %v3001 = vunpack.c.l.b16 %v788
        %v3002 = vunpack.c.h.b16 %v788
        %v3003 = vunpack.c.l.b16 %v789
        %v3004 = vunpack.c.h.b16 %v789
        %v3005 = vunpack.c.l.b16 %v790
        %v3006 = vunpack.c.h.b16 %v790
        %v3007 = vunpack.c.l.b16 %v791
        %v3008 = vunpack.c.h.b16 %v791
        %v3009 = vunpack.c.l.b16 %v792
        %v3010 = vunpack.c.h.b16 %v792
        %v3011 = vunpack.c.l.b16 %v793
        %v3012 = vunpack.c.h.b16 %v793
        %v3013 = vunpack.c.l.b16 %v794
        %v3014 = vunpack.c.h.b16 %v794
        %v3015 = vunpack.c.l.b16 %v795
        %v3016 = vunpack.c.h.b16 %v795
        %v3017 = vunpack.c.l.b16 %v796
        %v3018 = vunpack.c.h.b16 %v796
        %v3019 = vunpack.c.l.b16 %v797
        %v3020 = vunpack.c.h.b16 %v797
        %v3021 = vunpack.c.l.b16 %v798
        %v3022 = vunpack.c.h.b16 %v798
        %v3023 = vunpack.c.l.b16 %v799
        %v3024 = vunpack.c.h.b16 %v799
        %v3025 = vunpack.c.l.b16 %v800
        %v3026 = vunpack.c.h.b16 %v800
        %v3027 = vunpack.c.l.b16 %v801
        %v3028 = vunpack.c.h.b16 %v801
        %v3029 = vunpack.c.l.b16 %v802
        %v3030 = vunpack.c.h.b16 %v802
        %v3031 = vunpack.c.l.b16 %v803
        %v3032 = vunpack.c.h.b16 %v803
        %v3033 = vunpack.c.l.b16 %v804
        %v3034 = vunpack.c.h.b16 %v804
        %v3035 = vunpack.c.l.b16 %v805
        %v3036 = vunpack.c.h.b16 %v805
        %v3037 = vunpack.c.l.b16 %v806
        %v3038 = vunpack.c.h.b16 %v806
        %v3039 = vunpack.c.l.b16 %v807
        %v3040 = vunpack.c.h.b16 %v807
        %v3041 = vunpack.c.l.b16 %v808
        %v3042 = vunpack.c.h.b16 %v808
        %v3043 = vunpack.c.l.b16 %v809
        %v3044 = vunpack.c.h.b16 %v809
        %v3045 = vunpack.c.l.b16 %v810
        %v3046 = vunpack.c.h.b16 %v810
        %v3047 = vunpack.c.l.b16 %v811
        %v3048 = vunpack.c.h.b16 %v811
        %v3049 = vunpack.c.l.b16 %v812
        %v3050 = vunpack.c.h.b16 %v812
        %v3051 = vunpack.c.l.b16 %v813
        %v3052 = vunpack.c.h.b16 %v813
        %v3053 = vunpack.c.l.b16 %v814
        %v3054 = vunpack.c.h.b16 %v814
        %v3055 = vunpack.c.l.b16 %v815
        %v3056 = vunpack.c.h.b16 %v815
        %v3057 = vunpack.c.l.b16 %v816
        %v3058 = vunpack.c.h.b16 %v816
        %v3059 = vunpack.c.l.b16 %v817
        %v3060 = vunpack.c.h.b16 %v817
        %v3061 = vunpack.c.l.b16 %v818
        %v3062 = vunpack.c.h.b16 %v818
        %v3063 = vunpack.c.l.b16 %v819
        %v3064 = vunpack.c.h.b16 %v819
        %v3065 = vunpack.c.l.b16 %v820
        %v3066 = vunpack.c.h.b16 %v820
        %v3067 = vunpack.c.l.b16 %v821
        %v3068 = vunpack.c.h.b16 %v821
        %v3069 = vunpack.c.l.b16 %v822
        %v3070 = vunpack.c.h.b16 %v822
        %v3071 = vunpack.c.l.b16 %v823
        %v3072 = vunpack.c.h.b16 %v823
        %v3073 = vunpack.c.l.b16 %v824
        %v3074 = vunpack.c.h.b16 %v824
        %v3075 = vunpack.c.l.b16 %v825
        %v3076 = vunpack.c.h.b16 %v825
        %v3077 = vunpack.c.l.b16 %v826
        %v3078 = vunpack.c.h.b16 %v826
        %v3079 = vunpack.c.l.b16 %v827
        %v3080 = vunpack.c.h.b16 %v827
        %v3081 = vunpack.c.l.b16 %v828
        %v3082 = vunpack.c.h.b16 %v828
        %v3083 = vunpack.c.l.b16 %v829
        %v3084 = vunpack.c.h.b16 %v829
        %v3085 = vunpack.c.l.b16 %v830
        %v3086 = vunpack.c.h.b16 %v830
        %v3087 = vunpack.c.l.b16 %v831
        %v3088 = vunpack.c.h.b16 %v831
        %v3089 = vunpack.c.l.b16 %v832
        %v3090 = vunpack.c.h.b16 %v832
        %v3091 = vunpack.c.l.b16 %v833
        %v3092 = vunpack.c.h.b16 %v833
        %v3093 = vunpack.c.l.b16 %v834
        %v3094 = vunpack.c.h.b16 %v834
        %v3095 = vunpack.c.l.b16 %v835
        %v3096 = vunpack.c.h.b16 %v835
        %v3097 = vunpack.c.l.b16 %v836
        %v3098 = vunpack.c.h.b16 %v836
        %v3099 = vunpack.c.l.b16 %v837
        %v3100 = vunpack.c.h.b16 %v837
        %v3101 = vunpack.c.l.b16 %v838
        %v3102 = vunpack.c.h.b16 %v838
        %v3103 = vunpack.c.l.b16 %v839
        %v3104 = vunpack.c.h.b16 %v839
        %v3105 = vunpack.c.l.b16 %v840
        %v3106 = vunpack.c.h.b16 %v840
        %v3107 = vunpack.c.l.b16 %v841
        %v3108 = vunpack.c.h.b16 %v841
        %v3109 = vunpack.c.l.b16 %v842
        %v3110 = vunpack.c.h.b16 %v842
        %v3111 = vunpack.c.l.b16 %v843
        %v3112 = vunpack.c.h.b16 %v843
        %v3113 = vunpack.c.l.b16 %v844
        %v3114 = vunpack.c.h.b16 %v844
        %v3115 = vunpack.c.l.b16 %v845
        %v3116 = vunpack.c.h.b16 %v845
        %v3117 = vunpack.c.l.b16 %v846
        %v3118 = vunpack.c.h.b16 %v846
        %v3119 = vunpack.c.l.b16 %v847
        %v3120 = vunpack.c.h.b16 %v847
        %v3121 = vunpack.c.l.b16 %v848
        %v3122 = vunpack.c.h.b16 %v848
        %v3123 = vunpack.c.l.b16 %v849
        %v3124 = vunpack.c.h.b16 %v849
        %v3125 = vunpack.c.l.b16 %v850
        %v3126 = vunpack.c.h.b16 %v850
        %v3127 = vunpack.c.l.b16 %v851
        %v3128 = vunpack.c.h.b16 %v851
        %v3129 = vunpack.c.l.b16 %v852
        %v3130 = vunpack.c.h.b16 %v852
        %v3131 = vunpack.c.l.b16 %v853
        %v3132 = vunpack.c.h.b16 %v853
        %v3133 = vunpack.c.l.b16 %v854
        %v3134 = vunpack.c.h.b16 %v854
        %v3135 = vunpack.c.l.b16 %v855
        %v3136 = vunpack.c.h.b16 %v855
        %v3137 = vunpack.c.l.b16 %v856
        %v3138 = vunpack.c.h.b16 %v856
        %v3139 = vunpack.c.l.b16 %v857
        %v3140 = vunpack.c.h.b16 %v857
        %v3141 = vunpack.c.l.b16 %v858
        %v3142 = vunpack.c.h.b16 %v858
        %v3143 = vunpack.c.l.b16 %v859
        %v3144 = vunpack.c.h.b16 %v859
        %v3145 = vunpack.c.l.b16 %v860
        %v3146 = vunpack.c.h.b16 %v860
        %v3147 = vunpack.c.l.b16 %v861
        %v3148 = vunpack.c.h.b16 %v861
        %v3149 = vunpack.c.l.b16 %v862
        %v3150 = vunpack.c.h.b16 %v862
        %v3151 = vunpack.c.l.b16 %v863
        %v3152 = vunpack.c.h.b16 %v863
        %v3153 = vunpack.c.l.b16 %v864
        %v3154 = vunpack.c.h.b16 %v864
        %v3155 = vunpack.c.l.b16 %v865
        %v3156 = vunpack.c.h.b16 %v865
        %v3157 = vunpack.c.l.b16 %v866
        %v3158 = vunpack.c.h.b16 %v866
        %v3159 = vunpack.c.l.b16 %v867
        %v3160 = vunpack.c.h.b16 %v867
        %v3161 = vunpack.c.l.b16 %v868
        %v3162 = vunpack.c.h.b16 %v868
        %v3163 = vunpack.c.l.b16 %v869
        %v3164 = vunpack.c.h.b16 %v869
        %v3165 = vunpack.c.l.b16 %v870
        %v3166 = vunpack.c.h.b16 %v870
        %v3167 = vunpack.c.l.b16 %v871
        %v3168 = vunpack.c.h.b16 %v871
        %v3169 = vunpack.c.l.b16 %v872
        %v3170 = vunpack.c.h.b16 %v872
        %v3171 = vunpack.c.l.b16 %v873
        %v3172 = vunpack.c.h.b16 %v873
        %v3173 = vunpack.c.l.b16 %v874
        %v3174 = vunpack.c.h.b16 %v874
        %v3175 = vunpack.c.l.b16 %v875
        %v3176 = vunpack.c.h.b16 %v875
        %v3177 = vunpack.c.l.b16 %v876
        %v3178 = vunpack.c.h.b16 %v876
        %v3179 = vunpack.c.l.b16 %v877
        %v3180 = vunpack.c.h.b16 %v877
        %v3181 = vunpack.c.l.b16 %v878
        %v3182 = vunpack.c.h.b16 %v878
        %v3183 = vunpack.c.l.b16 %v879
        %v3184 = vunpack.c.h.b16 %v879
        %v3185 = vunpack.c.l.b16 %v880
        %v3186 = vunpack.c.h.b16 %v880
        %v3187 = vunpack.c.l.b16 %v881
        %v3188 = vunpack.c.h.b16 %v881
        %v3189 = vunpack.c.l.b16 %v882
        %v3190 = vunpack.c.h.b16 %v882
        %v3191 = vunpack.c.l.b16 %v883
        %v3192 = vunpack.c.h.b16 %v883
        %v3193 = vunpack.c.l.b16 %v884
        %v3194 = vunpack.c.h.b16 %v884
        %v3195 = vunpack.c.l.b16 %v885
        %v3196 = vunpack.c.h.b16 %v885
        %v3197 = vunpack.c.l.b16 %v886
        %v3198 = vunpack.c.h.b16 %v886
        %v3199 = vunpack.c.l.b16 %v887
        %v3200 = vunpack.c.h.b16 %v887
        %v3201 = vunpack.c.l.b16 %v888
        %v3202 = vunpack.c.h.b16 %v888
        %v3203 = vunpack.c.l.b16 %v889
        %v3204 = vunpack.c.h.b16 %v889
        %v3205 = vunpack.c.l.b16 %v890
        %v3206 = vunpack.c.h.b16 %v890
        %v3207 = vunpack.c.l.b16 %v891
        %v3208 = vunpack.c.h.b16 %v891
        %v3209 = vunpack.c.l.b16 %v892
        %v3210 = vunpack.c.h.b16 %v892
        %v3211 = vunpack.c.l.b16 %v893
        %v3212 = vunpack.c.h.b16 %v893
        %v3213 = vunpack.c.l.b16 %v894
        %v3214 = vunpack.c.h.b16 %v894
        %v3215 = vunpack.c.l.b16 %v895
        %v3216 = vunpack.c.h.b16 %v895
        %v3217 = vunpack.c.l.b16 %v896
        %v3218 = vunpack.c.h.b16 %v896
        %v3219 = vunpack.c.l.b16 %v897
        %v3220 = vunpack.c.h.b16 %v897
        %v3221 = vunpack.c.l.b16 %v898
        %v3222 = vunpack.c.h.b16 %v898
        %v3223 = vunpack.c.l.b16 %v899
        %v3224 = vunpack.c.h.b16 %v899
        %v3225 = vunpack.c.l.b16 %v900
        %v3226 = vunpack.c.h.b16 %v900
        %v3227 = vunpack.c.l.b16 %v901
        %v3228 = vunpack.c.h.b16 %v901
        %v3229 = vunpack.c.l.b16 %v902
        %v3230 = vunpack.c.h.b16 %v902
        %v3231 = vunpack.c.l.b16 %v903
        %v3232 = vunpack.c.h.b16 %v903
        %v3233 = vunpack.c.l.b16 %v904
        %v3234 = vunpack.c.h.b16 %v904
        %v3235 = vunpack.c.l.b16 %v905
        %v3236 = vunpack.c.h.b16 %v905
        %v3237 = vunpack.c.l.b16 %v906
        %v3238 = vunpack.c.h.b16 %v906
        %v3239 = vunpack.c.l.b16 %v907
        %v3240 = vunpack.c.h.b16 %v907
        %v3241 = vunpack.c.l.b16 %v908
        %v3242 = vunpack.c.h.b16 %v908
        %v3243 = vunpack.c.l.b16 %v909
        %v3244 = vunpack.c.h.b16 %v909
        %v3245 = vunpack.c.l.b16 %v910
        %v3246 = vunpack.c.h.b16 %v910
        %v3247 = vunpack.c.l.b16 %v911
        %v3248 = vunpack.c.h.b16 %v911
        %v3249 = vunpack.c.l.b16 %v912
        %v3250 = vunpack.c.h.b16 %v912
        %v3251 = vunpack.c.l.b16 %v913
        %v3252 = vunpack.c.h.b16 %v913
        %v3253 = vunpack.c.l.b16 %v914
        %v3254 = vunpack.c.h.b16 %v914
        %v3255 = vunpack.c.l.b16 %v915
        %v3256 = vunpack.c.h.b16 %v915
        %v3257 = vunpack.c.l.b16 %v916
        %v3258 = vunpack.c.h.b16 %v916
        %v3259 = vunpack.c.l.b16 %v917
        %v3260 = vunpack.c.h.b16 %v917
        %v3261 = vunpack.c.l.b16 %v918
        %v3262 = vunpack.c.h.b16 %v918
        %v3263 = vunpack.c.l.b16 %v919
        %v3264 = vunpack.c.h.b16 %v919
        %v3265 = vunpack.c.l.b16 %v920
        %v3266 = vunpack.c.h.b16 %v920
        %v3267 = vunpack.c.l.b16 %v921
        %v3268 = vunpack.c.h.b16 %v921
        %v3269 = vunpack.c.l.b16 %v922
        %v3270 = vunpack.c.h.b16 %v922
        %v3271 = vunpack.c.l.b16 %v923
        %v3272 = vunpack.c.h.b16 %v923
        %v3273 = vunpack.c.l.b16 %v924
        %v3274 = vunpack.c.h.b16 %v924
        %v3275 = vunpack.c.l.b16 %v925
        %v3276 = vunpack.c.h.b16 %v925
        %v3277 = vunpack.c.l.b16 %v926
        %v3278 = vunpack.c.h.b16 %v926
        %v3279 = vunpack.c.l.b16 %v927
        %v3280 = vunpack.c.h.b16 %v927
        %v3281 = vunpack.c.l.b16 %v928
        %v3282 = vunpack.c.h.b16 %v928
        %v3283 = vunpack.c.l.b16 %v929
        %v3284 = vunpack.c.h.b16 %v929
        %v3285 = vunpack.c.l.b16 %v930
        %v3286 = vunpack.c.h.b16 %v930
        %v3287 = vunpack.c.l.b16 %v931
        %v3288 = vunpack.c.h.b16 %v931
        %v3289 = vunpack.c.l.b16 %v932
        %v3290 = vunpack.c.h.b16 %v932
        %v3291 = vunpack.c.l.b16 %v933
        %v3292 = vunpack.c.h.b16 %v933
        %v3293 = vunpack.c.l.b16 %v934
        %v3294 = vunpack.c.h.b16 %v934
        %v3295 = vunpack.c.l.b16 %v935
        %v3296 = vunpack.c.h.b16 %v935
        %v3297 = vunpack.c.l.b16 %v936
        %v3298 = vunpack.c.h.b16 %v936
        %v3299 = vunpack.c.l.b16 %v937
        %v3300 = vunpack.c.h.b16 %v937
        %v3301 = vunpack.c.l.b16 %v938
        %v3302 = vunpack.c.h.b16 %v938
        %v3303 = vunpack.c.l.b16 %v939
        %v3304 = vunpack.c.h.b16 %v939
        %v3305 = vunpack.c.l.b16 %v940
        %v3306 = vunpack.c.h.b16 %v940
        %v3307 = vunpack.c.l.b16 %v941
        %v3308 = vunpack.c.h.b16 %v941
        %v3309 = vunpack.c.l.b16 %v942
        %v3310 = vunpack.c.h.b16 %v942
        %v3311 = vunpack.c.l.b16 %v943
        %v3312 = vunpack.c.h.b16 %v943
        %v3313 = vunpack.c.l.b16 %v944
        %v3314 = vunpack.c.h.b16 %v944
        %v3315 = vunpack.c.l.b16 %v945
        %v3316 = vunpack.c.h.b16 %v945
        %v3317 = vunpack.c.l.b16 %v946
        %v3318 = vunpack.c.h.b16 %v946
        %v3319 = vunpack.c.l.b16 %v947
        %v3320 = vunpack.c.h.b16 %v947
        %v3321 = vunpack.c.l.b16 %v948
        %v3322 = vunpack.c.h.b16 %v948
        %v3323 = vunpack.c.l.b16 %v949
        %v3324 = vunpack.c.h.b16 %v949
        %v3325 = vunpack.c.l.b16 %v950
        %v3326 = vunpack.c.h.b16 %v950
        %v3327 = vunpack.c.l.b16 %v951
        %v3328 = vunpack.c.h.b16 %v951
        %v3329 = vunpack.c.l.b16 %v952
        %v3330 = vunpack.c.h.b16 %v952
        %v3331 = vunpack.c.l.b16 %v953
        %v3332 = vunpack.c.h.b16 %v953
        %v3333 = vunpack.c.l.b16 %v954
        %v3334 = vunpack.c.h.b16 %v954
        %v3335 = vunpack.c.l.b16 %v955
        %v3336 = vunpack.c.h.b16 %v955
        %v3337 = vunpack.c.l.b16 %v956
        %v3338 = vunpack.c.h.b16 %v956
        %v3339 = vunpack.c.l.b16 %v957
        %v3340 = vunpack.c.h.b16 %v957
        %v3341 = vunpack.c.l.b16 %v958
        %v3342 = vunpack.c.h.b16 %v958
        %v3343 = vunpack.c.l.b16 %v959
        %v3344 = vunpack.c.h.b16 %v959
        %v3345 = vunpack.c.l.b16 %v960
        %v3346 = vunpack.c.h.b16 %v960
        %v3347 = vunpack.c.l.b16 %v961
        %v3348 = vunpack.c.h.b16 %v961
        %v3349 = vunpack.c.l.b16 %v962
        %v3350 = vunpack.c.h.b16 %v962
        %v3351 = vunpack.c.l.b16 %v963
        %v3352 = vunpack.c.h.b16 %v963
        %v3353 = vunpack.c.l.b16 %v964
        %v3354 = vunpack.c.h.b16 %v964
        %v3355 = vunpack.c.l.b16 %v965
        %v3356 = vunpack.c.h.b16 %v965
        %v3357 = vunpack.c.l.b16 %v966
        %v3358 = vunpack.c.h.b16 %v966
        %v3359 = vunpack.c.l.b16 %v967
        %v3360 = vunpack.c.h.b16 %v967
        %v3361 = vunpack.c.l.b16 %v968
        %v3362 = vunpack.c.h.b16 %v968
        %v3363 = vunpack.c.l.b16 %v969
        %v3364 = vunpack.c.h.b16 %v969
        %v3365 = vunpack.c.l.b16 %v970
        %v3366 = vunpack.c.h.b16 %v970
        %v3367 = vunpack.c.l.b16 %v971
        %v3368 = vunpack.c.h.b16 %v971
        %v3369 = vunpack.c.l.b16 %v972
        %v3370 = vunpack.c.h.b16 %v972
        %v3371 = vunpack.c.l.b16 %v973
        %v3372 = vunpack.c.h.b16 %v973
        %v3373 = vunpack.c.l.b16 %v974
        %v3374 = vunpack.c.h.b16 %v974
        %v3375 = vunpack.c.l.b16 %v975
        %v3376 = vunpack.c.h.b16 %v975
        %v3377 = vunpack.c.l.b16 %v976
        %v3378 = vunpack.c.h.b16 %v976
        %v3379 = vunpack.c.l.b16 %v977
        %v3380 = vunpack.c.h.b16 %v977
        %v3381 = vunpack.c.l.b16 %v978
        %v3382 = vunpack.c.h.b16 %v978
        %v3383 = vunpack.c.l.b16 %v979
        %v3384 = vunpack.c.h.b16 %v979
        %v3385 = vunpack.c.l.b16 %v980
        %v3386 = vunpack.c.h.b16 %v980
        %v3387 = vunpack.c.l.b16 %v981
        %v3388 = vunpack.c.h.b16 %v981
        %v3389 = vunpack.c.l.b16 %v982
        %v3390 = vunpack.c.h.b16 %v982
        %v3391 = vunpack.c.l.b16 %v983
        %v3392 = vunpack.c.h.b16 %v983
        %v3393 = vunpack.c.l.b16 %v984
        %v3394 = vunpack.c.h.b16 %v984
        %v3395 = vunpack.c.l.b16 %v985
        %v3396 = vunpack.c.h.b16 %v985
        %v3397 = vunpack.c.l.b16 %v986
        %v3398 = vunpack.c.h.b16 %v986
        %v3399 = vunpack.c.l.b16 %v987
        %v3400 = vunpack.c.h.b16 %v987
        %v3401 = vunpack.c.l.b16 %v988
        %v3402 = vunpack.c.h.b16 %v988
        %v3403 = vunpack.c.l.b16 %v989
        %v3404 = vunpack.c.h.b16 %v989
        %v3405 = vunpack.c.l.b16 %v990
        %v3406 = vunpack.c.h.b16 %v990
        %v3407 = vunpack.c.l.b16 %v991
        %v3408 = vunpack.c.h.b16 %v991
        %v3409 = vunpack.c.l.b16 %v992
        %v3410 = vunpack.c.h.b16 %v992
        %v3411 = vunpack.c.l.b16 %v993
        %v3412 = vunpack.c.h.b16 %v993
        %v3413 = vunpack.c.l.b16 %v994
        %v3414 = vunpack.c.h.b16 %v994
        %v3415 = vunpack.c.l.b16 %v995
        %v3416 = vunpack.c.h.b16 %v995
        %v3417 = vunpack.c.l.b16 %v996
        %v3418 = vunpack.c.h.b16 %v996
        %v3419 = vunpack.c.l.b16 %v997
        %v3420 = vunpack.c.h.b16 %v997
        %v3421 = vunpack.c.l.b16 %v998
        %v3422 = vunpack.c.h.b16 %v998
        %v3423 = vunpack.c.l.b16 %v999
        %v3424 = vunpack.c.h.b16 %v999
        %v3425 = vunpack.c.l.b16 %v1000
        %v3426 = vunpack.c.h.b16 %v1000
        %v3427 = vpack.c.b16 %v1903, %v1891
        %v3428 = vpack.c.b16 %v1904, %v1892
        %v3429 = vpack.c.b16 %v1905, %v1893
        %v3430 = vpack.c.b16 %v1906, %v1894
        %v3431 = vpack.c.b16 %v1907, %v1895
        %v3432 = vpack.c.b16 %v1908, %v1896
        %v3433 = vpack.c.b16 %v1909, %v1897
        %v3434 = vpack.c.b16 %v1910, %v1898
        %v3435 = vpack.c.b16 %v1911, %v1899
        %v3436 = vpack.c.b16 %v1912, %v1900
        %v3437 = vpack.c.b16 %v1913, %v1901
        %v3438 = vpack.c.b16 %v1914, %v1902
        %v3439 = vpack.c.b16 %v1927, %v1915
        %v3440 = vpack.c.b16 %v1928, %v1916
        %v3441 = vpack.c.b16 %v1929, %v1917
        %v3442 = vpack.c.b16 %v1930, %v1918
        %v3443 = vpack.c.b16 %v1931, %v1919
        %v3444 = vpack.c.b16 %v1932, %v1920
        %v3445 = vpack.c.b16 %v1933, %v1921
        %v3446 = vpack.c.b16 %v1934, %v1922
        %v3447 = vpack.c.b16 %v1935, %v1923
        %v3448 = vpack.c.b16 %v1936, %v1924
        %v3449 = vpack.c.b16 %v1937, %v1925
        %v3450 = vpack.c.b16 %v1938, %v1926
        %v3451 = vpack.c.b16 %v1951, %v1939
        %v3452 = vpack.c.b16 %v1952, %v1940
        %v3453 = vpack.c.b16 %v1953, %v1941
        %v3454 = vpack.c.b16 %v1954, %v1942
        %v3455 = vpack.c.b16 %v1955, %v1943
        %v3456 = vpack.c.b16 %v1956, %v1944
        %v3457 = vpack.c.b16 %v1957, %v1945
        %v3458 = vpack.c.b16 %v1958, %v1946
        %v3459 = vpack.c.b16 %v1959, %v1947
        %v3460 = vpack.c.b16 %v1960, %v1948
        %v3461 = vpack.c.b16 %v1961, %v1949
        %v3462 = vpack.c.b16 %v1962, %v1950
        %v3463 = vpack.c.b16 %v1975, %v1963
        %v3464 = vpack.c.b16 %v1976, %v1964
        %v3465 = vpack.c.b16 %v1977, %v1965
        %v3466 = vpack.c.b16 %v1978, %v1966
        %v3467 = vpack.c.b16 %v1979, %v1967
        %v3468 = vpack.c.b16 %v1980, %v1968
        %v3469 = vpack.c.b16 %v1981, %v1969
        %v3470 = vpack.c.b16 %v1982, %v1970
        %v3471 = vpack.c.b16 %v1983, %v1971
        %v3472 = vpack.c.b16 %v1984, %v1972
        %v3473 = vpack.c.b16 %v1985, %v1973
        %v3474 = vpack.c.b16 %v1986, %v1974
        %v3475 = vpack.c.b16 %v1999, %v1987
        %v3476 = vpack.c.b16 %v2000, %v1988
        %v3477 = vpack.c.b16 %v2001, %v1989
        %v3478 = vpack.c.b16 %v2002, %v1990
        %v3479 = vpack.c.b16 %v2003, %v1991
        %v3480 = vpack.c.b16 %v2004, %v1992
        %v3481 = vpack.c.b16 %v2005, %v1993
        %v3482 = vpack.c.b16 %v2006, %v1994
        %v3483 = vpack.c.b16 %v2007, %v1995
        %v3484 = vpack.c.b16 %v2008, %v1996
        %v3485 = vpack.c.b16 %v2009, %v1997
        %v3486 = vpack.c.b16 %v2010, %v1998
        %v3487 = vpack.c.b16 %v2023, %v2011
        %v3488 = vpack.c.b16 %v2024, %v2012
        %v3489 = vpack.c.b16 %v2025, %v2013
        %v3490 = vpack.c.b16 %v2026, %v2014
        %v3491 = vpack.c.b16 %v2027, %v2015
        %v3492 = vpack.c.b16 %v2028, %v2016
        %v3493 = vpack.c.b16 %v2029, %v2017
        %v3494 = vpack.c.b16 %v2030, %v2018
        %v3495 = vpack.c.b16 %v2031, %v2019
        %v3496 = vpack.c.b16 %v2032, %v2020
        %v3497 = vpack.c.b16 %v2033, %v2021
        %v3498 = vpack.c.b16 %v2034, %v2022
        %v3499 = vpack.c.b16 %v2047, %v2035
        %v3500 = vpack.c.b16 %v2048, %v2036
        %v3501 = vpack.c.b16 %v2049, %v2037
        %v3502 = vpack.c.b16 %v2050, %v2038
        %v3503 = vpack.c.b16 %v2051, %v2039
        %v3504 = vpack.c.b16 %v2052, %v2040
        %v3505 = vpack.c.b16 %v2053, %v2041
        %v3506 = vpack.c.b16 %v2054, %v2042
        %v3507 = vpack.c.b16 %v2055, %v2043
        %v3508 = vpack.c.b16 %v2056, %v2044
        %v3509 = vpack.c.b16 %v2057, %v2045
        %v3510 = vpack.c.b16 %v2058, %v2046
        %v3511 = vpack.c.b16 %v2071, %v2059
        %v3512 = vpack.c.b16 %v2072, %v2060
        %v3513 = vpack.c.b16 %v2073, %v2061
        %v3514 = vpack.c.b16 %v2074, %v2062
        %v3515 = vpack.c.b16 %v2075, %v2063
        %v3516 = vpack.c.b16 %v2076, %v2064
        %v3517 = vpack.c.b16 %v2077, %v2065
        %v3518 = vpack.c.b16 %v2078, %v2066
        %v3519 = vpack.c.b16 %v2079, %v2067
        %v3520 = vpack.c.b16 %v2080, %v2068
        %v3521 = vpack.c.b16 %v2081, %v2069
        %v3522 = vpack.c.b16 %v2082, %v2070
        %v3523 = vpack.c.b16 %v2095, %v2083
        %v3524 = vpack.c.b16 %v2096, %v2084
        %v3525 = vpack.c.b16 %v2097, %v2085
        %v3526 = vpack.c.b16 %v2098, %v2086
        %v3527 = vpack.c.b16 %v2099, %v2087
        %v3528 = vpack.c.b16 %v2100, %v2088
        %v3529 = vpack.c.b16 %v2101, %v2089
        %v3530 = vpack.c.b16 %v2102, %v2090
        %v3531 = vpack.c.b16 %v2103, %v2091
        %v3532 = vpack.c.b16 %v2104, %v2092
        %v3533 = vpack.c.b16 %v2105, %v2093
        %v3534 = vpack.c.b16 %v2106, %v2094
        %v3535 = vpack.c.b16 %v2119, %v2107
        %v3536 = vpack.c.b16 %v2120, %v2108
        %v3537 = vpack.c.b16 %v2121, %v2109
        %v3538 = vpack.c.b16 %v2122, %v2110
        %v3539 = vpack.c.b16 %v2123, %v2111
        %v3540 = vpack.c.b16 %v2124, %v2112
        %v3541 = vpack.c.b16 %v2125, %v2113
        %v3542 = vpack.c.b16 %v2126, %v2114
        %v3543 = vpack.c.b16 %v2127, %v2115
        %v3544 = vpack.c.b16 %v2128, %v2116
        %v3545 = vpack.c.b16 %v2129, %v2117
        %v3546 = vpack.c.b16 %v2130, %v2118
        %v3547 = vpack.c.b16 %v2143, %v2131
        %v3548 = vpack.c.b16 %v2144, %v2132
        %v3549 = vpack.c.b16 %v2145, %v2133
        %v3550 = vpack.c.b16 %v2146, %v2134
        %v3551 = vpack.c.b16 %v2147, %v2135
        %v3552 = vpack.c.b16 %v2148, %v2136
        %v3553 = vpack.c.b16 %v2149, %v2137
        %v3554 = vpack.c.b16 %v2150, %v2138
        %v3555 = vpack.c.b16 %v2151, %v2139
        %v3556 = vpack.c.b16 %v2152, %v2140
        %v3557 = vpack.c.b16 %v2153, %v2141
        %v3558 = vpack.c.b16 %v2154, %v2142
        %v3559 = vpack.c.b16 %v2167, %v2155
        %v3560 = vpack.c.b16 %v2168, %v2156
        %v3561 = vpack.c.b16 %v2169, %v2157
        %v3562 = vpack.c.b16 %v2170, %v2158
        %v3563 = vpack.c.b16 %v2171, %v2159
        %v3564 = vpack.c.b16 %v2172, %v2160
        %v3565 = vpack.c.b16 %v2173, %v2161
        %v3566 = vpack.c.b16 %v2174, %v2162
        %v3567 = vpack.c.b16 %v2175, %v2163
        %v3568 = vpack.c.b16 %v2176, %v2164
        %v3569 = vpack.c.b16 %v2177, %v2165
        %v3570 = vpack.c.b16 %v2178, %v2166
        %v3571 = vpack.c.b16 %v2191, %v2179
        %v3572 = vpack.c.b16 %v2192, %v2180
        %v3573 = vpack.c.b16 %v2193, %v2181
        %v3574 = vpack.c.b16 %v2194, %v2182
        %v3575 = vpack.c.b16 %v2195, %v2183
        %v3576 = vpack.c.b16 %v2196, %v2184
        %v3577 = vpack.c.b16 %v2197, %v2185
        %v3578 = vpack.c.b16 %v2198, %v2186
        %v3579 = vpack.c.b16 %v2199, %v2187
        %v3580 = vpack.c.b16 %v2200, %v2188
        %v3581 = vpack.c.b16 %v2201, %v2189
        %v3582 = vpack.c.b16 %v2202, %v2190
        %v3583 = vpack.c.b16 %v2215, %v2203
        %v3584 = vpack.c.b16 %v2216, %v2204
        %v3585 = vpack.c.b16 %v2217, %v2205
        %v3586 = vpack.c.b16 %v2218, %v2206
        %v3587 = vpack.c.b16 %v2219, %v2207
        %v3588 = vpack.c.b16 %v2220, %v2208
        %v3589 = vpack.c.b16 %v2221, %v2209
        %v3590 = vpack.c.b16 %v2222, %v2210
        %v3591 = vpack.c.b16 %v2223, %v2211
        %v3592 = vpack.c.b16 %v2224, %v2212
        %v3593 = vpack.c.b16 %v2225, %v2213
        %v3594 = vpack.c.b16 %v2226, %v2214
        %v3595 = vpack.c.b16 %v2239, %v2227
        %v3596 = vpack.c.b16 %v2240, %v2228
        %v3597 = vpack.c.b16 %v2241, %v2229
        %v3598 = vpack.c.b16 %v2242, %v2230
        %v3599 = vpack.c.b16 %v2243, %v2231
        %v3600 = vpack.c.b16 %v2244, %v2232
        %v3601 = vpack.c.b16 %v2245, %v2233
        %v3602 = vpack.c.b16 %v2246, %v2234
        %v3603 = vpack.c.b16 %v2247, %v2235
        %v3604 = vpack.c.b16 %v2248, %v2236
        %v3605 = vpack.c.b16 %v2249, %v2237
        %v3606 = vpack.c.b16 %v2250, %v2238
        %v3607 = vpack.c.b16 %v2263, %v2251
        %v3608 = vpack.c.b16 %v2264, %v2252
        %v3609 = vpack.c.b16 %v2265, %v2253
        %v3610 = vpack.c.b16 %v2266, %v2254
        %v3611 = vpack.c.b16 %v2267, %v2255
        %v3612 = vpack.c.b16 %v2268, %v2256
        %v3613 = vpack.c.b16 %v2269, %v2257
        %v3614 = vpack.c.b16 %v2270, %v2258
        %v3615 = vpack.c.b16 %v2271, %v2259
        %v3616 = vpack.c.b16 %v2272, %v2260
        %v3617 = vpack.c.b16 %v2273, %v2261
        %v3618 = vpack.c.b16 %v2274, %v2262
        %v3619 = vpack.c.b16 %v2287, %v2275
        %v3620 = vpack.c.b16 %v2288, %v2276
        %v3621 = vpack.c.b16 %v2289, %v2277
        %v3622 = vpack.c.b16 %v2290, %v2278
        %v3623 = vpack.c.b16 %v2291, %v2279
        %v3624 = vpack.c.b16 %v2292, %v2280
        %v3625 = vpack.c.b16 %v2293, %v2281
        %v3626 = vpack.c.b16 %v2294, %v2282
        %v3627 = vpack.c.b16 %v2295, %v2283
        %v3628 = vpack.c.b16 %v2296, %v2284
        %v3629 = vpack.c.b16 %v2297, %v2285
        %v3630 = vpack.c.b16 %v2298, %v2286
        %v3631 = vpack.c.b16 %v2311, %v2299
        %v3632 = vpack.c.b16 %v2312, %v2300
        %v3633 = vpack.c.b16 %v2313, %v2301
        %v3634 = vpack.c.b16 %v2314, %v2302
        %v3635 = vpack.c.b16 %v2315, %v2303
        %v3636 = vpack.c.b16 %v2316, %v2304
        %v3637 = vpack.c.b16 %v2317, %v2305
        %v3638 = vpack.c.b16 %v2318, %v2306
        %v3639 = vpack.c.b16 %v2319, %v2307
        %v3640 = vpack.c.b16 %v2320, %v2308
        %v3641 = vpack.c.b16 %v2321, %v2309
        %v3642 = vpack.c.b16 %v2322, %v2310
        %v3643 = vpack.c.b16 %v2335, %v2323
        %v3644 = vpack.c.b16 %v2336, %v2324
        %v3645 = vpack.c.b16 %v2337, %v2325
        %v3646 = vpack.c.b16 %v2338, %v2326
        %v3647 = vpack.c.b16 %v2339, %v2327
        %v3648 = vpack.c.b16 %v2340, %v2328
        %v3649 = vpack.c.b16 %v2341, %v2329
        %v3650 = vpack.c.b16 %v2342, %v2330
        %v3651 = vpack.c.b16 %v2343, %v2331
        %v3652 = vpack.c.b16 %v2344, %v2332
        %v3653 = vpack.c.b16 %v2345, %v2333
        %v3654 = vpack.c.b16 %v2346, %v2334
        %v3655 = vpack.c.b16 %v2359, %v2347
        %v3656 = vpack.c.b16 %v2360, %v2348
        %v3657 = vpack.c.b16 %v2361, %v2349
        %v3658 = vpack.c.b16 %v2362, %v2350
        %v3659 = vpack.c.b16 %v2363, %v2351
        %v3660 = vpack.c.b16 %v2364, %v2352
        %v3661 = vpack.c.b16 %v2365, %v2353
        %v3662 = vpack.c.b16 %v2366, %v2354
        %v3663 = vpack.c.b16 %v2367, %v2355
        %v3664 = vpack.c.b16 %v2368, %v2356
        %v3665 = vpack.c.b16 %v2369, %v2357
        %v3666 = vpack.c.b16 %v2370, %v2358
        %v3667 = vpack.c.b16 %v2383, %v2371
        %v3668 = vpack.c.b16 %v2384, %v2372
        %v3669 = vpack.c.b16 %v2385, %v2373
        %v3670 = vpack.c.b16 %v2386, %v2374
        %v3671 = vpack.c.b16 %v2387, %v2375
        %v3672 = vpack.c.b16 %v2388, %v2376
        %v3673 = vpack.c.b16 %v2389, %v2377
        %v3674 = vpack.c.b16 %v2390, %v2378
        %v3675 = vpack.c.b16 %v2391, %v2379
        %v3676 = vpack.c.b16 %v2392, %v2380
        %v3677 = vpack.c.b16 %v2393, %v2381
        %v3678 = vpack.c.b16 %v2394, %v2382
        %v3679 = vpack.c.b16 %v2407, %v2395
        %v3680 = vpack.c.b16 %v2408, %v2396
        %v3681 = vpack.c.b16 %v2409, %v2397
        %v3682 = vpack.c.b16 %v2410, %v2398
        %v3683 = vpack.c.b16 %v2411, %v2399
        %v3684 = vpack.c.b16 %v2412, %v2400
        %v3685 = vpack.c.b16 %v2413, %v2401
        %v3686 = vpack.c.b16 %v2414, %v2402
        %v3687 = vpack.c.b16 %v2415, %v2403
        %v3688 = vpack.c.b16 %v2416, %v2404
        %v3689 = vpack.c.b16 %v2417, %v2405
        %v3690 = vpack.c.b16 %v2418, %v2406
        %v3691 = vpack.c.b16 %v2431, %v2419
        %v3692 = vpack.c.b16 %v2432, %v2420
        %v3693 = vpack.c.b16 %v2433, %v2421
        %v3694 = vpack.c.b16 %v2434, %v2422
        %v3695 = vpack.c.b16 %v2435, %v2423
        %v3696 = vpack.c.b16 %v2436, %v2424
        %v3697 = vpack.c.b16 %v2437, %v2425
        %v3698 = vpack.c.b16 %v2438, %v2426
        %v3699 = vpack.c.b16 %v2439, %v2427
        %v3700 = vpack.c.b16 %v2440, %v2428
        %v3701 = vpack.c.b16 %v2441, %v2429
        %v3702 = vpack.c.b16 %v2442, %v2430
        %v3703 = vpack.c.b16 %v2455, %v2443
        %v3704 = vpack.c.b16 %v2456, %v2444
        %v3705 = vpack.c.b16 %v2457, %v2445
        %v3706 = vpack.c.b16 %v2458, %v2446
        %v3707 = vpack.c.b16 %v2459, %v2447
        %v3708 = vpack.c.b16 %v2460, %v2448
        %v3709 = vpack.c.b16 %v2461, %v2449
        %v3710 = vpack.c.b16 %v2462, %v2450
        %v3711 = vpack.c.b16 %v2463, %v2451
        %v3712 = vpack.c.b16 %v2464, %v2452
        %v3713 = vpack.c.b16 %v2465, %v2453
        %v3714 = vpack.c.b16 %v2466, %v2454
        %v3715 = vpack.c.b16 %v2479, %v2467
        %v3716 = vpack.c.b16 %v2480, %v2468
        %v3717 = vpack.c.b16 %v2481, %v2469
        %v3718 = vpack.c.b16 %v2482, %v2470
        %v3719 = vpack.c.b16 %v2483, %v2471
        %v3720 = vpack.c.b16 %v2484, %v2472
        %v3721 = vpack.c.b16 %v2485, %v2473
        %v3722 = vpack.c.b16 %v2486, %v2474
        %v3723 = vpack.c.b16 %v2487, %v2475
        %v3724 = vpack.c.b16 %v2488, %v2476
        %v3725 = vpack.c.b16 %v2489, %v2477
        %v3726 = vpack.c.b16 %v2490, %v2478
        %v3727 = vpack.c.b16 %v2503, %v2491
        %v3728 = vpack.c.b16 %v2504, %v2492
        %v3729 = vpack.c.b16 %v2505, %v2493
        %v3730 = vpack.c.b16 %v2506, %v2494
        %v3731 = vpack.c.b16 %v2507, %v2495
        %v3732 = vpack.c.b16 %v2508, %v2496
        %v3733 = vpack.c.b16 %v2509, %v2497
        %v3734 = vpack.c.b16 %v2510, %v2498
        %v3735 = vpack.c.b16 %v2511, %v2499
        %v3736 = vpack.c.b16 %v2512, %v2500
        %v3737 = vpack.c.b16 %v2513, %v2501
        %v3738 = vpack.c.b16 %v2514, %v2502
        %v3739 = vpack.c.b16 %v2527, %v2515
        %v3740 = vpack.c.b16 %v2528, %v2516
        %v3741 = vpack.c.b16 %v2529, %v2517
        %v3742 = vpack.c.b16 %v2530, %v2518
        %v3743 = vpack.c.b16 %v2531, %v2519
        %v3744 = vpack.c.b16 %v2532, %v2520
        %v3745 = vpack.c.b16 %v2533, %v2521
        %v3746 = vpack.c.b16 %v2534, %v2522
        %v3747 = vpack.c.b16 %v2535, %v2523
        %v3748 = vpack.c.b16 %v2536, %v2524
        %v3749 = vpack.c.b16 %v2537, %v2525
        %v3750 = vpack.c.b16 %v2538, %v2526
        %v3751 = vpack.c.b16 %v2551, %v2539
        %v3752 = vpack.c.b16 %v2552, %v2540
        %v3753 = vpack.c.b16 %v2553, %v2541
        %v3754 = vpack.c.b16 %v2554, %v2542
        %v3755 = vpack.c.b16 %v2555, %v2543
        %v3756 = vpack.c.b16 %v2556, %v2544
        %v3757 = vpack.c.b16 %v2557, %v2545
        %v3758 = vpack.c.b16 %v2558, %v2546
        %v3759 = vpack.c.b16 %v2559, %v2547
        %v3760 = vpack.c.b16 %v2560, %v2548
        %v3761 = vpack.c.b16 %v2561, %v2549
        %v3762 = vpack.c.b16 %v2562, %v2550
        %v3763 = vpack.c.b16 %v2575, %v2563
        %v3764 = vpack.c.b16 %v2576, %v2564
        %v3765 = vpack.c.b16 %v2577, %v2565
        %v3766 = vpack.c.b16 %v2578, %v2566
        %v3767 = vpack.c.b16 %v2579, %v2567
        %v3768 = vpack.c.b16 %v2580, %v2568
        %v3769 = vpack.c.b16 %v2581, %v2569
        %v3770 = vpack.c.b16 %v2582, %v2570
        %v3771 = vpack.c.b16 %v2583, %v2571
        %v3772 = vpack.c.b16 %v2584, %v2572
        %v3773 = vpack.c.b16 %v2585, %v2573
        %v3774 = vpack.c.b16 %v2586, %v2574
        %v3775 = vpack.c.b16 %v2599, %v2587
        %v3776 = vpack.c.b16 %v2600, %v2588
        %v3777 = vpack.c.b16 %v2601, %v2589
        %v3778 = vpack.c.b16 %v2602, %v2590
        %v3779 = vpack.c.b16 %v2603, %v2591
        %v3780 = vpack.c.b16 %v2604, %v2592
        %v3781 = vpack.c.b16 %v2605, %v2593
        %v3782 = vpack.c.b16 %v2606, %v2594
        %v3783 = vpack.c.b16 %v2607, %v2595
        %v3784 = vpack.c.b16 %v2608, %v2596
        %v3785 = vpack.c.b16 %v2609, %v2597
        %v3786 = vpack.c.b16 %v2610, %v2598
        %v3787 = vpack.c.b16 %v2623, %v2611
        %v3788 = vpack.c.b16 %v2624, %v2612
        %v3789 = vpack.c.b16 %v2625, %v2613
        %v3790 = vpack.c.b16 %v2626, %v2614
        %v3791 = vpack.c.b16 %v2627, %v2615
        %v3792 = vpack.c.b16 %v2628, %v2616
        %v3793 = vpack.c.b16 %v2629, %v2617
        %v3794 = vpack.c.b16 %v2630, %v2618
        %v3795 = vpack.c.b16 %v2631, %v2619
        %v3796 = vpack.c.b16 %v2632, %v2620
        %v3797 = vpack.c.b16 %v2633, %v2621
        %v3798 = vpack.c.b16 %v2634, %v2622
        %v3799 = vpack.c.b16 %v2647, %v2635
        %v3800 = vpack.c.b16 %v2648, %v2636
        %v3801 = vpack.c.b16 %v2649, %v2637
        %v3802 = vpack.c.b16 %v2650, %v2638
        %v3803 = vpack.c.b16 %v2651, %v2639
        %v3804 = vpack.c.b16 %v2652, %v2640
        %v3805 = vpack.c.b16 %v2653, %v2641
        %v3806 = vpack.c.b16 %v2654, %v2642
        %v3807 = vpack.c.b16 %v2655, %v2643
        %v3808 = vpack.c.b16 %v2656, %v2644
        %v3809 = vpack.c.b16 %v2657, %v2645
        %v3810 = vpack.c.b16 %v2658, %v2646
        %v3811 = vpack.c.b16 %v2671, %v2659
        %v3812 = vpack.c.b16 %v2672, %v2660
        %v3813 = vpack.c.b16 %v2673, %v2661
        %v3814 = vpack.c.b16 %v2674, %v2662
        %v3815 = vpack.c.b16 %v2675, %v2663
        %v3816 = vpack.c.b16 %v2676, %v2664
        %v3817 = vpack.c.b16 %v2677, %v2665
        %v3818 = vpack.c.b16 %v2678, %v2666
        %v3819 = vpack.c.b16 %v2679, %v2667
        %v3820 = vpack.c.b16 %v2680, %v2668
        %v3821 = vpack.c.b16 %v2681, %v2669
        %v3822 = vpack.c.b16 %v2682, %v2670
        %v3823 = vpack.c.b16 %v2695, %v2683
        %v3824 = vpack.c.b16 %v2696, %v2684
        %v3825 = vpack.c.b16 %v2697, %v2685
        %v3826 = vpack.c.b16 %v2698, %v2686
        %v3827 = vpack.c.b16 %v2699, %v2687
        %v3828 = vpack.c.b16 %v2700, %v2688
        %v3829 = vpack.c.b16 %v2701, %v2689
        %v3830 = vpack.c.b16 %v2702, %v2690
        %v3831 = vpack.c.b16 %v2703, %v2691
        %v3832 = vpack.c.b16 %v2704, %v2692
        %v3833 = vpack.c.b16 %v2705, %v2693
        %v3834 = vpack.c.b16 %v2706, %v2694
        %v3835 = vpack.c.b16 %v2719, %v2707
        %v3836 = vpack.c.b16 %v2720, %v2708
        %v3837 = vpack.c.b16 %v2721, %v2709
        %v3838 = vpack.c.b16 %v2722, %v2710
        %v3839 = vpack.c.b16 %v2723, %v2711
        %v3840 = vpack.c.b16 %v2724, %v2712
        %v3841 = vpack.c.b16 %v2725, %v2713
        %v3842 = vpack.c.b16 %v2726, %v2714
        %v3843 = vpack.c.b16 %v2727, %v2715
        %v3844 = vpack.c.b16 %v2728, %v2716
        %v3845 = vpack.c.b16 %v2729, %v2717
        %v3846 = vpack.c.b16 %v2730, %v2718
        %v3847 = vpack.c.b16 %v2743, %v2731
        %v3848 = vpack.c.b16 %v2744, %v2732
        %v3849 = vpack.c.b16 %v2745, %v2733
        %v3850 = vpack.c.b16 %v2746, %v2734
        %v3851 = vpack.c.b16 %v2747, %v2735
        %v3852 = vpack.c.b16 %v2748, %v2736
        %v3853 = vpack.c.b16 %v2749, %v2737
        %v3854 = vpack.c.b16 %v2750, %v2738
        %v3855 = vpack.c.b16 %v2751, %v2739
        %v3856 = vpack.c.b16 %v2752, %v2740
        %v3857 = vpack.c.b16 %v2753, %v2741
        %v3858 = vpack.c.b16 %v2754, %v2742
        %v3859 = vpack.c.b16 %v2767, %v2755
        %v3860 = vpack.c.b16 %v2768, %v2756
        %v3861 = vpack.c.b16 %v2769, %v2757
        %v3862 = vpack.c.b16 %v2770, %v2758
        %v3863 = vpack.c.b16 %v2771, %v2759
        %v3864 = vpack.c.b16 %v2772, %v2760
        %v3865 = vpack.c.b16 %v2773, %v2761
        %v3866 = vpack.c.b16 %v2774, %v2762
        %v3867 = vpack.c.b16 %v2775, %v2763
        %v3868 = vpack.c.b16 %v2776, %v2764
        %v3869 = vpack.c.b16 %v2777, %v2765
        %v3870 = vpack.c.b16 %v2778, %v2766
        %v3871 = vpack.c.b16 %v2791, %v2779
        %v3872 = vpack.c.b16 %v2792, %v2780
        %v3873 = vpack.c.b16 %v2793, %v2781
        %v3874 = vpack.c.b16 %v2794, %v2782
        %v3875 = vpack.c.b16 %v2795, %v2783
        %v3876 = vpack.c.b16 %v2796, %v2784
        %v3877 = vpack.c.b16 %v2797, %v2785
        %v3878 = vpack.c.b16 %v2798, %v2786
        %v3879 = vpack.c.b16 %v2799, %v2787
        %v3880 = vpack.c.b16 %v2800, %v2788
        %v3881 = vpack.c.b16 %v2801, %v2789
        %v3882 = vpack.c.b16 %v2802, %v2790
        %v3883 = vpack.c.b16 %v2815, %v2803
        %v3884 = vpack.c.b16 %v2816, %v2804
        %v3885 = vpack.c.b16 %v2817, %v2805
        %v3886 = vpack.c.b16 %v2818, %v2806
        %v3887 = vpack.c.b16 %v2819, %v2807
        %v3888 = vpack.c.b16 %v2820, %v2808
        %v3889 = vpack.c.b16 %v2821, %v2809
        %v3890 = vpack.c.b16 %v2822, %v2810
        %v3891 = vpack.c.b16 %v2823, %v2811
        %v3892 = vpack.c.b16 %v2824, %v2812
        %v3893 = vpack.c.b16 %v2825, %v2813
        %v3894 = vpack.c.b16 %v2826, %v2814
        %v3895 = vpack.c.b16 %v2839, %v2827
        %v3896 = vpack.c.b16 %v2840, %v2828
        %v3897 = vpack.c.b16 %v2841, %v2829
        %v3898 = vpack.c.b16 %v2842, %v2830
        %v3899 = vpack.c.b16 %v2843, %v2831
        %v3900 = vpack.c.b16 %v2844, %v2832
        %v3901 = vpack.c.b16 %v2845, %v2833
        %v3902 = vpack.c.b16 %v2846, %v2834
        %v3903 = vpack.c.b16 %v2847, %v2835
        %v3904 = vpack.c.b16 %v2848, %v2836
        %v3905 = vpack.c.b16 %v2849, %v2837
        %v3906 = vpack.c.b16 %v2850, %v2838
        %v3907 = vpack.c.b16 %v2863, %v2851
        %v3908 = vpack.c.b16 %v2864, %v2852
        %v3909 = vpack.c.b16 %v2865, %v2853
        %v3910 = vpack.c.b16 %v2866, %v2854
        %v3911 = vpack.c.b16 %v2867, %v2855
        %v3912 = vpack.c.b16 %v2868, %v2856
        %v3913 = vpack.c.b16 %v2869, %v2857
        %v3914 = vpack.c.b16 %v2870, %v2858
        %v3915 = vpack.c.b16 %v2871, %v2859
        %v3916 = vpack.c.b16 %v2872, %v2860
        %v3917 = vpack.c.b16 %v2873, %v2861
        %v3918 = vpack.c.b16 %v2874, %v2862
        %v3919 = vpack.c.b16 %v2887, %v2875
        %v3920 = vpack.c.b16 %v2888, %v2876
        %v3921 = vpack.c.b16 %v2889, %v2877
        %v3922 = vpack.c.b16 %v2890, %v2878
        %v3923 = vpack.c.b16 %v2891, %v2879
        %v3924 = vpack.c.b16 %v2892, %v2880
        %v3925 = vpack.c.b16 %v2893, %v2881
        %v3926 = vpack.c.b16 %v2894, %v2882
        %v3927 = vpack.c.b16 %v2895, %v2883
        %v3928 = vpack.c.b16 %v2896, %v2884
        %v3929 = vpack.c.b16 %v2897, %v2885
        %v3930 = vpack.c.b16 %v2898, %v2886
        %v3931 = vpack.c.b16 %v2911, %v2899
        %v3932 = vpack.c.b16 %v2912, %v2900
        %v3933 = vpack.c.b16 %v2913, %v2901
        %v3934 = vpack.c.b16 %v2914, %v2902
        %v3935 = vpack.c.b16 %v2915, %v2903
        %v3936 = vpack.c.b16 %v2916, %v2904
        %v3937 = vpack.c.b16 %v2917, %v2905
        %v3938 = vpack.c.b16 %v2918, %v2906
        %v3939 = vpack.c.b16 %v2919, %v2907
        %v3940 = vpack.c.b16 %v2920, %v2908
        %v3941 = vpack.c.b16 %v2921, %v2909
        %v3942 = vpack.c.b16 %v2922, %v2910
        %v3943 = vpack.c.b16 %v2935, %v2923
        %v3944 = vpack.c.b16 %v2936, %v2924
        %v3945 = vpack.c.b16 %v2937, %v2925
        %v3946 = vpack.c.b16 %v2938, %v2926
        %v3947 = vpack.c.b16 %v2939, %v2927
        %v3948 = vpack.c.b16 %v2940, %v2928
        %v3949 = vpack.c.b16 %v2941, %v2929
        %v3950 = vpack.c.b16 %v2942, %v2930
        %v3951 = vpack.c.b16 %v2943, %v2931
        %v3952 = vpack.c.b16 %v2944, %v2932
        %v3953 = vpack.c.b16 %v2945, %v2933
        %v3954 = vpack.c.b16 %v2946, %v2934
        %v3955 = vpack.c.b16 %v2959, %v2947
        %v3956 = vpack.c.b16 %v2960, %v2948
        %v3957 = vpack.c.b16 %v2961, %v2949
        %v3958 = vpack.c.b16 %v2962, %v2950
        %v3959 = vpack.c.b16 %v2963, %v2951
        %v3960 = vpack.c.b16 %v2964, %v2952
        %v3961 = vpack.c.b16 %v2965, %v2953
        %v3962 = vpack.c.b16 %v2966, %v2954
        %v3963 = vpack.c.b16 %v2967, %v2955
        %v3964 = vpack.c.b16 %v2968, %v2956
        %v3965 = vpack.c.b16 %v2969, %v2957
        %v3966 = vpack.c.b16 %v2970, %v2958
        %v3967 = vpack.c.b16 %v2983, %v2971
        %v3968 = vpack.c.b16 %v2984, %v2972
        %v3969 = vpack.c.b16 %v2985, %v2973
        %v3970 = vpack.c.b16 %v2986, %v2974
        %v3971 = vpack.c.b16 %v2987, %v2975
        %v3972 = vpack.c.b16 %v2988, %v2976
        %v3973 = vpack.c.b16 %v2989, %v2977
        %v3974 = vpack.c.b16 %v2990, %v2978
        %v3975 = vpack.c.b16 %v2991, %v2979
        %v3976 = vpack.c.b16 %v2992, %v2980
        %v3977 = vpack.c.b16 %v2993, %v2981
        %v3978 = vpack.c.b16 %v2994, %v2982
        %v3979 = vpack.c.b16 %v3007, %v2995
        %v3980 = vpack.c.b16 %v3008, %v2996
        %v3981 = vpack.c.b16 %v3009, %v2997
        %v3982 = vpack.c.b16 %v3010, %v2998
        %v3983 = vpack.c.b16 %v3011, %v2999
        %v3984 = vpack.c.b16 %v3012, %v3000
        %v3985 = vpack.c.b16 %v3013, %v3001
        %v3986 = vpack.c.b16 %v3014, %v3002
        %v3987 = vpack.c.b16 %v3015, %v3003
        %v3988 = vpack.c.b16 %v3016, %v3004
        %v3989 = vpack.c.b16 %v3017, %v3005
        %v3990 = vpack.c.b16 %v3018, %v3006
        %v3991 = vpack.c.b16 %v3031, %v3019
        %v3992 = vpack.c.b16 %v3032, %v3020
        %v3993 = vpack.c.b16 %v3033, %v3021
        %v3994 = vpack.c.b16 %v3034, %v3022
        %v3995 = vpack.c.b16 %v3035, %v3023
        %v3996 = vpack.c.b16 %v3036, %v3024
        %v3997 = vpack.c.b16 %v3037, %v3025
        %v3998 = vpack.c.b16 %v3038, %v3026
        %v3999 = vpack.c.b16 %v3039, %v3027
        %v4000 = vpack.c.b16 %v3040, %v3028
        %v4001 = vpack.c.b16 %v3041, %v3029
        %v4002 = vpack.c.b16 %v3042, %v3030
        %v4003 = vpack.c.b16 %v3055, %v3043
        %v4004 = vpack.c.b16 %v3056, %v3044
        %v4005 = vpack.c.b16 %v3057, %v3045
        %v4006 = vpack.c.b16 %v3058, %v3046
        %v4007 = vpack.c.b16 %v3059, %v3047
        %v4008 = vpack.c.b16 %v3060, %v3048
        %v4009 = vpack.c.b16 %v3061, %v3049
        %v4010 = vpack.c.b16 %v3062, %v3050
        %v4011 = vpack.c.b16 %v3063, %v3051
        %v4012 = vpack.c.b16 %v3064, %v3052
        %v4013 = vpack.c.b16 %v3065, %v3053
        %v4014 = vpack.c.b16 %v3066, %v3054
        %v4015 = vpack.c.b16 %v3079, %v3067
        %v4016 = vpack.c.b16 %v3080, %v3068
        %v4017 = vpack.c.b16 %v3081, %v3069
        %v4018 = vpack.c.b16 %v3082, %v3070
        %v4019 = vpack.c.b16 %v3083, %v3071
        %v4020 = vpack.c.b16 %v3084, %v3072
        %v4021 = vpack.c.b16 %v3085, %v3073
        %v4022 = vpack.c.b16 %v3086, %v3074
        %v4023 = vpack.c.b16 %v3087, %v3075
        %v4024 = vpack.c.b16 %v3088, %v3076
        %v4025 = vpack.c.b16 %v3089, %v3077
        %v4026 = vpack.c.b16 %v3090, %v3078
        %v4027 = vpack.c.b16 %v3103, %v3091
        %v4028 = vpack.c.b16 %v3104, %v3092
        %v4029 = vpack.c.b16 %v3105, %v3093
        %v4030 = vpack.c.b16 %v3106, %v3094
        %v4031 = vpack.c.b16 %v3107, %v3095
        %v4032 = vpack.c.b16 %v3108, %v3096
        %v4033 = vpack.c.b16 %v3109, %v3097
        %v4034 = vpack.c.b16 %v3110, %v3098
        %v4035 = vpack.c.b16 %v3111, %v3099
        %v4036 = vpack.c.b16 %v3112, %v3100
        %v4037 = vpack.c.b16 %v3113, %v3101
        %v4038 = vpack.c.b16 %v3114, %v3102
        %v4039 = vpack.c.b16 %v3127, %v3115
        %v4040 = vpack.c.b16 %v3128, %v3116
        %v4041 = vpack.c.b16 %v3129, %v3117
        %v4042 = vpack.c.b16 %v3130, %v3118
        %v4043 = vpack.c.b16 %v3131, %v3119
        %v4044 = vpack.c.b16 %v3132, %v3120
        %v4045 = vpack.c.b16 %v3133, %v3121
        %v4046 = vpack.c.b16 %v3134, %v3122
        %v4047 = vpack.c.b16 %v3135, %v3123
        %v4048 = vpack.c.b16 %v3136, %v3124
        %v4049 = vpack.c.b16 %v3137, %v3125
        %v4050 = vpack.c.b16 %v3138, %v3126
        %v4051 = vpack.c.b16 %v3151, %v3139
        %v4052 = vpack.c.b16 %v3152, %v3140
        %v4053 = vpack.c.b16 %v3153, %v3141
        %v4054 = vpack.c.b16 %v3154, %v3142
        %v4055 = vpack.c.b16 %v3155, %v3143
        %v4056 = vpack.c.b16 %v3156, %v3144
        %v4057 = vpack.c.b16 %v3157, %v3145
        %v4058 = vpack.c.b16 %v3158, %v3146
        %v4059 = vpack.c.b16 %v3159, %v3147
        %v4060 = vpack.c.b16 %v3160, %v3148
        %v4061 = vpack.c.b16 %v3161, %v3149
        %v4062 = vpack.c.b16 %v3162, %v3150
        %v4063 = vpack.c.b16 %v3175, %v3163
        %v4064 = vpack.c.b16 %v3176, %v3164
        %v4065 = vpack.c.b16 %v3177, %v3165
        %v4066 = vpack.c.b16 %v3178, %v3166
        %v4067 = vpack.c.b16 %v3179, %v3167
        %v4068 = vpack.c.b16 %v3180, %v3168
        %v4069 = vpack.c.b16 %v3181, %v3169
        %v4070 = vpack.c.b16 %v3182, %v3170
        %v4071 = vpack.c.b16 %v3183, %v3171
        %v4072 = vpack.c.b16 %v3184, %v3172
        %v4073 = vpack.c.b16 %v3185, %v3173
        %v4074 = vpack.c.b16 %v3186, %v3174
        %v4075 = vpack.c.b16 %v3199, %v3187
        %v4076 = vpack.c.b16 %v3200, %v3188
        %v4077 = vpack.c.b16 %v3201, %v3189
        %v4078 = vpack.c.b16 %v3202, %v3190
        %v4079 = vpack.c.b16 %v3203, %v3191
        %v4080 = vpack.c.b16 %v3204, %v3192
        %v4081 = vpack.c.b16 %v3205, %v3193
        %v4082 = vpack.c.b16 %v3206, %v3194
        %v4083 = vpack.c.b16 %v3207, %v3195
        %v4084 = vpack.c.b16 %v3208, %v3196
        %v4085 = vpack.c.b16 %v3209, %v3197
        %v4086 = vpack.c.b16 %v3210, %v3198
        %v4087 = vpack.c.b16 %v3223, %v3211
        %v4088 = vpack.c.b16 %v3224, %v3212
        %v4089 = vpack.c.b16 %v3225, %v3213
        %v4090 = vpack.c.b16 %v3226, %v3214
        %v4091 = vpack.c.b16 %v3227, %v3215
        %v4092 = vpack.c.b16 %v3228, %v3216
        %v4093 = vpack.c.b16 %v3229, %v3217
        %v4094 = vpack.c.b16 %v3230, %v3218
        %v4095 = vpack.c.b16 %v3231, %v3219
        %v4096 = vpack.c.b16 %v3232, %v3220
        %v4097 = vpack.c.b16 %v3233, %v3221
        %v4098 = vpack.c.b16 %v3234, %v3222
        %v4099 = vpack.c.b16 %v3247, %v3235
        %v4100 = vpack.c.b16 %v3248, %v3236
        %v4101 = vpack.c.b16 %v3249, %v3237
        %v4102 = vpack.c.b16 %v3250, %v3238
        %v4103 = vpack.c.b16 %v3251, %v3239
        %v4104 = vpack.c.b16 %v3252, %v3240
        %v4105 = vpack.c.b16 %v3253, %v3241
        %v4106 = vpack.c.b16 %v3254, %v3242
        %v4107 = vpack.c.b16 %v3255, %v3243
        %v4108 = vpack.c.b16 %v3256, %v3244
        %v4109 = vpack.c.b16 %v3257, %v3245
        %v4110 = vpack.c.b16 %v3258, %v3246
        %v4111 = vpack.c.b16 %v3271, %v3259
        %v4112 = vpack.c.b16 %v3272, %v3260
        %v4113 = vpack.c.b16 %v3273, %v3261
        %v4114 = vpack.c.b16 %v3274, %v3262
        %v4115 = vpack.c.b16 %v3275, %v3263
        %v4116 = vpack.c.b16 %v3276, %v3264
        %v4117 = vpack.c.b16 %v3277, %v3265
        %v4118 = vpack.c.b16 %v3278, %v3266
        %v4119 = vpack.c.b16 %v3279, %v3267
        %v4120 = vpack.c.b16 %v3280, %v3268
        %v4121 = vpack.c.b16 %v3281, %v3269
        %v4122 = vpack.c.b16 %v3282, %v3270
        %v4123 = vpack.c.b16 %v3295, %v3283
        %v4124 = vpack.c.b16 %v3296, %v3284
        %v4125 = vpack.c.b16 %v3297, %v3285
        %v4126 = vpack.c.b16 %v3298, %v3286
        %v4127 = vpack.c.b16 %v3299, %v3287
        %v4128 = vpack.c.b16 %v3300, %v3288
        %v4129 = vpack.c.b16 %v3301, %v3289
        %v4130 = vpack.c.b16 %v3302, %v3290
        %v4131 = vpack.c.b16 %v3303, %v3291
        %v4132 = vpack.c.b16 %v3304, %v3292
        %v4133 = vpack.c.b16 %v3305, %v3293
        %v4134 = vpack.c.b16 %v3306, %v3294
        %v4135 = vpack.c.b16 %v3319, %v3307
        %v4136 = vpack.c.b16 %v3320, %v3308
        %v4137 = vpack.c.b16 %v3321, %v3309
        %v4138 = vpack.c.b16 %v3322, %v3310
        %v4139 = vpack.c.b16 %v3323, %v3311
        %v4140 = vpack.c.b16 %v3324, %v3312
        %v4141 = vpack.c.b16 %v3325, %v3313
        %v4142 = vpack.c.b16 %v3326, %v3314
        %v4143 = vpack.c.b16 %v3327, %v3315
        %v4144 = vpack.c.b16 %v3328, %v3316
        %v4145 = vpack.c.b16 %v3329, %v3317
        %v4146 = vpack.c.b16 %v3330, %v3318
        %v4147 = vpack.c.b16 %v3343, %v3331
        %v4148 = vpack.c.b16 %v3344, %v3332
        %v4149 = vpack.c.b16 %v3345, %v3333
        %v4150 = vpack.c.b16 %v3346, %v3334
        %v4151 = vpack.c.b16 %v3347, %v3335
        %v4152 = vpack.c.b16 %v3348, %v3336
        %v4153 = vpack.c.b16 %v3349, %v3337
        %v4154 = vpack.c.b16 %v3350, %v3338
        %v4155 = vpack.c.b16 %v3351, %v3339
        %v4156 = vpack.c.b16 %v3352, %v3340
        %v4157 = vpack.c.b16 %v3353, %v3341
        %v4158 = vpack.c.b16 %v3354, %v3342
        %v4159 = vpack.c.b16 %v3367, %v3355
        %v4160 = vpack.c.b16 %v3368, %v3356
        %v4161 = vpack.c.b16 %v3369, %v3357
        %v4162 = vpack.c.b16 %v3370, %v3358
        %v4163 = vpack.c.b16 %v3371, %v3359
        %v4164 = vpack.c.b16 %v3372, %v3360
        %v4165 = vpack.c.b16 %v3373, %v3361
        %v4166 = vpack.c.b16 %v3374, %v3362
        %v4167 = vpack.c.b16 %v3375, %v3363
        %v4168 = vpack.c.b16 %v3376, %v3364
        %v4169 = vpack.c.b16 %v3377, %v3365
        %v4170 = vpack.c.b16 %v3378, %v3366
        %v4171 = vpack.c.b16 %v3391, %v3379
        %v4172 = vpack.c.b16 %v3392, %v3380
        %v4173 = vpack.c.b16 %v3393, %v3381
        %v4174 = vpack.c.b16 %v3394, %v3382
        %v4175 = vpack.c.b16 %v3395, %v3383
        %v4176 = vpack.c.b16 %v3396, %v3384
        %v4177 = vpack.c.b16 %v3397, %v3385
        %v4178 = vpack.c.b16 %v3398, %v3386
        %v4179 = vpack.c.b16 %v3399, %v3387
        %v4180 = vpack.c.b16 %v3400, %v3388
        %v4181 = vpack.c.b16 %v3401, %v3389
        %v4182 = vpack.c.b16 %v3402, %v3390
        %v4183 = vpack.c.b16 %v3415, %v3403
        %v4184 = vpack.c.b16 %v3416, %v3404
        %v4185 = vpack.c.b16 %v3417, %v3405
        %v4186 = vpack.c.b16 %v3418, %v3406
        %v4187 = vpack.c.b16 %v3419, %v3407
        %v4188 = vpack.c.b16 %v3420, %v3408
        %v4189 = vpack.c.b16 %v3421, %v3409
        %v4190 = vpack.c.b16 %v3422, %v3410
        %v4191 = vpack.c.b16 %v3423, %v3411
        %v4192 = vpack.c.b16 %v3424, %v3412
        %v4193 = vpack.c.b16 %v3425, %v3413
        %v4194 = vpack.c.b16 %v3426, %v3414
        %4963 = vmatprep.subr.bf16.mxu0 %v3428
        %4964 = vmatpush1.bf16.msra.mxu0 %v3427
        %4965 = vmatprep.subr.bf16.mxu0 %v3440
        %4966 = vmatpush1.bf16.msra.mxu0 %v3439
        %4967 = vmatprep.subr.bf16.mxu0 %v3452
        %4968 = vmatpush1.bf16.msra.mxu0 %v3451
        %4969 = vmatprep.subr.bf16.mxu0 %v3464
        %4970 = vmatpush1.bf16.msra.mxu0 %v3463
        %4971 = vmatprep.subr.bf16.mxu0 %v3476
        %4972 = vmatpush1.bf16.msra.mxu0 %v3475
        %4973 = vmatprep.subr.bf16.mxu0 %v3488
        %4974 = vmatpush1.bf16.msra.mxu0 %v3487
        %4975 = vmatprep.subr.bf16.mxu0 %v3500
        %4976 = vmatpush1.bf16.msra.mxu0 %v3499
        %4977 = vmatprep.subr.bf16.mxu0 %v3512
        %4978 = vmatpush1.bf16.msra.mxu0 %v3511
        %4979 = vmatprep.subr.bf16.mxu0 %v3524
        %4980 = vmatpush1.bf16.msra.mxu0 %v3523
        %4981 = vmatprep.subr.bf16.mxu0 %v3536
        %4982 = vmatpush1.bf16.msra.mxu0 %v3535
        %4983 = vmatprep.subr.bf16.mxu0 %v3548
        %4984 = vmatpush1.bf16.msra.mxu0 %v3547
        %4985 = vmatprep.subr.bf16.mxu0 %v3560
        %4986 = vmatpush1.bf16.msra.mxu0 %v3559
        %4987 = vmatprep.subr.bf16.mxu0 %v3572
        %4988 = vmatpush1.bf16.msra.mxu0 %v3571
        %4989 = vmatprep.subr.bf16.mxu0 %v3584
        %4990 = vmatpush1.bf16.msra.mxu0 %v3583
        %4991 = vmatprep.subr.bf16.mxu0 %v3596
        %4992 = vmatpush1.bf16.msra.mxu0 %v3595
        %4993 = vmatprep.subr.bf16.mxu0 %v3608
        %4994 = vmatpush1.bf16.msra.mxu0 %v3607
        %4995 = vmatprep.mubr.bf16.mxu0 %v1103
        %4996 = vmatmul.mubr.bf16.gmra.mrb[0].mxu0 %v1089
        %v4997 = vpop.f32.mrb[0].mxu0
        %v4998 = vadd.f32 %v1008, %v4997
        %v4999 = vpop.f32.mrb[0].mxu0
        %v5000 = vadd.f32 %v1012, %v4999
        %v5001 = vpop.f32.mrb[0].mxu0
        %v5002 = vpop.f32.mrb[0].mxu0
        %5003 = vdwg.mxu0
        %5004 = vmatprep.subr.bf16.mxu0 %v3620
        %5005 = vmatpush1.bf16.msra.mxu0 %v3619
        %5006 = vmatprep.subr.bf16.mxu0 %v3632
        %5007 = vmatpush1.bf16.msra.mxu0 %v3631
        %5008 = vmatprep.subr.bf16.mxu0 %v3644
        %5009 = vmatpush1.bf16.msra.mxu0 %v3643
        %5010 = vmatprep.subr.bf16.mxu0 %v3656
        %5011 = vmatpush1.bf16.msra.mxu0 %v3655
        %5012 = vmatprep.subr.bf16.mxu0 %v3668
        %5013 = vmatpush1.bf16.msra.mxu0 %v3667
        %5014 = vmatprep.subr.bf16.mxu0 %v3680
        %5015 = vmatpush1.bf16.msra.mxu0 %v3679
        %5016 = vmatprep.subr.bf16.mxu0 %v3692
        %5017 = vmatpush1.bf16.msra.mxu0 %v3691
        %5018 = vmatprep.subr.bf16.mxu0 %v3704
        %5019 = vmatpush1.bf16.msra.mxu0 %v3703
        %5020 = vmatprep.subr.bf16.mxu0 %v3716
        %5021 = vmatpush1.bf16.msra.mxu0 %v3715
        %5022 = vmatprep.subr.bf16.mxu0 %v3728
        %5023 = vmatpush1.bf16.msra.mxu0 %v3727
        %5024 = vmatprep.subr.bf16.mxu0 %v3740
        %5025 = vmatpush1.bf16.msra.mxu0 %v3739
        %5026 = vmatprep.subr.bf16.mxu0 %v3752
        %5027 = vmatpush1.bf16.msra.mxu0 %v3751
        %5028 = vmatprep.subr.bf16.mxu0 %v3764
        %5029 = vmatpush1.bf16.msra.mxu0 %v3763
        %5030 = vmatprep.subr.bf16.mxu0 %v3776
        %5031 = vmatpush1.bf16.msra.mxu0 %v3775
        %5032 = vmatprep.subr.bf16.mxu0 %v3788
        %5033 = vmatpush1.bf16.msra.mxu0 %v3787
        %5034 = vmatprep.subr.bf16.mxu0 %v3800
        %5035 = vmatpush1.bf16.msra.mxu0 %v3799
        %5036 = vmatprep.mubr.bf16.mxu0 %v1113
        %5037 = vmatmul.mubr.bf16.gmra.mrb[0].mxu0 %v1111
        %v5038 = vpop.f32.mrb[0].mxu0
        %v5039 = vadd.f32 %v4998, %v5038
        %v5040 = vpop.f32.mrb[0].mxu0
        %v5041 = vadd.f32 %v5000, %v5040
        %v5042 = vpop.f32.mrb[0].mxu0
        %v5043 = vpop.f32.mrb[0].mxu0
        %5044 = vdwg.mxu0
        %5045 = vmatprep.subr.bf16.mxu0 %v3812
        %5046 = vmatpush1.bf16.msra.mxu0 %v3811
        %5047 = vmatprep.subr.bf16.mxu0 %v3824
        %5048 = vmatpush1.bf16.msra.mxu0 %v3823
        %5049 = vmatprep.subr.bf16.mxu0 %v3836
        %5050 = vmatpush1.bf16.msra.mxu0 %v3835
        %5051 = vmatprep.subr.bf16.mxu0 %v3848
        %5052 = vmatpush1.bf16.msra.mxu0 %v3847
        %5053 = vmatprep.subr.bf16.mxu0 %v3860
        %5054 = vmatpush1.bf16.msra.mxu0 %v3859
        %5055 = vmatprep.subr.bf16.mxu0 %v3872
        %5056 = vmatpush1.bf16.msra.mxu0 %v3871
        %5057 = vmatprep.subr.bf16.mxu0 %v3884
        %5058 = vmatpush1.bf16.msra.mxu0 %v3883
        %5059 = vmatprep.subr.bf16.mxu0 %v3896
        %5060 = vmatpush1.bf16.msra.mxu0 %v3895
        %5061 = vmatprep.subr.bf16.mxu0 %v3908
        %5062 = vmatpush1.bf16.msra.mxu0 %v3907
        %5063 = vmatprep.subr.bf16.mxu0 %v3920
        %5064 = vmatpush1.bf16.msra.mxu0 %v3919
        %5065 = vmatprep.subr.bf16.mxu0 %v3932
        %5066 = vmatpush1.bf16.msra.mxu0 %v3931
        %5067 = vmatprep.subr.bf16.mxu0 %v3944
        %5068 = vmatpush1.bf16.msra.mxu0 %v3943
        %5069 = vmatprep.subr.bf16.mxu0 %v3956
        %5070 = vmatpush1.bf16.msra.mxu0 %v3955
        %5071 = vmatprep.subr.bf16.mxu0 %v3968
        %5072 = vmatpush1.bf16.msra.mxu0 %v3967
        %5073 = vmatprep.subr.bf16.mxu0 %v3980
        %5074 = vmatpush1.bf16.msra.mxu0 %v3979
        %5075 = vmatprep.subr.bf16.mxu0 %v3992
        %5076 = vmatpush1.bf16.msra.mxu0 %v3991
        %5077 = vmatprep.mubr.bf16.mxu0 %v1110
        %5078 = vmatmul.mubr.bf16.gmra.mrb[0].mxu0 %v1096
        %v5079 = vpop.f32.mrb[0].mxu0
        %v5080 = vadd.f32 %v5039, %v5079
        %v5081 = vpop.f32.mrb[0].mxu0
        %v5082 = vadd.f32 %v5041, %v5081
        %v5083 = vpop.f32.mrb[0].mxu0
        %v5084 = vpop.f32.mrb[0].mxu0
        %5085 = vdwg.mxu0
        %5086 = vmatprep.subr.bf16.mxu0 %v4004
        %5087 = vmatpush1.bf16.msra.mxu0 %v4003
        %5088 = vmatprep.subr.bf16.mxu0 %v4016
        %5089 = vmatpush1.bf16.msra.mxu0 %v4015
        %5090 = vmatprep.subr.bf16.mxu0 %v4028
        %5091 = vmatpush1.bf16.msra.mxu0 %v4027
        %5092 = vmatprep.subr.bf16.mxu0 %v4040
        %5093 = vmatpush1.bf16.msra.mxu0 %v4039
        %5094 = vmatprep.subr.bf16.mxu0 %v4052
        %5095 = vmatpush1.bf16.msra.mxu0 %v4051
        %5096 = vmatprep.subr.bf16.mxu0 %v4064
        %5097 = vmatpush1.bf16.msra.mxu0 %v4063
        %5098 = vmatprep.subr.bf16.mxu0 %v4076
        %5099 = vmatpush1.bf16.msra.mxu0 %v4075
        %5100 = vmatprep.subr.bf16.mxu0 %v4088
        %5101 = vmatpush1.bf16.msra.mxu0 %v4087
        %5102 = vmatprep.subr.bf16.mxu0 %v4100
        %5103 = vmatpush1.bf16.msra.mxu0 %v4099
        %5104 = vmatprep.subr.bf16.mxu0 %v4112
        %5105 = vmatpush1.bf16.msra.mxu0 %v4111
        %5106 = vmatprep.subr.bf16.mxu0 %v4124
        %5107 = vmatpush1.bf16.msra.mxu0 %v4123
        %5108 = vmatprep.subr.bf16.mxu0 %v4136
        %5109 = vmatpush1.bf16.msra.mxu0 %v4135
        %5110 = vmatprep.subr.bf16.mxu0 %v4148
        %5111 = vmatpush1.bf16.msra.mxu0 %v4147
        %5112 = vmatprep.subr.bf16.mxu0 %v4160
        %5113 = vmatpush1.bf16.msra.mxu0 %v4159
        %5114 = vmatprep.subr.bf16.mxu0 %v4172
        %5115 = vmatpush1.bf16.msra.mxu0 %v4171
        %5116 = vmatprep.subr.bf16.mxu0 %v4184
        %5117 = vmatpush1.bf16.msra.mxu0 %v4183
        %5118 = vmatprep.mubr.bf16.mxu0 %v1114
        %5119 = vmatmul.mubr.bf16.gmra.mrb[0].mxu0 %v1112
        %v5120 = vpop.f32.mrb[0].mxu0
        %v5121 = vadd.f32 %v5080, %v5120
        %v5122 = vpop.f32.mrb[0].mxu0
        %v5123 = vadd.f32 %v5082, %v5122
        %v5124 = vpop.f32.mrb[0].mxu0
        %v5125 = vpop.f32.mrb[0].mxu0
        %5126 = vdwg.mxu0
        %5127 = vmatprep.subr.bf16.mxu0 %v3430
        %5128 = vmatpush1.bf16.msra.mxu0 %v3429
        %5129 = vmatprep.subr.bf16.mxu0 %v3442
        %5130 = vmatpush1.bf16.msra.mxu0 %v3441
        %5131 = vmatprep.subr.bf16.mxu0 %v3454
        %5132 = vmatpush1.bf16.msra.mxu0 %v3453
        %5133 = vmatprep.subr.bf16.mxu0 %v3466
        %5134 = vmatpush1.bf16.msra.mxu0 %v3465
        %5135 = vmatprep.subr.bf16.mxu0 %v3478
        %5136 = vmatpush1.bf16.msra.mxu0 %v3477
        %5137 = vmatprep.subr.bf16.mxu0 %v3490
        %5138 = vmatpush1.bf16.msra.mxu0 %v3489
        %5139 = vmatprep.subr.bf16.mxu0 %v3502
        %5140 = vmatpush1.bf16.msra.mxu0 %v3501
        %5141 = vmatprep.subr.bf16.mxu0 %v3514
        %5142 = vmatpush1.bf16.msra.mxu0 %v3513
        %5143 = vmatprep.subr.bf16.mxu0 %v3526
        %5144 = vmatpush1.bf16.msra.mxu0 %v3525
        %5145 = vmatprep.subr.bf16.mxu0 %v3538
        %5146 = vmatpush1.bf16.msra.mxu0 %v3537
        %5147 = vmatprep.subr.bf16.mxu0 %v3550
        %5148 = vmatpush1.bf16.msra.mxu0 %v3549
        %5149 = vmatprep.subr.bf16.mxu0 %v3562
        %5150 = vmatpush1.bf16.msra.mxu0 %v3561
        %5151 = vmatprep.subr.bf16.mxu0 %v3574
        %5152 = vmatpush1.bf16.msra.mxu0 %v3573
        %5153 = vmatprep.subr.bf16.mxu0 %v3586
        %5154 = vmatpush1.bf16.msra.mxu0 %v3585
        %5155 = vmatprep.subr.bf16.mxu0 %v3598
        %5156 = vmatpush1.bf16.msra.mxu0 %v3597
        %5157 = vmatprep.subr.bf16.mxu0 %v3610
        %5158 = vmatpush1.bf16.msra.mxu0 %v3609
        %5159 = vmatprep.mubr.bf16.mxu0 %v1103
        %5160 = vmatmul.mubr.bf16.gmra.mrb[0].mxu0 %v1089
        %v5161 = vpop.f32.mrb[0].mxu0
        %v5162 = vadd.f32 %v1016, %v5161
        %v5163 = vpop.f32.mrb[0].mxu0
        %v5164 = vadd.f32 %v1020, %v5163
        %v5165 = vpop.f32.mrb[0].mxu0
        %v5166 = vpop.f32.mrb[0].mxu0
        %5167 = vdwg.mxu0
        %5168 = vmatprep.subr.bf16.mxu0 %v3622
        %5169 = vmatpush1.bf16.msra.mxu0 %v3621
        %5170 = vmatprep.subr.bf16.mxu0 %v3634
        %5171 = vmatpush1.bf16.msra.mxu0 %v3633
        %5172 = vmatprep.subr.bf16.mxu0 %v3646
        %5173 = vmatpush1.bf16.msra.mxu0 %v3645
        %5174 = vmatprep.subr.bf16.mxu0 %v3658
        %5175 = vmatpush1.bf16.msra.mxu0 %v3657
        %5176 = vmatprep.subr.bf16.mxu0 %v3670
        %5177 = vmatpush1.bf16.msra.mxu0 %v3669
        %5178 = vmatprep.subr.bf16.mxu0 %v3682
        %5179 = vmatpush1.bf16.msra.mxu0 %v3681
        %5180 = vmatprep.subr.bf16.mxu0 %v3694
        %5181 = vmatpush1.bf16.msra.mxu0 %v3693
        %5182 = vmatprep.subr.bf16.mxu0 %v3706
        %5183 = vmatpush1.bf16.msra.mxu0 %v3705
        %5184 = vmatprep.subr.bf16.mxu0 %v3718
        %5185 = vmatpush1.bf16.msra.mxu0 %v3717
        %5186 = vmatprep.subr.bf16.mxu0 %v3730
        %5187 = vmatpush1.bf16.msra.mxu0 %v3729
        %5188 = vmatprep.subr.bf16.mxu0 %v3742
        %5189 = vmatpush1.bf16.msra.mxu0 %v3741
        %5190 = vmatprep.subr.bf16.mxu0 %v3754
        %5191 = vmatpush1.bf16.msra.mxu0 %v3753
        %5192 = vmatprep.subr.bf16.mxu0 %v3766
        %5193 = vmatpush1.bf16.msra.mxu0 %v3765
        %5194 = vmatprep.subr.bf16.mxu0 %v3778
        %5195 = vmatpush1.bf16.msra.mxu0 %v3777
        %5196 = vmatprep.subr.bf16.mxu0 %v3790
        %5197 = vmatpush1.bf16.msra.mxu0 %v3789
        %5198 = vmatprep.subr.bf16.mxu0 %v3802
        %5199 = vmatpush1.bf16.msra.mxu0 %v3801
        %5200 = vmatprep.mubr.bf16.mxu0 %v1113
        %5201 = vmatmul.mubr.bf16.gmra.mrb[0].mxu0 %v1111
        %v5202 = vpop.f32.mrb[0].mxu0
        %v5203 = vadd.f32 %v5162, %v5202
        %v5204 = vpop.f32.mrb[0].mxu0
        %v5205 = vadd.f32 %v5164, %v5204
        %v5206 = vpop.f32.mrb[0].mxu0
        %v5207 = vpop.f32.mrb[0].mxu0
        %5208 = vdwg.mxu0
        %5209 = vmatprep.subr.bf16.mxu0 %v3814
        %5210 = vmatpush1.bf16.msra.mxu0 %v3813
        %5211 = vmatprep.subr.bf16.mxu0 %v3826
        %5212 = vmatpush1.bf16.msra.mxu0 %v3825
        %5213 = vmatprep.subr.bf16.mxu0 %v3838
        %5214 = vmatpush1.bf16.msra.mxu0 %v3837
        %5215 = vmatprep.subr.bf16.mxu0 %v3850
        %5216 = vmatpush1.bf16.msra.mxu0 %v3849
        %5217 = vmatprep.subr.bf16.mxu0 %v3862
        %5218 = vmatpush1.bf16.msra.mxu0 %v3861
        %5219 = vmatprep.subr.bf16.mxu0 %v3874
        %5220 = vmatpush1.bf16.msra.mxu0 %v3873
        %5221 = vmatprep.subr.bf16.mxu0 %v3886
        %5222 = vmatpush1.bf16.msra.mxu0 %v3885
        %5223 = vmatprep.subr.bf16.mxu0 %v3898
        %5224 = vmatpush1.bf16.msra.mxu0 %v3897
        %5225 = vmatprep.subr.bf16.mxu0 %v3910
        %5226 = vmatpush1.bf16.msra.mxu0 %v3909
        %5227 = vmatprep.subr.bf16.mxu0 %v3922
        %5228 = vmatpush1.bf16.msra.mxu0 %v3921
        %5229 = vmatprep.subr.bf16.mxu0 %v3934
        %5230 = vmatpush1.bf16.msra.mxu0 %v3933
        %5231 = vmatprep.subr.bf16.mxu0 %v3946
        %5232 = vmatpush1.bf16.msra.mxu0 %v3945
        %5233 = vmatprep.subr.bf16.mxu0 %v3958
        %5234 = vmatpush1.bf16.msra.mxu0 %v3957
        %5235 = vmatprep.subr.bf16.mxu0 %v3970
        %5236 = vmatpush1.bf16.msra.mxu0 %v3969
        %5237 = vmatprep.subr.bf16.mxu0 %v3982
        %5238 = vmatpush1.bf16.msra.mxu0 %v3981
        %5239 = vmatprep.subr.bf16.mxu0 %v3994
        %5240 = vmatpush1.bf16.msra.mxu0 %v3993
        %5241 = vmatprep.mubr.bf16.mxu0 %v1110
        %5242 = vmatmul.mubr.bf16.gmra.mrb[0].mxu0 %v1096
        %v5243 = vpop.f32.mrb[0].mxu0
        %v5244 = vadd.f32 %v5203, %v5243
        %v5245 = vpop.f32.mrb[0].mxu0
        %v5246 = vadd.f32 %v5205, %v5245
        %v5247 = vpop.f32.mrb[0].mxu0
        %v5248 = vpop.f32.mrb[0].mxu0
        %5249 = vdwg.mxu0
        %5250 = vmatprep.subr.bf16.mxu0 %v4006
        %5251 = vmatpush1.bf16.msra.mxu0 %v4005
        %5252 = vmatprep.subr.bf16.mxu0 %v4018
        %5253 = vmatpush1.bf16.msra.mxu0 %v4017
        %5254 = vmatprep.subr.bf16.mxu0 %v4030
        %5255 = vmatpush1.bf16.msra.mxu0 %v4029
        %5256 = vmatprep.subr.bf16.mxu0 %v4042
        %5257 = vmatpush1.bf16.msra.mxu0 %v4041
        %5258 = vmatprep.subr.bf16.mxu0 %v4054
        %5259 = vmatpush1.bf16.msra.mxu0 %v4053
        %5260 = vmatprep.subr.bf16.mxu0 %v4066
        %5261 = vmatpush1.bf16.msra.mxu0 %v4065
        %5262 = vmatprep.subr.bf16.mxu0 %v4078
        %5263 = vmatpush1.bf16.msra.mxu0 %v4077
        %5264 = vmatprep.subr.bf16.mxu0 %v4090
        %5265 = vmatpush1.bf16.msra.mxu0 %v4089
        %5266 = vmatprep.subr.bf16.mxu0 %v4102
        %5267 = vmatpush1.bf16.msra.mxu0 %v4101
        %5268 = vmatprep.subr.bf16.mxu0 %v4114
        %5269 = vmatpush1.bf16.msra.mxu0 %v4113
        %5270 = vmatprep.subr.bf16.mxu0 %v4126
        %5271 = vmatpush1.bf16.msra.mxu0 %v4125
        %5272 = vmatprep.subr.bf16.mxu0 %v4138
        %5273 = vmatpush1.bf16.msra.mxu0 %v4137
        %5274 = vmatprep.subr.bf16.mxu0 %v4150
        %5275 = vmatpush1.bf16.msra.mxu0 %v4149
        %5276 = vmatprep.subr.bf16.mxu0 %v4162
        %5277 = vmatpush1.bf16.msra.mxu0 %v4161
        %5278 = vmatprep.subr.bf16.mxu0 %v4174
        %5279 = vmatpush1.bf16.msra.mxu0 %v4173
        %5280 = vmatprep.subr.bf16.mxu0 %v4186
        %5281 = vmatpush1.bf16.msra.mxu0 %v4185
        %5282 = vmatprep.mubr.bf16.mxu0 %v1114
        %5283 = vmatmul.mubr.bf16.gmra.mrb[0].mxu0 %v1112
        %v5284 = vpop.f32.mrb[0].mxu0
        %v5285 = vadd.f32 %v5244, %v5284
        %v5286 = vpop.f32.mrb[0].mxu0
        %v5287 = vadd.f32 %v5246, %v5286
        %v5288 = vpop.f32.mrb[0].mxu0
        %v5289 = vpop.f32.mrb[0].mxu0
        %5290 = vdwg.mxu0
        %5291 = vmatprep.subr.bf16.mxu0 %v3432
        %5292 = vmatpush1.bf16.msra.mxu0 %v3431
        %5293 = vmatprep.subr.bf16.mxu0 %v3444
        %5294 = vmatpush1.bf16.msra.mxu0 %v3443
        %5295 = vmatprep.subr.bf16.mxu0 %v3456
        %5296 = vmatpush1.bf16.msra.mxu0 %v3455
        %5297 = vmatprep.subr.bf16.mxu0 %v3468
        %5298 = vmatpush1.bf16.msra.mxu0 %v3467
        %5299 = vmatprep.subr.bf16.mxu0 %v3480
        %5300 = vmatpush1.bf16.msra.mxu0 %v3479
        %5301 = vmatprep.subr.bf16.mxu0 %v3492
        %5302 = vmatpush1.bf16.msra.mxu0 %v3491
        %5303 = vmatprep.subr.bf16.mxu0 %v3504
        %5304 = vmatpush1.bf16.msra.mxu0 %v3503
        %5305 = vmatprep.subr.bf16.mxu0 %v3516
        %5306 = vmatpush1.bf16.msra.mxu0 %v3515
        %5307 = vmatprep.subr.bf16.mxu0 %v3528
        %5308 = vmatpush1.bf16.msra.mxu0 %v3527
        %5309 = vmatprep.subr.bf16.mxu0 %v3540
        %5310 = vmatpush1.bf16.msra.mxu0 %v3539
        %5311 = vmatprep.subr.bf16.mxu0 %v3552
        %5312 = vmatpush1.bf16.msra.mxu0 %v3551
        %5313 = vmatprep.subr.bf16.mxu0 %v3564
        %5314 = vmatpush1.bf16.msra.mxu0 %v3563
        %5315 = vmatprep.subr.bf16.mxu0 %v3576
        %5316 = vmatpush1.bf16.msra.mxu0 %v3575
        %5317 = vmatprep.subr.bf16.mxu0 %v3588
        %5318 = vmatpush1.bf16.msra.mxu0 %v3587
        %5319 = vmatprep.subr.bf16.mxu0 %v3600
        %5320 = vmatpush1.bf16.msra.mxu0 %v3599
        %5321 = vmatprep.subr.bf16.mxu0 %v3612
        %5322 = vmatpush1.bf16.msra.mxu0 %v3611
        %5323 = vmatprep.mubr.bf16.mxu0 %v1103
        %5324 = vmatmul.mubr.bf16.gmra.mrb[0].mxu0 %v1089
        %v5325 = vpop.f32.mrb[0].mxu0
        %v5326 = vadd.f32 %v1024, %v5325
        %v5327 = vpop.f32.mrb[0].mxu0
        %v5328 = vadd.f32 %v1028, %v5327
        %v5329 = vpop.f32.mrb[0].mxu0
        %v5330 = vpop.f32.mrb[0].mxu0
        %5331 = vdwg.mxu0
        %5332 = vmatprep.subr.bf16.mxu0 %v3624
        %5333 = vmatpush1.bf16.msra.mxu0 %v3623
        %5334 = vmatprep.subr.bf16.mxu0 %v3636
        %5335 = vmatpush1.bf16.msra.mxu0 %v3635
        %5336 = vmatprep.subr.bf16.mxu0 %v3648
        %5337 = vmatpush1.bf16.msra.mxu0 %v3647
        %5338 = vmatprep.subr.bf16.mxu0 %v3660
        %5339 = vmatpush1.bf16.msra.mxu0 %v3659
        %5340 = vmatprep.subr.bf16.mxu0 %v3672
        %5341 = vmatpush1.bf16.msra.mxu0 %v3671
        %5342 = vmatprep.subr.bf16.mxu0 %v3684
        %5343 = vmatpush1.bf16.msra.mxu0 %v3683
        %5344 = vmatprep.subr.bf16.mxu0 %v3696
        %5345 = vmatpush1.bf16.msra.mxu0 %v3695
        %5346 = vmatprep.subr.bf16.mxu0 %v3708
        %5347 = vmatpush1.bf16.msra.mxu0 %v3707
        %5348 = vmatprep.subr.bf16.mxu0 %v3720
        %5349 = vmatpush1.bf16.msra.mxu0 %v3719
        %5350 = vmatprep.subr.bf16.mxu0 %v3732
        %5351 = vmatpush1.bf16.msra.mxu0 %v3731
        %5352 = vmatprep.subr.bf16.mxu0 %v3744
        %5353 = vmatpush1.bf16.msra.mxu0 %v3743
        %5354 = vmatprep.subr.bf16.mxu0 %v3756
        %5355 = vmatpush1.bf16.msra.mxu0 %v3755
        %5356 = vmatprep.subr.bf16.mxu0 %v3768
        %5357 = vmatpush1.bf16.msra.mxu0 %v3767
        %5358 = vmatprep.subr.bf16.mxu0 %v3780
        %5359 = vmatpush1.bf16.msra.mxu0 %v3779
        %5360 = vmatprep.subr.bf16.mxu0 %v3792
        %5361 = vmatpush1.bf16.msra.mxu0 %v3791
        %5362 = vmatprep.subr.bf16.mxu0 %v3804
        %5363 = vmatpush1.bf16.msra.mxu0 %v3803
        %5364 = vmatprep.mubr.bf16.mxu0 %v1113
        %5365 = vmatmul.mubr.bf16.gmra.mrb[0].mxu0 %v1111
        %v5366 = vpop.f32.mrb[0].mxu0
        %v5367 = vadd.f32 %v5326, %v5366
        %v5368 = vpop.f32.mrb[0].mxu0
        %v5369 = vadd.f32 %v5328, %v5368
        %v5370 = vpop.f32.mrb[0].mxu0
        %v5371 = vpop.f32.mrb[0].mxu0
        %5372 = vdwg.mxu0
        %5373 = vmatprep.subr.bf16.mxu0 %v3816
        %5374 = vmatpush1.bf16.msra.mxu0 %v3815
        %5375 = vmatprep.subr.bf16.mxu0 %v3828
        %5376 = vmatpush1.bf16.msra.mxu0 %v3827
        %5377 = vmatprep.subr.bf16.mxu0 %v3840
        %5378 = vmatpush1.bf16.msra.mxu0 %v3839
        %5379 = vmatprep.subr.bf16.mxu0 %v3852
        %5380 = vmatpush1.bf16.msra.mxu0 %v3851
        %5381 = vmatprep.subr.bf16.mxu0 %v3864
        %5382 = vmatpush1.bf16.msra.mxu0 %v3863
        %5383 = vmatprep.subr.bf16.mxu0 %v3876
        %5384 = vmatpush1.bf16.msra.mxu0 %v3875
        %5385 = vmatprep.subr.bf16.mxu0 %v3888
        %5386 = vmatpush1.bf16.msra.mxu0 %v3887
        %5387 = vmatprep.subr.bf16.mxu0 %v3900
        %5388 = vmatpush1.bf16.msra.mxu0 %v3899
        %5389 = vmatprep.subr.bf16.mxu0 %v3912
        %5390 = vmatpush1.bf16.msra.mxu0 %v3911
        %5391 = vmatprep.subr.bf16.mxu0 %v3924
        %5392 = vmatpush1.bf16.msra.mxu0 %v3923
        %5393 = vmatprep.subr.bf16.mxu0 %v3936
        %5394 = vmatpush1.bf16.msra.mxu0 %v3935
        %5395 = vmatprep.subr.bf16.mxu0 %v3948
        %5396 = vmatpush1.bf16.msra.mxu0 %v3947
        %5397 = vmatprep.subr.bf16.mxu0 %v3960
        %5398 = vmatpush1.bf16.msra.mxu0 %v3959
        %5399 = vmatprep.subr.bf16.mxu0 %v3972
        %5400 = vmatpush1.bf16.msra.mxu0 %v3971
        %5401 = vmatprep.subr.bf16.mxu0 %v3984
        %5402 = vmatpush1.bf16.msra.mxu0 %v3983
        %5403 = vmatprep.subr.bf16.mxu0 %v3996
        %5404 = vmatpush1.bf16.msra.mxu0 %v3995
        %5405 = vmatprep.mubr.bf16.mxu0 %v1110
        %5406 = vmatmul.mubr.bf16.gmra.mrb[0].mxu0 %v1096
        %v5407 = vpop.f32.mrb[0].mxu0
        %v5408 = vadd.f32 %v5367, %v5407
        %v5409 = vpop.f32.mrb[0].mxu0
        %v5410 = vadd.f32 %v5369, %v5409
        %v5411 = vpop.f32.mrb[0].mxu0
        %v5412 = vpop.f32.mrb[0].mxu0
        %5413 = vdwg.mxu0
        %5414 = vmatprep.subr.bf16.mxu0 %v4008
        %5415 = vmatpush1.bf16.msra.mxu0 %v4007
        %5416 = vmatprep.subr.bf16.mxu0 %v4020
        %5417 = vmatpush1.bf16.msra.mxu0 %v4019
        %5418 = vmatprep.subr.bf16.mxu0 %v4032
        %5419 = vmatpush1.bf16.msra.mxu0 %v4031
        %5420 = vmatprep.subr.bf16.mxu0 %v4044
        %5421 = vmatpush1.bf16.msra.mxu0 %v4043
        %5422 = vmatprep.subr.bf16.mxu0 %v4056
        %5423 = vmatpush1.bf16.msra.mxu0 %v4055
        %5424 = vmatprep.subr.bf16.mxu0 %v4068
        %5425 = vmatpush1.bf16.msra.mxu0 %v4067
        %5426 = vmatprep.subr.bf16.mxu0 %v4080
        %5427 = vmatpush1.bf16.msra.mxu0 %v4079
        %5428 = vmatprep.subr.bf16.mxu0 %v4092
        %5429 = vmatpush1.bf16.msra.mxu0 %v4091
        %5430 = vmatprep.subr.bf16.mxu0 %v4104
        %5431 = vmatpush1.bf16.msra.mxu0 %v4103
        %5432 = vmatprep.subr.bf16.mxu0 %v4116
        %5433 = vmatpush1.bf16.msra.mxu0 %v4115
        %5434 = vmatprep.subr.bf16.mxu0 %v4128
        %5435 = vmatpush1.bf16.msra.mxu0 %v4127
        %5436 = vmatprep.subr.bf16.mxu0 %v4140
        %5437 = vmatpush1.bf16.msra.mxu0 %v4139
        %5438 = vmatprep.subr.bf16.mxu0 %v4152
        %5439 = vmatpush1.bf16.msra.mxu0 %v4151
        %5440 = vmatprep.subr.bf16.mxu0 %v4164
        %5441 = vmatpush1.bf16.msra.mxu0 %v4163
        %5442 = vmatprep.subr.bf16.mxu0 %v4176
        %5443 = vmatpush1.bf16.msra.mxu0 %v4175
        %5444 = vmatprep.subr.bf16.mxu0 %v4188
        %5445 = vmatpush1.bf16.msra.mxu0 %v4187
        %5446 = vmatprep.mubr.bf16.mxu0 %v1114
        %5447 = vmatmul.mubr.bf16.gmra.mrb[0].mxu0 %v1112
        %v5448 = vpop.f32.mrb[0].mxu0
        %v5449 = vadd.f32 %v5408, %v5448
        %v5450 = vpop.f32.mrb[0].mxu0
        %v5451 = vadd.f32 %v5410, %v5450
        %v5452 = vpop.f32.mrb[0].mxu0
        %v5453 = vpop.f32.mrb[0].mxu0
        %5454 = vdwg.mxu0
        %5455 = vmatprep.subr.bf16.mxu0 %v3434
        %5456 = vmatpush1.bf16.msra.mxu0 %v3433
        %5457 = vmatprep.subr.bf16.mxu0 %v3446
        %5458 = vmatpush1.bf16.msra.mxu0 %v3445
        %5459 = vmatprep.subr.bf16.mxu0 %v3458
        %5460 = vmatpush1.bf16.msra.mxu0 %v3457
        %5461 = vmatprep.subr.bf16.mxu0 %v3470
        %5462 = vmatpush1.bf16.msra.mxu0 %v3469
        %5463 = vmatprep.subr.bf16.mxu0 %v3482
        %5464 = vmatpush1.bf16.msra.mxu0 %v3481
        %5465 = vmatprep.subr.bf16.mxu0 %v3494
        %5466 = vmatpush1.bf16.msra.mxu0 %v3493
        %5467 = vmatprep.subr.bf16.mxu0 %v3506
        %5468 = vmatpush1.bf16.msra.mxu0 %v3505
        %5469 = vmatprep.subr.bf16.mxu0 %v3518
        %5470 = vmatpush1.bf16.msra.mxu0 %v3517
        %5471 = vmatprep.subr.bf16.mxu0 %v3530
        %5472 = vmatpush1.bf16.msra.mxu0 %v3529
        %5473 = vmatprep.subr.bf16.mxu0 %v3542
        %5474 = vmatpush1.bf16.msra.mxu0 %v3541
        %5475 = vmatprep.subr.bf16.mxu0 %v3554
        %5476 = vmatpush1.bf16.msra.mxu0 %v3553
        %5477 = vmatprep.subr.bf16.mxu0 %v3566
        %5478 = vmatpush1.bf16.msra.mxu0 %v3565
        %5479 = vmatprep.subr.bf16.mxu0 %v3578
        %5480 = vmatpush1.bf16.msra.mxu0 %v3577
        %5481 = vmatprep.subr.bf16.mxu0 %v3590
        %5482 = vmatpush1.bf16.msra.mxu0 %v3589
        %5483 = vmatprep.subr.bf16.mxu0 %v3602
        %5484 = vmatpush1.bf16.msra.mxu0 %v3601
        %5485 = vmatprep.subr.bf16.mxu0 %v3614
        %5486 = vmatpush1.bf16.msra.mxu0 %v3613
        %5487 = vmatprep.mubr.bf16.mxu0 %v1103
        %5488 = vmatmul.mubr.bf16.gmra.mrb[0].mxu0 %v1089
        %v5489 = vpop.f32.mrb[0].mxu0
        %v5490 = vadd.f32 %v1032, %v5489
        %v5491 = vpop.f32.mrb[0].mxu0
        %v5492 = vadd.f32 %v1036, %v5491
        %v5493 = vpop.f32.mrb[0].mxu0
        %v5494 = vpop.f32.mrb[0].mxu0
        %5495 = vdwg.mxu0
        %5496 = vmatprep.subr.bf16.mxu0 %v3626
        %5497 = vmatpush1.bf16.msra.mxu0 %v3625
        %5498 = vmatprep.subr.bf16.mxu0 %v3638
        %5499 = vmatpush1.bf16.msra.mxu0 %v3637
        %5500 = vmatprep.subr.bf16.mxu0 %v3650
        %5501 = vmatpush1.bf16.msra.mxu0 %v3649
        %5502 = vmatprep.subr.bf16.mxu0 %v3662
        %5503 = vmatpush1.bf16.msra.mxu0 %v3661
        %5504 = vmatprep.subr.bf16.mxu0 %v3674
        %5505 = vmatpush1.bf16.msra.mxu0 %v3673
        %5506 = vmatprep.subr.bf16.mxu0 %v3686
        %5507 = vmatpush1.bf16.msra.mxu0 %v3685
        %5508 = vmatprep.subr.bf16.mxu0 %v3698
        %5509 = vmatpush1.bf16.msra.mxu0 %v3697
        %5510 = vmatprep.subr.bf16.mxu0 %v3710
        %5511 = vmatpush1.bf16.msra.mxu0 %v3709
        %5512 = vmatprep.subr.bf16.mxu0 %v3722
        %5513 = vmatpush1.bf16.msra.mxu0 %v3721
        %5514 = vmatprep.subr.bf16.mxu0 %v3734
        %5515 = vmatpush1.bf16.msra.mxu0 %v3733
        %5516 = vmatprep.subr.bf16.mxu0 %v3746
        %5517 = vmatpush1.bf16.msra.mxu0 %v3745
        %5518 = vmatprep.subr.bf16.mxu0 %v3758
        %5519 = vmatpush1.bf16.msra.mxu0 %v3757
        %5520 = vmatprep.subr.bf16.mxu0 %v3770
        %5521 = vmatpush1.bf16.msra.mxu0 %v3769
        %5522 = vmatprep.subr.bf16.mxu0 %v3782
        %5523 = vmatpush1.bf16.msra.mxu0 %v3781
        %5524 = vmatprep.subr.bf16.mxu0 %v3794
        %5525 = vmatpush1.bf16.msra.mxu0 %v3793
        %5526 = vmatprep.subr.bf16.mxu0 %v3806
        %5527 = vmatpush1.bf16.msra.mxu0 %v3805
        %5528 = vmatprep.mubr.bf16.mxu0 %v1113
        %5529 = vmatmul.mubr.bf16.gmra.mrb[0].mxu0 %v1111
        %v5530 = vpop.f32.mrb[0].mxu0
        %v5531 = vadd.f32 %v5490, %v5530
        %v5532 = vpop.f32.mrb[0].mxu0
        %v5533 = vadd.f32 %v5492, %v5532
        %v5534 = vpop.f32.mrb[0].mxu0
        %v5535 = vpop.f32.mrb[0].mxu0
        %5536 = vdwg.mxu0
        %5537 = vmatprep.subr.bf16.mxu0 %v3818
        %5538 = vmatpush1.bf16.msra.mxu0 %v3817
        %5539 = vmatprep.subr.bf16.mxu0 %v3830
        %5540 = vmatpush1.bf16.msra.mxu0 %v3829
        %5541 = vmatprep.subr.bf16.mxu0 %v3842
        %5542 = vmatpush1.bf16.msra.mxu0 %v3841
        %5543 = vmatprep.subr.bf16.mxu0 %v3854
        %5544 = vmatpush1.bf16.msra.mxu0 %v3853
        %5545 = vmatprep.subr.bf16.mxu0 %v3866
        %5546 = vmatpush1.bf16.msra.mxu0 %v3865
        %5547 = vmatprep.subr.bf16.mxu0 %v3878
        %5548 = vmatpush1.bf16.msra.mxu0 %v3877
        %5549 = vmatprep.subr.bf16.mxu0 %v3890
        %5550 = vmatpush1.bf16.msra.mxu0 %v3889
        %5551 = vmatprep.subr.bf16.mxu0 %v3902
        %5552 = vmatpush1.bf16.msra.mxu0 %v3901
        %5553 = vmatprep.subr.bf16.mxu0 %v3914
        %5554 = vmatpush1.bf16.msra.mxu0 %v3913
        %5555 = vmatprep.subr.bf16.mxu0 %v3926
        %5556 = vmatpush1.bf16.msra.mxu0 %v3925
        %5557 = vmatprep.subr.bf16.mxu0 %v3938
        %5558 = vmatpush1.bf16.msra.mxu0 %v3937
        %5559 = vmatprep.subr.bf16.mxu0 %v3950
        %5560 = vmatpush1.bf16.msra.mxu0 %v3949
        %5561 = vmatprep.subr.bf16.mxu0 %v3962
        %5562 = vmatpush1.bf16.msra.mxu0 %v3961
        %5563 = vmatprep.subr.bf16.mxu0 %v3974
        %5564 = vmatpush1.bf16.msra.mxu0 %v3973
        %5565 = vmatprep.subr.bf16.mxu0 %v3986
        %5566 = vmatpush1.bf16.msra.mxu0 %v3985
        %5567 = vmatprep.subr.bf16.mxu0 %v3998
        %5568 = vmatpush1.bf16.msra.mxu0 %v3997
        %5569 = vmatprep.mubr.bf16.mxu0 %v1110
        %5570 = vmatmul.mubr.bf16.gmra.mrb[0].mxu0 %v1096
        %v5571 = vpop.f32.mrb[0].mxu0
        %v5572 = vadd.f32 %v5531, %v5571
        %v5573 = vpop.f32.mrb[0].mxu0
        %v5574 = vadd.f32 %v5533, %v5573
        %v5575 = vpop.f32.mrb[0].mxu0
        %v5576 = vpop.f32.mrb[0].mxu0
        %5577 = vdwg.mxu0
        %5578 = vmatprep.subr.bf16.mxu0 %v4010
        %5579 = vmatpush1.bf16.msra.mxu0 %v4009
        %5580 = vmatprep.subr.bf16.mxu0 %v4022
        %5581 = vmatpush1.bf16.msra.mxu0 %v4021
        %5582 = vmatprep.subr.bf16.mxu0 %v4034
        %5583 = vmatpush1.bf16.msra.mxu0 %v4033
        %5584 = vmatprep.subr.bf16.mxu0 %v4046
        %5585 = vmatpush1.bf16.msra.mxu0 %v4045
        %5586 = vmatprep.subr.bf16.mxu0 %v4058
        %5587 = vmatpush1.bf16.msra.mxu0 %v4057
        %5588 = vmatprep.subr.bf16.mxu0 %v4070
        %5589 = vmatpush1.bf16.msra.mxu0 %v4069
        %5590 = vmatprep.subr.bf16.mxu0 %v4082
        %5591 = vmatpush1.bf16.msra.mxu0 %v4081
        %5592 = vmatprep.subr.bf16.mxu0 %v4094
        %5593 = vmatpush1.bf16.msra.mxu0 %v4093
        %5594 = vmatprep.subr.bf16.mxu0 %v4106
        %5595 = vmatpush1.bf16.msra.mxu0 %v4105
        %5596 = vmatprep.subr.bf16.mxu0 %v4118
        %5597 = vmatpush1.bf16.msra.mxu0 %v4117
        %5598 = vmatprep.subr.bf16.mxu0 %v4130
        %5599 = vmatpush1.bf16.msra.mxu0 %v4129
        %5600 = vmatprep.subr.bf16.mxu0 %v4142
        %5601 = vmatpush1.bf16.msra.mxu0 %v4141
        %5602 = vmatprep.subr.bf16.mxu0 %v4154
        %5603 = vmatpush1.bf16.msra.mxu0 %v4153
        %5604 = vmatprep.subr.bf16.mxu0 %v4166
        %5605 = vmatpush1.bf16.msra.mxu0 %v4165
        %5606 = vmatprep.subr.bf16.mxu0 %v4178
        %5607 = vmatpush1.bf16.msra.mxu0 %v4177
        %5608 = vmatprep.subr.bf16.mxu0 %v4190
        %5609 = vmatpush1.bf16.msra.mxu0 %v4189
        %5610 = vmatprep.mubr.bf16.mxu0 %v1114
        %5611 = vmatmul.mubr.bf16.gmra.mrb[0].mxu0 %v1112
        %v5612 = vpop.f32.mrb[0].mxu0
        %v5613 = vadd.f32 %v5572, %v5612
        %v5614 = vpop.f32.mrb[0].mxu0
        %v5615 = vadd.f32 %v5574, %v5614
        %v5616 = vpop.f32.mrb[0].mxu0
        %v5617 = vpop.f32.mrb[0].mxu0
        %5618 = vdwg.mxu0
        %5619 = vmatprep.subr.bf16.mxu0 %v3436
        %5620 = vmatpush1.bf16.msra.mxu0 %v3435
        %5621 = vmatprep.subr.bf16.mxu0 %v3448
        %5622 = vmatpush1.bf16.msra.mxu0 %v3447
        %5623 = vmatprep.subr.bf16.mxu0 %v3460
        %5624 = vmatpush1.bf16.msra.mxu0 %v3459
        %5625 = vmatprep.subr.bf16.mxu0 %v3472
        %5626 = vmatpush1.bf16.msra.mxu0 %v3471
        %5627 = vmatprep.subr.bf16.mxu0 %v3484
        %5628 = vmatpush1.bf16.msra.mxu0 %v3483
        %5629 = vmatprep.subr.bf16.mxu0 %v3496
        %5630 = vmatpush1.bf16.msra.mxu0 %v3495
        %5631 = vmatprep.subr.bf16.mxu0 %v3508
        %5632 = vmatpush1.bf16.msra.mxu0 %v3507
        %5633 = vmatprep.subr.bf16.mxu0 %v3520
        %5634 = vmatpush1.bf16.msra.mxu0 %v3519
        %5635 = vmatprep.subr.bf16.mxu0 %v3532
        %5636 = vmatpush1.bf16.msra.mxu0 %v3531
        %5637 = vmatprep.subr.bf16.mxu0 %v3544
        %5638 = vmatpush1.bf16.msra.mxu0 %v3543
        %5639 = vmatprep.subr.bf16.mxu0 %v3556
        %5640 = vmatpush1.bf16.msra.mxu0 %v3555
        %5641 = vmatprep.subr.bf16.mxu0 %v3568
        %5642 = vmatpush1.bf16.msra.mxu0 %v3567
        %5643 = vmatprep.subr.bf16.mxu0 %v3580
        %5644 = vmatpush1.bf16.msra.mxu0 %v3579
        %5645 = vmatprep.subr.bf16.mxu0 %v3592
        %5646 = vmatpush1.bf16.msra.mxu0 %v3591
        %5647 = vmatprep.subr.bf16.mxu0 %v3604
        %5648 = vmatpush1.bf16.msra.mxu0 %v3603
        %5649 = vmatprep.subr.bf16.mxu0 %v3616
        %5650 = vmatpush1.bf16.msra.mxu0 %v3615
        %5651 = vmatprep.mubr.bf16.mxu0 %v1103
        %5652 = vmatmul.mubr.bf16.gmra.mrb[0].mxu0 %v1089
        %v5653 = vpop.f32.mrb[0].mxu0
        %v5654 = vadd.f32 %v1040, %v5653
        %v5655 = vpop.f32.mrb[0].mxu0
        %v5656 = vadd.f32 %v1044, %v5655
        %v5657 = vpop.f32.mrb[0].mxu0
        %v5658 = vpop.f32.mrb[0].mxu0
        %5659 = vdwg.mxu0
        %5660 = vmatprep.subr.bf16.mxu0 %v3628
        %5661 = vmatpush1.bf16.msra.mxu0 %v3627
        %5662 = vmatprep.subr.bf16.mxu0 %v3640
        %5663 = vmatpush1.bf16.msra.mxu0 %v3639
        %5664 = vmatprep.subr.bf16.mxu0 %v3652
        %5665 = vmatpush1.bf16.msra.mxu0 %v3651
        %5666 = vmatprep.subr.bf16.mxu0 %v3664
        %5667 = vmatpush1.bf16.msra.mxu0 %v3663
        %5668 = vmatprep.subr.bf16.mxu0 %v3676
        %5669 = vmatpush1.bf16.msra.mxu0 %v3675
        %5670 = vmatprep.subr.bf16.mxu0 %v3688
        %5671 = vmatpush1.bf16.msra.mxu0 %v3687
        %5672 = vmatprep.subr.bf16.mxu0 %v3700
        %5673 = vmatpush1.bf16.msra.mxu0 %v3699
        %5674 = vmatprep.subr.bf16.mxu0 %v3712
        %5675 = vmatpush1.bf16.msra.mxu0 %v3711
        %5676 = vmatprep.subr.bf16.mxu0 %v3724
        %5677 = vmatpush1.bf16.msra.mxu0 %v3723
        %5678 = vmatprep.subr.bf16.mxu0 %v3736
        %5679 = vmatpush1.bf16.msra.mxu0 %v3735
        %5680 = vmatprep.subr.bf16.mxu0 %v3748
        %5681 = vmatpush1.bf16.msra.mxu0 %v3747
        %5682 = vmatprep.subr.bf16.mxu0 %v3760
        %5683 = vmatpush1.bf16.msra.mxu0 %v3759
        %5684 = vmatprep.subr.bf16.mxu0 %v3772
        %5685 = vmatpush1.bf16.msra.mxu0 %v3771
        %5686 = vmatprep.subr.bf16.mxu0 %v3784
        %5687 = vmatpush1.bf16.msra.mxu0 %v3783
        %5688 = vmatprep.subr.bf16.mxu0 %v3796
        %5689 = vmatpush1.bf16.msra.mxu0 %v3795
        %5690 = vmatprep.subr.bf16.mxu0 %v3808
        %5691 = vmatpush1.bf16.msra.mxu0 %v3807
        %5692 = vmatprep.mubr.bf16.mxu0 %v1113
        %5693 = vmatmul.mubr.bf16.gmra.mrb[0].mxu0 %v1111
        %v5694 = vpop.f32.mrb[0].mxu0
        %v5695 = vadd.f32 %v5654, %v5694
        %v5696 = vpop.f32.mrb[0].mxu0
        %v5697 = vadd.f32 %v5656, %v5696
        %v5698 = vpop.f32.mrb[0].mxu0
        %v5699 = vpop.f32.mrb[0].mxu0
        %5700 = vdwg.mxu0
        %5701 = vmatprep.subr.bf16.mxu0 %v3820
        %5702 = vmatpush1.bf16.msra.mxu0 %v3819
        %5703 = vmatprep.subr.bf16.mxu0 %v3832
        %5704 = vmatpush1.bf16.msra.mxu0 %v3831
        %5705 = vmatprep.subr.bf16.mxu0 %v3844
        %5706 = vmatpush1.bf16.msra.mxu0 %v3843
        %5707 = vmatprep.subr.bf16.mxu0 %v3856
        %5708 = vmatpush1.bf16.msra.mxu0 %v3855
        %5709 = vmatprep.subr.bf16.mxu0 %v3868
        %5710 = vmatpush1.bf16.msra.mxu0 %v3867
        %5711 = vmatprep.subr.bf16.mxu0 %v3880
        %5712 = vmatpush1.bf16.msra.mxu0 %v3879
        %5713 = vmatprep.subr.bf16.mxu0 %v3892
        %5714 = vmatpush1.bf16.msra.mxu0 %v3891
        %5715 = vmatprep.subr.bf16.mxu0 %v3904
        %5716 = vmatpush1.bf16.msra.mxu0 %v3903
        %5717 = vmatprep.subr.bf16.mxu0 %v3916
        %5718 = vmatpush1.bf16.msra.mxu0 %v3915
        %5719 = vmatprep.subr.bf16.mxu0 %v3928
        %5720 = vmatpush1.bf16.msra.mxu0 %v3927
        %5721 = vmatprep.subr.bf16.mxu0 %v3940
        %5722 = vmatpush1.bf16.msra.mxu0 %v3939
        %5723 = vmatprep.subr.bf16.mxu0 %v3952
        %5724 = vmatpush1.bf16.msra.mxu0 %v3951
        %5725 = vmatprep.subr.bf16.mxu0 %v3964
        %5726 = vmatpush1.bf16.msra.mxu0 %v3963
        %5727 = vmatprep.subr.bf16.mxu0 %v3976
        %5728 = vmatpush1.bf16.msra.mxu0 %v3975
        %5729 = vmatprep.subr.bf16.mxu0 %v3988
        %5730 = vmatpush1.bf16.msra.mxu0 %v3987
        %5731 = vmatprep.subr.bf16.mxu0 %v4000
        %5732 = vmatpush1.bf16.msra.mxu0 %v3999
        %5733 = vmatprep.mubr.bf16.mxu0 %v1110
        %5734 = vmatmul.mubr.bf16.gmra.mrb[0].mxu0 %v1096
        %v5735 = vpop.f32.mrb[0].mxu0
        %v5736 = vadd.f32 %v5695, %v5735
        %v5737 = vpop.f32.mrb[0].mxu0
        %v5738 = vadd.f32 %v5697, %v5737
        %v5739 = vpop.f32.mrb[0].mxu0
        %v5740 = vpop.f32.mrb[0].mxu0
        %5741 = vdwg.mxu0
        %5742 = vmatprep.subr.bf16.mxu0 %v4012
        %5743 = vmatpush1.bf16.msra.mxu0 %v4011
        %5744 = vmatprep.subr.bf16.mxu0 %v4024
        %5745 = vmatpush1.bf16.msra.mxu0 %v4023
        %5746 = vmatprep.subr.bf16.mxu0 %v4036
        %5747 = vmatpush1.bf16.msra.mxu0 %v4035
        %5748 = vmatprep.subr.bf16.mxu0 %v4048
        %5749 = vmatpush1.bf16.msra.mxu0 %v4047
        %5750 = vmatprep.subr.bf16.mxu0 %v4060
        %5751 = vmatpush1.bf16.msra.mxu0 %v4059
        %5752 = vmatprep.subr.bf16.mxu0 %v4072
        %5753 = vmatpush1.bf16.msra.mxu0 %v4071
        %5754 = vmatprep.subr.bf16.mxu0 %v4084
        %5755 = vmatpush1.bf16.msra.mxu0 %v4083
        %5756 = vmatprep.subr.bf16.mxu0 %v4096
        %5757 = vmatpush1.bf16.msra.mxu0 %v4095
        %5758 = vmatprep.subr.bf16.mxu0 %v4108
        %5759 = vmatpush1.bf16.msra.mxu0 %v4107
        %5760 = vmatprep.subr.bf16.mxu0 %v4120
        %5761 = vmatpush1.bf16.msra.mxu0 %v4119
        %5762 = vmatprep.subr.bf16.mxu0 %v4132
        %5763 = vmatpush1.bf16.msra.mxu0 %v4131
        %5764 = vmatprep.subr.bf16.mxu0 %v4144
        %5765 = vmatpush1.bf16.msra.mxu0 %v4143
        %5766 = vmatprep.subr.bf16.mxu0 %v4156
        %5767 = vmatpush1.bf16.msra.mxu0 %v4155
        %5768 = vmatprep.subr.bf16.mxu0 %v4168
        %5769 = vmatpush1.bf16.msra.mxu0 %v4167
        %5770 = vmatprep.subr.bf16.mxu0 %v4180
        %5771 = vmatpush1.bf16.msra.mxu0 %v4179
        %5772 = vmatprep.subr.bf16.mxu0 %v4192
        %5773 = vmatpush1.bf16.msra.mxu0 %v4191
        %5774 = vmatprep.mubr.bf16.mxu0 %v1114
        %5775 = vmatmul.mubr.bf16.gmra.mrb[0].mxu0 %v1112
        %v5776 = vpop.f32.mrb[0].mxu0
        %v5777 = vadd.f32 %v5736, %v5776
        %v5778 = vpop.f32.mrb[0].mxu0
        %v5779 = vadd.f32 %v5738, %v5778
        %v5780 = vpop.f32.mrb[0].mxu0
        %v5781 = vpop.f32.mrb[0].mxu0
        %5782 = vdwg.mxu0
        %5783 = vmatprep.subr.bf16.mxu0 %v3438
        %5784 = vmatpush1.bf16.msra.mxu0 %v3437
        %5785 = vmatprep.subr.bf16.mxu0 %v3450
        %5786 = vmatpush1.bf16.msra.mxu0 %v3449
        %5787 = vmatprep.subr.bf16.mxu0 %v3462
        %5788 = vmatpush1.bf16.msra.mxu0 %v3461
        %5789 = vmatprep.subr.bf16.mxu0 %v3474
        %5790 = vmatpush1.bf16.msra.mxu0 %v3473
        %5791 = vmatprep.subr.bf16.mxu0 %v3486
        %5792 = vmatpush1.bf16.msra.mxu0 %v3485
        %5793 = vmatprep.subr.bf16.mxu0 %v3498
        %5794 = vmatpush1.bf16.msra.mxu0 %v3497
        %5795 = vmatprep.subr.bf16.mxu0 %v3510
        %5796 = vmatpush1.bf16.msra.mxu0 %v3509
        %5797 = vmatprep.subr.bf16.mxu0 %v3522
        %5798 = vmatpush1.bf16.msra.mxu0 %v3521
        %5799 = vmatprep.subr.bf16.mxu0 %v3534
        %5800 = vmatpush1.bf16.msra.mxu0 %v3533
        %5801 = vmatprep.subr.bf16.mxu0 %v3546
        %5802 = vmatpush1.bf16.msra.mxu0 %v3545
        %5803 = vmatprep.subr.bf16.mxu0 %v3558
        %5804 = vmatpush1.bf16.msra.mxu0 %v3557
        %5805 = vmatprep.subr.bf16.mxu0 %v3570
        %5806 = vmatpush1.bf16.msra.mxu0 %v3569
        %5807 = vmatprep.subr.bf16.mxu0 %v3582
        %5808 = vmatpush1.bf16.msra.mxu0 %v3581
        %5809 = vmatprep.subr.bf16.mxu0 %v3594
        %5810 = vmatpush1.bf16.msra.mxu0 %v3593
        %5811 = vmatprep.subr.bf16.mxu0 %v3606
        %5812 = vmatpush1.bf16.msra.mxu0 %v3605
        %5813 = vmatprep.subr.bf16.mxu0 %v3618
        %5814 = vmatpush1.bf16.msra.mxu0 %v3617
        %5815 = vmatprep.mubr.bf16.mxu0 %v1103
        %5816 = vmatmul.mubr.bf16.gmra.mrb[0].mxu0 %v1089
        %v5817 = vpop.f32.mrb[0].mxu0
        %v5818 = vadd.f32 %v1048, %v5817
        %v5819 = vpop.f32.mrb[0].mxu0
        %v5820 = vadd.f32 %v1052, %v5819
        %v5821 = vpop.f32.mrb[0].mxu0
        %v5822 = vpop.f32.mrb[0].mxu0
        %5823 = vdwg.mxu0
        %5824 = vmatprep.subr.bf16.mxu0 %v3630
        %5825 = vmatpush1.bf16.msra.mxu0 %v3629
        %5826 = vmatprep.subr.bf16.mxu0 %v3642
        %5827 = vmatpush1.bf16.msra.mxu0 %v3641
        %5828 = vmatprep.subr.bf16.mxu0 %v3654
        %5829 = vmatpush1.bf16.msra.mxu0 %v3653
        %5830 = vmatprep.subr.bf16.mxu0 %v3666
        %5831 = vmatpush1.bf16.msra.mxu0 %v3665
        %5832 = vmatprep.subr.bf16.mxu0 %v3678
        %5833 = vmatpush1.bf16.msra.mxu0 %v3677
        %5834 = vmatprep.subr.bf16.mxu0 %v3690
        %5835 = vmatpush1.bf16.msra.mxu0 %v3689
        %5836 = vmatprep.subr.bf16.mxu0 %v3702
        %5837 = vmatpush1.bf16.msra.mxu0 %v3701
        %5838 = vmatprep.subr.bf16.mxu0 %v3714
        %5839 = vmatpush1.bf16.msra.mxu0 %v3713
        %5840 = vmatprep.subr.bf16.mxu0 %v3726
        %5841 = vmatpush1.bf16.msra.mxu0 %v3725
        %5842 = vmatprep.subr.bf16.mxu0 %v3738
        %5843 = vmatpush1.bf16.msra.mxu0 %v3737
        %5844 = vmatprep.subr.bf16.mxu0 %v3750
        %5845 = vmatpush1.bf16.msra.mxu0 %v3749
        %5846 = vmatprep.subr.bf16.mxu0 %v3762
        %5847 = vmatpush1.bf16.msra.mxu0 %v3761
        %5848 = vmatprep.subr.bf16.mxu0 %v3774
        %5849 = vmatpush1.bf16.msra.mxu0 %v3773
        %5850 = vmatprep.subr.bf16.mxu0 %v3786
        %5851 = vmatpush1.bf16.msra.mxu0 %v3785
        %5852 = vmatprep.subr.bf16.mxu0 %v3798
        %5853 = vmatpush1.bf16.msra.mxu0 %v3797
        %5854 = vmatprep.subr.bf16.mxu0 %v3810
        %5855 = vmatpush1.bf16.msra.mxu0 %v3809
        %5856 = vmatprep.mubr.bf16.mxu0 %v1113
        %5857 = vmatmul.mubr.bf16.gmra.mrb[0].mxu0 %v1111
        %v5858 = vpop.f32.mrb[0].mxu0
        %v5859 = vadd.f32 %v5818, %v5858
        %v5860 = vpop.f32.mrb[0].mxu0
        %v5861 = vadd.f32 %v5820, %v5860
        %v5862 = vpop.f32.mrb[0].mxu0
        %v5863 = vpop.f32.mrb[0].mxu0
        %5864 = vdwg.mxu0
        %5865 = vmatprep.subr.bf16.mxu0 %v3822
        %5866 = vmatpush1.bf16.msra.mxu0 %v3821
        %5867 = vmatprep.subr.bf16.mxu0 %v3834
        %5868 = vmatpush1.bf16.msra.mxu0 %v3833
        %5869 = vmatprep.subr.bf16.mxu0 %v3846
        %5870 = vmatpush1.bf16.msra.mxu0 %v3845
        %5871 = vmatprep.subr.bf16.mxu0 %v3858
        %5872 = vmatpush1.bf16.msra.mxu0 %v3857
        %5873 = vmatprep.subr.bf16.mxu0 %v3870
        %5874 = vmatpush1.bf16.msra.mxu0 %v3869
        %5875 = vmatprep.subr.bf16.mxu0 %v3882
        %5876 = vmatpush1.bf16.msra.mxu0 %v3881
        %5877 = vmatprep.subr.bf16.mxu0 %v3894
        %5878 = vmatpush1.bf16.msra.mxu0 %v3893
        %5879 = vmatprep.subr.bf16.mxu0 %v3906
        %5880 = vmatpush1.bf16.msra.mxu0 %v3905
        %5881 = vmatprep.subr.bf16.mxu0 %v3918
        %5882 = vmatpush1.bf16.msra.mxu0 %v3917
        %5883 = vmatprep.subr.bf16.mxu0 %v3930
        %5884 = vmatpush1.bf16.msra.mxu0 %v3929
        %5885 = vmatprep.subr.bf16.mxu0 %v3942
        %5886 = vmatpush1.bf16.msra.mxu0 %v3941
        %5887 = vmatprep.subr.bf16.mxu0 %v3954
        %5888 = vmatpush1.bf16.msra.mxu0 %v3953
        %5889 = vmatprep.subr.bf16.mxu0 %v3966
        %5890 = vmatpush1.bf16.msra.mxu0 %v3965
        %5891 = vmatprep.subr.bf16.mxu0 %v3978
        %5892 = vmatpush1.bf16.msra.mxu0 %v3977
        %5893 = vmatprep.subr.bf16.mxu0 %v3990
        %5894 = vmatpush1.bf16.msra.mxu0 %v3989
        %5895 = vmatprep.subr.bf16.mxu0 %v4002
        %5896 = vmatpush1.bf16.msra.mxu0 %v4001
        %5897 = vmatprep.mubr.bf16.mxu0 %v1110
        %5898 = vmatmul.mubr.bf16.gmra.mrb[0].mxu0 %v1096
        %v5899 = vpop.f32.mrb[0].mxu0
        %v5900 = vadd.f32 %v5859, %v5899
        %v5901 = vpop.f32.mrb[0].mxu0
        %v5902 = vadd.f32 %v5861, %v5901
        %v5903 = vpop.f32.mrb[0].mxu0
        %v5904 = vpop.f32.mrb[0].mxu0
        %5905 = vdwg.mxu0
        %5906 = vmatprep.subr.bf16.mxu0 %v4014
        %5907 = vmatpush1.bf16.msra.mxu0 %v4013
        %5908 = vmatprep.subr.bf16.mxu0 %v4026
        %5909 = vmatpush1.bf16.msra.mxu0 %v4025
        %5910 = vmatprep.subr.bf16.mxu0 %v4038
        %5911 = vmatpush1.bf16.msra.mxu0 %v4037
        %5912 = vmatprep.subr.bf16.mxu0 %v4050
        %5913 = vmatpush1.bf16.msra.mxu0 %v4049
        %5914 = vmatprep.subr.bf16.mxu0 %v4062
        %5915 = vmatpush1.bf16.msra.mxu0 %v4061
        %5916 = vmatprep.subr.bf16.mxu0 %v4074
        %5917 = vmatpush1.bf16.msra.mxu0 %v4073
        %5918 = vmatprep.subr.bf16.mxu0 %v4086
        %5919 = vmatpush1.bf16.msra.mxu0 %v4085
        %5920 = vmatprep.subr.bf16.mxu0 %v4098
        %5921 = vmatpush1.bf16.msra.mxu0 %v4097
        %5922 = vmatprep.subr.bf16.mxu0 %v4110
        %5923 = vmatpush1.bf16.msra.mxu0 %v4109
        %5924 = vmatprep.subr.bf16.mxu0 %v4122
        %5925 = vmatpush1.bf16.msra.mxu0 %v4121
        %5926 = vmatprep.subr.bf16.mxu0 %v4134
        %5927 = vmatpush1.bf16.msra.mxu0 %v4133
        %5928 = vmatprep.subr.bf16.mxu0 %v4146
        %5929 = vmatpush1.bf16.msra.mxu0 %v4145
        %5930 = vmatprep.subr.bf16.mxu0 %v4158
        %5931 = vmatpush1.bf16.msra.mxu0 %v4157
        %5932 = vmatprep.subr.bf16.mxu0 %v4170
        %5933 = vmatpush1.bf16.msra.mxu0 %v4169
        %5934 = vmatprep.subr.bf16.mxu0 %v4182
        %5935 = vmatpush1.bf16.msra.mxu0 %v4181
        %5936 = vmatprep.subr.bf16.mxu0 %v4194
        %5937 = vmatpush1.bf16.msra.mxu0 %v4193
        %5938 = vmatprep.mubr.bf16.mxu0 %v1114
        %5939 = vmatmul.mubr.bf16.gmra.mrb[0].mxu0 %v1112
        %v5940 = vpop.f32.mrb[0].mxu0
        %v5941 = vadd.f32 %v5900, %v5940
        %v5942 = vpop.f32.mrb[0].mxu0
        %v5943 = vadd.f32 %v5902, %v5942
        %v5944 = vpop.f32.mrb[0].mxu0
        %v5945 = vpop.f32.mrb[0].mxu0
        %5946 = vdwg.mxu0
        %v5959 = vcombine.low %v5121, %v5123
        %v5960 = vcombine.low %v5285, %v5287
        %v5962 = vunpack.c.l.s4 1983009808
        %v5963 = vunpack.c.0.s8 %v5962
        %v5964 = vlaneseq
        %v5965 = vshrl.u32 %v5964, 7
        %v5966 = vsub.s32 %v5963, %v5965
        %v5967 = vrot.slane %v5959, %v5966
        %v5969 = vunpack.c.l.s4 1983009808
        %v5970 = vunpack.c.0.s8 %v5969
        %v5971 = vlaneseq
        %v5972 = vshrl.u32 %v5971, 7
        %v5973 = vsub.s32 %v5970, %v5972
        %v5974 = vrot.slane %v5960, %v5973
        %v5975 = vcombine.low %v5967, %v5974
        %v5976 = vcombine.low %v5449, %v5451
        %v5977 = vcombine.low %v5613, %v5615
        %v5979 = vunpack.c.l.s4 1983009808
        %v5980 = vunpack.c.0.s8 %v5979
        %v5981 = vlaneseq
        %v5982 = vshrl.u32 %v5981, 7
        %v5983 = vsub.s32 %v5980, %v5982
        %v5984 = vrot.slane %v5976, %v5983
        %v5986 = vunpack.c.l.s4 1983009808
        %v5987 = vunpack.c.0.s8 %v5986
        %v5988 = vlaneseq
        %v5989 = vshrl.u32 %v5988, 7
        %v5990 = vsub.s32 %v5987, %v5989
        %v5991 = vrot.slane %v5977, %v5990
        %v5992 = vcombine.low %v5984, %v5991
        %v5993 = vcombine.low %v5777, %v5779
        %v5994 = vcombine.low %v5941, %v5943
        %v5996 = vunpack.c.l.s4 1983009808
        %v5997 = vunpack.c.0.s8 %v5996
        %v5998 = vlaneseq
        %v5999 = vshrl.u32 %v5998, 7
        %v6000 = vsub.s32 %v5997, %v5999
        %v6001 = vrot.slane %v5993, %v6000
        %v6003 = vunpack.c.l.s4 1983009808
        %v6004 = vunpack.c.0.s8 %v6003
        %v6005 = vlaneseq
        %v6006 = vshrl.u32 %v6005, 7
        %v6007 = vsub.s32 %v6004, %v6006
        %v6008 = vrot.slane %v5994, %v6007
        %v6009 = vcombine.low %v6001, %v6008
        %6013 = vst [vmem:[%s230] sm:$0xff] %v5975
        %6014 = vst [vmem:[%s230 + $0x8] sm:$0xff] %v5992
        %6015 = vst [vmem:[%s230 + $0x10] sm:$0xff] %v6009
        %s6016 = smul.u32 12, %s20
        %p6017 = scmp.lt.s32.totalorder %s6016, 47
        %s6018 = scalar_select %p6017, %s6016, 47
        %s6019 = smul.addr %s6018, 2
        %s6020 = scalar_lea.vmem %s3, %s6019
        // Predicated region
        $region41: #{gru_forward.2} parent=31 // pred_check
          %p6021 = pneg %p111
        $region42: #{gru_forward.2} parent=31 // pred_check_branch
          %6023 = sbr.rel (%p6021) target = $region44
        $region43: #{gru_forward.2} parent=31 // pred_region
          %s6024 = smul.u32 12, %s20
        $region44: #{gru_forward.2} parent=31 // pred_fallthru
          _
      $region32: #{gru_forward.2} parent=5 // pred_fallthru
        _
      %p6025 = scmp.le.s32.totalorder 2, %s15
      // Predicated region
      $region45: #{gru_forward.2} parent=5 // pred_check
        %p6026 = pneg %p6025
      $region46: #{gru_forward.2} parent=5 // pred_check_branch
        %6028 = sbr.rel (%p6026) target = $region48
      $region47: #{gru_forward.2} parent=5 // pred_region
        %s6029 = ssub.s32 %s15, 2
        // Predicated region
        $region49: #{gru_forward.2} parent=47 // pred_check
          %p6030 = pneg %p117
        $region50: #{gru_forward.2} parent=47 // pred_check_branch
          %6032 = sbr.rel (%p6030) target = $region52
        $region51: #{gru_forward.2} parent=47 // pred_region
          %s6033 = smul.u32 12, %s21
          %p6034 = scmp.lt.s32.totalorder %s6033, 47
          %s6035 = scalar_select %p6034, %s6033, 47
          %s6036 = smul.addr %s6035, 2
          %s6037 = scalar_lea.vmem %s3, %s6036
        $region52: #{gru_forward.2} parent=47 // pred_fallthru
          _
      $region48: #{gru_forward.2} parent=5 // pred_fallthru
        _
    $region6: #{gru_forward.2} parent=1 // loop_footer
      %s19 = sadd.s32 1, %s15
    $region7: #{gru_forward.2} parent=1 // loop_footer_branch
      %14 = sbr.rel target = $region3
    $region8: #{gru_forward.2} parent=1 // loop_exit
      _
    %6038 = vsyncpa [#allocation3], 1
    %s6039 = scalar_lea.sflag [#allocation3], 1
    %6040 = vsyncpa %s6039, 1
    %6041 = vsyncpa [#allocation5], 1
    %s6042 = scalar_lea.sflag [#allocation5], 1
    %6043 = vsyncpa %s6042, 1

</llo_original>
